<compile_context>
chip_gen: v7x
topology: tpu7x:2x2x1
jax: 0.10.0
libtpu: 0.0.40
codegen_flags: <defaults>
</compile_context>

<pallas_src>
import jax
import jax.numpy as jnp
from jax import lax
from jax.experimental import pallas as pl
from jax.experimental.pallas import tpu as pltpu


def _lstm_step(x, h, c, w_ih_t, w_hh_t, b, H):
    # x: (B, 1); h, c: (B, H); w_ih_t: (1, 4H); w_hh_t: (H, 4H); b: (1, 4H)
    # H is padded to 128, so each gate slice is lane-aligned to a vreg boundary.
    # gate order matches PyTorch: i, f, g, o
    gates = (x * w_ih_t                                  # K == 1 matmul == broadcast
             + jnp.dot(h, w_hh_t, preferred_element_type=jnp.float32)
             + b)
    i = jax.nn.sigmoid(gates[:, 0:H])
    f = jax.nn.sigmoid(gates[:, H:2 * H])
    g = jnp.tanh(gates[:, 2 * H:3 * H])
    o = jax.nn.sigmoid(gates[:, 3 * H:4 * H])
    c_new = f * c + i * g
    h_new = o * jnp.tanh(c_new)
    return h_new, c_new


def ptrnet_kernel(seq_ref, seqm_ref, tgt_ref,
                  e_wih_ref, e_whh_ref, e_b_ref,
                  d_wih_ref, d_whh_ref, d_b_ref,
                  we_ref, be_ref, wd_ref, bd_ref, v_ref,
                  out_ref,
                  h_hist_ref, c_hist_ref, e_slab_ref):
    BT, Le = seq_ref.shape              # batch tile (8 sublanes), encoder length
    Ld = tgt_ref.shape[1]               # decoder length
    Hp = we_ref.shape[0]                # hidden size padded to 128 lanes
    f32 = jnp.float32

    seq = seq_ref[...]                  # (BT, Le)
    tgt = tgt_ref[...]                  # (BT, Ld)
    seqm = seqm_ref[...]                # (1, BT, 1) int32
    e_wih = e_wih_ref[...]
    e_whh = e_whh_ref[...]
    e_b = e_b_ref[...]
    d_wih = d_wih_ref[...]
    d_whh = d_whh_ref[...]
    d_b = d_b_ref[...]
    we_t = we_ref[...]
    be = be_ref[...]
    wd_t = wd_ref[...]
    bd = bd_ref[...]
    v = v_ref[...]                      # (1, Hp), zero in padded lanes

    # ------------------------------ encoder ------------------------------
    # Static unroll (Le is tiny): static lane slice of seq each step, per-step
    # state flushed to VMEM scratch so live ranges stay bounded.
    h = jnp.zeros((BT, Hp), f32)
    c = jnp.zeros((BT, Hp), f32)
    for j in range(Le):
        x_j = seq[:, j:j + 1]                                  # (BT, 1)
        h, c = _lstm_step(x_j, h, c, e_wih, e_whh, e_b, Hp)
        h_hist_ref[j] = h                                      # time-major history
        c_hist_ref[j] = c

    hist = h_hist_ref[...]              # (Le, BT, Hp) == raw encoder outputs
    chist = c_hist_ref[...]

    # decoder initial state = encoder (h, c) at step seq_m[b] - 1
    # (single broadcast compare + multiply + leading-axis reduction)
    step_iota = lax.broadcasted_iota(jnp.int32, (Le, BT, 1), 0)
    sel = (step_iota == (seqm - 1)).astype(f32)                # (Le, BT, 1)
    dh0 = jnp.sum(hist * sel, axis=0)                          # (BT, Hp)
    dc0 = jnp.sum(chist * sel, axis=0)

    # Hoist the e_linear chain off the decoder critical path:
    # e_slab[i] = e_linear^(i+1)(E0), one (Le*BT, Hp) @ (Hp, Hp) matmul per slab.
    def pre_body(i, e_flat):
        e_flat = jnp.dot(e_flat, we_t, preferred_element_type=f32) + be
        e_slab_ref[i] = e_flat.reshape(Le, BT, Hp)
        return e_flat

    lax.fori_loop(0, Ld, pre_body, hist.reshape(Le * BT, Hp), unroll=True)

    # -------------------- loop-invariant decoder constants --------------------
    col_iota = lax.broadcasted_iota(jnp.int32, (BT, Le), 1)
    col_iota_f = col_iota.astype(f32)
    # reproduce in-place mutation seq[:, 0, :] = 0.1 (used for mask + gather)
    seq_mod = jnp.where(col_iota == 0, jnp.float32(0.1), seq)  # (BT, Le)
    nonzero = seq_mod != jnp.float32(0.0)
    big_idx = jnp.full((BT, Le), float(Le), f32)
    tgt0 = tgt[:, 0:1]
    tgt1 = tgt[:, 1:2] if Ld > 1 else tgt0

    # Constant 0/1 matrices that turn the (Le*BT, 1) score column (row = t*BT + b)
    # into a (BT, Le) score matrix with MXU matmuls (layout flip on the otherwise
    # idle MXU instead of an XLU relayout).  BT is a power of two by construction.
    shift = BT.bit_length() - 1
    r_row = lax.broadcasted_iota(jnp.int32, (BT, Le * BT), 1)
    b_row = lax.broadcasted_iota(jnp.int32, (BT, Le * BT), 0)
    gath_b = ((r_row & (BT - 1)) == b_row).astype(f32)             # r % BT == b
    r_col = lax.broadcasted_iota(jnp.int32, (Le * BT, Le), 0)
    t_col = lax.broadcasted_iota(jnp.int32, (Le * BT, Le), 1)
    gath_t = (jnp.right_shift(r_col, shift) == t_col).astype(f32)  # r // BT == t

    # lane-dense output block: zero once, then write 128-wide rows per step
    out_ref[...] = jnp.zeros(out_ref.shape, f32)

    # ------------------------------ decoder ------------------------------
    def dec_body(i, carry):
        dh, dc, d_in = carry
        # teacher forcing on steps 0 and 1, greedy pointer input afterwards
        d_in = jnp.where(i == 0, tgt0, jnp.where(i == 1, tgt1, d_in))
        dh, dc = _lstm_step(d_in, dh, dc, d_wih, d_whh, d_b, Hp)
        d_lin = jnp.dot(dh, wd_t, preferred_element_type=f32) + bd     # (BT, Hp)

        # attention over all encoder positions in one shot
        e_i = e_slab_ref[i]                                    # (Le, BT, Hp)
        a = jnp.tanh(e_i + d_lin[None, :, :])                  # (Le, BT, Hp)
        # v-weighted H reduction as an MXU A @ B^T matvec -> (Le*BT, 1)
        s_col = lax.dot_general(a.reshape(Le * BT, Hp), v,
                                (((1,), (1,)), ((), ())),
                                preferred_element_type=f32)
        # (Le*BT, 1) column -> (BT, Le) scores via the constant gather matmul
        scores = jnp.dot(gath_b, s_col * gath_t,
                         preferred_element_type=f32)           # (BT, Le)

        # additive mask: -1000 where the (mutated) seq value is exactly zero
        masked = jnp.where(nonzero, scores, scores - jnp.float32(1000.0))

        # softmax over encoder positions
        m = jnp.max(masked, axis=1, keepdims=True)
        ex = jnp.exp(masked - m)
        probs = ex / jnp.sum(ex, axis=1, keepdims=True)        # (BT, Le)

        out_ref[i, :, 0:Le] = probs

        # greedy pointer (first max) -> next decoder input from mutated seq
        is_max = masked == m
        idx_f = jnp.min(jnp.where(is_max, col_iota_f, big_idx),
                        axis=1, keepdims=True)                 # (BT, 1)
        onehot = (col_iota_f == idx_f).astype(f32)             # (BT, Le)
        d_in_next = jnp.sum(onehot * seq_mod, axis=1, keepdims=True)   # (BT, 1)
        return dh, dc, d_in_next

    lax.fori_loop(0, Ld, dec_body, (dh0, dc0, tgt0), unroll=True)


def init_params(key, hidden_size, feat_len=1):
    H = hidden_size
    ks = jax.random.split(key, 12)
    s = 1.0 / float(H) ** 0.5
    u = lambda k, shp: jax.random.uniform(k, shp, jnp.float32, -s, s)
    return {
        "e_wih": u(ks[0], (4 * H, feat_len)),
        "e_whh": u(ks[1], (4 * H, H)),
        "e_bih": u(ks[2], (4 * H,)),
        "e_bhh": u(ks[3], (4 * H,)),
        "d_wih": u(ks[4], (4 * H, feat_len)),
        "d_whh": u(ks[5], (4 * H, H)),
        "d_bih": u(ks[6], (4 * H,)),
        "d_bhh": u(ks[7], (4 * H,)),
        "we": u(ks[8], (H, H)),
        "be": u(ks[9], (H,)),
        "wd": u(ks[10], (H, H)),
        "bd": u(ks[11], (H,)),
        "v": jnp.ones((H,), jnp.float32),       # Parameter(torch.ones(H))
    }


def ptrnet_forward(params, seq, seq_m, target):
    B, Le = seq.shape
    _, Ld = target.shape
    H = params["we"].shape[0]
    f32 = jnp.float32

    BT = 8                                            # batch tile (sublanes)
    Hp = max(128, ((H + 127) // 128) * 128)           # hidden padded to full lanes
    Lp = max(128, ((Le + 127) // 128) * 128)          # lane-dense output width
    Bp = ((B + BT - 1) // BT) * BT                    # padded batch

    # ---- glue: zero-pad weights so padded lanes never perturb the real math ----
    def pad_gate_cols(w):                             # (r, 4H) -> (r, 4Hp)
        blocks = [jnp.pad(w[:, g * H:(g + 1) * H], ((0, 0), (0, Hp - H)))
                  for g in range(4)]
        return jnp.concatenate(blocks, axis=1).astype(f32)

    def pack_lstm(w_ih, w_hh, b_ih, b_hh):
        w_ih_t = pad_gate_cols(w_ih.T)                                   # (1, 4Hp)
        w_hh_t = jnp.pad(pad_gate_cols(w_hh.T), ((0, Hp - H), (0, 0)))   # (Hp, 4Hp)
        b = pad_gate_cols((b_ih + b_hh).reshape(1, 4 * H))               # (1, 4Hp)
        return w_ih_t, w_hh_t, b

    e_wih_t, e_whh_t, e_b = pack_lstm(params["e_wih"], params["e_whh"],
                                      params["e_bih"], params["e_bhh"])
    d_wih_t, d_whh_t, d_b = pack_lstm(params["d_wih"], params["d_whh"],
                                      params["d_bih"], params["d_bhh"])
    we_t = jnp.pad(params["we"].T.astype(f32), ((0, Hp - H), (0, Hp - H)))
    wd_t = jnp.pad(params["wd"].T.astype(f32), ((0, Hp - H), (0, Hp - H)))
    be = jnp.pad(params["be"].reshape(1, H).astype(f32), ((0, 0), (0, Hp - H)))
    bd = jnp.pad(params["bd"].reshape(1, H).astype(f32), ((0, 0), (0, Hp - H)))
    v = jnp.pad(params["v"].reshape(1, H).astype(f32), ((0, 0), (0, Hp - H)))

    seq_p = jnp.pad(seq.astype(f32), ((0, Bp - B), (0, 0)))
    tgt_p = jnp.pad(target.astype(f32), ((0, Bp - B), (0, 0)))
    seqm_p = jnp.pad(seq_m.astype(jnp.int32), ((0, Bp - B), (0, 0)),
                     constant_values=1).reshape(1, Bp, 1)

    bcast = lambda b: (0, 0)
    in_specs = [
        pl.BlockSpec((BT, Le), lambda b: (b, 0)),            # seq
        pl.BlockSpec((1, BT, 1), lambda b: (0, b, 0)),       # seq_m
        pl.BlockSpec((BT, Ld), lambda b: (b, 0)),            # target
        pl.BlockSpec((1, 4 * Hp), bcast),                    # encoder w_ih^T
        pl.BlockSpec((Hp, 4 * Hp), bcast),                   # encoder w_hh^T
        pl.BlockSpec((1, 4 * Hp), bcast),                    # encoder bias
        pl.BlockSpec((1, 4 * Hp), bcast),                    # decoder w_ih^T
        pl.BlockSpec((Hp, 4 * Hp), bcast),                   # decoder w_hh^T
        pl.BlockSpec((1, 4 * Hp), bcast),                    # decoder bias
        pl.BlockSpec((Hp, Hp), bcast),                       # e_linear W^T
        pl.BlockSpec((1, Hp), bcast),                        # e_linear b
        pl.BlockSpec((Hp, Hp), bcast),                       # d_linear W^T
        pl.BlockSpec((1, Hp), bcast),                        # d_linear b
        pl.BlockSpec((1, Hp), bcast),                        # v
    ]

    out = pl.pallas_call(
        ptrnet_kernel,
        out_shape=jax.ShapeDtypeStruct((Ld, Bp, Lp), f32),
        grid=(Bp // BT,),                                    # batch tiles -> megacore
        in_specs=in_specs,
        out_specs=pl.BlockSpec((Ld, BT, Lp), lambda b: (0, b, 0)),
        scratch_shapes=[
            pltpu.VMEM((Le, BT, Hp), f32),                   # encoder h history (== e)
            pltpu.VMEM((Le, BT, Hp), f32),                   # encoder c history
            pltpu.VMEM((Ld, Le, BT, Hp), f32),               # e_linear^(i+1)(e) slabs
        ],
        compiler_params=pltpu.CompilerParams(
            dimension_semantics=("parallel",),
            vmem_limit_bytes=32 * 1024 * 1024),
    )(seq_p, seqm_p, tgt_p,
      e_wih_t, e_whh_t, e_b, d_wih_t, d_whh_t, d_b,
      we_t, be, wd_t, bd, v)

    # strip batch / lane padding; (Ld, B, Le) -> (B, Ld, Le) == torch .permute(1,0,2)
    return jnp.transpose(out[:, :B, :Le], (1, 0, 2))


if __name__ == "__main__":
    B, Le, Ld, H = 2, 8, 8, 32          # batch, enc len, dec len, hidden
    key = jax.random.PRNGKey(0)
    kp, k1, k2 = jax.random.split(key, 3)

    params = init_params(kp, H, feat_len=1)

    seq = jax.random.uniform(k1, (B, Le), jnp.float32, 0.5, 1.5)
    lengths = jnp.array([6, 8], dtype=jnp.int32)       # valid lengths per row
    pos = jnp.arange(Le)[None, :]
    seq = jnp.where(pos < lengths[:, None], seq, 0.0)  # zero padding tail
    seq_m = lengths.reshape(B, 1)                      # seq_m[p][0] semantics
    target = jax.random.uniform(k2, (B, Ld), jnp.float32, 0.5, 1.5)

    pointer = ptrnet_forward(params, seq, seq_m, target)
    pointer = jax.block_until_ready(pointer)

    assert pointer.shape == (B, Ld, Le), pointer.shape
    assert bool(jnp.all(jnp.isfinite(pointer)))
    # rows are softmax distributions over encoder positions
    assert bool(jnp.allclose(jnp.sum(pointer, axis=-1), 1.0, atol=1e-5))
    print("KERNEL_OK")
</pallas_src>

<mosaic_0001>
module attributes {stable_mosaic.version = 11 : i64} {
  func.func @ptrnet_kernel(%arg0: i32, %arg1: memref<8x8xf32, #tpu.memory_space<vmem>>, %arg2: memref<1x8x1xi32, #tpu.memory_space<vmem>>, %arg3: memref<8x8xf32, #tpu.memory_space<vmem>>, %arg4: memref<1x512xf32, #tpu.memory_space<vmem>>, %arg5: memref<128x512xf32, #tpu.memory_space<vmem>>, %arg6: memref<1x512xf32, #tpu.memory_space<vmem>>, %arg7: memref<1x512xf32, #tpu.memory_space<vmem>>, %arg8: memref<128x512xf32, #tpu.memory_space<vmem>>, %arg9: memref<1x512xf32, #tpu.memory_space<vmem>>, %arg10: memref<128x128xf32, #tpu.memory_space<vmem>>, %arg11: memref<1x128xf32, #tpu.memory_space<vmem>>, %arg12: memref<128x128xf32, #tpu.memory_space<vmem>>, %arg13: memref<1x128xf32, #tpu.memory_space<vmem>>, %arg14: memref<1x128xf32, #tpu.memory_space<vmem>>, %arg15: memref<8x8x128xf32, #tpu.memory_space<vmem>>, %arg16: memref<8x8x128xf32, #tpu.memory_space<vmem>>, %arg17: memref<8x8x128xf32, #tpu.memory_space<vmem>>, %arg18: memref<8x8x8x128xf32, #tpu.memory_space<vmem>>) attributes {dimension_semantics = [#tpu.dimension_semantics<parallel>], iteration_bounds = array<i64: 1>, scalar_prefetch = 0 : i64, scratch_operands = 3 : i64, tpu.core_type = #tpu.core_type<tc>, window_params = [{transform_indices = @transform_0, window_bounds = array<i64: 8, 8>}, {transform_indices = @transform_1, window_bounds = array<i64: 1, 8, 1>}, {transform_indices = @transform_2, window_bounds = array<i64: 8, 8>}, {pipeline_mode = #tpu.pipeline_mode<synchronous>, transform_indices = @transform_3, window_bounds = array<i64: 1, 512>}, {pipeline_mode = #tpu.pipeline_mode<synchronous>, transform_indices = @transform_4, window_bounds = array<i64: 128, 512>}, {pipeline_mode = #tpu.pipeline_mode<synchronous>, transform_indices = @transform_5, window_bounds = array<i64: 1, 512>}, {pipeline_mode = #tpu.pipeline_mode<synchronous>, transform_indices = @transform_6, window_bounds = array<i64: 1, 512>}, {pipeline_mode = #tpu.pipeline_mode<synchronous>, transform_indices = @transform_7, window_bounds = array<i64: 128, 512>}, {pipeline_mode = #tpu.pipeline_mode<synchronous>, transform_indices = @transform_8, window_bounds = array<i64: 1, 512>}, {pipeline_mode = #tpu.pipeline_mode<synchronous>, transform_indices = @transform_9, window_bounds = array<i64: 128, 128>}, {pipeline_mode = #tpu.pipeline_mode<synchronous>, transform_indices = @transform_10, window_bounds = array<i64: 1, 128>}, {pipeline_mode = #tpu.pipeline_mode<synchronous>, transform_indices = @transform_11, window_bounds = array<i64: 128, 128>}, {pipeline_mode = #tpu.pipeline_mode<synchronous>, transform_indices = @transform_12, window_bounds = array<i64: 1, 128>}, {pipeline_mode = #tpu.pipeline_mode<synchronous>, transform_indices = @transform_13, window_bounds = array<i64: 1, 128>}, {transform_indices = @transform_14, window_bounds = array<i64: 8, 8, 128>}]} {
    %c0 = arith.constant 0 : index
    %c0_0 = arith.constant 0 : index
    %0 = vector.load %arg1[%c0, %c0_0] : memref<8x8xf32, #tpu.memory_space<vmem>>, vector<8x8xf32>
    %c0_1 = arith.constant 0 : index
    %c0_2 = arith.constant 0 : index
    %1 = vector.load %arg3[%c0_1, %c0_2] : memref<8x8xf32, #tpu.memory_space<vmem>>, vector<8x8xf32>
    %c0_3 = arith.constant 0 : index
    %c0_4 = arith.constant 0 : index
    %c0_5 = arith.constant 0 : index
    %2 = vector.load %arg2[%c0_3, %c0_4, %c0_5] : memref<1x8x1xi32, #tpu.memory_space<vmem>>, vector<1x8x1xi32>
    %c0_6 = arith.constant 0 : index
    %c0_7 = arith.constant 0 : index
    %3 = vector.load %arg4[%c0_6, %c0_7] : memref<1x512xf32, #tpu.memory_space<vmem>>, vector<1x512xf32>
    %c0_8 = arith.constant 0 : index
    %c0_9 = arith.constant 0 : index
    %4 = vector.load %arg5[%c0_8, %c0_9] : memref<128x512xf32, #tpu.memory_space<vmem>>, vector<128x512xf32>
    %c0_10 = arith.constant 0 : index
    %c0_11 = arith.constant 0 : index
    %5 = vector.load %arg6[%c0_10, %c0_11] : memref<1x512xf32, #tpu.memory_space<vmem>>, vector<1x512xf32>
    %c0_12 = arith.constant 0 : index
    %c0_13 = arith.constant 0 : index
    %6 = vector.load %arg7[%c0_12, %c0_13] : memref<1x512xf32, #tpu.memory_space<vmem>>, vector<1x512xf32>
    %c0_14 = arith.constant 0 : index
    %c0_15 = arith.constant 0 : index
    %7 = vector.load %arg8[%c0_14, %c0_15] : memref<128x512xf32, #tpu.memory_space<vmem>>, vector<128x512xf32>
    %c0_16 = arith.constant 0 : index
    %c0_17 = arith.constant 0 : index
    %8 = vector.load %arg9[%c0_16, %c0_17] : memref<1x512xf32, #tpu.memory_space<vmem>>, vector<1x512xf32>
    %c0_18 = arith.constant 0 : index
    %c0_19 = arith.constant 0 : index
    %9 = vector.load %arg10[%c0_18, %c0_19] : memref<128x128xf32, #tpu.memory_space<vmem>>, vector<128x128xf32>
    %c0_20 = arith.constant 0 : index
    %c0_21 = arith.constant 0 : index
    %10 = vector.load %arg11[%c0_20, %c0_21] : memref<1x128xf32, #tpu.memory_space<vmem>>, vector<1x128xf32>
    %c0_22 = arith.constant 0 : index
    %c0_23 = arith.constant 0 : index
    %11 = vector.load %arg12[%c0_22, %c0_23] : memref<128x128xf32, #tpu.memory_space<vmem>>, vector<128x128xf32>
    %c0_24 = arith.constant 0 : index
    %c0_25 = arith.constant 0 : index
    %12 = vector.load %arg13[%c0_24, %c0_25] : memref<1x128xf32, #tpu.memory_space<vmem>>, vector<1x128xf32>
    %c0_26 = arith.constant 0 : index
    %c0_27 = arith.constant 0 : index
    %13 = vector.load %arg14[%c0_26, %c0_27] : memref<1x128xf32, #tpu.memory_space<vmem>>, vector<1x128xf32>
    %cst = arith.constant 0.000000e+00 : f32
    %14 = vector.broadcast %cst : f32 to vector<8x128xf32>
    %cst_28 = arith.constant 0.000000e+00 : f32
    %15 = vector.broadcast %cst_28 : f32 to vector<8x128xf32>
    %16 = vector.extract_strided_slice %0 {offsets = [0, 0], sizes = [8, 1], strides = [1, 1]} : vector<8x8xf32> to vector<8x1xf32>
    %17 = vector.broadcast %16 : vector<8x1xf32> to vector<8x512xf32>
    %18 = vector.broadcast %3 : vector<1x512xf32> to vector<8x512xf32>
    %19 = arith.mulf %17, %18 : vector<8x512xf32>
    %cst_29 = arith.constant dense<0.000000e+00> : vector<8x512xf32>
    %20 = tpu.matmul %14, %4, %cst_29 {dimension_numbers = #tpu.dot_dimension_numbers<[1], [0], [0], [1], [0, 0, 1, 1], [], []>} : vector<8x128xf32>, vector<128x512xf32>, vector<8x512xf32> -> vector<8x512xf32>
    %21 = arith.addf %19, %20 : vector<8x512xf32>
    %22 = vector.broadcast %5 : vector<1x512xf32> to vector<8x512xf32>
    %23 = arith.addf %21, %22 : vector<8x512xf32>
    %24 = vector.extract_strided_slice %23 {offsets = [0, 0], sizes = [8, 128], strides = [1, 1]} : vector<8x512xf32> to vector<8x128xf32>
    %25 = arith.negf %24 : vector<8x128xf32>
    %26 = math.exp %25 : vector<8x128xf32>
    %cst_30 = arith.constant 1.000000e+00 : f32
    %27 = vector.broadcast %cst_30 : f32 to vector<8x128xf32>
    %28 = arith.addf %27, %26 : vector<8x128xf32>
    %29 = arith.divf %27, %28 : vector<8x128xf32>
    %30 = vector.extract_strided_slice %23 {offsets = [0, 128], sizes = [8, 128], strides = [1, 1]} : vector<8x512xf32> to vector<8x128xf32>
    %31 = arith.negf %30 : vector<8x128xf32>
    %32 = math.exp %31 : vector<8x128xf32>
    %cst_31 = arith.constant 1.000000e+00 : f32
    %33 = vector.broadcast %cst_31 : f32 to vector<8x128xf32>
    %34 = arith.addf %33, %32 : vector<8x128xf32>
    %35 = arith.divf %33, %34 : vector<8x128xf32>
    %36 = vector.extract_strided_slice %23 {offsets = [0, 256], sizes = [8, 128], strides = [1, 1]} : vector<8x512xf32> to vector<8x128xf32>
    %37 = math.tanh %36 : vector<8x128xf32>
    %38 = vector.extract_strided_slice %23 {offsets = [0, 384], sizes = [8, 128], strides = [1, 1]} : vector<8x512xf32> to vector<8x128xf32>
    %39 = arith.negf %38 : vector<8x128xf32>
    %40 = math.exp %39 : vector<8x128xf32>
    %cst_32 = arith.constant 1.000000e+00 : f32
    %41 = vector.broadcast %cst_32 : f32 to vector<8x128xf32>
    %42 = arith.addf %41, %40 : vector<8x128xf32>
    %43 = arith.divf %41, %42 : vector<8x128xf32>
    %44 = arith.mulf %35, %15 : vector<8x128xf32>
    %45 = arith.mulf %29, %37 : vector<8x128xf32>
    %46 = arith.addf %44, %45 : vector<8x128xf32>
    %47 = math.tanh %46 : vector<8x128xf32>
    %48 = arith.mulf %43, %47 : vector<8x128xf32>
    %c0_33 = arith.constant 0 : index
    %c0_34 = arith.constant 0 : index
    %c0_35 = arith.constant 0 : index
    %49 = vector.load %arg16[%c0_33, %c0_34, %c0_35] : memref<8x8x128xf32, #tpu.memory_space<vmem>>, vector<1x8x128xf32>
    %50 = vector.shape_cast %49 : vector<1x8x128xf32> to vector<8x128xf32>
    %51 = vector.shape_cast %48 : vector<8x128xf32> to vector<1x8x128xf32>
    tpu.vector_store %arg16[%c0_33, %c0_34, %c0_35], %51 {strides = array<i32>} : memref<8x8x128xf32, #tpu.memory_space<vmem>>, vector<1x8x128xf32>,
    %c0_36 = arith.constant 0 : index
    %c0_37 = arith.constant 0 : index
    %c0_38 = arith.constant 0 : index
    %52 = vector.load %arg17[%c0_36, %c0_37, %c0_38] : memref<8x8x128xf32, #tpu.memory_space<vmem>>, vector<1x8x128xf32>
    %53 = vector.shape_cast %52 : vector<1x8x128xf32> to vector<8x128xf32>
    %54 = vector.shape_cast %46 : vector<8x128xf32> to vector<1x8x128xf32>
    tpu.vector_store %arg17[%c0_36, %c0_37, %c0_38], %54 {strides = array<i32>} : memref<8x8x128xf32, #tpu.memory_space<vmem>>, vector<1x8x128xf32>,
    %55 = vector.extract_strided_slice %0 {offsets = [0, 1], sizes = [8, 1], strides = [1, 1]} : vector<8x8xf32> to vector<8x1xf32>
    %56 = vector.broadcast %55 : vector<8x1xf32> to vector<8x512xf32>
    %57 = vector.broadcast %3 : vector<1x512xf32> to vector<8x512xf32>
    %58 = arith.mulf %56, %57 : vector<8x512xf32>
    %cst_39 = arith.constant dense<0.000000e+00> : vector<8x512xf32>
    %59 = tpu.matmul %48, %4, %cst_39 {dimension_numbers = #tpu.dot_dimension_numbers<[1], [0], [0], [1], [0, 0, 1, 1], [], []>} : vector<8x128xf32>, vector<128x512xf32>, vector<8x512xf32> -> vector<8x512xf32>
    %60 = arith.addf %58, %59 : vector<8x512xf32>
    %61 = vector.broadcast %5 : vector<1x512xf32> to vector<8x512xf32>
    %62 = arith.addf %60, %61 : vector<8x512xf32>
    %63 = vector.extract_strided_slice %62 {offsets = [0, 0], sizes = [8, 128], strides = [1, 1]} : vector<8x512xf32> to vector<8x128xf32>
    %64 = arith.negf %63 : vector<8x128xf32>
    %65 = math.exp %64 : vector<8x128xf32>
    %cst_40 = arith.constant 1.000000e+00 : f32
    %66 = vector.broadcast %cst_40 : f32 to vector<8x128xf32>
    %67 = arith.addf %66, %65 : vector<8x128xf32>
    %68 = arith.divf %66, %67 : vector<8x128xf32>
    %69 = vector.extract_strided_slice %62 {offsets = [0, 128], sizes = [8, 128], strides = [1, 1]} : vector<8x512xf32> to vector<8x128xf32>
    %70 = arith.negf %69 : vector<8x128xf32>
    %71 = math.exp %70 : vector<8x128xf32>
    %cst_41 = arith.constant 1.000000e+00 : f32
    %72 = vector.broadcast %cst_41 : f32 to vector<8x128xf32>
    %73 = arith.addf %72, %71 : vector<8x128xf32>
    %74 = arith.divf %72, %73 : vector<8x128xf32>
    %75 = vector.extract_strided_slice %62 {offsets = [0, 256], sizes = [8, 128], strides = [1, 1]} : vector<8x512xf32> to vector<8x128xf32>
    %76 = math.tanh %75 : vector<8x128xf32>
    %77 = vector.extract_strided_slice %62 {offsets = [0, 384], sizes = [8, 128], strides = [1, 1]} : vector<8x512xf32> to vector<8x128xf32>
    %78 = arith.negf %77 : vector<8x128xf32>
    %79 = math.exp %78 : vector<8x128xf32>
    %cst_42 = arith.constant 1.000000e+00 : f32
    %80 = vector.broadcast %cst_42 : f32 to vector<8x128xf32>
    %81 = arith.addf %80, %79 : vector<8x128xf32>
    %82 = arith.divf %80, %81 : vector<8x128xf32>
    %83 = arith.mulf %74, %46 : vector<8x128xf32>
    %84 = arith.mulf %68, %76 : vector<8x128xf32>
    %85 = arith.addf %83, %84 : vector<8x128xf32>
    %86 = math.tanh %85 : vector<8x128xf32>
    %87 = arith.mulf %82, %86 : vector<8x128xf32>
    %c1 = arith.constant 1 : index
    %c0_43 = arith.constant 0 : index
    %c0_44 = arith.constant 0 : index
    %88 = vector.load %arg16[%c1, %c0_43, %c0_44] : memref<8x8x128xf32, #tpu.memory_space<vmem>>, vector<1x8x128xf32>
    %89 = vector.shape_cast %88 : vector<1x8x128xf32> to vector<8x128xf32>
    %90 = vector.shape_cast %87 : vector<8x128xf32> to vector<1x8x128xf32>
    tpu.vector_store %arg16[%c1, %c0_43, %c0_44], %90 {strides = array<i32>} : memref<8x8x128xf32, #tpu.memory_space<vmem>>, vector<1x8x128xf32>,
    %c1_45 = arith.constant 1 : index
    %c0_46 = arith.constant 0 : index
    %c0_47 = arith.constant 0 : index
    %91 = vector.load %arg17[%c1_45, %c0_46, %c0_47] : memref<8x8x128xf32, #tpu.memory_space<vmem>>, vector<1x8x128xf32>
    %92 = vector.shape_cast %91 : vector<1x8x128xf32> to vector<8x128xf32>
    %93 = vector.shape_cast %85 : vector<8x128xf32> to vector<1x8x128xf32>
    tpu.vector_store %arg17[%c1_45, %c0_46, %c0_47], %93 {strides = array<i32>} : memref<8x8x128xf32, #tpu.memory_space<vmem>>, vector<1x8x128xf32>,
    %94 = vector.extract_strided_slice %0 {offsets = [0, 2], sizes = [8, 1], strides = [1, 1]} : vector<8x8xf32> to vector<8x1xf32>
    %95 = vector.broadcast %94 : vector<8x1xf32> to vector<8x512xf32>
    %96 = vector.broadcast %3 : vector<1x512xf32> to vector<8x512xf32>
    %97 = arith.mulf %95, %96 : vector<8x512xf32>
    %cst_48 = arith.constant dense<0.000000e+00> : vector<8x512xf32>
    %98 = tpu.matmul %87, %4, %cst_48 {dimension_numbers = #tpu.dot_dimension_numbers<[1], [0], [0], [1], [0, 0, 1, 1], [], []>} : vector<8x128xf32>, vector<128x512xf32>, vector<8x512xf32> -> vector<8x512xf32>
    %99 = arith.addf %97, %98 : vector<8x512xf32>
    %100 = vector.broadcast %5 : vector<1x512xf32> to vector<8x512xf32>
    %101 = arith.addf %99, %100 : vector<8x512xf32>
    %102 = vector.extract_strided_slice %101 {offsets = [0, 0], sizes = [8, 128], strides = [1, 1]} : vector<8x512xf32> to vector<8x128xf32>
    %103 = arith.negf %102 : vector<8x128xf32>
    %104 = math.exp %103 : vector<8x128xf32>
    %cst_49 = arith.constant 1.000000e+00 : f32
    %105 = vector.broadcast %cst_49 : f32 to vector<8x128xf32>
    %106 = arith.addf %105, %104 : vector<8x128xf32>
    %107 = arith.divf %105, %106 : vector<8x128xf32>
    %108 = vector.extract_strided_slice %101 {offsets = [0, 128], sizes = [8, 128], strides = [1, 1]} : vector<8x512xf32> to vector<8x128xf32>
    %109 = arith.negf %108 : vector<8x128xf32>
    %110 = math.exp %109 : vector<8x128xf32>
    %cst_50 = arith.constant 1.000000e+00 : f32
    %111 = vector.broadcast %cst_50 : f32 to vector<8x128xf32>
    %112 = arith.addf %111, %110 : vector<8x128xf32>
    %113 = arith.divf %111, %112 : vector<8x128xf32>
    %114 = vector.extract_strided_slice %101 {offsets = [0, 256], sizes = [8, 128], strides = [1, 1]} : vector<8x512xf32> to vector<8x128xf32>
    %115 = math.tanh %114 : vector<8x128xf32>
    %116 = vector.extract_strided_slice %101 {offsets = [0, 384], sizes = [8, 128], strides = [1, 1]} : vector<8x512xf32> to vector<8x128xf32>
    %117 = arith.negf %116 : vector<8x128xf32>
    %118 = math.exp %117 : vector<8x128xf32>
    %cst_51 = arith.constant 1.000000e+00 : f32
    %119 = vector.broadcast %cst_51 : f32 to vector<8x128xf32>
    %120 = arith.addf %119, %118 : vector<8x128xf32>
    %121 = arith.divf %119, %120 : vector<8x128xf32>
    %122 = arith.mulf %113, %85 : vector<8x128xf32>
    %123 = arith.mulf %107, %115 : vector<8x128xf32>
    %124 = arith.addf %122, %123 : vector<8x128xf32>
    %125 = math.tanh %124 : vector<8x128xf32>
    %126 = arith.mulf %121, %125 : vector<8x128xf32>
    %c2 = arith.constant 2 : index
    %c0_52 = arith.constant 0 : index
    %c0_53 = arith.constant 0 : index
    %127 = vector.load %arg16[%c2, %c0_52, %c0_53] : memref<8x8x128xf32, #tpu.memory_space<vmem>>, vector<1x8x128xf32>
    %128 = vector.shape_cast %127 : vector<1x8x128xf32> to vector<8x128xf32>
    %129 = vector.shape_cast %126 : vector<8x128xf32> to vector<1x8x128xf32>
    tpu.vector_store %arg16[%c2, %c0_52, %c0_53], %129 {strides = array<i32>} : memref<8x8x128xf32, #tpu.memory_space<vmem>>, vector<1x8x128xf32>,
    %c2_54 = arith.constant 2 : index
    %c0_55 = arith.constant 0 : index
    %c0_56 = arith.constant 0 : index
    %130 = vector.load %arg17[%c2_54, %c0_55, %c0_56] : memref<8x8x128xf32, #tpu.memory_space<vmem>>, vector<1x8x128xf32>
    %131 = vector.shape_cast %130 : vector<1x8x128xf32> to vector<8x128xf32>
    %132 = vector.shape_cast %124 : vector<8x128xf32> to vector<1x8x128xf32>
    tpu.vector_store %arg17[%c2_54, %c0_55, %c0_56], %132 {strides = array<i32>} : memref<8x8x128xf32, #tpu.memory_space<vmem>>, vector<1x8x128xf32>,
    %133 = vector.extract_strided_slice %0 {offsets = [0, 3], sizes = [8, 1], strides = [1, 1]} : vector<8x8xf32> to vector<8x1xf32>
    %134 = vector.broadcast %133 : vector<8x1xf32> to vector<8x512xf32>
    %135 = vector.broadcast %3 : vector<1x512xf32> to vector<8x512xf32>
    %136 = arith.mulf %134, %135 : vector<8x512xf32>
    %cst_57 = arith.constant dense<0.000000e+00> : vector<8x512xf32>
    %137 = tpu.matmul %126, %4, %cst_57 {dimension_numbers = #tpu.dot_dimension_numbers<[1], [0], [0], [1], [0, 0, 1, 1], [], []>} : vector<8x128xf32>, vector<128x512xf32>, vector<8x512xf32> -> vector<8x512xf32>
    %138 = arith.addf %136, %137 : vector<8x512xf32>
    %139 = vector.broadcast %5 : vector<1x512xf32> to vector<8x512xf32>
    %140 = arith.addf %138, %139 : vector<8x512xf32>
    %141 = vector.extract_strided_slice %140 {offsets = [0, 0], sizes = [8, 128], strides = [1, 1]} : vector<8x512xf32> to vector<8x128xf32>
    %142 = arith.negf %141 : vector<8x128xf32>
    %143 = math.exp %142 : vector<8x128xf32>
    %cst_58 = arith.constant 1.000000e+00 : f32
    %144 = vector.broadcast %cst_58 : f32 to vector<8x128xf32>
    %145 = arith.addf %144, %143 : vector<8x128xf32>
    %146 = arith.divf %144, %145 : vector<8x128xf32>
    %147 = vector.extract_strided_slice %140 {offsets = [0, 128], sizes = [8, 128], strides = [1, 1]} : vector<8x512xf32> to vector<8x128xf32>
    %148 = arith.negf %147 : vector<8x128xf32>
    %149 = math.exp %148 : vector<8x128xf32>
    %cst_59 = arith.constant 1.000000e+00 : f32
    %150 = vector.broadcast %cst_59 : f32 to vector<8x128xf32>
    %151 = arith.addf %150, %149 : vector<8x128xf32>
    %152 = arith.divf %150, %151 : vector<8x128xf32>
    %153 = vector.extract_strided_slice %140 {offsets = [0, 256], sizes = [8, 128], strides = [1, 1]} : vector<8x512xf32> to vector<8x128xf32>
    %154 = math.tanh %153 : vector<8x128xf32>
    %155 = vector.extract_strided_slice %140 {offsets = [0, 384], sizes = [8, 128], strides = [1, 1]} : vector<8x512xf32> to vector<8x128xf32>
    %156 = arith.negf %155 : vector<8x128xf32>
    %157 = math.exp %156 : vector<8x128xf32>
    %cst_60 = arith.constant 1.000000e+00 : f32
    %158 = vector.broadcast %cst_60 : f32 to vector<8x128xf32>
    %159 = arith.addf %158, %157 : vector<8x128xf32>
    %160 = arith.divf %158, %159 : vector<8x128xf32>
    %161 = arith.mulf %152, %124 : vector<8x128xf32>
    %162 = arith.mulf %146, %154 : vector<8x128xf32>
    %163 = arith.addf %161, %162 : vector<8x128xf32>
    %164 = math.tanh %163 : vector<8x128xf32>
    %165 = arith.mulf %160, %164 : vector<8x128xf32>
    %c3 = arith.constant 3 : index
    %c0_61 = arith.constant 0 : index
    %c0_62 = arith.constant 0 : index
    %166 = vector.load %arg16[%c3, %c0_61, %c0_62] : memref<8x8x128xf32, #tpu.memory_space<vmem>>, vector<1x8x128xf32>
    %167 = vector.shape_cast %166 : vector<1x8x128xf32> to vector<8x128xf32>
    %168 = vector.shape_cast %165 : vector<8x128xf32> to vector<1x8x128xf32>
    tpu.vector_store %arg16[%c3, %c0_61, %c0_62], %168 {strides = array<i32>} : memref<8x8x128xf32, #tpu.memory_space<vmem>>, vector<1x8x128xf32>,
    %c3_63 = arith.constant 3 : index
    %c0_64 = arith.constant 0 : index
    %c0_65 = arith.constant 0 : index
    %169 = vector.load %arg17[%c3_63, %c0_64, %c0_65] : memref<8x8x128xf32, #tpu.memory_space<vmem>>, vector<1x8x128xf32>
    %170 = vector.shape_cast %169 : vector<1x8x128xf32> to vector<8x128xf32>
    %171 = vector.shape_cast %163 : vector<8x128xf32> to vector<1x8x128xf32>
    tpu.vector_store %arg17[%c3_63, %c0_64, %c0_65], %171 {strides = array<i32>} : memref<8x8x128xf32, #tpu.memory_space<vmem>>, vector<1x8x128xf32>,
    %172 = vector.extract_strided_slice %0 {offsets = [0, 4], sizes = [8, 1], strides = [1, 1]} : vector<8x8xf32> to vector<8x1xf32>
    %173 = vector.broadcast %172 : vector<8x1xf32> to vector<8x512xf32>
    %174 = vector.broadcast %3 : vector<1x512xf32> to vector<8x512xf32>
    %175 = arith.mulf %173, %174 : vector<8x512xf32>
    %cst_66 = arith.constant dense<0.000000e+00> : vector<8x512xf32>
    %176 = tpu.matmul %165, %4, %cst_66 {dimension_numbers = #tpu.dot_dimension_numbers<[1], [0], [0], [1], [0, 0, 1, 1], [], []>} : vector<8x128xf32>, vector<128x512xf32>, vector<8x512xf32> -> vector<8x512xf32>
    %177 = arith.addf %175, %176 : vector<8x512xf32>
    %178 = vector.broadcast %5 : vector<1x512xf32> to vector<8x512xf32>
    %179 = arith.addf %177, %178 : vector<8x512xf32>
    %180 = vector.extract_strided_slice %179 {offsets = [0, 0], sizes = [8, 128], strides = [1, 1]} : vector<8x512xf32> to vector<8x128xf32>
    %181 = arith.negf %180 : vector<8x128xf32>
    %182 = math.exp %181 : vector<8x128xf32>
    %cst_67 = arith.constant 1.000000e+00 : f32
    %183 = vector.broadcast %cst_67 : f32 to vector<8x128xf32>
    %184 = arith.addf %183, %182 : vector<8x128xf32>
    %185 = arith.divf %183, %184 : vector<8x128xf32>
    %186 = vector.extract_strided_slice %179 {offsets = [0, 128], sizes = [8, 128], strides = [1, 1]} : vector<8x512xf32> to vector<8x128xf32>
    %187 = arith.negf %186 : vector<8x128xf32>
    %188 = math.exp %187 : vector<8x128xf32>
    %cst_68 = arith.constant 1.000000e+00 : f32
    %189 = vector.broadcast %cst_68 : f32 to vector<8x128xf32>
    %190 = arith.addf %189, %188 : vector<8x128xf32>
    %191 = arith.divf %189, %190 : vector<8x128xf32>
    %192 = vector.extract_strided_slice %179 {offsets = [0, 256], sizes = [8, 128], strides = [1, 1]} : vector<8x512xf32> to vector<8x128xf32>
    %193 = math.tanh %192 : vector<8x128xf32>
    %194 = vector.extract_strided_slice %179 {offsets = [0, 384], sizes = [8, 128], strides = [1, 1]} : vector<8x512xf32> to vector<8x128xf32>
    %195 = arith.negf %194 : vector<8x128xf32>
    %196 = math.exp %195 : vector<8x128xf32>
    %cst_69 = arith.constant 1.000000e+00 : f32
    %197 = vector.broadcast %cst_69 : f32 to vector<8x128xf32>
    %198 = arith.addf %197, %196 : vector<8x128xf32>
    %199 = arith.divf %197, %198 : vector<8x128xf32>
    %200 = arith.mulf %191, %163 : vector<8x128xf32>
    %201 = arith.mulf %185, %193 : vector<8x128xf32>
    %202 = arith.addf %200, %201 : vector<8x128xf32>
    %203 = math.tanh %202 : vector<8x128xf32>
    %204 = arith.mulf %199, %203 : vector<8x128xf32>
    %c4 = arith.constant 4 : index
    %c0_70 = arith.constant 0 : index
    %c0_71 = arith.constant 0 : index
    %205 = vector.load %arg16[%c4, %c0_70, %c0_71] : memref<8x8x128xf32, #tpu.memory_space<vmem>>, vector<1x8x128xf32>
    %206 = vector.shape_cast %205 : vector<1x8x128xf32> to vector<8x128xf32>
    %207 = vector.shape_cast %204 : vector<8x128xf32> to vector<1x8x128xf32>
    tpu.vector_store %arg16[%c4, %c0_70, %c0_71], %207 {strides = array<i32>} : memref<8x8x128xf32, #tpu.memory_space<vmem>>, vector<1x8x128xf32>,
    %c4_72 = arith.constant 4 : index
    %c0_73 = arith.constant 0 : index
    %c0_74 = arith.constant 0 : index
    %208 = vector.load %arg17[%c4_72, %c0_73, %c0_74] : memref<8x8x128xf32, #tpu.memory_space<vmem>>, vector<1x8x128xf32>
    %209 = vector.shape_cast %208 : vector<1x8x128xf32> to vector<8x128xf32>
    %210 = vector.shape_cast %202 : vector<8x128xf32> to vector<1x8x128xf32>
    tpu.vector_store %arg17[%c4_72, %c0_73, %c0_74], %210 {strides = array<i32>} : memref<8x8x128xf32, #tpu.memory_space<vmem>>, vector<1x8x128xf32>,
    %211 = vector.extract_strided_slice %0 {offsets = [0, 5], sizes = [8, 1], strides = [1, 1]} : vector<8x8xf32> to vector<8x1xf32>
    %212 = vector.broadcast %211 : vector<8x1xf32> to vector<8x512xf32>
    %213 = vector.broadcast %3 : vector<1x512xf32> to vector<8x512xf32>
    %214 = arith.mulf %212, %213 : vector<8x512xf32>
    %cst_75 = arith.constant dense<0.000000e+00> : vector<8x512xf32>
    %215 = tpu.matmul %204, %4, %cst_75 {dimension_numbers = #tpu.dot_dimension_numbers<[1], [0], [0], [1], [0, 0, 1, 1], [], []>} : vector<8x128xf32>, vector<128x512xf32>, vector<8x512xf32> -> vector<8x512xf32>
    %216 = arith.addf %214, %215 : vector<8x512xf32>
    %217 = vector.broadcast %5 : vector<1x512xf32> to vector<8x512xf32>
    %218 = arith.addf %216, %217 : vector<8x512xf32>
    %219 = vector.extract_strided_slice %218 {offsets = [0, 0], sizes = [8, 128], strides = [1, 1]} : vector<8x512xf32> to vector<8x128xf32>
    %220 = arith.negf %219 : vector<8x128xf32>
    %221 = math.exp %220 : vector<8x128xf32>
    %cst_76 = arith.constant 1.000000e+00 : f32
    %222 = vector.broadcast %cst_76 : f32 to vector<8x128xf32>
    %223 = arith.addf %222, %221 : vector<8x128xf32>
    %224 = arith.divf %222, %223 : vector<8x128xf32>
    %225 = vector.extract_strided_slice %218 {offsets = [0, 128], sizes = [8, 128], strides = [1, 1]} : vector<8x512xf32> to vector<8x128xf32>
    %226 = arith.negf %225 : vector<8x128xf32>
    %227 = math.exp %226 : vector<8x128xf32>
    %cst_77 = arith.constant 1.000000e+00 : f32
    %228 = vector.broadcast %cst_77 : f32 to vector<8x128xf32>
    %229 = arith.addf %228, %227 : vector<8x128xf32>
    %230 = arith.divf %228, %229 : vector<8x128xf32>
    %231 = vector.extract_strided_slice %218 {offsets = [0, 256], sizes = [8, 128], strides = [1, 1]} : vector<8x512xf32> to vector<8x128xf32>
    %232 = math.tanh %231 : vector<8x128xf32>
    %233 = vector.extract_strided_slice %218 {offsets = [0, 384], sizes = [8, 128], strides = [1, 1]} : vector<8x512xf32> to vector<8x128xf32>
    %234 = arith.negf %233 : vector<8x128xf32>
    %235 = math.exp %234 : vector<8x128xf32>
    %cst_78 = arith.constant 1.000000e+00 : f32
    %236 = vector.broadcast %cst_78 : f32 to vector<8x128xf32>
    %237 = arith.addf %236, %235 : vector<8x128xf32>
    %238 = arith.divf %236, %237 : vector<8x128xf32>
    %239 = arith.mulf %230, %202 : vector<8x128xf32>
    %240 = arith.mulf %224, %232 : vector<8x128xf32>
    %241 = arith.addf %239, %240 : vector<8x128xf32>
    %242 = math.tanh %241 : vector<8x128xf32>
    %243 = arith.mulf %238, %242 : vector<8x128xf32>
    %c5 = arith.constant 5 : index
    %c0_79 = arith.constant 0 : index
    %c0_80 = arith.constant 0 : index
    %244 = vector.load %arg16[%c5, %c0_79, %c0_80] : memref<8x8x128xf32, #tpu.memory_space<vmem>>, vector<1x8x128xf32>
    %245 = vector.shape_cast %244 : vector<1x8x128xf32> to vector<8x128xf32>
    %246 = vector.shape_cast %243 : vector<8x128xf32> to vector<1x8x128xf32>
    tpu.vector_store %arg16[%c5, %c0_79, %c0_80], %246 {strides = array<i32>} : memref<8x8x128xf32, #tpu.memory_space<vmem>>, vector<1x8x128xf32>,
    %c5_81 = arith.constant 5 : index
    %c0_82 = arith.constant 0 : index
    %c0_83 = arith.constant 0 : index
    %247 = vector.load %arg17[%c5_81, %c0_82, %c0_83] : memref<8x8x128xf32, #tpu.memory_space<vmem>>, vector<1x8x128xf32>
    %248 = vector.shape_cast %247 : vector<1x8x128xf32> to vector<8x128xf32>
    %249 = vector.shape_cast %241 : vector<8x128xf32> to vector<1x8x128xf32>
    tpu.vector_store %arg17[%c5_81, %c0_82, %c0_83], %249 {strides = array<i32>} : memref<8x8x128xf32, #tpu.memory_space<vmem>>, vector<1x8x128xf32>,
    %250 = vector.extract_strided_slice %0 {offsets = [0, 6], sizes = [8, 1], strides = [1, 1]} : vector<8x8xf32> to vector<8x1xf32>
    %251 = vector.broadcast %250 : vector<8x1xf32> to vector<8x512xf32>
    %252 = vector.broadcast %3 : vector<1x512xf32> to vector<8x512xf32>
    %253 = arith.mulf %251, %252 : vector<8x512xf32>
    %cst_84 = arith.constant dense<0.000000e+00> : vector<8x512xf32>
    %254 = tpu.matmul %243, %4, %cst_84 {dimension_numbers = #tpu.dot_dimension_numbers<[1], [0], [0], [1], [0, 0, 1, 1], [], []>} : vector<8x128xf32>, vector<128x512xf32>, vector<8x512xf32> -> vector<8x512xf32>
    %255 = arith.addf %253, %254 : vector<8x512xf32>
    %256 = vector.broadcast %5 : vector<1x512xf32> to vector<8x512xf32>
    %257 = arith.addf %255, %256 : vector<8x512xf32>
    %258 = vector.extract_strided_slice %257 {offsets = [0, 0], sizes = [8, 128], strides = [1, 1]} : vector<8x512xf32> to vector<8x128xf32>
    %259 = arith.negf %258 : vector<8x128xf32>
    %260 = math.exp %259 : vector<8x128xf32>
    %cst_85 = arith.constant 1.000000e+00 : f32
    %261 = vector.broadcast %cst_85 : f32 to vector<8x128xf32>
    %262 = arith.addf %261, %260 : vector<8x128xf32>
    %263 = arith.divf %261, %262 : vector<8x128xf32>
    %264 = vector.extract_strided_slice %257 {offsets = [0, 128], sizes = [8, 128], strides = [1, 1]} : vector<8x512xf32> to vector<8x128xf32>
    %265 = arith.negf %264 : vector<8x128xf32>
    %266 = math.exp %265 : vector<8x128xf32>
    %cst_86 = arith.constant 1.000000e+00 : f32
    %267 = vector.broadcast %cst_86 : f32 to vector<8x128xf32>
    %268 = arith.addf %267, %266 : vector<8x128xf32>
    %269 = arith.divf %267, %268 : vector<8x128xf32>
    %270 = vector.extract_strided_slice %257 {offsets = [0, 256], sizes = [8, 128], strides = [1, 1]} : vector<8x512xf32> to vector<8x128xf32>
    %271 = math.tanh %270 : vector<8x128xf32>
    %272 = vector.extract_strided_slice %257 {offsets = [0, 384], sizes = [8, 128], strides = [1, 1]} : vector<8x512xf32> to vector<8x128xf32>
    %273 = arith.negf %272 : vector<8x128xf32>
    %274 = math.exp %273 : vector<8x128xf32>
    %cst_87 = arith.constant 1.000000e+00 : f32
    %275 = vector.broadcast %cst_87 : f32 to vector<8x128xf32>
    %276 = arith.addf %275, %274 : vector<8x128xf32>
    %277 = arith.divf %275, %276 : vector<8x128xf32>
    %278 = arith.mulf %269, %241 : vector<8x128xf32>
    %279 = arith.mulf %263, %271 : vector<8x128xf32>
    %280 = arith.addf %278, %279 : vector<8x128xf32>
    %281 = math.tanh %280 : vector<8x128xf32>
    %282 = arith.mulf %277, %281 : vector<8x128xf32>
    %c6 = arith.constant 6 : index
    %c0_88 = arith.constant 0 : index
    %c0_89 = arith.constant 0 : index
    %283 = vector.load %arg16[%c6, %c0_88, %c0_89] : memref<8x8x128xf32, #tpu.memory_space<vmem>>, vector<1x8x128xf32>
    %284 = vector.shape_cast %283 : vector<1x8x128xf32> to vector<8x128xf32>
    %285 = vector.shape_cast %282 : vector<8x128xf32> to vector<1x8x128xf32>
    tpu.vector_store %arg16[%c6, %c0_88, %c0_89], %285 {strides = array<i32>} : memref<8x8x128xf32, #tpu.memory_space<vmem>>, vector<1x8x128xf32>,
    %c6_90 = arith.constant 6 : index
    %c0_91 = arith.constant 0 : index
    %c0_92 = arith.constant 0 : index
    %286 = vector.load %arg17[%c6_90, %c0_91, %c0_92] : memref<8x8x128xf32, #tpu.memory_space<vmem>>, vector<1x8x128xf32>
    %287 = vector.shape_cast %286 : vector<1x8x128xf32> to vector<8x128xf32>
    %288 = vector.shape_cast %280 : vector<8x128xf32> to vector<1x8x128xf32>
    tpu.vector_store %arg17[%c6_90, %c0_91, %c0_92], %288 {strides = array<i32>} : memref<8x8x128xf32, #tpu.memory_space<vmem>>, vector<1x8x128xf32>,
    %289 = vector.extract_strided_slice %0 {offsets = [0, 7], sizes = [8, 1], strides = [1, 1]} : vector<8x8xf32> to vector<8x1xf32>
    %290 = vector.broadcast %289 : vector<8x1xf32> to vector<8x512xf32>
    %291 = vector.broadcast %3 : vector<1x512xf32> to vector<8x512xf32>
    %292 = arith.mulf %290, %291 : vector<8x512xf32>
    %cst_93 = arith.constant dense<0.000000e+00> : vector<8x512xf32>
    %293 = tpu.matmul %282, %4, %cst_93 {dimension_numbers = #tpu.dot_dimension_numbers<[1], [0], [0], [1], [0, 0, 1, 1], [], []>} : vector<8x128xf32>, vector<128x512xf32>, vector<8x512xf32> -> vector<8x512xf32>
    %294 = arith.addf %292, %293 : vector<8x512xf32>
    %295 = vector.broadcast %5 : vector<1x512xf32> to vector<8x512xf32>
    %296 = arith.addf %294, %295 : vector<8x512xf32>
    %297 = vector.extract_strided_slice %296 {offsets = [0, 0], sizes = [8, 128], strides = [1, 1]} : vector<8x512xf32> to vector<8x128xf32>
    %298 = arith.negf %297 : vector<8x128xf32>
    %299 = math.exp %298 : vector<8x128xf32>
    %cst_94 = arith.constant 1.000000e+00 : f32
    %300 = vector.broadcast %cst_94 : f32 to vector<8x128xf32>
    %301 = arith.addf %300, %299 : vector<8x128xf32>
    %302 = arith.divf %300, %301 : vector<8x128xf32>
    %303 = vector.extract_strided_slice %296 {offsets = [0, 128], sizes = [8, 128], strides = [1, 1]} : vector<8x512xf32> to vector<8x128xf32>
    %304 = arith.negf %303 : vector<8x128xf32>
    %305 = math.exp %304 : vector<8x128xf32>
    %cst_95 = arith.constant 1.000000e+00 : f32
    %306 = vector.broadcast %cst_95 : f32 to vector<8x128xf32>
    %307 = arith.addf %306, %305 : vector<8x128xf32>
    %308 = arith.divf %306, %307 : vector<8x128xf32>
    %309 = vector.extract_strided_slice %296 {offsets = [0, 256], sizes = [8, 128], strides = [1, 1]} : vector<8x512xf32> to vector<8x128xf32>
    %310 = math.tanh %309 : vector<8x128xf32>
    %311 = vector.extract_strided_slice %296 {offsets = [0, 384], sizes = [8, 128], strides = [1, 1]} : vector<8x512xf32> to vector<8x128xf32>
    %312 = arith.negf %311 : vector<8x128xf32>
    %313 = math.exp %312 : vector<8x128xf32>
    %cst_96 = arith.constant 1.000000e+00 : f32
    %314 = vector.broadcast %cst_96 : f32 to vector<8x128xf32>
    %315 = arith.addf %314, %313 : vector<8x128xf32>
    %316 = arith.divf %314, %315 : vector<8x128xf32>
    %317 = arith.mulf %308, %280 : vector<8x128xf32>
    %318 = arith.mulf %302, %310 : vector<8x128xf32>
    %319 = arith.addf %317, %318 : vector<8x128xf32>
    %320 = math.tanh %319 : vector<8x128xf32>
    %321 = arith.mulf %316, %320 : vector<8x128xf32>
    %c7 = arith.constant 7 : index
    %c0_97 = arith.constant 0 : index
    %c0_98 = arith.constant 0 : index
    %322 = vector.load %arg16[%c7, %c0_97, %c0_98] : memref<8x8x128xf32, #tpu.memory_space<vmem>>, vector<1x8x128xf32>
    %323 = vector.shape_cast %322 : vector<1x8x128xf32> to vector<8x128xf32>
    %324 = vector.shape_cast %321 : vector<8x128xf32> to vector<1x8x128xf32>
    tpu.vector_store %arg16[%c7, %c0_97, %c0_98], %324 {strides = array<i32>} : memref<8x8x128xf32, #tpu.memory_space<vmem>>, vector<1x8x128xf32>,
    %c7_99 = arith.constant 7 : index
    %c0_100 = arith.constant 0 : index
    %c0_101 = arith.constant 0 : index
    %325 = vector.load %arg17[%c7_99, %c0_100, %c0_101] : memref<8x8x128xf32, #tpu.memory_space<vmem>>, vector<1x8x128xf32>
    %326 = vector.shape_cast %325 : vector<1x8x128xf32> to vector<8x128xf32>
    %327 = vector.shape_cast %319 : vector<8x128xf32> to vector<1x8x128xf32>
    tpu.vector_store %arg17[%c7_99, %c0_100, %c0_101], %327 {strides = array<i32>} : memref<8x8x128xf32, #tpu.memory_space<vmem>>, vector<1x8x128xf32>,
    %c0_102 = arith.constant 0 : index
    %c0_103 = arith.constant 0 : index
    %c0_104 = arith.constant 0 : index
    %328 = vector.load %arg16[%c0_102, %c0_103, %c0_104] : memref<8x8x128xf32, #tpu.memory_space<vmem>>, vector<8x8x128xf32>
    %c0_105 = arith.constant 0 : index
    %c0_106 = arith.constant 0 : index
    %c0_107 = arith.constant 0 : index
    %329 = vector.load %arg17[%c0_105, %c0_106, %c0_107] : memref<8x8x128xf32, #tpu.memory_space<vmem>>, vector<8x8x128xf32>
    %330 = tpu.iota {dimensions = array<i32: 0>} : vector<8x8x1xi32>
    %c1_i32 = arith.constant 1 : i32
    %331 = vector.broadcast %c1_i32 : i32 to vector<1x8x1xi32>
    %332 = arith.subi %2, %331 : vector<1x8x1xi32>
    %333 = vector.broadcast %332 : vector<1x8x1xi32> to vector<8x8x1xi32>
    %334 = arith.cmpi eq, %330, %333 : vector<8x8x1xi32>
    %335 = arith.extui %334 : vector<8x8x1xi1> to vector<8x8x1xi32>
    %336 = arith.sitofp %335 : vector<8x8x1xi32> to vector<8x8x1xf32>
    %337 = vector.broadcast %336 : vector<8x8x1xf32> to vector<8x8x128xf32>
    %338 = arith.mulf %328, %337 : vector<8x8x128xf32>
    %cst_108 = arith.constant dense<0.000000e+00> : vector<8x128xf32>
    %339 = vector.multi_reduction <add>, %338, %cst_108 [0] : vector<8x8x128xf32> to vector<8x128xf32>
    %340 = vector.broadcast %336 : vector<8x8x1xf32> to vector<8x8x128xf32>
    %341 = arith.mulf %329, %340 : vector<8x8x128xf32>
    %cst_109 = arith.constant dense<0.000000e+00> : vector<8x128xf32>
    %342 = vector.multi_reduction <add>, %341, %cst_109 [0] : vector<8x8x128xf32> to vector<8x128xf32>
    %343 = vector.shape_cast %328 : vector<8x8x128xf32> to vector<64x128xf32>
    %c0_i32 = arith.constant 0 : i32
    %cst_110 = arith.constant dense<0.000000e+00> : vector<64x128xf32>
    %344 = tpu.matmul %343, %9, %cst_110 {dimension_numbers = #tpu.dot_dimension_numbers<[1], [0], [0], [1], [0, 0, 1, 1], [], []>} : vector<64x128xf32>, vector<128x128xf32>, vector<64x128xf32> -> vector<64x128xf32>
    %345 = vector.broadcast %10 : vector<1x128xf32> to vector<64x128xf32>
    %346 = arith.addf %344, %345 : vector<64x128xf32>
    %347 = vector.shape_cast %346 : vector<64x128xf32> to vector<8x8x128xf32>
    %348 = arith.index_cast %c0_i32 : i32 to index
    %c0_111 = arith.constant 0 : index
    %c0_112 = arith.constant 0 : index
    %c0_113 = arith.constant 0 : index
    %349 = vector.load %arg18[%348, %c0_111, %c0_112, %c0_113] : memref<8x8x8x128xf32, #tpu.memory_space<vmem>>, vector<1x8x8x128xf32>
    %350 = vector.shape_cast %349 : vector<1x8x8x128xf32> to vector<8x8x128xf32>
    %351 = vector.shape_cast %347 : vector<8x8x128xf32> to vector<1x8x8x128xf32>
    tpu.vector_store %arg18[%348, %c0_111, %c0_112, %c0_113], %351 {strides = array<i32>} : memref<8x8x8x128xf32, #tpu.memory_space<vmem>>, vector<1x8x8x128xf32>,
    %c1_i32_114 = arith.constant 1 : i32
    %cst_115 = arith.constant dense<0.000000e+00> : vector<64x128xf32>
    %352 = tpu.matmul %346, %9, %cst_115 {dimension_numbers = #tpu.dot_dimension_numbers<[1], [0], [0], [1], [0, 0, 1, 1], [], []>} : vector<64x128xf32>, vector<128x128xf32>, vector<64x128xf32> -> vector<64x128xf32>
    %353 = vector.broadcast %10 : vector<1x128xf32> to vector<64x128xf32>
    %354 = arith.addf %352, %353 : vector<64x128xf32>
    %355 = vector.shape_cast %354 : vector<64x128xf32> to vector<8x8x128xf32>
    %356 = arith.index_cast %c1_i32_114 : i32 to index
    %c0_116 = arith.constant 0 : index
    %c0_117 = arith.constant 0 : index
    %c0_118 = arith.constant 0 : index
    %357 = vector.load %arg18[%356, %c0_116, %c0_117, %c0_118] : memref<8x8x8x128xf32, #tpu.memory_space<vmem>>, vector<1x8x8x128xf32>
    %358 = vector.shape_cast %357 : vector<1x8x8x128xf32> to vector<8x8x128xf32>
    %359 = vector.shape_cast %355 : vector<8x8x128xf32> to vector<1x8x8x128xf32>
    tpu.vector_store %arg18[%356, %c0_116, %c0_117, %c0_118], %359 {strides = array<i32>} : memref<8x8x8x128xf32, #tpu.memory_space<vmem>>, vector<1x8x8x128xf32>,
    %c2_i32 = arith.constant 2 : i32
    %cst_119 = arith.constant dense<0.000000e+00> : vector<64x128xf32>
    %360 = tpu.matmul %354, %9, %cst_119 {dimension_numbers = #tpu.dot_dimension_numbers<[1], [0], [0], [1], [0, 0, 1, 1], [], []>} : vector<64x128xf32>, vector<128x128xf32>, vector<64x128xf32> -> vector<64x128xf32>
    %361 = vector.broadcast %10 : vector<1x128xf32> to vector<64x128xf32>
    %362 = arith.addf %360, %361 : vector<64x128xf32>
    %363 = vector.shape_cast %362 : vector<64x128xf32> to vector<8x8x128xf32>
    %364 = arith.index_cast %c2_i32 : i32 to index
    %c0_120 = arith.constant 0 : index
    %c0_121 = arith.constant 0 : index
    %c0_122 = arith.constant 0 : index
    %365 = vector.load %arg18[%364, %c0_120, %c0_121, %c0_122] : memref<8x8x8x128xf32, #tpu.memory_space<vmem>>, vector<1x8x8x128xf32>
    %366 = vector.shape_cast %365 : vector<1x8x8x128xf32> to vector<8x8x128xf32>
    %367 = vector.shape_cast %363 : vector<8x8x128xf32> to vector<1x8x8x128xf32>
    tpu.vector_store %arg18[%364, %c0_120, %c0_121, %c0_122], %367 {strides = array<i32>} : memref<8x8x8x128xf32, #tpu.memory_space<vmem>>, vector<1x8x8x128xf32>,
    %c3_i32 = arith.constant 3 : i32
    %cst_123 = arith.constant dense<0.000000e+00> : vector<64x128xf32>
    %368 = tpu.matmul %362, %9, %cst_123 {dimension_numbers = #tpu.dot_dimension_numbers<[1], [0], [0], [1], [0, 0, 1, 1], [], []>} : vector<64x128xf32>, vector<128x128xf32>, vector<64x128xf32> -> vector<64x128xf32>
    %369 = vector.broadcast %10 : vector<1x128xf32> to vector<64x128xf32>
    %370 = arith.addf %368, %369 : vector<64x128xf32>
    %371 = vector.shape_cast %370 : vector<64x128xf32> to vector<8x8x128xf32>
    %372 = arith.index_cast %c3_i32 : i32 to index
    %c0_124 = arith.constant 0 : index
    %c0_125 = arith.constant 0 : index
    %c0_126 = arith.constant 0 : index
    %373 = vector.load %arg18[%372, %c0_124, %c0_125, %c0_126] : memref<8x8x8x128xf32, #tpu.memory_space<vmem>>, vector<1x8x8x128xf32>
    %374 = vector.shape_cast %373 : vector<1x8x8x128xf32> to vector<8x8x128xf32>
    %375 = vector.shape_cast %371 : vector<8x8x128xf32> to vector<1x8x8x128xf32>
    tpu.vector_store %arg18[%372, %c0_124, %c0_125, %c0_126], %375 {strides = array<i32>} : memref<8x8x8x128xf32, #tpu.memory_space<vmem>>, vector<1x8x8x128xf32>,
    %c4_i32 = arith.constant 4 : i32
    %cst_127 = arith.constant dense<0.000000e+00> : vector<64x128xf32>
    %376 = tpu.matmul %370, %9, %cst_127 {dimension_numbers = #tpu.dot_dimension_numbers<[1], [0], [0], [1], [0, 0, 1, 1], [], []>} : vector<64x128xf32>, vector<128x128xf32>, vector<64x128xf32> -> vector<64x128xf32>
    %377 = vector.broadcast %10 : vector<1x128xf32> to vector<64x128xf32>
    %378 = arith.addf %376, %377 : vector<64x128xf32>
    %379 = vector.shape_cast %378 : vector<64x128xf32> to vector<8x8x128xf32>
    %380 = arith.index_cast %c4_i32 : i32 to index
    %c0_128 = arith.constant 0 : index
    %c0_129 = arith.constant 0 : index
    %c0_130 = arith.constant 0 : index
    %381 = vector.load %arg18[%380, %c0_128, %c0_129, %c0_130] : memref<8x8x8x128xf32, #tpu.memory_space<vmem>>, vector<1x8x8x128xf32>
    %382 = vector.shape_cast %381 : vector<1x8x8x128xf32> to vector<8x8x128xf32>
    %383 = vector.shape_cast %379 : vector<8x8x128xf32> to vector<1x8x8x128xf32>
    tpu.vector_store %arg18[%380, %c0_128, %c0_129, %c0_130], %383 {strides = array<i32>} : memref<8x8x8x128xf32, #tpu.memory_space<vmem>>, vector<1x8x8x128xf32>,
    %c5_i32 = arith.constant 5 : i32
    %cst_131 = arith.constant dense<0.000000e+00> : vector<64x128xf32>
    %384 = tpu.matmul %378, %9, %cst_131 {dimension_numbers = #tpu.dot_dimension_numbers<[1], [0], [0], [1], [0, 0, 1, 1], [], []>} : vector<64x128xf32>, vector<128x128xf32>, vector<64x128xf32> -> vector<64x128xf32>
    %385 = vector.broadcast %10 : vector<1x128xf32> to vector<64x128xf32>
    %386 = arith.addf %384, %385 : vector<64x128xf32>
    %387 = vector.shape_cast %386 : vector<64x128xf32> to vector<8x8x128xf32>
    %388 = arith.index_cast %c5_i32 : i32 to index
    %c0_132 = arith.constant 0 : index
    %c0_133 = arith.constant 0 : index
    %c0_134 = arith.constant 0 : index
    %389 = vector.load %arg18[%388, %c0_132, %c0_133, %c0_134] : memref<8x8x8x128xf32, #tpu.memory_space<vmem>>, vector<1x8x8x128xf32>
    %390 = vector.shape_cast %389 : vector<1x8x8x128xf32> to vector<8x8x128xf32>
    %391 = vector.shape_cast %387 : vector<8x8x128xf32> to vector<1x8x8x128xf32>
    tpu.vector_store %arg18[%388, %c0_132, %c0_133, %c0_134], %391 {strides = array<i32>} : memref<8x8x8x128xf32, #tpu.memory_space<vmem>>, vector<1x8x8x128xf32>,
    %c6_i32 = arith.constant 6 : i32
    %cst_135 = arith.constant dense<0.000000e+00> : vector<64x128xf32>
    %392 = tpu.matmul %386, %9, %cst_135 {dimension_numbers = #tpu.dot_dimension_numbers<[1], [0], [0], [1], [0, 0, 1, 1], [], []>} : vector<64x128xf32>, vector<128x128xf32>, vector<64x128xf32> -> vector<64x128xf32>
    %393 = vector.broadcast %10 : vector<1x128xf32> to vector<64x128xf32>
    %394 = arith.addf %392, %393 : vector<64x128xf32>
    %395 = vector.shape_cast %394 : vector<64x128xf32> to vector<8x8x128xf32>
    %396 = arith.index_cast %c6_i32 : i32 to index
    %c0_136 = arith.constant 0 : index
    %c0_137 = arith.constant 0 : index
    %c0_138 = arith.constant 0 : index
    %397 = vector.load %arg18[%396, %c0_136, %c0_137, %c0_138] : memref<8x8x8x128xf32, #tpu.memory_space<vmem>>, vector<1x8x8x128xf32>
    %398 = vector.shape_cast %397 : vector<1x8x8x128xf32> to vector<8x8x128xf32>
    %399 = vector.shape_cast %395 : vector<8x8x128xf32> to vector<1x8x8x128xf32>
    tpu.vector_store %arg18[%396, %c0_136, %c0_137, %c0_138], %399 {strides = array<i32>} : memref<8x8x8x128xf32, #tpu.memory_space<vmem>>, vector<1x8x8x128xf32>,
    %c7_i32 = arith.constant 7 : i32
    %cst_139 = arith.constant dense<0.000000e+00> : vector<64x128xf32>
    %400 = tpu.matmul %394, %9, %cst_139 {dimension_numbers = #tpu.dot_dimension_numbers<[1], [0], [0], [1], [0, 0, 1, 1], [], []>} : vector<64x128xf32>, vector<128x128xf32>, vector<64x128xf32> -> vector<64x128xf32>
    %401 = vector.broadcast %10 : vector<1x128xf32> to vector<64x128xf32>
    %402 = arith.addf %400, %401 : vector<64x128xf32>
    %403 = vector.shape_cast %402 : vector<64x128xf32> to vector<8x8x128xf32>
    %404 = arith.index_cast %c7_i32 : i32 to index
    %c0_140 = arith.constant 0 : index
    %c0_141 = arith.constant 0 : index
    %c0_142 = arith.constant 0 : index
    %405 = vector.load %arg18[%404, %c0_140, %c0_141, %c0_142] : memref<8x8x8x128xf32, #tpu.memory_space<vmem>>, vector<1x8x8x128xf32>
    %406 = vector.shape_cast %405 : vector<1x8x8x128xf32> to vector<8x8x128xf32>
    %407 = vector.shape_cast %403 : vector<8x8x128xf32> to vector<1x8x8x128xf32>
    tpu.vector_store %arg18[%404, %c0_140, %c0_141, %c0_142], %407 {strides = array<i32>} : memref<8x8x8x128xf32, #tpu.memory_space<vmem>>, vector<1x8x8x128xf32>,
    %c8_i32 = arith.constant 8 : i32
    %408 = tpu.iota {dimensions = array<i32: 1>} : vector<8x8xi32>
    %409 = arith.sitofp %408 : vector<8x8xi32> to vector<8x8xf32>
    %c0_i32_143 = arith.constant 0 : i32
    %410 = vector.broadcast %c0_i32_143 : i32 to vector<8x8xi32>
    %411 = arith.cmpi eq, %408, %410 : vector<8x8xi32>
    %cst_144 = arith.constant 1.000000e-01 : f32
    %412 = vector.broadcast %cst_144 : f32 to vector<8x8xf32>
    %413 = arith.select %411, %412, %0 : vector<8x8xi1>, vector<8x8xf32>
    %cst_145 = arith.constant 0.000000e+00 : f32
    %414 = vector.broadcast %cst_145 : f32 to vector<8x8xf32>
    %415 = arith.cmpf one, %413, %414 : vector<8x8xf32>
    %cst_146 = arith.constant 8.000000e+00 : f32
    %416 = vector.broadcast %cst_146 : f32 to vector<8x8xf32>
    %417 = vector.extract_strided_slice %1 {offsets = [0, 0], sizes = [8, 1], strides = [1, 1]} : vector<8x8xf32> to vector<8x1xf32>
    %418 = vector.extract_strided_slice %1 {offsets = [0, 1], sizes = [8, 1], strides = [1, 1]} : vector<8x8xf32> to vector<8x1xf32>
    %419 = tpu.iota {dimensions = array<i32: 1>} : vector<8x64xi32>
    %420 = tpu.iota {dimensions = array<i32: 0>} : vector<8x64xi32>
    %c7_i32_147 = arith.constant 7 : i32
    %421 = vector.broadcast %c7_i32_147 : i32 to vector<8x64xi32>
    %422 = arith.andi %419, %421 : vector<8x64xi32>
    %423 = arith.cmpi eq, %422, %420 : vector<8x64xi32>
    %424 = arith.extui %423 : vector<8x64xi1> to vector<8x64xi32>
    %425 = arith.sitofp %424 : vector<8x64xi32> to vector<8x64xf32>
    %426 = tpu.iota {dimensions = array<i32: 0>} : vector<64x8xi32>
    %427 = tpu.iota {dimensions = array<i32: 1>} : vector<64x8xi32>
    %c3_i32_148 = arith.constant 3 : i32
    %428 = vector.broadcast %c3_i32_148 : i32 to vector<64x8xi32>
    %429 = arith.shrsi %426, %428 : vector<64x8xi32>
    %430 = arith.cmpi eq, %429, %427 : vector<64x8xi32>
    %431 = arith.extui %430 : vector<64x8xi1> to vector<64x8xi32>
    %432 = arith.sitofp %431 : vector<64x8xi32> to vector<64x8xf32>
    %cst_149 = arith.constant 0.000000e+00 : f32
    %433 = vector.broadcast %cst_149 : f32 to vector<8x8x128xf32>
    %c0_150 = arith.constant 0 : index
    %c0_151 = arith.constant 0 : index
    %c0_152 = arith.constant 0 : index
    %434 = vector.load %arg15[%c0_150, %c0_151, %c0_152] : memref<8x8x128xf32, #tpu.memory_space<vmem>>, vector<8x8x128xf32>
    tpu.vector_store %arg15[%c0_150, %c0_151, %c0_152], %433 {strides = array<i32>} : memref<8x8x128xf32, #tpu.memory_space<vmem>>, vector<8x8x128xf32>,
    %c0_i32_153 = arith.constant 0 : i32
    %c0_i32_154 = arith.constant 0 : i32
    %435 = arith.cmpi eq, %c0_i32_153, %c0_i32_154 : i32
    %c1_i32_155 = arith.constant 1 : i32
    %436 = arith.cmpi eq, %c0_i32_153, %c1_i32_155 : i32
    %437 = arith.select %436, %418, %417 : vector<8x1xf32>
    %438 = arith.select %435, %417, %437 : vector<8x1xf32>
    %439 = vector.broadcast %438 : vector<8x1xf32> to vector<8x512xf32>
    %440 = vector.broadcast %6 : vector<1x512xf32> to vector<8x512xf32>
    %441 = arith.mulf %439, %440 : vector<8x512xf32>
    %cst_156 = arith.constant dense<0.000000e+00> : vector<8x512xf32>
    %442 = tpu.matmul %339, %7, %cst_156 {dimension_numbers = #tpu.dot_dimension_numbers<[1], [0], [0], [1], [0, 0, 1, 1], [], []>} : vector<8x128xf32>, vector<128x512xf32>, vector<8x512xf32> -> vector<8x512xf32>
    %443 = arith.addf %441, %442 : vector<8x512xf32>
    %444 = vector.broadcast %8 : vector<1x512xf32> to vector<8x512xf32>
    %445 = arith.addf %443, %444 : vector<8x512xf32>
    %446 = vector.extract_strided_slice %445 {offsets = [0, 0], sizes = [8, 128], strides = [1, 1]} : vector<8x512xf32> to vector<8x128xf32>
    %447 = arith.negf %446 : vector<8x128xf32>
    %448 = math.exp %447 : vector<8x128xf32>
    %cst_157 = arith.constant 1.000000e+00 : f32
    %449 = vector.broadcast %cst_157 : f32 to vector<8x128xf32>
    %450 = arith.addf %449, %448 : vector<8x128xf32>
    %451 = arith.divf %449, %450 : vector<8x128xf32>
    %452 = vector.extract_strided_slice %445 {offsets = [0, 128], sizes = [8, 128], strides = [1, 1]} : vector<8x512xf32> to vector<8x128xf32>
    %453 = arith.negf %452 : vector<8x128xf32>
    %454 = math.exp %453 : vector<8x128xf32>
    %cst_158 = arith.constant 1.000000e+00 : f32
    %455 = vector.broadcast %cst_158 : f32 to vector<8x128xf32>
    %456 = arith.addf %455, %454 : vector<8x128xf32>
    %457 = arith.divf %455, %456 : vector<8x128xf32>
    %458 = vector.extract_strided_slice %445 {offsets = [0, 256], sizes = [8, 128], strides = [1, 1]} : vector<8x512xf32> to vector<8x128xf32>
    %459 = math.tanh %458 : vector<8x128xf32>
    %460 = vector.extract_strided_slice %445 {offsets = [0, 384], sizes = [8, 128], strides = [1, 1]} : vector<8x512xf32> to vector<8x128xf32>
    %461 = arith.negf %460 : vector<8x128xf32>
    %462 = math.exp %461 : vector<8x128xf32>
    %cst_159 = arith.constant 1.000000e+00 : f32
    %463 = vector.broadcast %cst_159 : f32 to vector<8x128xf32>
    %464 = arith.addf %463, %462 : vector<8x128xf32>
    %465 = arith.divf %463, %464 : vector<8x128xf32>
    %466 = arith.mulf %457, %342 : vector<8x128xf32>
    %467 = arith.mulf %451, %459 : vector<8x128xf32>
    %468 = arith.addf %466, %467 : vector<8x128xf32>
    %469 = math.tanh %468 : vector<8x128xf32>
    %470 = arith.mulf %465, %469 : vector<8x128xf32>
    %cst_160 = arith.constant dense<0.000000e+00> : vector<8x128xf32>
    %471 = tpu.matmul %470, %11, %cst_160 {dimension_numbers = #tpu.dot_dimension_numbers<[1], [0], [0], [1], [0, 0, 1, 1], [], []>} : vector<8x128xf32>, vector<128x128xf32>, vector<8x128xf32> -> vector<8x128xf32>
    %472 = vector.broadcast %12 : vector<1x128xf32> to vector<8x128xf32>
    %473 = arith.addf %471, %472 : vector<8x128xf32>
    %474 = arith.index_cast %c0_i32_153 : i32 to index
    %c0_161 = arith.constant 0 : index
    %c0_162 = arith.constant 0 : index
    %c0_163 = arith.constant 0 : index
    %475 = vector.load %arg18[%474, %c0_161, %c0_162, %c0_163] : memref<8x8x8x128xf32, #tpu.memory_space<vmem>>, vector<1x8x8x128xf32>
    %476 = vector.shape_cast %475 : vector<1x8x8x128xf32> to vector<8x8x128xf32>
    %477 = vector.shape_cast %473 : vector<8x128xf32> to vector<1x8x128xf32>
    %478 = vector.broadcast %477 : vector<1x8x128xf32> to vector<8x8x128xf32>
    %479 = arith.addf %476, %478 : vector<8x8x128xf32>
    %480 = math.tanh %479 : vector<8x8x128xf32>
    %481 = vector.shape_cast %480 : vector<8x8x128xf32> to vector<64x128xf32>
    %cst_164 = arith.constant dense<0.000000e+00> : vector<64x1xf32>
    %482 = tpu.matmul %481, %13, %cst_164 {dimension_numbers = #tpu.dot_dimension_numbers<[1], [1], [0], [0], [0, 0, 1, 0], [], []>} : vector<64x128xf32>, vector<1x128xf32>, vector<64x1xf32> -> vector<64x1xf32>
    %483 = vector.broadcast %482 : vector<64x1xf32> to vector<64x8xf32>
    %484 = arith.mulf %483, %432 : vector<64x8xf32>
    %cst_165 = arith.constant dense<0.000000e+00> : vector<8x8xf32>
    %485 = tpu.matmul %425, %484, %cst_165 {dimension_numbers = #tpu.dot_dimension_numbers<[1], [0], [0], [1], [0, 0, 1, 1], [], []>} : vector<8x64xf32>, vector<64x8xf32>, vector<8x8xf32> -> vector<8x8xf32>
    %cst_166 = arith.constant 1.000000e+03 : f32
    %486 = vector.broadcast %cst_166 : f32 to vector<8x8xf32>
    %487 = arith.subf %485, %486 : vector<8x8xf32>
    %488 = arith.select %415, %485, %487 : vector<8x8xi1>, vector<8x8xf32>
    %cst_167 = arith.constant dense<0xFF800000> : vector<8xf32>
    %489 = vector.multi_reduction <maximumf>, %488, %cst_167 [1] : vector<8x8xf32> to vector<8xf32>
    %490 = vector.shape_cast %489 : vector<8xf32> to vector<8x1xf32>
    %491 = vector.broadcast %490 : vector<8x1xf32> to vector<8x8xf32>
    %492 = arith.subf %488, %491 : vector<8x8xf32>
    %493 = math.exp %492 : vector<8x8xf32>
    %cst_168 = arith.constant dense<0.000000e+00> : vector<8xf32>
    %494 = vector.multi_reduction <add>, %493, %cst_168 [1] : vector<8x8xf32> to vector<8xf32>
    %495 = vector.shape_cast %494 : vector<8xf32> to vector<8x1xf32>
    %496 = vector.broadcast %495 : vector<8x1xf32> to vector<8x8xf32>
    %497 = arith.divf %493, %496 : vector<8x8xf32>
    %498 = arith.index_cast %c0_i32_153 : i32 to index
    %c0_169 = arith.constant 0 : index
    %c0_170 = arith.constant 0 : index
    %499 = vector.load %arg15[%498, %c0_169, %c0_170] : memref<8x8x128xf32, #tpu.memory_space<vmem>>, vector<1x8x8xf32>
    %500 = vector.shape_cast %499 : vector<1x8x8xf32> to vector<8x8xf32>
    %501 = vector.shape_cast %497 : vector<8x8xf32> to vector<1x8x8xf32>
    tpu.vector_store %arg15[%498, %c0_169, %c0_170], %501 {strides = array<i32>} : memref<8x8x128xf32, #tpu.memory_space<vmem>>, vector<1x8x8xf32>,
    %502 = vector.broadcast %490 : vector<8x1xf32> to vector<8x8xf32>
    %503 = arith.cmpf oeq, %488, %502 : vector<8x8xf32>
    %504 = arith.select %503, %409, %416 : vector<8x8xi1>, vector<8x8xf32>
    %cst_171 = arith.constant dense<0x7F800000> : vector<8xf32>
    %505 = vector.multi_reduction <minimumf>, %504, %cst_171 [1] : vector<8x8xf32> to vector<8xf32>
    %506 = vector.shape_cast %505 : vector<8xf32> to vector<8x1xf32>
    %507 = vector.broadcast %506 : vector<8x1xf32> to vector<8x8xf32>
    %508 = arith.cmpf oeq, %409, %507 : vector<8x8xf32>
    %509 = arith.extui %508 : vector<8x8xi1> to vector<8x8xi32>
    %510 = arith.sitofp %509 : vector<8x8xi32> to vector<8x8xf32>
    %511 = arith.mulf %510, %413 : vector<8x8xf32>
    %cst_172 = arith.constant dense<0.000000e+00> : vector<8xf32>
    %512 = vector.multi_reduction <add>, %511, %cst_172 [1] : vector<8x8xf32> to vector<8xf32>
    %513 = vector.shape_cast %512 : vector<8xf32> to vector<8x1xf32>
    %c1_i32_173 = arith.constant 1 : i32
    %c0_i32_174 = arith.constant 0 : i32
    %514 = arith.cmpi eq, %c1_i32_173, %c0_i32_174 : i32
    %c1_i32_175 = arith.constant 1 : i32
    %515 = arith.cmpi eq, %c1_i32_173, %c1_i32_175 : i32
    %516 = arith.select %515, %418, %513 : vector<8x1xf32>
    %517 = arith.select %514, %417, %516 : vector<8x1xf32>
    %518 = vector.broadcast %517 : vector<8x1xf32> to vector<8x512xf32>
    %519 = vector.broadcast %6 : vector<1x512xf32> to vector<8x512xf32>
    %520 = arith.mulf %518, %519 : vector<8x512xf32>
    %cst_176 = arith.constant dense<0.000000e+00> : vector<8x512xf32>
    %521 = tpu.matmul %470, %7, %cst_176 {dimension_numbers = #tpu.dot_dimension_numbers<[1], [0], [0], [1], [0, 0, 1, 1], [], []>} : vector<8x128xf32>, vector<128x512xf32>, vector<8x512xf32> -> vector<8x512xf32>
    %522 = arith.addf %520, %521 : vector<8x512xf32>
    %523 = vector.broadcast %8 : vector<1x512xf32> to vector<8x512xf32>
    %524 = arith.addf %522, %523 : vector<8x512xf32>
    %525 = vector.extract_strided_slice %524 {offsets = [0, 0], sizes = [8, 128], strides = [1, 1]} : vector<8x512xf32> to vector<8x128xf32>
    %526 = arith.negf %525 : vector<8x128xf32>
    %527 = math.exp %526 : vector<8x128xf32>
    %cst_177 = arith.constant 1.000000e+00 : f32
    %528 = vector.broadcast %cst_177 : f32 to vector<8x128xf32>
    %529 = arith.addf %528, %527 : vector<8x128xf32>
    %530 = arith.divf %528, %529 : vector<8x128xf32>
    %531 = vector.extract_strided_slice %524 {offsets = [0, 128], sizes = [8, 128], strides = [1, 1]} : vector<8x512xf32> to vector<8x128xf32>
    %532 = arith.negf %531 : vector<8x128xf32>
    %533 = math.exp %532 : vector<8x128xf32>
    %cst_178 = arith.constant 1.000000e+00 : f32
    %534 = vector.broadcast %cst_178 : f32 to vector<8x128xf32>
    %535 = arith.addf %534, %533 : vector<8x128xf32>
    %536 = arith.divf %534, %535 : vector<8x128xf32>
    %537 = vector.extract_strided_slice %524 {offsets = [0, 256], sizes = [8, 128], strides = [1, 1]} : vector<8x512xf32> to vector<8x128xf32>
    %538 = math.tanh %537 : vector<8x128xf32>
    %539 = vector.extract_strided_slice %524 {offsets = [0, 384], sizes = [8, 128], strides = [1, 1]} : vector<8x512xf32> to vector<8x128xf32>
    %540 = arith.negf %539 : vector<8x128xf32>
    %541 = math.exp %540 : vector<8x128xf32>
    %cst_179 = arith.constant 1.000000e+00 : f32
    %542 = vector.broadcast %cst_179 : f32 to vector<8x128xf32>
    %543 = arith.addf %542, %541 : vector<8x128xf32>
    %544 = arith.divf %542, %543 : vector<8x128xf32>
    %545 = arith.mulf %536, %468 : vector<8x128xf32>
    %546 = arith.mulf %530, %538 : vector<8x128xf32>
    %547 = arith.addf %545, %546 : vector<8x128xf32>
    %548 = math.tanh %547 : vector<8x128xf32>
    %549 = arith.mulf %544, %548 : vector<8x128xf32>
    %cst_180 = arith.constant dense<0.000000e+00> : vector<8x128xf32>
    %550 = tpu.matmul %549, %11, %cst_180 {dimension_numbers = #tpu.dot_dimension_numbers<[1], [0], [0], [1], [0, 0, 1, 1], [], []>} : vector<8x128xf32>, vector<128x128xf32>, vector<8x128xf32> -> vector<8x128xf32>
    %551 = vector.broadcast %12 : vector<1x128xf32> to vector<8x128xf32>
    %552 = arith.addf %550, %551 : vector<8x128xf32>
    %553 = arith.index_cast %c1_i32_173 : i32 to index
    %c0_181 = arith.constant 0 : index
    %c0_182 = arith.constant 0 : index
    %c0_183 = arith.constant 0 : index
    %554 = vector.load %arg18[%553, %c0_181, %c0_182, %c0_183] : memref<8x8x8x128xf32, #tpu.memory_space<vmem>>, vector<1x8x8x128xf32>
    %555 = vector.shape_cast %554 : vector<1x8x8x128xf32> to vector<8x8x128xf32>
    %556 = vector.shape_cast %552 : vector<8x128xf32> to vector<1x8x128xf32>
    %557 = vector.broadcast %556 : vector<1x8x128xf32> to vector<8x8x128xf32>
    %558 = arith.addf %555, %557 : vector<8x8x128xf32>
    %559 = math.tanh %558 : vector<8x8x128xf32>
    %560 = vector.shape_cast %559 : vector<8x8x128xf32> to vector<64x128xf32>
    %cst_184 = arith.constant dense<0.000000e+00> : vector<64x1xf32>
    %561 = tpu.matmul %560, %13, %cst_184 {dimension_numbers = #tpu.dot_dimension_numbers<[1], [1], [0], [0], [0, 0, 1, 0], [], []>} : vector<64x128xf32>, vector<1x128xf32>, vector<64x1xf32> -> vector<64x1xf32>
    %562 = vector.broadcast %561 : vector<64x1xf32> to vector<64x8xf32>
    %563 = arith.mulf %562, %432 : vector<64x8xf32>
    %cst_185 = arith.constant dense<0.000000e+00> : vector<8x8xf32>
    %564 = tpu.matmul %425, %563, %cst_185 {dimension_numbers = #tpu.dot_dimension_numbers<[1], [0], [0], [1], [0, 0, 1, 1], [], []>} : vector<8x64xf32>, vector<64x8xf32>, vector<8x8xf32> -> vector<8x8xf32>
    %cst_186 = arith.constant 1.000000e+03 : f32
    %565 = vector.broadcast %cst_186 : f32 to vector<8x8xf32>
    %566 = arith.subf %564, %565 : vector<8x8xf32>
    %567 = arith.select %415, %564, %566 : vector<8x8xi1>, vector<8x8xf32>
    %cst_187 = arith.constant dense<0xFF800000> : vector<8xf32>
    %568 = vector.multi_reduction <maximumf>, %567, %cst_187 [1] : vector<8x8xf32> to vector<8xf32>
    %569 = vector.shape_cast %568 : vector<8xf32> to vector<8x1xf32>
    %570 = vector.broadcast %569 : vector<8x1xf32> to vector<8x8xf32>
    %571 = arith.subf %567, %570 : vector<8x8xf32>
    %572 = math.exp %571 : vector<8x8xf32>
    %cst_188 = arith.constant dense<0.000000e+00> : vector<8xf32>
    %573 = vector.multi_reduction <add>, %572, %cst_188 [1] : vector<8x8xf32> to vector<8xf32>
    %574 = vector.shape_cast %573 : vector<8xf32> to vector<8x1xf32>
    %575 = vector.broadcast %574 : vector<8x1xf32> to vector<8x8xf32>
    %576 = arith.divf %572, %575 : vector<8x8xf32>
    %577 = arith.index_cast %c1_i32_173 : i32 to index
    %c0_189 = arith.constant 0 : index
    %c0_190 = arith.constant 0 : index
    %578 = vector.load %arg15[%577, %c0_189, %c0_190] : memref<8x8x128xf32, #tpu.memory_space<vmem>>, vector<1x8x8xf32>
    %579 = vector.shape_cast %578 : vector<1x8x8xf32> to vector<8x8xf32>
    %580 = vector.shape_cast %576 : vector<8x8xf32> to vector<1x8x8xf32>
    tpu.vector_store %arg15[%577, %c0_189, %c0_190], %580 {strides = array<i32>} : memref<8x8x128xf32, #tpu.memory_space<vmem>>, vector<1x8x8xf32>,
    %581 = vector.broadcast %569 : vector<8x1xf32> to vector<8x8xf32>
    %582 = arith.cmpf oeq, %567, %581 : vector<8x8xf32>
    %583 = arith.select %582, %409, %416 : vector<8x8xi1>, vector<8x8xf32>
    %cst_191 = arith.constant dense<0x7F800000> : vector<8xf32>
    %584 = vector.multi_reduction <minimumf>, %583, %cst_191 [1] : vector<8x8xf32> to vector<8xf32>
    %585 = vector.shape_cast %584 : vector<8xf32> to vector<8x1xf32>
    %586 = vector.broadcast %585 : vector<8x1xf32> to vector<8x8xf32>
    %587 = arith.cmpf oeq, %409, %586 : vector<8x8xf32>
    %588 = arith.extui %587 : vector<8x8xi1> to vector<8x8xi32>
    %589 = arith.sitofp %588 : vector<8x8xi32> to vector<8x8xf32>
    %590 = arith.mulf %589, %413 : vector<8x8xf32>
    %cst_192 = arith.constant dense<0.000000e+00> : vector<8xf32>
    %591 = vector.multi_reduction <add>, %590, %cst_192 [1] : vector<8x8xf32> to vector<8xf32>
    %592 = vector.shape_cast %591 : vector<8xf32> to vector<8x1xf32>
    %c2_i32_193 = arith.constant 2 : i32
    %c0_i32_194 = arith.constant 0 : i32
    %593 = arith.cmpi eq, %c2_i32_193, %c0_i32_194 : i32
    %c1_i32_195 = arith.constant 1 : i32
    %594 = arith.cmpi eq, %c2_i32_193, %c1_i32_195 : i32
    %595 = arith.select %594, %418, %592 : vector<8x1xf32>
    %596 = arith.select %593, %417, %595 : vector<8x1xf32>
    %597 = vector.broadcast %596 : vector<8x1xf32> to vector<8x512xf32>
    %598 = vector.broadcast %6 : vector<1x512xf32> to vector<8x512xf32>
    %599 = arith.mulf %597, %598 : vector<8x512xf32>
    %cst_196 = arith.constant dense<0.000000e+00> : vector<8x512xf32>
    %600 = tpu.matmul %549, %7, %cst_196 {dimension_numbers = #tpu.dot_dimension_numbers<[1], [0], [0], [1], [0, 0, 1, 1], [], []>} : vector<8x128xf32>, vector<128x512xf32>, vector<8x512xf32> -> vector<8x512xf32>
    %601 = arith.addf %599, %600 : vector<8x512xf32>
    %602 = vector.broadcast %8 : vector<1x512xf32> to vector<8x512xf32>
    %603 = arith.addf %601, %602 : vector<8x512xf32>
    %604 = vector.extract_strided_slice %603 {offsets = [0, 0], sizes = [8, 128], strides = [1, 1]} : vector<8x512xf32> to vector<8x128xf32>
    %605 = arith.negf %604 : vector<8x128xf32>
    %606 = math.exp %605 : vector<8x128xf32>
    %cst_197 = arith.constant 1.000000e+00 : f32
    %607 = vector.broadcast %cst_197 : f32 to vector<8x128xf32>
    %608 = arith.addf %607, %606 : vector<8x128xf32>
    %609 = arith.divf %607, %608 : vector<8x128xf32>
    %610 = vector.extract_strided_slice %603 {offsets = [0, 128], sizes = [8, 128], strides = [1, 1]} : vector<8x512xf32> to vector<8x128xf32>
    %611 = arith.negf %610 : vector<8x128xf32>
    %612 = math.exp %611 : vector<8x128xf32>
    %cst_198 = arith.constant 1.000000e+00 : f32
    %613 = vector.broadcast %cst_198 : f32 to vector<8x128xf32>
    %614 = arith.addf %613, %612 : vector<8x128xf32>
    %615 = arith.divf %613, %614 : vector<8x128xf32>
    %616 = vector.extract_strided_slice %603 {offsets = [0, 256], sizes = [8, 128], strides = [1, 1]} : vector<8x512xf32> to vector<8x128xf32>
    %617 = math.tanh %616 : vector<8x128xf32>
    %618 = vector.extract_strided_slice %603 {offsets = [0, 384], sizes = [8, 128], strides = [1, 1]} : vector<8x512xf32> to vector<8x128xf32>
    %619 = arith.negf %618 : vector<8x128xf32>
    %620 = math.exp %619 : vector<8x128xf32>
    %cst_199 = arith.constant 1.000000e+00 : f32
    %621 = vector.broadcast %cst_199 : f32 to vector<8x128xf32>
    %622 = arith.addf %621, %620 : vector<8x128xf32>
    %623 = arith.divf %621, %622 : vector<8x128xf32>
    %624 = arith.mulf %615, %547 : vector<8x128xf32>
    %625 = arith.mulf %609, %617 : vector<8x128xf32>
    %626 = arith.addf %624, %625 : vector<8x128xf32>
    %627 = math.tanh %626 : vector<8x128xf32>
    %628 = arith.mulf %623, %627 : vector<8x128xf32>
    %cst_200 = arith.constant dense<0.000000e+00> : vector<8x128xf32>
    %629 = tpu.matmul %628, %11, %cst_200 {dimension_numbers = #tpu.dot_dimension_numbers<[1], [0], [0], [1], [0, 0, 1, 1], [], []>} : vector<8x128xf32>, vector<128x128xf32>, vector<8x128xf32> -> vector<8x128xf32>
    %630 = vector.broadcast %12 : vector<1x128xf32> to vector<8x128xf32>
    %631 = arith.addf %629, %630 : vector<8x128xf32>
    %632 = arith.index_cast %c2_i32_193 : i32 to index
    %c0_201 = arith.constant 0 : index
    %c0_202 = arith.constant 0 : index
    %c0_203 = arith.constant 0 : index
    %633 = vector.load %arg18[%632, %c0_201, %c0_202, %c0_203] : memref<8x8x8x128xf32, #tpu.memory_space<vmem>>, vector<1x8x8x128xf32>
    %634 = vector.shape_cast %633 : vector<1x8x8x128xf32> to vector<8x8x128xf32>
    %635 = vector.shape_cast %631 : vector<8x128xf32> to vector<1x8x128xf32>
    %636 = vector.broadcast %635 : vector<1x8x128xf32> to vector<8x8x128xf32>
    %637 = arith.addf %634, %636 : vector<8x8x128xf32>
    %638 = math.tanh %637 : vector<8x8x128xf32>
    %639 = vector.shape_cast %638 : vector<8x8x128xf32> to vector<64x128xf32>
    %cst_204 = arith.constant dense<0.000000e+00> : vector<64x1xf32>
    %640 = tpu.matmul %639, %13, %cst_204 {dimension_numbers = #tpu.dot_dimension_numbers<[1], [1], [0], [0], [0, 0, 1, 0], [], []>} : vector<64x128xf32>, vector<1x128xf32>, vector<64x1xf32> -> vector<64x1xf32>
    %641 = vector.broadcast %640 : vector<64x1xf32> to vector<64x8xf32>
    %642 = arith.mulf %641, %432 : vector<64x8xf32>
    %cst_205 = arith.constant dense<0.000000e+00> : vector<8x8xf32>
    %643 = tpu.matmul %425, %642, %cst_205 {dimension_numbers = #tpu.dot_dimension_numbers<[1], [0], [0], [1], [0, 0, 1, 1], [], []>} : vector<8x64xf32>, vector<64x8xf32>, vector<8x8xf32> -> vector<8x8xf32>
    %cst_206 = arith.constant 1.000000e+03 : f32
    %644 = vector.broadcast %cst_206 : f32 to vector<8x8xf32>
    %645 = arith.subf %643, %644 : vector<8x8xf32>
    %646 = arith.select %415, %643, %645 : vector<8x8xi1>, vector<8x8xf32>
    %cst_207 = arith.constant dense<0xFF800000> : vector<8xf32>
    %647 = vector.multi_reduction <maximumf>, %646, %cst_207 [1] : vector<8x8xf32> to vector<8xf32>
    %648 = vector.shape_cast %647 : vector<8xf32> to vector<8x1xf32>
    %649 = vector.broadcast %648 : vector<8x1xf32> to vector<8x8xf32>
    %650 = arith.subf %646, %649 : vector<8x8xf32>
    %651 = math.exp %650 : vector<8x8xf32>
    %cst_208 = arith.constant dense<0.000000e+00> : vector<8xf32>
    %652 = vector.multi_reduction <add>, %651, %cst_208 [1] : vector<8x8xf32> to vector<8xf32>
    %653 = vector.shape_cast %652 : vector<8xf32> to vector<8x1xf32>
    %654 = vector.broadcast %653 : vector<8x1xf32> to vector<8x8xf32>
    %655 = arith.divf %651, %654 : vector<8x8xf32>
    %656 = arith.index_cast %c2_i32_193 : i32 to index
    %c0_209 = arith.constant 0 : index
    %c0_210 = arith.constant 0 : index
    %657 = vector.load %arg15[%656, %c0_209, %c0_210] : memref<8x8x128xf32, #tpu.memory_space<vmem>>, vector<1x8x8xf32>
    %658 = vector.shape_cast %657 : vector<1x8x8xf32> to vector<8x8xf32>
    %659 = vector.shape_cast %655 : vector<8x8xf32> to vector<1x8x8xf32>
    tpu.vector_store %arg15[%656, %c0_209, %c0_210], %659 {strides = array<i32>} : memref<8x8x128xf32, #tpu.memory_space<vmem>>, vector<1x8x8xf32>,
    %660 = vector.broadcast %648 : vector<8x1xf32> to vector<8x8xf32>
    %661 = arith.cmpf oeq, %646, %660 : vector<8x8xf32>
    %662 = arith.select %661, %409, %416 : vector<8x8xi1>, vector<8x8xf32>
    %cst_211 = arith.constant dense<0x7F800000> : vector<8xf32>
    %663 = vector.multi_reduction <minimumf>, %662, %cst_211 [1] : vector<8x8xf32> to vector<8xf32>
    %664 = vector.shape_cast %663 : vector<8xf32> to vector<8x1xf32>
    %665 = vector.broadcast %664 : vector<8x1xf32> to vector<8x8xf32>
    %666 = arith.cmpf oeq, %409, %665 : vector<8x8xf32>
    %667 = arith.extui %666 : vector<8x8xi1> to vector<8x8xi32>
    %668 = arith.sitofp %667 : vector<8x8xi32> to vector<8x8xf32>
    %669 = arith.mulf %668, %413 : vector<8x8xf32>
    %cst_212 = arith.constant dense<0.000000e+00> : vector<8xf32>
    %670 = vector.multi_reduction <add>, %669, %cst_212 [1] : vector<8x8xf32> to vector<8xf32>
    %671 = vector.shape_cast %670 : vector<8xf32> to vector<8x1xf32>
    %c3_i32_213 = arith.constant 3 : i32
    %c0_i32_214 = arith.constant 0 : i32
    %672 = arith.cmpi eq, %c3_i32_213, %c0_i32_214 : i32
    %c1_i32_215 = arith.constant 1 : i32
    %673 = arith.cmpi eq, %c3_i32_213, %c1_i32_215 : i32
    %674 = arith.select %673, %418, %671 : vector<8x1xf32>
    %675 = arith.select %672, %417, %674 : vector<8x1xf32>
    %676 = vector.broadcast %675 : vector<8x1xf32> to vector<8x512xf32>
    %677 = vector.broadcast %6 : vector<1x512xf32> to vector<8x512xf32>
    %678 = arith.mulf %676, %677 : vector<8x512xf32>
    %cst_216 = arith.constant dense<0.000000e+00> : vector<8x512xf32>
    %679 = tpu.matmul %628, %7, %cst_216 {dimension_numbers = #tpu.dot_dimension_numbers<[1], [0], [0], [1], [0, 0, 1, 1], [], []>} : vector<8x128xf32>, vector<128x512xf32>, vector<8x512xf32> -> vector<8x512xf32>
    %680 = arith.addf %678, %679 : vector<8x512xf32>
    %681 = vector.broadcast %8 : vector<1x512xf32> to vector<8x512xf32>
    %682 = arith.addf %680, %681 : vector<8x512xf32>
    %683 = vector.extract_strided_slice %682 {offsets = [0, 0], sizes = [8, 128], strides = [1, 1]} : vector<8x512xf32> to vector<8x128xf32>
    %684 = arith.negf %683 : vector<8x128xf32>
    %685 = math.exp %684 : vector<8x128xf32>
    %cst_217 = arith.constant 1.000000e+00 : f32
    %686 = vector.broadcast %cst_217 : f32 to vector<8x128xf32>
    %687 = arith.addf %686, %685 : vector<8x128xf32>
    %688 = arith.divf %686, %687 : vector<8x128xf32>
    %689 = vector.extract_strided_slice %682 {offsets = [0, 128], sizes = [8, 128], strides = [1, 1]} : vector<8x512xf32> to vector<8x128xf32>
    %690 = arith.negf %689 : vector<8x128xf32>
    %691 = math.exp %690 : vector<8x128xf32>
    %cst_218 = arith.constant 1.000000e+00 : f32
    %692 = vector.broadcast %cst_218 : f32 to vector<8x128xf32>
    %693 = arith.addf %692, %691 : vector<8x128xf32>
    %694 = arith.divf %692, %693 : vector<8x128xf32>
    %695 = vector.extract_strided_slice %682 {offsets = [0, 256], sizes = [8, 128], strides = [1, 1]} : vector<8x512xf32> to vector<8x128xf32>
    %696 = math.tanh %695 : vector<8x128xf32>
    %697 = vector.extract_strided_slice %682 {offsets = [0, 384], sizes = [8, 128], strides = [1, 1]} : vector<8x512xf32> to vector<8x128xf32>
    %698 = arith.negf %697 : vector<8x128xf32>
    %699 = math.exp %698 : vector<8x128xf32>
    %cst_219 = arith.constant 1.000000e+00 : f32
    %700 = vector.broadcast %cst_219 : f32 to vector<8x128xf32>
    %701 = arith.addf %700, %699 : vector<8x128xf32>
    %702 = arith.divf %700, %701 : vector<8x128xf32>
    %703 = arith.mulf %694, %626 : vector<8x128xf32>
    %704 = arith.mulf %688, %696 : vector<8x128xf32>
    %705 = arith.addf %703, %704 : vector<8x128xf32>
    %706 = math.tanh %705 : vector<8x128xf32>
    %707 = arith.mulf %702, %706 : vector<8x128xf32>
    %cst_220 = arith.constant dense<0.000000e+00> : vector<8x128xf32>
    %708 = tpu.matmul %707, %11, %cst_220 {dimension_numbers = #tpu.dot_dimension_numbers<[1], [0], [0], [1], [0, 0, 1, 1], [], []>} : vector<8x128xf32>, vector<128x128xf32>, vector<8x128xf32> -> vector<8x128xf32>
    %709 = vector.broadcast %12 : vector<1x128xf32> to vector<8x128xf32>
    %710 = arith.addf %708, %709 : vector<8x128xf32>
    %711 = arith.index_cast %c3_i32_213 : i32 to index
    %c0_221 = arith.constant 0 : index
    %c0_222 = arith.constant 0 : index
    %c0_223 = arith.constant 0 : index
    %712 = vector.load %arg18[%711, %c0_221, %c0_222, %c0_223] : memref<8x8x8x128xf32, #tpu.memory_space<vmem>>, vector<1x8x8x128xf32>
    %713 = vector.shape_cast %712 : vector<1x8x8x128xf32> to vector<8x8x128xf32>
    %714 = vector.shape_cast %710 : vector<8x128xf32> to vector<1x8x128xf32>
    %715 = vector.broadcast %714 : vector<1x8x128xf32> to vector<8x8x128xf32>
    %716 = arith.addf %713, %715 : vector<8x8x128xf32>
    %717 = math.tanh %716 : vector<8x8x128xf32>
    %718 = vector.shape_cast %717 : vector<8x8x128xf32> to vector<64x128xf32>
    %cst_224 = arith.constant dense<0.000000e+00> : vector<64x1xf32>
    %719 = tpu.matmul %718, %13, %cst_224 {dimension_numbers = #tpu.dot_dimension_numbers<[1], [1], [0], [0], [0, 0, 1, 0], [], []>} : vector<64x128xf32>, vector<1x128xf32>, vector<64x1xf32> -> vector<64x1xf32>
    %720 = vector.broadcast %719 : vector<64x1xf32> to vector<64x8xf32>
    %721 = arith.mulf %720, %432 : vector<64x8xf32>
    %cst_225 = arith.constant dense<0.000000e+00> : vector<8x8xf32>
    %722 = tpu.matmul %425, %721, %cst_225 {dimension_numbers = #tpu.dot_dimension_numbers<[1], [0], [0], [1], [0, 0, 1, 1], [], []>} : vector<8x64xf32>, vector<64x8xf32>, vector<8x8xf32> -> vector<8x8xf32>
    %cst_226 = arith.constant 1.000000e+03 : f32
    %723 = vector.broadcast %cst_226 : f32 to vector<8x8xf32>
    %724 = arith.subf %722, %723 : vector<8x8xf32>
    %725 = arith.select %415, %722, %724 : vector<8x8xi1>, vector<8x8xf32>
    %cst_227 = arith.constant dense<0xFF800000> : vector<8xf32>
    %726 = vector.multi_reduction <maximumf>, %725, %cst_227 [1] : vector<8x8xf32> to vector<8xf32>
    %727 = vector.shape_cast %726 : vector<8xf32> to vector<8x1xf32>
    %728 = vector.broadcast %727 : vector<8x1xf32> to vector<8x8xf32>
    %729 = arith.subf %725, %728 : vector<8x8xf32>
    %730 = math.exp %729 : vector<8x8xf32>
    %cst_228 = arith.constant dense<0.000000e+00> : vector<8xf32>
    %731 = vector.multi_reduction <add>, %730, %cst_228 [1] : vector<8x8xf32> to vector<8xf32>
    %732 = vector.shape_cast %731 : vector<8xf32> to vector<8x1xf32>
    %733 = vector.broadcast %732 : vector<8x1xf32> to vector<8x8xf32>
    %734 = arith.divf %730, %733 : vector<8x8xf32>
    %735 = arith.index_cast %c3_i32_213 : i32 to index
    %c0_229 = arith.constant 0 : index
    %c0_230 = arith.constant 0 : index
    %736 = vector.load %arg15[%735, %c0_229, %c0_230] : memref<8x8x128xf32, #tpu.memory_space<vmem>>, vector<1x8x8xf32>
    %737 = vector.shape_cast %736 : vector<1x8x8xf32> to vector<8x8xf32>
    %738 = vector.shape_cast %734 : vector<8x8xf32> to vector<1x8x8xf32>
    tpu.vector_store %arg15[%735, %c0_229, %c0_230], %738 {strides = array<i32>} : memref<8x8x128xf32, #tpu.memory_space<vmem>>, vector<1x8x8xf32>,
    %739 = vector.broadcast %727 : vector<8x1xf32> to vector<8x8xf32>
    %740 = arith.cmpf oeq, %725, %739 : vector<8x8xf32>
    %741 = arith.select %740, %409, %416 : vector<8x8xi1>, vector<8x8xf32>
    %cst_231 = arith.constant dense<0x7F800000> : vector<8xf32>
    %742 = vector.multi_reduction <minimumf>, %741, %cst_231 [1] : vector<8x8xf32> to vector<8xf32>
    %743 = vector.shape_cast %742 : vector<8xf32> to vector<8x1xf32>
    %744 = vector.broadcast %743 : vector<8x1xf32> to vector<8x8xf32>
    %745 = arith.cmpf oeq, %409, %744 : vector<8x8xf32>
    %746 = arith.extui %745 : vector<8x8xi1> to vector<8x8xi32>
    %747 = arith.sitofp %746 : vector<8x8xi32> to vector<8x8xf32>
    %748 = arith.mulf %747, %413 : vector<8x8xf32>
    %cst_232 = arith.constant dense<0.000000e+00> : vector<8xf32>
    %749 = vector.multi_reduction <add>, %748, %cst_232 [1] : vector<8x8xf32> to vector<8xf32>
    %750 = vector.shape_cast %749 : vector<8xf32> to vector<8x1xf32>
    %c4_i32_233 = arith.constant 4 : i32
    %c0_i32_234 = arith.constant 0 : i32
    %751 = arith.cmpi eq, %c4_i32_233, %c0_i32_234 : i32
    %c1_i32_235 = arith.constant 1 : i32
    %752 = arith.cmpi eq, %c4_i32_233, %c1_i32_235 : i32
    %753 = arith.select %752, %418, %750 : vector<8x1xf32>
    %754 = arith.select %751, %417, %753 : vector<8x1xf32>
    %755 = vector.broadcast %754 : vector<8x1xf32> to vector<8x512xf32>
    %756 = vector.broadcast %6 : vector<1x512xf32> to vector<8x512xf32>
    %757 = arith.mulf %755, %756 : vector<8x512xf32>
    %cst_236 = arith.constant dense<0.000000e+00> : vector<8x512xf32>
    %758 = tpu.matmul %707, %7, %cst_236 {dimension_numbers = #tpu.dot_dimension_numbers<[1], [0], [0], [1], [0, 0, 1, 1], [], []>} : vector<8x128xf32>, vector<128x512xf32>, vector<8x512xf32> -> vector<8x512xf32>
    %759 = arith.addf %757, %758 : vector<8x512xf32>
    %760 = vector.broadcast %8 : vector<1x512xf32> to vector<8x512xf32>
    %761 = arith.addf %759, %760 : vector<8x512xf32>
    %762 = vector.extract_strided_slice %761 {offsets = [0, 0], sizes = [8, 128], strides = [1, 1]} : vector<8x512xf32> to vector<8x128xf32>
    %763 = arith.negf %762 : vector<8x128xf32>
    %764 = math.exp %763 : vector<8x128xf32>
    %cst_237 = arith.constant 1.000000e+00 : f32
    %765 = vector.broadcast %cst_237 : f32 to vector<8x128xf32>
    %766 = arith.addf %765, %764 : vector<8x128xf32>
    %767 = arith.divf %765, %766 : vector<8x128xf32>
    %768 = vector.extract_strided_slice %761 {offsets = [0, 128], sizes = [8, 128], strides = [1, 1]} : vector<8x512xf32> to vector<8x128xf32>
    %769 = arith.negf %768 : vector<8x128xf32>
    %770 = math.exp %769 : vector<8x128xf32>
    %cst_238 = arith.constant 1.000000e+00 : f32
    %771 = vector.broadcast %cst_238 : f32 to vector<8x128xf32>
    %772 = arith.addf %771, %770 : vector<8x128xf32>
    %773 = arith.divf %771, %772 : vector<8x128xf32>
    %774 = vector.extract_strided_slice %761 {offsets = [0, 256], sizes = [8, 128], strides = [1, 1]} : vector<8x512xf32> to vector<8x128xf32>
    %775 = math.tanh %774 : vector<8x128xf32>
    %776 = vector.extract_strided_slice %761 {offsets = [0, 384], sizes = [8, 128], strides = [1, 1]} : vector<8x512xf32> to vector<8x128xf32>
    %777 = arith.negf %776 : vector<8x128xf32>
    %778 = math.exp %777 : vector<8x128xf32>
    %cst_239 = arith.constant 1.000000e+00 : f32
    %779 = vector.broadcast %cst_239 : f32 to vector<8x128xf32>
    %780 = arith.addf %779, %778 : vector<8x128xf32>
    %781 = arith.divf %779, %780 : vector<8x128xf32>
    %782 = arith.mulf %773, %705 : vector<8x128xf32>
    %783 = arith.mulf %767, %775 : vector<8x128xf32>
    %784 = arith.addf %782, %783 : vector<8x128xf32>
    %785 = math.tanh %784 : vector<8x128xf32>
    %786 = arith.mulf %781, %785 : vector<8x128xf32>
    %cst_240 = arith.constant dense<0.000000e+00> : vector<8x128xf32>
    %787 = tpu.matmul %786, %11, %cst_240 {dimension_numbers = #tpu.dot_dimension_numbers<[1], [0], [0], [1], [0, 0, 1, 1], [], []>} : vector<8x128xf32>, vector<128x128xf32>, vector<8x128xf32> -> vector<8x128xf32>
    %788 = vector.broadcast %12 : vector<1x128xf32> to vector<8x128xf32>
    %789 = arith.addf %787, %788 : vector<8x128xf32>
    %790 = arith.index_cast %c4_i32_233 : i32 to index
    %c0_241 = arith.constant 0 : index
    %c0_242 = arith.constant 0 : index
    %c0_243 = arith.constant 0 : index
    %791 = vector.load %arg18[%790, %c0_241, %c0_242, %c0_243] : memref<8x8x8x128xf32, #tpu.memory_space<vmem>>, vector<1x8x8x128xf32>
    %792 = vector.shape_cast %791 : vector<1x8x8x128xf32> to vector<8x8x128xf32>
    %793 = vector.shape_cast %789 : vector<8x128xf32> to vector<1x8x128xf32>
    %794 = vector.broadcast %793 : vector<1x8x128xf32> to vector<8x8x128xf32>
    %795 = arith.addf %792, %794 : vector<8x8x128xf32>
    %796 = math.tanh %795 : vector<8x8x128xf32>
    %797 = vector.shape_cast %796 : vector<8x8x128xf32> to vector<64x128xf32>
    %cst_244 = arith.constant dense<0.000000e+00> : vector<64x1xf32>
    %798 = tpu.matmul %797, %13, %cst_244 {dimension_numbers = #tpu.dot_dimension_numbers<[1], [1], [0], [0], [0, 0, 1, 0], [], []>} : vector<64x128xf32>, vector<1x128xf32>, vector<64x1xf32> -> vector<64x1xf32>
    %799 = vector.broadcast %798 : vector<64x1xf32> to vector<64x8xf32>
    %800 = arith.mulf %799, %432 : vector<64x8xf32>
    %cst_245 = arith.constant dense<0.000000e+00> : vector<8x8xf32>
    %801 = tpu.matmul %425, %800, %cst_245 {dimension_numbers = #tpu.dot_dimension_numbers<[1], [0], [0], [1], [0, 0, 1, 1], [], []>} : vector<8x64xf32>, vector<64x8xf32>, vector<8x8xf32> -> vector<8x8xf32>
    %cst_246 = arith.constant 1.000000e+03 : f32
    %802 = vector.broadcast %cst_246 : f32 to vector<8x8xf32>
    %803 = arith.subf %801, %802 : vector<8x8xf32>
    %804 = arith.select %415, %801, %803 : vector<8x8xi1>, vector<8x8xf32>
    %cst_247 = arith.constant dense<0xFF800000> : vector<8xf32>
    %805 = vector.multi_reduction <maximumf>, %804, %cst_247 [1] : vector<8x8xf32> to vector<8xf32>
    %806 = vector.shape_cast %805 : vector<8xf32> to vector<8x1xf32>
    %807 = vector.broadcast %806 : vector<8x1xf32> to vector<8x8xf32>
    %808 = arith.subf %804, %807 : vector<8x8xf32>
    %809 = math.exp %808 : vector<8x8xf32>
    %cst_248 = arith.constant dense<0.000000e+00> : vector<8xf32>
    %810 = vector.multi_reduction <add>, %809, %cst_248 [1] : vector<8x8xf32> to vector<8xf32>
    %811 = vector.shape_cast %810 : vector<8xf32> to vector<8x1xf32>
    %812 = vector.broadcast %811 : vector<8x1xf32> to vector<8x8xf32>
    %813 = arith.divf %809, %812 : vector<8x8xf32>
    %814 = arith.index_cast %c4_i32_233 : i32 to index
    %c0_249 = arith.constant 0 : index
    %c0_250 = arith.constant 0 : index
    %815 = vector.load %arg15[%814, %c0_249, %c0_250] : memref<8x8x128xf32, #tpu.memory_space<vmem>>, vector<1x8x8xf32>
    %816 = vector.shape_cast %815 : vector<1x8x8xf32> to vector<8x8xf32>
    %817 = vector.shape_cast %813 : vector<8x8xf32> to vector<1x8x8xf32>
    tpu.vector_store %arg15[%814, %c0_249, %c0_250], %817 {strides = array<i32>} : memref<8x8x128xf32, #tpu.memory_space<vmem>>, vector<1x8x8xf32>,
    %818 = vector.broadcast %806 : vector<8x1xf32> to vector<8x8xf32>
    %819 = arith.cmpf oeq, %804, %818 : vector<8x8xf32>
    %820 = arith.select %819, %409, %416 : vector<8x8xi1>, vector<8x8xf32>
    %cst_251 = arith.constant dense<0x7F800000> : vector<8xf32>
    %821 = vector.multi_reduction <minimumf>, %820, %cst_251 [1] : vector<8x8xf32> to vector<8xf32>
    %822 = vector.shape_cast %821 : vector<8xf32> to vector<8x1xf32>
    %823 = vector.broadcast %822 : vector<8x1xf32> to vector<8x8xf32>
    %824 = arith.cmpf oeq, %409, %823 : vector<8x8xf32>
    %825 = arith.extui %824 : vector<8x8xi1> to vector<8x8xi32>
    %826 = arith.sitofp %825 : vector<8x8xi32> to vector<8x8xf32>
    %827 = arith.mulf %826, %413 : vector<8x8xf32>
    %cst_252 = arith.constant dense<0.000000e+00> : vector<8xf32>
    %828 = vector.multi_reduction <add>, %827, %cst_252 [1] : vector<8x8xf32> to vector<8xf32>
    %829 = vector.shape_cast %828 : vector<8xf32> to vector<8x1xf32>
    %c5_i32_253 = arith.constant 5 : i32
    %c0_i32_254 = arith.constant 0 : i32
    %830 = arith.cmpi eq, %c5_i32_253, %c0_i32_254 : i32
    %c1_i32_255 = arith.constant 1 : i32
    %831 = arith.cmpi eq, %c5_i32_253, %c1_i32_255 : i32
    %832 = arith.select %831, %418, %829 : vector<8x1xf32>
    %833 = arith.select %830, %417, %832 : vector<8x1xf32>
    %834 = vector.broadcast %833 : vector<8x1xf32> to vector<8x512xf32>
    %835 = vector.broadcast %6 : vector<1x512xf32> to vector<8x512xf32>
    %836 = arith.mulf %834, %835 : vector<8x512xf32>
    %cst_256 = arith.constant dense<0.000000e+00> : vector<8x512xf32>
    %837 = tpu.matmul %786, %7, %cst_256 {dimension_numbers = #tpu.dot_dimension_numbers<[1], [0], [0], [1], [0, 0, 1, 1], [], []>} : vector<8x128xf32>, vector<128x512xf32>, vector<8x512xf32> -> vector<8x512xf32>
    %838 = arith.addf %836, %837 : vector<8x512xf32>
    %839 = vector.broadcast %8 : vector<1x512xf32> to vector<8x512xf32>
    %840 = arith.addf %838, %839 : vector<8x512xf32>
    %841 = vector.extract_strided_slice %840 {offsets = [0, 0], sizes = [8, 128], strides = [1, 1]} : vector<8x512xf32> to vector<8x128xf32>
    %842 = arith.negf %841 : vector<8x128xf32>
    %843 = math.exp %842 : vector<8x128xf32>
    %cst_257 = arith.constant 1.000000e+00 : f32
    %844 = vector.broadcast %cst_257 : f32 to vector<8x128xf32>
    %845 = arith.addf %844, %843 : vector<8x128xf32>
    %846 = arith.divf %844, %845 : vector<8x128xf32>
    %847 = vector.extract_strided_slice %840 {offsets = [0, 128], sizes = [8, 128], strides = [1, 1]} : vector<8x512xf32> to vector<8x128xf32>
    %848 = arith.negf %847 : vector<8x128xf32>
    %849 = math.exp %848 : vector<8x128xf32>
    %cst_258 = arith.constant 1.000000e+00 : f32
    %850 = vector.broadcast %cst_258 : f32 to vector<8x128xf32>
    %851 = arith.addf %850, %849 : vector<8x128xf32>
    %852 = arith.divf %850, %851 : vector<8x128xf32>
    %853 = vector.extract_strided_slice %840 {offsets = [0, 256], sizes = [8, 128], strides = [1, 1]} : vector<8x512xf32> to vector<8x128xf32>
    %854 = math.tanh %853 : vector<8x128xf32>
    %855 = vector.extract_strided_slice %840 {offsets = [0, 384], sizes = [8, 128], strides = [1, 1]} : vector<8x512xf32> to vector<8x128xf32>
    %856 = arith.negf %855 : vector<8x128xf32>
    %857 = math.exp %856 : vector<8x128xf32>
    %cst_259 = arith.constant 1.000000e+00 : f32
    %858 = vector.broadcast %cst_259 : f32 to vector<8x128xf32>
    %859 = arith.addf %858, %857 : vector<8x128xf32>
    %860 = arith.divf %858, %859 : vector<8x128xf32>
    %861 = arith.mulf %852, %784 : vector<8x128xf32>
    %862 = arith.mulf %846, %854 : vector<8x128xf32>
    %863 = arith.addf %861, %862 : vector<8x128xf32>
    %864 = math.tanh %863 : vector<8x128xf32>
    %865 = arith.mulf %860, %864 : vector<8x128xf32>
    %cst_260 = arith.constant dense<0.000000e+00> : vector<8x128xf32>
    %866 = tpu.matmul %865, %11, %cst_260 {dimension_numbers = #tpu.dot_dimension_numbers<[1], [0], [0], [1], [0, 0, 1, 1], [], []>} : vector<8x128xf32>, vector<128x128xf32>, vector<8x128xf32> -> vector<8x128xf32>
    %867 = vector.broadcast %12 : vector<1x128xf32> to vector<8x128xf32>
    %868 = arith.addf %866, %867 : vector<8x128xf32>
    %869 = arith.index_cast %c5_i32_253 : i32 to index
    %c0_261 = arith.constant 0 : index
    %c0_262 = arith.constant 0 : index
    %c0_263 = arith.constant 0 : index
    %870 = vector.load %arg18[%869, %c0_261, %c0_262, %c0_263] : memref<8x8x8x128xf32, #tpu.memory_space<vmem>>, vector<1x8x8x128xf32>
    %871 = vector.shape_cast %870 : vector<1x8x8x128xf32> to vector<8x8x128xf32>
    %872 = vector.shape_cast %868 : vector<8x128xf32> to vector<1x8x128xf32>
    %873 = vector.broadcast %872 : vector<1x8x128xf32> to vector<8x8x128xf32>
    %874 = arith.addf %871, %873 : vector<8x8x128xf32>
    %875 = math.tanh %874 : vector<8x8x128xf32>
    %876 = vector.shape_cast %875 : vector<8x8x128xf32> to vector<64x128xf32>
    %cst_264 = arith.constant dense<0.000000e+00> : vector<64x1xf32>
    %877 = tpu.matmul %876, %13, %cst_264 {dimension_numbers = #tpu.dot_dimension_numbers<[1], [1], [0], [0], [0, 0, 1, 0], [], []>} : vector<64x128xf32>, vector<1x128xf32>, vector<64x1xf32> -> vector<64x1xf32>
    %878 = vector.broadcast %877 : vector<64x1xf32> to vector<64x8xf32>
    %879 = arith.mulf %878, %432 : vector<64x8xf32>
    %cst_265 = arith.constant dense<0.000000e+00> : vector<8x8xf32>
    %880 = tpu.matmul %425, %879, %cst_265 {dimension_numbers = #tpu.dot_dimension_numbers<[1], [0], [0], [1], [0, 0, 1, 1], [], []>} : vector<8x64xf32>, vector<64x8xf32>, vector<8x8xf32> -> vector<8x8xf32>
    %cst_266 = arith.constant 1.000000e+03 : f32
    %881 = vector.broadcast %cst_266 : f32 to vector<8x8xf32>
    %882 = arith.subf %880, %881 : vector<8x8xf32>
    %883 = arith.select %415, %880, %882 : vector<8x8xi1>, vector<8x8xf32>
    %cst_267 = arith.constant dense<0xFF800000> : vector<8xf32>
    %884 = vector.multi_reduction <maximumf>, %883, %cst_267 [1] : vector<8x8xf32> to vector<8xf32>
    %885 = vector.shape_cast %884 : vector<8xf32> to vector<8x1xf32>
    %886 = vector.broadcast %885 : vector<8x1xf32> to vector<8x8xf32>
    %887 = arith.subf %883, %886 : vector<8x8xf32>
    %888 = math.exp %887 : vector<8x8xf32>
    %cst_268 = arith.constant dense<0.000000e+00> : vector<8xf32>
    %889 = vector.multi_reduction <add>, %888, %cst_268 [1] : vector<8x8xf32> to vector<8xf32>
    %890 = vector.shape_cast %889 : vector<8xf32> to vector<8x1xf32>
    %891 = vector.broadcast %890 : vector<8x1xf32> to vector<8x8xf32>
    %892 = arith.divf %888, %891 : vector<8x8xf32>
    %893 = arith.index_cast %c5_i32_253 : i32 to index
    %c0_269 = arith.constant 0 : index
    %c0_270 = arith.constant 0 : index
    %894 = vector.load %arg15[%893, %c0_269, %c0_270] : memref<8x8x128xf32, #tpu.memory_space<vmem>>, vector<1x8x8xf32>
    %895 = vector.shape_cast %894 : vector<1x8x8xf32> to vector<8x8xf32>
    %896 = vector.shape_cast %892 : vector<8x8xf32> to vector<1x8x8xf32>
    tpu.vector_store %arg15[%893, %c0_269, %c0_270], %896 {strides = array<i32>} : memref<8x8x128xf32, #tpu.memory_space<vmem>>, vector<1x8x8xf32>,
    %897 = vector.broadcast %885 : vector<8x1xf32> to vector<8x8xf32>
    %898 = arith.cmpf oeq, %883, %897 : vector<8x8xf32>
    %899 = arith.select %898, %409, %416 : vector<8x8xi1>, vector<8x8xf32>
    %cst_271 = arith.constant dense<0x7F800000> : vector<8xf32>
    %900 = vector.multi_reduction <minimumf>, %899, %cst_271 [1] : vector<8x8xf32> to vector<8xf32>
    %901 = vector.shape_cast %900 : vector<8xf32> to vector<8x1xf32>
    %902 = vector.broadcast %901 : vector<8x1xf32> to vector<8x8xf32>
    %903 = arith.cmpf oeq, %409, %902 : vector<8x8xf32>
    %904 = arith.extui %903 : vector<8x8xi1> to vector<8x8xi32>
    %905 = arith.sitofp %904 : vector<8x8xi32> to vector<8x8xf32>
    %906 = arith.mulf %905, %413 : vector<8x8xf32>
    %cst_272 = arith.constant dense<0.000000e+00> : vector<8xf32>
    %907 = vector.multi_reduction <add>, %906, %cst_272 [1] : vector<8x8xf32> to vector<8xf32>
    %908 = vector.shape_cast %907 : vector<8xf32> to vector<8x1xf32>
    %c6_i32_273 = arith.constant 6 : i32
    %c0_i32_274 = arith.constant 0 : i32
    %909 = arith.cmpi eq, %c6_i32_273, %c0_i32_274 : i32
    %c1_i32_275 = arith.constant 1 : i32
    %910 = arith.cmpi eq, %c6_i32_273, %c1_i32_275 : i32
    %911 = arith.select %910, %418, %908 : vector<8x1xf32>
    %912 = arith.select %909, %417, %911 : vector<8x1xf32>
    %913 = vector.broadcast %912 : vector<8x1xf32> to vector<8x512xf32>
    %914 = vector.broadcast %6 : vector<1x512xf32> to vector<8x512xf32>
    %915 = arith.mulf %913, %914 : vector<8x512xf32>
    %cst_276 = arith.constant dense<0.000000e+00> : vector<8x512xf32>
    %916 = tpu.matmul %865, %7, %cst_276 {dimension_numbers = #tpu.dot_dimension_numbers<[1], [0], [0], [1], [0, 0, 1, 1], [], []>} : vector<8x128xf32>, vector<128x512xf32>, vector<8x512xf32> -> vector<8x512xf32>
    %917 = arith.addf %915, %916 : vector<8x512xf32>
    %918 = vector.broadcast %8 : vector<1x512xf32> to vector<8x512xf32>
    %919 = arith.addf %917, %918 : vector<8x512xf32>
    %920 = vector.extract_strided_slice %919 {offsets = [0, 0], sizes = [8, 128], strides = [1, 1]} : vector<8x512xf32> to vector<8x128xf32>
    %921 = arith.negf %920 : vector<8x128xf32>
    %922 = math.exp %921 : vector<8x128xf32>
    %cst_277 = arith.constant 1.000000e+00 : f32
    %923 = vector.broadcast %cst_277 : f32 to vector<8x128xf32>
    %924 = arith.addf %923, %922 : vector<8x128xf32>
    %925 = arith.divf %923, %924 : vector<8x128xf32>
    %926 = vector.extract_strided_slice %919 {offsets = [0, 128], sizes = [8, 128], strides = [1, 1]} : vector<8x512xf32> to vector<8x128xf32>
    %927 = arith.negf %926 : vector<8x128xf32>
    %928 = math.exp %927 : vector<8x128xf32>
    %cst_278 = arith.constant 1.000000e+00 : f32
    %929 = vector.broadcast %cst_278 : f32 to vector<8x128xf32>
    %930 = arith.addf %929, %928 : vector<8x128xf32>
    %931 = arith.divf %929, %930 : vector<8x128xf32>
    %932 = vector.extract_strided_slice %919 {offsets = [0, 256], sizes = [8, 128], strides = [1, 1]} : vector<8x512xf32> to vector<8x128xf32>
    %933 = math.tanh %932 : vector<8x128xf32>
    %934 = vector.extract_strided_slice %919 {offsets = [0, 384], sizes = [8, 128], strides = [1, 1]} : vector<8x512xf32> to vector<8x128xf32>
    %935 = arith.negf %934 : vector<8x128xf32>
    %936 = math.exp %935 : vector<8x128xf32>
    %cst_279 = arith.constant 1.000000e+00 : f32
    %937 = vector.broadcast %cst_279 : f32 to vector<8x128xf32>
    %938 = arith.addf %937, %936 : vector<8x128xf32>
    %939 = arith.divf %937, %938 : vector<8x128xf32>
    %940 = arith.mulf %931, %863 : vector<8x128xf32>
    %941 = arith.mulf %925, %933 : vector<8x128xf32>
    %942 = arith.addf %940, %941 : vector<8x128xf32>
    %943 = math.tanh %942 : vector<8x128xf32>
    %944 = arith.mulf %939, %943 : vector<8x128xf32>
    %cst_280 = arith.constant dense<0.000000e+00> : vector<8x128xf32>
    %945 = tpu.matmul %944, %11, %cst_280 {dimension_numbers = #tpu.dot_dimension_numbers<[1], [0], [0], [1], [0, 0, 1, 1], [], []>} : vector<8x128xf32>, vector<128x128xf32>, vector<8x128xf32> -> vector<8x128xf32>
    %946 = vector.broadcast %12 : vector<1x128xf32> to vector<8x128xf32>
    %947 = arith.addf %945, %946 : vector<8x128xf32>
    %948 = arith.index_cast %c6_i32_273 : i32 to index
    %c0_281 = arith.constant 0 : index
    %c0_282 = arith.constant 0 : index
    %c0_283 = arith.constant 0 : index
    %949 = vector.load %arg18[%948, %c0_281, %c0_282, %c0_283] : memref<8x8x8x128xf32, #tpu.memory_space<vmem>>, vector<1x8x8x128xf32>
    %950 = vector.shape_cast %949 : vector<1x8x8x128xf32> to vector<8x8x128xf32>
    %951 = vector.shape_cast %947 : vector<8x128xf32> to vector<1x8x128xf32>
    %952 = vector.broadcast %951 : vector<1x8x128xf32> to vector<8x8x128xf32>
    %953 = arith.addf %950, %952 : vector<8x8x128xf32>
    %954 = math.tanh %953 : vector<8x8x128xf32>
    %955 = vector.shape_cast %954 : vector<8x8x128xf32> to vector<64x128xf32>
    %cst_284 = arith.constant dense<0.000000e+00> : vector<64x1xf32>
    %956 = tpu.matmul %955, %13, %cst_284 {dimension_numbers = #tpu.dot_dimension_numbers<[1], [1], [0], [0], [0, 0, 1, 0], [], []>} : vector<64x128xf32>, vector<1x128xf32>, vector<64x1xf32> -> vector<64x1xf32>
    %957 = vector.broadcast %956 : vector<64x1xf32> to vector<64x8xf32>
    %958 = arith.mulf %957, %432 : vector<64x8xf32>
    %cst_285 = arith.constant dense<0.000000e+00> : vector<8x8xf32>
    %959 = tpu.matmul %425, %958, %cst_285 {dimension_numbers = #tpu.dot_dimension_numbers<[1], [0], [0], [1], [0, 0, 1, 1], [], []>} : vector<8x64xf32>, vector<64x8xf32>, vector<8x8xf32> -> vector<8x8xf32>
    %cst_286 = arith.constant 1.000000e+03 : f32
    %960 = vector.broadcast %cst_286 : f32 to vector<8x8xf32>
    %961 = arith.subf %959, %960 : vector<8x8xf32>
    %962 = arith.select %415, %959, %961 : vector<8x8xi1>, vector<8x8xf32>
    %cst_287 = arith.constant dense<0xFF800000> : vector<8xf32>
    %963 = vector.multi_reduction <maximumf>, %962, %cst_287 [1] : vector<8x8xf32> to vector<8xf32>
    %964 = vector.shape_cast %963 : vector<8xf32> to vector<8x1xf32>
    %965 = vector.broadcast %964 : vector<8x1xf32> to vector<8x8xf32>
    %966 = arith.subf %962, %965 : vector<8x8xf32>
    %967 = math.exp %966 : vector<8x8xf32>
    %cst_288 = arith.constant dense<0.000000e+00> : vector<8xf32>
    %968 = vector.multi_reduction <add>, %967, %cst_288 [1] : vector<8x8xf32> to vector<8xf32>
    %969 = vector.shape_cast %968 : vector<8xf32> to vector<8x1xf32>
    %970 = vector.broadcast %969 : vector<8x1xf32> to vector<8x8xf32>
    %971 = arith.divf %967, %970 : vector<8x8xf32>
    %972 = arith.index_cast %c6_i32_273 : i32 to index
    %c0_289 = arith.constant 0 : index
    %c0_290 = arith.constant 0 : index
    %973 = vector.load %arg15[%972, %c0_289, %c0_290] : memref<8x8x128xf32, #tpu.memory_space<vmem>>, vector<1x8x8xf32>
    %974 = vector.shape_cast %973 : vector<1x8x8xf32> to vector<8x8xf32>
    %975 = vector.shape_cast %971 : vector<8x8xf32> to vector<1x8x8xf32>
    tpu.vector_store %arg15[%972, %c0_289, %c0_290], %975 {strides = array<i32>} : memref<8x8x128xf32, #tpu.memory_space<vmem>>, vector<1x8x8xf32>,
    %976 = vector.broadcast %964 : vector<8x1xf32> to vector<8x8xf32>
    %977 = arith.cmpf oeq, %962, %976 : vector<8x8xf32>
    %978 = arith.select %977, %409, %416 : vector<8x8xi1>, vector<8x8xf32>
    %cst_291 = arith.constant dense<0x7F800000> : vector<8xf32>
    %979 = vector.multi_reduction <minimumf>, %978, %cst_291 [1] : vector<8x8xf32> to vector<8xf32>
    %980 = vector.shape_cast %979 : vector<8xf32> to vector<8x1xf32>
    %981 = vector.broadcast %980 : vector<8x1xf32> to vector<8x8xf32>
    %982 = arith.cmpf oeq, %409, %981 : vector<8x8xf32>
    %983 = arith.extui %982 : vector<8x8xi1> to vector<8x8xi32>
    %984 = arith.sitofp %983 : vector<8x8xi32> to vector<8x8xf32>
    %985 = arith.mulf %984, %413 : vector<8x8xf32>
    %cst_292 = arith.constant dense<0.000000e+00> : vector<8xf32>
    %986 = vector.multi_reduction <add>, %985, %cst_292 [1] : vector<8x8xf32> to vector<8xf32>
    %987 = vector.shape_cast %986 : vector<8xf32> to vector<8x1xf32>
    %c7_i32_293 = arith.constant 7 : i32
    %c0_i32_294 = arith.constant 0 : i32
    %988 = arith.cmpi eq, %c7_i32_293, %c0_i32_294 : i32
    %c1_i32_295 = arith.constant 1 : i32
    %989 = arith.cmpi eq, %c7_i32_293, %c1_i32_295 : i32
    %990 = arith.select %989, %418, %987 : vector<8x1xf32>
    %991 = arith.select %988, %417, %990 : vector<8x1xf32>
    %992 = vector.broadcast %991 : vector<8x1xf32> to vector<8x512xf32>
    %993 = vector.broadcast %6 : vector<1x512xf32> to vector<8x512xf32>
    %994 = arith.mulf %992, %993 : vector<8x512xf32>
    %cst_296 = arith.constant dense<0.000000e+00> : vector<8x512xf32>
    %995 = tpu.matmul %944, %7, %cst_296 {dimension_numbers = #tpu.dot_dimension_numbers<[1], [0], [0], [1], [0, 0, 1, 1], [], []>} : vector<8x128xf32>, vector<128x512xf32>, vector<8x512xf32> -> vector<8x512xf32>
    %996 = arith.addf %994, %995 : vector<8x512xf32>
    %997 = vector.broadcast %8 : vector<1x512xf32> to vector<8x512xf32>
    %998 = arith.addf %996, %997 : vector<8x512xf32>
    %999 = vector.extract_strided_slice %998 {offsets = [0, 0], sizes = [8, 128], strides = [1, 1]} : vector<8x512xf32> to vector<8x128xf32>
    %1000 = arith.negf %999 : vector<8x128xf32>
    %1001 = math.exp %1000 : vector<8x128xf32>
    %cst_297 = arith.constant 1.000000e+00 : f32
    %1002 = vector.broadcast %cst_297 : f32 to vector<8x128xf32>
    %1003 = arith.addf %1002, %1001 : vector<8x128xf32>
    %1004 = arith.divf %1002, %1003 : vector<8x128xf32>
    %1005 = vector.extract_strided_slice %998 {offsets = [0, 128], sizes = [8, 128], strides = [1, 1]} : vector<8x512xf32> to vector<8x128xf32>
    %1006 = arith.negf %1005 : vector<8x128xf32>
    %1007 = math.exp %1006 : vector<8x128xf32>
    %cst_298 = arith.constant 1.000000e+00 : f32
    %1008 = vector.broadcast %cst_298 : f32 to vector<8x128xf32>
    %1009 = arith.addf %1008, %1007 : vector<8x128xf32>
    %1010 = arith.divf %1008, %1009 : vector<8x128xf32>
    %1011 = vector.extract_strided_slice %998 {offsets = [0, 256], sizes = [8, 128], strides = [1, 1]} : vector<8x512xf32> to vector<8x128xf32>
    %1012 = math.tanh %1011 : vector<8x128xf32>
    %1013 = vector.extract_strided_slice %998 {offsets = [0, 384], sizes = [8, 128], strides = [1, 1]} : vector<8x512xf32> to vector<8x128xf32>
    %1014 = arith.negf %1013 : vector<8x128xf32>
    %1015 = math.exp %1014 : vector<8x128xf32>
    %cst_299 = arith.constant 1.000000e+00 : f32
    %1016 = vector.broadcast %cst_299 : f32 to vector<8x128xf32>
    %1017 = arith.addf %1016, %1015 : vector<8x128xf32>
    %1018 = arith.divf %1016, %1017 : vector<8x128xf32>
    %1019 = arith.mulf %1010, %942 : vector<8x128xf32>
    %1020 = arith.mulf %1004, %1012 : vector<8x128xf32>
    %1021 = arith.addf %1019, %1020 : vector<8x128xf32>
    %1022 = math.tanh %1021 : vector<8x128xf32>
    %1023 = arith.mulf %1018, %1022 : vector<8x128xf32>
    %cst_300 = arith.constant dense<0.000000e+00> : vector<8x128xf32>
    %1024 = tpu.matmul %1023, %11, %cst_300 {dimension_numbers = #tpu.dot_dimension_numbers<[1], [0], [0], [1], [0, 0, 1, 1], [], []>} : vector<8x128xf32>, vector<128x128xf32>, vector<8x128xf32> -> vector<8x128xf32>
    %1025 = vector.broadcast %12 : vector<1x128xf32> to vector<8x128xf32>
    %1026 = arith.addf %1024, %1025 : vector<8x128xf32>
    %1027 = arith.index_cast %c7_i32_293 : i32 to index
    %c0_301 = arith.constant 0 : index
    %c0_302 = arith.constant 0 : index
    %c0_303 = arith.constant 0 : index
    %1028 = vector.load %arg18[%1027, %c0_301, %c0_302, %c0_303] : memref<8x8x8x128xf32, #tpu.memory_space<vmem>>, vector<1x8x8x128xf32>
    %1029 = vector.shape_cast %1028 : vector<1x8x8x128xf32> to vector<8x8x128xf32>
    %1030 = vector.shape_cast %1026 : vector<8x128xf32> to vector<1x8x128xf32>
    %1031 = vector.broadcast %1030 : vector<1x8x128xf32> to vector<8x8x128xf32>
    %1032 = arith.addf %1029, %1031 : vector<8x8x128xf32>
    %1033 = math.tanh %1032 : vector<8x8x128xf32>
    %1034 = vector.shape_cast %1033 : vector<8x8x128xf32> to vector<64x128xf32>
    %cst_304 = arith.constant dense<0.000000e+00> : vector<64x1xf32>
    %1035 = tpu.matmul %1034, %13, %cst_304 {dimension_numbers = #tpu.dot_dimension_numbers<[1], [1], [0], [0], [0, 0, 1, 0], [], []>} : vector<64x128xf32>, vector<1x128xf32>, vector<64x1xf32> -> vector<64x1xf32>
    %1036 = vector.broadcast %1035 : vector<64x1xf32> to vector<64x8xf32>
    %1037 = arith.mulf %1036, %432 : vector<64x8xf32>
    %cst_305 = arith.constant dense<0.000000e+00> : vector<8x8xf32>
    %1038 = tpu.matmul %425, %1037, %cst_305 {dimension_numbers = #tpu.dot_dimension_numbers<[1], [0], [0], [1], [0, 0, 1, 1], [], []>} : vector<8x64xf32>, vector<64x8xf32>, vector<8x8xf32> -> vector<8x8xf32>
    %cst_306 = arith.constant 1.000000e+03 : f32
    %1039 = vector.broadcast %cst_306 : f32 to vector<8x8xf32>
    %1040 = arith.subf %1038, %1039 : vector<8x8xf32>
    %1041 = arith.select %415, %1038, %1040 : vector<8x8xi1>, vector<8x8xf32>
    %cst_307 = arith.constant dense<0xFF800000> : vector<8xf32>
    %1042 = vector.multi_reduction <maximumf>, %1041, %cst_307 [1] : vector<8x8xf32> to vector<8xf32>
    %1043 = vector.shape_cast %1042 : vector<8xf32> to vector<8x1xf32>
    %1044 = vector.broadcast %1043 : vector<8x1xf32> to vector<8x8xf32>
    %1045 = arith.subf %1041, %1044 : vector<8x8xf32>
    %1046 = math.exp %1045 : vector<8x8xf32>
    %cst_308 = arith.constant dense<0.000000e+00> : vector<8xf32>
    %1047 = vector.multi_reduction <add>, %1046, %cst_308 [1] : vector<8x8xf32> to vector<8xf32>
    %1048 = vector.shape_cast %1047 : vector<8xf32> to vector<8x1xf32>
    %1049 = vector.broadcast %1048 : vector<8x1xf32> to vector<8x8xf32>
    %1050 = arith.divf %1046, %1049 : vector<8x8xf32>
    %1051 = arith.index_cast %c7_i32_293 : i32 to index
    %c0_309 = arith.constant 0 : index
    %c0_310 = arith.constant 0 : index
    %1052 = vector.load %arg15[%1051, %c0_309, %c0_310] : memref<8x8x128xf32, #tpu.memory_space<vmem>>, vector<1x8x8xf32>
    %1053 = vector.shape_cast %1052 : vector<1x8x8xf32> to vector<8x8xf32>
    %1054 = vector.shape_cast %1050 : vector<8x8xf32> to vector<1x8x8xf32>
    tpu.vector_store %arg15[%1051, %c0_309, %c0_310], %1054 {strides = array<i32>} : memref<8x8x128xf32, #tpu.memory_space<vmem>>, vector<1x8x8xf32>,
    %1055 = vector.broadcast %1043 : vector<8x1xf32> to vector<8x8xf32>
    %1056 = arith.cmpf oeq, %1041, %1055 : vector<8x8xf32>
    %1057 = arith.select %1056, %409, %416 : vector<8x8xi1>, vector<8x8xf32>
    %cst_311 = arith.constant dense<0x7F800000> : vector<8xf32>
    %1058 = vector.multi_reduction <minimumf>, %1057, %cst_311 [1] : vector<8x8xf32> to vector<8xf32>
    %1059 = vector.shape_cast %1058 : vector<8xf32> to vector<8x1xf32>
    %1060 = vector.broadcast %1059 : vector<8x1xf32> to vector<8x8xf32>
    %1061 = arith.cmpf oeq, %409, %1060 : vector<8x8xf32>
    %1062 = arith.extui %1061 : vector<8x8xi1> to vector<8x8xi32>
    %1063 = arith.sitofp %1062 : vector<8x8xi32> to vector<8x8xf32>
    %1064 = arith.mulf %1063, %413 : vector<8x8xf32>
    %cst_312 = arith.constant dense<0.000000e+00> : vector<8xf32>
    %1065 = vector.multi_reduction <add>, %1064, %cst_312 [1] : vector<8x8xf32> to vector<8xf32>
    %1066 = vector.shape_cast %1065 : vector<8xf32> to vector<8x1xf32>
    %c8_i32_313 = arith.constant 8 : i32
    return
  }
  func.func @transform_0(%arg0: i32) -> (i32, i32) {
    %c0_i32 = arith.constant 0 : i32
    %c0_i32_0 = arith.constant 0 : i32
    return %arg0, %c0_i32 : i32, i32
  }
  func.func @transform_1(%arg0: i32) -> (i32, i32, i32) {
    %c0_i32 = arith.constant 0 : i32
    %c0_i32_0 = arith.constant 0 : i32
    %c0_i32_1 = arith.constant 0 : i32
    return %c0_i32, %arg0, %c0_i32_0 : i32, i32, i32
  }
  func.func @transform_2(%arg0: i32) -> (i32, i32) {
    %c0_i32 = arith.constant 0 : i32
    %c0_i32_0 = arith.constant 0 : i32
    return %arg0, %c0_i32 : i32, i32
  }
  func.func @transform_3(%arg0: i32) -> (i32, i32) {
    %c0_i32 = arith.constant 0 : i32
    %c0_i32_0 = arith.constant 0 : i32
    %c0_i32_1 = arith.constant 0 : i32
    return %c0_i32, %c0_i32_0 : i32, i32
  }
  func.func @transform_4(%arg0: i32) -> (i32, i32) {
    %c0_i32 = arith.constant 0 : i32
    %c0_i32_0 = arith.constant 0 : i32
    %c0_i32_1 = arith.constant 0 : i32
    return %c0_i32, %c0_i32_0 : i32, i32
  }
  func.func @transform_5(%arg0: i32) -> (i32, i32) {
    %c0_i32 = arith.constant 0 : i32
    %c0_i32_0 = arith.constant 0 : i32
    %c0_i32_1 = arith.constant 0 : i32
    return %c0_i32, %c0_i32_0 : i32, i32
  }
  func.func @transform_6(%arg0: i32) -> (i32, i32) {
    %c0_i32 = arith.constant 0 : i32
    %c0_i32_0 = arith.constant 0 : i32
    %c0_i32_1 = arith.constant 0 : i32
    return %c0_i32, %c0_i32_0 : i32, i32
  }
  func.func @transform_7(%arg0: i32) -> (i32, i32) {
    %c0_i32 = arith.constant 0 : i32
    %c0_i32_0 = arith.constant 0 : i32
    %c0_i32_1 = arith.constant 0 : i32
    return %c0_i32, %c0_i32_0 : i32, i32
  }
  func.func @transform_8(%arg0: i32) -> (i32, i32) {
    %c0_i32 = arith.constant 0 : i32
    %c0_i32_0 = arith.constant 0 : i32
    %c0_i32_1 = arith.constant 0 : i32
    return %c0_i32, %c0_i32_0 : i32, i32
  }
  func.func @transform_9(%arg0: i32) -> (i32, i32) {
    %c0_i32 = arith.constant 0 : i32
    %c0_i32_0 = arith.constant 0 : i32
    %c0_i32_1 = arith.constant 0 : i32
    return %c0_i32, %c0_i32_0 : i32, i32
  }
  func.func @transform_10(%arg0: i32) -> (i32, i32) {
    %c0_i32 = arith.constant 0 : i32
    %c0_i32_0 = arith.constant 0 : i32
    %c0_i32_1 = arith.constant 0 : i32
    return %c0_i32, %c0_i32_0 : i32, i32
  }
  func.func @transform_11(%arg0: i32) -> (i32, i32) {
    %c0_i32 = arith.constant 0 : i32
    %c0_i32_0 = arith.constant 0 : i32
    %c0_i32_1 = arith.constant 0 : i32
    return %c0_i32, %c0_i32_0 : i32, i32
  }
  func.func @transform_12(%arg0: i32) -> (i32, i32) {
    %c0_i32 = arith.constant 0 : i32
    %c0_i32_0 = arith.constant 0 : i32
    %c0_i32_1 = arith.constant 0 : i32
    return %c0_i32, %c0_i32_0 : i32, i32
  }
  func.func @transform_13(%arg0: i32) -> (i32, i32) {
    %c0_i32 = arith.constant 0 : i32
    %c0_i32_0 = arith.constant 0 : i32
    %c0_i32_1 = arith.constant 0 : i32
    return %c0_i32, %c0_i32_0 : i32, i32
  }
  func.func @transform_14(%arg0: i32) -> (i32, i32, i32) {
    %c0_i32 = arith.constant 0 : i32
    %c0_i32_0 = arith.constant 0 : i32
    %c0_i32_1 = arith.constant 0 : i32
    return %c0_i32, %arg0, %c0_i32_0 : i32, i32, i32
  }
}

</mosaic_0001>

<llo_original>
// kernel: tpu_custom_call.1
$region0: #{tpu_custom_call.1}
  #allocation0 [shape = 'u32[]', space=smem, size = 0x4, offset = 0x4, fixed_abs, tag = 'smem constant byte address 0x4 - core index']
  #allocation1 [shape = 'u32[144,128]{1,0:T(1,128)}', space=vmem, size = 0x12000, scoped, tag = 'internal scratch']
  #allocation2 [shape = 'f32[8,8,128]{2,1,0:T(8,128)}', space=vmem, size = 0x8000, scoped, tag = 'scratch operand']
  #allocation3 [shape = 'f32[8,8,128]{2,1,0:T(8,128)}', space=vmem, size = 0x8000, scoped, tag = 'scratch operand']
  #allocation4 [shape = 'f32[8,8,8,128]{3,2,1,0:T(8,128)}', space=vmem, size = 0x40000, scoped, tag = 'scratch operand']
  %s0 = inlined_call_operand.vmem [shape: f32[8,8], index: 0, kind: input, shape index: {}]
  %s1 = inlined_call_operand.vmem [shape: s32[1,8,1], index: 1, kind: input, shape index: {}]
  %s2 = inlined_call_operand.vmem [shape: f32[8,8], index: 2, kind: input, shape index: {}]
  %s3 = inlined_call_operand.vmem [shape: f32[1,512], index: 3, kind: input, shape index: {}]
  %s4 = inlined_call_operand.hbm [shape: f32[128,512], index: 4, kind: input, shape index: {}]
  %s5 = inlined_call_operand.vmem [shape: f32[1,512], index: 5, kind: input, shape index: {}]
  %s6 = inlined_call_operand.vmem [shape: f32[1,512], index: 6, kind: input, shape index: {}]
  %s7 = inlined_call_operand.hbm [shape: f32[128,512], index: 7, kind: input, shape index: {}]
  %s8 = inlined_call_operand.vmem [shape: f32[1,512], index: 8, kind: input, shape index: {}]
  %s9 = inlined_call_operand.hbm [shape: f32[128,128], index: 9, kind: input, shape index: {}]
  %s10 = inlined_call_operand.vmem [shape: f32[1,128], index: 10, kind: input, shape index: {}]
  %s11 = inlined_call_operand.hbm [shape: f32[128,128], index: 11, kind: input, shape index: {}]
  %s12 = inlined_call_operand.vmem [shape: f32[1,128], index: 12, kind: input, shape index: {}]
  %s13 = inlined_call_operand.vmem [shape: f32[1,128], index: 13, kind: input, shape index: {}]
  %s14 = inlined_call_operand.hbm [shape: f32[8,8,128], index: 14, kind: output, shape index: {}]
  %s15 = sld [smem:[#allocation0]]
  $region82: #{tpu_custom_call.1} parent=0
    _
  %s17 = ssub.s32 1, %s15
  %s18 = scalar_select 0, %s17, %s15
  $region1: #{tpu_custom_call.1} parent=0
    #allocation5 [shape = 'u8[262144]{0}', space=vmem, size = 0x40000, scoped, tag = 'input window, operand 4, single buffered']
    #allocation6 [shape = 's32[1]{0}', space=sflag, size = 0x4, scoped, tag = 'scoped memory for tpu_custom_call.1']
    #allocation7 [shape = 's32[1]{0}', space=sflag, size = 0x4, scoped, tag = 'scoped memory for tpu_custom_call.1']
    #allocation8 [shape = 'u8[262144]{0}', space=vmem, size = 0x40000, scoped, tag = 'input window, operand 7, single buffered']
    #allocation9 [shape = 's32[1]{0}', space=sflag, size = 0x4, scoped, tag = 'scoped memory for tpu_custom_call.1']
    #allocation10 [shape = 'u8[65536]{0}', space=vmem, size = 0x10000, scoped, tag = 'input window, operand 9, single buffered']
    #allocation11 [shape = 'u8[65536]{0}', space=vmem, size = 0x10000, scoped, tag = 'input window, operand 11, single buffered']
    #allocation12 [shape = 's32[1]{0}', space=sflag, size = 0x4, scoped, tag = 'scoped memory for tpu_custom_call.1']
    #allocation13 [shape = 'u8[32768]{0}', space=vmem, size = 0x8000, scoped, tag = 'output window, operand 0, single buffered']
    %19 = vsyncpa [#allocation6], 0
    %20 = vsyncpa [#allocation9], 0
    %21 = vsyncpa [#allocation12], 0
    %22 = vsyncpa [#allocation7], 0
    // Predicated region
    $region2: #{tpu_custom_call.1} parent=1 // pred_check
      _
    $region3: #{tpu_custom_call.1} parent=1 // pred_check_branch
      %24 = sbr.rel (0) target = $region5
    $region4: #{tpu_custom_call.1} parent=1 // pred_region
      _
    $region5: #{tpu_custom_call.1} parent=1 // pred_fallthru
      _
    // Predicated region
    $region6: #{tpu_custom_call.1} parent=1 // pred_check
      _
    $region7: #{tpu_custom_call.1} parent=1 // pred_check_branch
      %26 = sbr.rel (0) target = $region9
    $region8: #{tpu_custom_call.1} parent=1 // pred_region
      _
    $region9: #{tpu_custom_call.1} parent=1 // pred_fallthru
      _
    // Predicated region
    $region10: #{tpu_custom_call.1} parent=1 // pred_check
      _
    $region11: #{tpu_custom_call.1} parent=1 // pred_check_branch
      %28 = sbr.rel (0) target = $region13
    $region12: #{tpu_custom_call.1} parent=1 // pred_region
      _
    $region13: #{tpu_custom_call.1} parent=1 // pred_fallthru
      _
    // Predicated region
    $region14: #{tpu_custom_call.1} parent=1 // pred_check
      _
    $region15: #{tpu_custom_call.1} parent=1 // pred_check_branch
      %30 = sbr.rel (0) target = $region17
    $region16: #{tpu_custom_call.1} parent=1 // pred_region
      _
    $region17: #{tpu_custom_call.1} parent=1 // pred_fallthru
      _
    // Predicated region
    $region18: #{tpu_custom_call.1} parent=1 // pred_check
      _
    $region19: #{tpu_custom_call.1} parent=1 // pred_check_branch
      %32 = sbr.rel (0) target = $region21
    $region20: #{tpu_custom_call.1} parent=1 // pred_region
      %s34 = ssub.s32 8192, 8192
      %35 = vsyncadd [#allocation6], %s34
      %s36 = sshll.u32 [#allocation5], 4
      %s37 = int_to_ptr.vmem [resolvable:$true] %s36
      %42 = dma.hbm_to_vmem [thread:$0]  %s4, 8192, %s37, [#allocation6], 512, 512, 32
    $region21: #{tpu_custom_call.1} parent=1 // pred_fallthru
      _
    // Predicated region
    $region22: #{tpu_custom_call.1} parent=1 // pred_check
      _
    $region23: #{tpu_custom_call.1} parent=1 // pred_check_branch
      %44 = sbr.rel (0) target = $region25
    $region24: #{tpu_custom_call.1} parent=1 // pred_region
      _
    $region25: #{tpu_custom_call.1} parent=1 // pred_fallthru
      _
    // Predicated region
    $region26: #{tpu_custom_call.1} parent=1 // pred_check
      _
    $region27: #{tpu_custom_call.1} parent=1 // pred_check_branch
      %46 = sbr.rel (0) target = $region29
    $region28: #{tpu_custom_call.1} parent=1 // pred_region
      _
    $region29: #{tpu_custom_call.1} parent=1 // pred_fallthru
      _
    // Predicated region
    $region30: #{tpu_custom_call.1} parent=1 // pred_check
      _
    $region31: #{tpu_custom_call.1} parent=1 // pred_check_branch
      %48 = sbr.rel (0) target = $region33
    $region32: #{tpu_custom_call.1} parent=1 // pred_region
      %s50 = ssub.s32 8192, 8192
      %51 = vsyncadd [#allocation9], %s50
      %s52 = sshll.u32 [#allocation8], 4
      %s53 = int_to_ptr.vmem [resolvable:$true] %s52
      %58 = dma.hbm_to_vmem [thread:$0]  %s7, 8192, %s53, [#allocation9], 512, 512, 32
    $region33: #{tpu_custom_call.1} parent=1 // pred_fallthru
      _
    // Predicated region
    $region34: #{tpu_custom_call.1} parent=1 // pred_check
      _
    $region35: #{tpu_custom_call.1} parent=1 // pred_check_branch
      %60 = sbr.rel (0) target = $region37
    $region36: #{tpu_custom_call.1} parent=1 // pred_region
      _
    $region37: #{tpu_custom_call.1} parent=1 // pred_fallthru
      _
    // Predicated region
    $region38: #{tpu_custom_call.1} parent=1 // pred_check
      _
    $region39: #{tpu_custom_call.1} parent=1 // pred_check_branch
      %62 = sbr.rel (0) target = $region41
    $region40: #{tpu_custom_call.1} parent=1 // pred_region
      %s64 = ssub.s32 2048, 2048
      %65 = vsyncadd [#allocation9], %s64
      %s66 = sshll.u32 [#allocation10], 4
      %s67 = int_to_ptr.vmem [resolvable:$true] %s66
      %72 = dma.hbm_to_vmem [thread:$0]  %s9, 2048, %s67, [#allocation9], 128, 128, 8
    $region41: #{tpu_custom_call.1} parent=1 // pred_fallthru
      _
    // Predicated region
    $region42: #{tpu_custom_call.1} parent=1 // pred_check
      _
    $region43: #{tpu_custom_call.1} parent=1 // pred_check_branch
      %74 = sbr.rel (0) target = $region45
    $region44: #{tpu_custom_call.1} parent=1 // pred_region
      _
    $region45: #{tpu_custom_call.1} parent=1 // pred_fallthru
      _
    // Predicated region
    $region46: #{tpu_custom_call.1} parent=1 // pred_check
      _
    $region47: #{tpu_custom_call.1} parent=1 // pred_check_branch
      %76 = sbr.rel (0) target = $region49
    $region48: #{tpu_custom_call.1} parent=1 // pred_region
      %s78 = ssub.s32 2048, 2048
      %79 = vsyncadd [#allocation12], %s78
      %s80 = sshll.u32 [#allocation11], 4
      %s81 = int_to_ptr.vmem [resolvable:$true] %s80
      %86 = dma.hbm_to_vmem [thread:$0]  %s11, 2048, %s81, [#allocation12], 128, 128, 8
    $region49: #{tpu_custom_call.1} parent=1 // pred_fallthru
      _
    // Predicated region
    $region50: #{tpu_custom_call.1} parent=1 // pred_check
      _
    $region51: #{tpu_custom_call.1} parent=1 // pred_check_branch
      %88 = sbr.rel (0) target = $region53
    $region52: #{tpu_custom_call.1} parent=1 // pred_region
      _
    $region53: #{tpu_custom_call.1} parent=1 // pred_fallthru
      _
    // Predicated region
    $region54: #{tpu_custom_call.1} parent=1 // pred_check
      _
    $region55: #{tpu_custom_call.1} parent=1 // pred_check_branch
      %90 = sbr.rel (0) target = $region57
    $region56: #{tpu_custom_call.1} parent=1 // pred_region
      _
    $region57: #{tpu_custom_call.1} parent=1 // pred_fallthru
      _
    // Predicated region
    $region58: #{tpu_custom_call.1} parent=1 // pred_check
      _
    $region59: #{tpu_custom_call.1} parent=1 // pred_check_branch
      %92 = sbr.rel (0) target = $region61
    $region60: #{tpu_custom_call.1} parent=1 // pred_region
      %93 = dma.done [#allocation6], 8192
    $region61: #{tpu_custom_call.1} parent=1 // pred_fallthru
      _
    // Predicated region
    $region62: #{tpu_custom_call.1} parent=1 // pred_check
      _
    $region63: #{tpu_custom_call.1} parent=1 // pred_check_branch
      %95 = sbr.rel (0) target = $region65
    $region64: #{tpu_custom_call.1} parent=1 // pred_region
      %96 = dma.done [#allocation9], 8192
    $region65: #{tpu_custom_call.1} parent=1 // pred_fallthru
      _
    // Predicated region
    $region66: #{tpu_custom_call.1} parent=1 // pred_check
      _
    $region67: #{tpu_custom_call.1} parent=1 // pred_check_branch
      %98 = sbr.rel (0) target = $region69
    $region68: #{tpu_custom_call.1} parent=1 // pred_region
      %99 = dma.done [#allocation9], 2048
    $region69: #{tpu_custom_call.1} parent=1 // pred_fallthru
      _
    // Predicated region
    $region70: #{tpu_custom_call.1} parent=1 // pred_check
      _
    $region71: #{tpu_custom_call.1} parent=1 // pred_check_branch
      %101 = sbr.rel (0) target = $region73
    $region72: #{tpu_custom_call.1} parent=1 // pred_region
      %102 = dma.done [#allocation12], 2048
    $region73: #{tpu_custom_call.1} parent=1 // pred_fallthru
      _
    %v103 = vld [vmem:[%s0] sm:$0xff]
    %v104 = vld [vmem:[%s2] sm:$0xff]
    %v105 = vld [vmem:[%s1] sm:$0xff]
    %v106 = vld [vmem:[%s3] sm:$0xf]
    %v107 = vld [vmem:[#allocation5] sm:$0xff]
    %v108 = vld [vmem:[#allocation5 + $0x8] sm:$0xff]
    %v109 = vld [vmem:[#allocation5 + $0x10] sm:$0xff]
    %v110 = vld [vmem:[#allocation5 + $0x18] sm:$0xff]
    %v111 = vld [vmem:[#allocation5 + $0x20] sm:$0xff]
    %v112 = vld [vmem:[#allocation5 + $0x28] sm:$0xff]
    %v113 = vld [vmem:[#allocation5 + $0x30] sm:$0xff]
    %v114 = vld [vmem:[#allocation5 + $0x38] sm:$0xff]
    %v115 = vld [vmem:[#allocation5 + $0x40] sm:$0xff]
    %v116 = vld [vmem:[#allocation5 + $0x48] sm:$0xff]
    %v117 = vld [vmem:[#allocation5 + $0x50] sm:$0xff]
    %v118 = vld [vmem:[#allocation5 + $0x58] sm:$0xff]
    %v119 = vld [vmem:[#allocation5 + $0x60] sm:$0xff]
    %v120 = vld [vmem:[#allocation5 + $0x68] sm:$0xff]
    %v121 = vld [vmem:[#allocation5 + $0x70] sm:$0xff]
    %v122 = vld [vmem:[#allocation5 + $0x78] sm:$0xff]
    %v123 = vld [vmem:[#allocation5 + $0x80] sm:$0xff]
    %v124 = vld [vmem:[#allocation5 + $0x88] sm:$0xff]
    %v125 = vld [vmem:[#allocation5 + $0x90] sm:$0xff]
    %v126 = vld [vmem:[#allocation5 + $0x98] sm:$0xff]
    %v127 = vld [vmem:[#allocation5 + $0xa0] sm:$0xff]
    %v128 = vld [vmem:[#allocation5 + $0xa8] sm:$0xff]
    %v129 = vld [vmem:[#allocation5 + $0xb0] sm:$0xff]
    %v130 = vld [vmem:[#allocation5 + $0xb8] sm:$0xff]
    %v131 = vld [vmem:[#allocation5 + $0xc0] sm:$0xff]
    %v132 = vld [vmem:[#allocation5 + $0xc8] sm:$0xff]
    %v133 = vld [vmem:[#allocation5 + $0xd0] sm:$0xff]
    %v134 = vld [vmem:[#allocation5 + $0xd8] sm:$0xff]
    %v135 = vld [vmem:[#allocation5 + $0xe0] sm:$0xff]
    %v136 = vld [vmem:[#allocation5 + $0xe8] sm:$0xff]
    %v137 = vld [vmem:[#allocation5 + $0xf0] sm:$0xff]
    %v138 = vld [vmem:[#allocation5 + $0xf8] sm:$0xff]
    %v139 = vld [vmem:[#allocation5 + $0x100] sm:$0xff]
    %v140 = vld [vmem:[#allocation5 + $0x108] sm:$0xff]
    %v141 = vld [vmem:[#allocation5 + $0x110] sm:$0xff]
    %v142 = vld [vmem:[#allocation5 + $0x118] sm:$0xff]
    %v143 = vld [vmem:[#allocation5 + $0x120] sm:$0xff]
    %v144 = vld [vmem:[#allocation5 + $0x128] sm:$0xff]
    %v145 = vld [vmem:[#allocation5 + $0x130] sm:$0xff]
    %v146 = vld [vmem:[#allocation5 + $0x138] sm:$0xff]
    %v147 = vld [vmem:[#allocation5 + $0x140] sm:$0xff]
    %v148 = vld [vmem:[#allocation5 + $0x148] sm:$0xff]
    %v149 = vld [vmem:[#allocation5 + $0x150] sm:$0xff]
    %v150 = vld [vmem:[#allocation5 + $0x158] sm:$0xff]
    %v151 = vld [vmem:[#allocation5 + $0x160] sm:$0xff]
    %v152 = vld [vmem:[#allocation5 + $0x168] sm:$0xff]
    %v153 = vld [vmem:[#allocation5 + $0x170] sm:$0xff]
    %v154 = vld [vmem:[#allocation5 + $0x178] sm:$0xff]
    %v155 = vld [vmem:[#allocation5 + $0x180] sm:$0xff]
    %v156 = vld [vmem:[#allocation5 + $0x188] sm:$0xff]
    %v157 = vld [vmem:[#allocation5 + $0x190] sm:$0xff]
    %v158 = vld [vmem:[#allocation5 + $0x198] sm:$0xff]
    %v159 = vld [vmem:[#allocation5 + $0x1a0] sm:$0xff]
    %v160 = vld [vmem:[#allocation5 + $0x1a8] sm:$0xff]
    %v161 = vld [vmem:[#allocation5 + $0x1b0] sm:$0xff]
    %v162 = vld [vmem:[#allocation5 + $0x1b8] sm:$0xff]
    %v163 = vld [vmem:[#allocation5 + $0x1c0] sm:$0xff]
    %v164 = vld [vmem:[#allocation5 + $0x1c8] sm:$0xff]
    %v165 = vld [vmem:[#allocation5 + $0x1d0] sm:$0xff]
    %v166 = vld [vmem:[#allocation5 + $0x1d8] sm:$0xff]
    %v167 = vld [vmem:[#allocation5 + $0x1e0] sm:$0xff]
    %v168 = vld [vmem:[#allocation5 + $0x1e8] sm:$0xff]
    %v169 = vld [vmem:[#allocation5 + $0x1f0] sm:$0xff]
    %v170 = vld [vmem:[#allocation5 + $0x1f8] sm:$0xff]
    %v171 = vld [vmem:[%s5] sm:$0xf]
    %v172 = vld [vmem:[%s6] sm:$0xf]
    %v173 = vld [vmem:[#allocation8] sm:$0xff]
    %v174 = vld [vmem:[#allocation8 + $0x8] sm:$0xff]
    %v175 = vld [vmem:[#allocation8 + $0x10] sm:$0xff]
    %v176 = vld [vmem:[#allocation8 + $0x18] sm:$0xff]
    %v177 = vld [vmem:[#allocation8 + $0x20] sm:$0xff]
    %v178 = vld [vmem:[#allocation8 + $0x28] sm:$0xff]
    %v179 = vld [vmem:[#allocation8 + $0x30] sm:$0xff]
    %v180 = vld [vmem:[#allocation8 + $0x38] sm:$0xff]
    %v181 = vld [vmem:[#allocation8 + $0x40] sm:$0xff]
    %v182 = vld [vmem:[#allocation8 + $0x48] sm:$0xff]
    %v183 = vld [vmem:[#allocation8 + $0x50] sm:$0xff]
    %v184 = vld [vmem:[#allocation8 + $0x58] sm:$0xff]
    %v185 = vld [vmem:[#allocation8 + $0x60] sm:$0xff]
    %v186 = vld [vmem:[#allocation8 + $0x68] sm:$0xff]
    %v187 = vld [vmem:[#allocation8 + $0x70] sm:$0xff]
    %v188 = vld [vmem:[#allocation8 + $0x78] sm:$0xff]
    %v189 = vld [vmem:[#allocation8 + $0x80] sm:$0xff]
    %v190 = vld [vmem:[#allocation8 + $0x88] sm:$0xff]
    %v191 = vld [vmem:[#allocation8 + $0x90] sm:$0xff]
    %v192 = vld [vmem:[#allocation8 + $0x98] sm:$0xff]
    %v193 = vld [vmem:[#allocation8 + $0xa0] sm:$0xff]
    %v194 = vld [vmem:[#allocation8 + $0xa8] sm:$0xff]
    %v195 = vld [vmem:[#allocation8 + $0xb0] sm:$0xff]
    %v196 = vld [vmem:[#allocation8 + $0xb8] sm:$0xff]
    %v197 = vld [vmem:[#allocation8 + $0xc0] sm:$0xff]
    %v198 = vld [vmem:[#allocation8 + $0xc8] sm:$0xff]
    %v199 = vld [vmem:[#allocation8 + $0xd0] sm:$0xff]
    %v200 = vld [vmem:[#allocation8 + $0xd8] sm:$0xff]
    %v201 = vld [vmem:[#allocation8 + $0xe0] sm:$0xff]
    %v202 = vld [vmem:[#allocation8 + $0xe8] sm:$0xff]
    %v203 = vld [vmem:[#allocation8 + $0xf0] sm:$0xff]
    %v204 = vld [vmem:[#allocation8 + $0xf8] sm:$0xff]
    %v205 = vld [vmem:[#allocation8 + $0x100] sm:$0xff]
    %v206 = vld [vmem:[#allocation8 + $0x108] sm:$0xff]
    %v207 = vld [vmem:[#allocation8 + $0x110] sm:$0xff]
    %v208 = vld [vmem:[#allocation8 + $0x118] sm:$0xff]
    %v209 = vld [vmem:[#allocation8 + $0x120] sm:$0xff]
    %v210 = vld [vmem:[#allocation8 + $0x128] sm:$0xff]
    %v211 = vld [vmem:[#allocation8 + $0x130] sm:$0xff]
    %v212 = vld [vmem:[#allocation8 + $0x138] sm:$0xff]
    %v213 = vld [vmem:[#allocation8 + $0x140] sm:$0xff]
    %v214 = vld [vmem:[#allocation8 + $0x148] sm:$0xff]
    %v215 = vld [vmem:[#allocation8 + $0x150] sm:$0xff]
    %v216 = vld [vmem:[#allocation8 + $0x158] sm:$0xff]
    %v217 = vld [vmem:[#allocation8 + $0x160] sm:$0xff]
    %v218 = vld [vmem:[#allocation8 + $0x168] sm:$0xff]
    %v219 = vld [vmem:[#allocation8 + $0x170] sm:$0xff]
    %v220 = vld [vmem:[#allocation8 + $0x178] sm:$0xff]
    %v221 = vld [vmem:[#allocation8 + $0x180] sm:$0xff]
    %v222 = vld [vmem:[#allocation8 + $0x188] sm:$0xff]
    %v223 = vld [vmem:[#allocation8 + $0x190] sm:$0xff]
    %v224 = vld [vmem:[#allocation8 + $0x198] sm:$0xff]
    %v225 = vld [vmem:[#allocation8 + $0x1a0] sm:$0xff]
    %v226 = vld [vmem:[#allocation8 + $0x1a8] sm:$0xff]
    %v227 = vld [vmem:[#allocation8 + $0x1b0] sm:$0xff]
    %v228 = vld [vmem:[#allocation8 + $0x1b8] sm:$0xff]
    %v229 = vld [vmem:[#allocation8 + $0x1c0] sm:$0xff]
    %v230 = vld [vmem:[#allocation8 + $0x1c8] sm:$0xff]
    %v231 = vld [vmem:[#allocation8 + $0x1d0] sm:$0xff]
    %v232 = vld [vmem:[#allocation8 + $0x1d8] sm:$0xff]
    %v233 = vld [vmem:[#allocation8 + $0x1e0] sm:$0xff]
    %v234 = vld [vmem:[#allocation8 + $0x1e8] sm:$0xff]
    %v235 = vld [vmem:[#allocation8 + $0x1f0] sm:$0xff]
    %v236 = vld [vmem:[#allocation8 + $0x1f8] sm:$0xff]
    %v237 = vld [vmem:[%s8] sm:$0xf]
    %v238 = vld [vmem:[#allocation10] sm:$0xff]
    %v239 = vld [vmem:[#allocation10 + $0x8] sm:$0xff]
    %v240 = vld [vmem:[#allocation10 + $0x10] sm:$0xff]
    %v241 = vld [vmem:[#allocation10 + $0x18] sm:$0xff]
    %v242 = vld [vmem:[#allocation10 + $0x20] sm:$0xff]
    %v243 = vld [vmem:[#allocation10 + $0x28] sm:$0xff]
    %v244 = vld [vmem:[#allocation10 + $0x30] sm:$0xff]
    %v245 = vld [vmem:[#allocation10 + $0x38] sm:$0xff]
    %v246 = vld [vmem:[#allocation10 + $0x40] sm:$0xff]
    %v247 = vld [vmem:[#allocation10 + $0x48] sm:$0xff]
    %v248 = vld [vmem:[#allocation10 + $0x50] sm:$0xff]
    %v249 = vld [vmem:[#allocation10 + $0x58] sm:$0xff]
    %v250 = vld [vmem:[#allocation10 + $0x60] sm:$0xff]
    %v251 = vld [vmem:[#allocation10 + $0x68] sm:$0xff]
    %v252 = vld [vmem:[#allocation10 + $0x70] sm:$0xff]
    %v253 = vld [vmem:[#allocation10 + $0x78] sm:$0xff]
    %v254 = vld [vmem:[%s10] sm:$0x1]
    %v255 = vld [vmem:[#allocation11] sm:$0xff]
    %v256 = vld [vmem:[#allocation11 + $0x8] sm:$0xff]
    %v257 = vld [vmem:[#allocation11 + $0x10] sm:$0xff]
    %v258 = vld [vmem:[#allocation11 + $0x18] sm:$0xff]
    %v259 = vld [vmem:[#allocation11 + $0x20] sm:$0xff]
    %v260 = vld [vmem:[#allocation11 + $0x28] sm:$0xff]
    %v261 = vld [vmem:[#allocation11 + $0x30] sm:$0xff]
    %v262 = vld [vmem:[#allocation11 + $0x38] sm:$0xff]
    %v263 = vld [vmem:[#allocation11 + $0x40] sm:$0xff]
    %v264 = vld [vmem:[#allocation11 + $0x48] sm:$0xff]
    %v265 = vld [vmem:[#allocation11 + $0x50] sm:$0xff]
    %v266 = vld [vmem:[#allocation11 + $0x58] sm:$0xff]
    %v267 = vld [vmem:[#allocation11 + $0x60] sm:$0xff]
    %v268 = vld [vmem:[#allocation11 + $0x68] sm:$0xff]
    %v269 = vld [vmem:[#allocation11 + $0x70] sm:$0xff]
    %v270 = vld [vmem:[#allocation11 + $0x78] sm:$0xff]
    %v271 = vld [vmem:[%s12] sm:$0x1]
    %v272 = vld [vmem:[%s13] sm:$0x1]
    %274 = vset.pattern.permute.xlu0 0
    %275 = vperm.xlu0 %274, %v103
    %v276 = vpop.permute.xlu0 %275
    %v279 = vlaneseq
    %v280 = vshrl.u32 %v279, 7
    %v281 = vsub.s32 0, %v280
    %v282 = vrot.slane %v106, %v281
    %v283 = vlaneseq
    %v284 = vshrl.u32 %v283, 7
    %v285 = vsub.s32 1, %v284
    %v286 = vrot.slane %v106, %v285
    %v287 = vlaneseq
    %v288 = vshrl.u32 %v287, 7
    %v289 = vsub.s32 2, %v288
    %v290 = vrot.slane %v106, %v289
    %v291 = vlaneseq
    %v292 = vshrl.u32 %v291, 7
    %v293 = vsub.s32 3, %v292
    %v294 = vrot.slane %v106, %v293
    %v299 = vmul.f32 %v276, %v282
    %v300 = vmul.f32 %v276, %v286
    %v301 = vmul.f32 %v276, %v290
    %v302 = vmul.f32 %v276, %v294
    %303 = vmatprep.subr.mxu0 %v108
    %304 = vmatpush1.msra.mxu0 %v107
    %305 = vmatprep.subr.mxu0 %v112
    %306 = vmatpush1.msra.mxu0 %v111
    %307 = vmatprep.subr.mxu0 %v116
    %308 = vmatpush1.msra.mxu0 %v115
    %309 = vmatprep.subr.mxu0 %v120
    %310 = vmatpush1.msra.mxu0 %v119
    %311 = vmatprep.subr.mxu0 %v124
    %312 = vmatpush1.msra.mxu0 %v123
    %313 = vmatprep.subr.mxu0 %v128
    %314 = vmatpush1.msra.mxu0 %v127
    %315 = vmatprep.subr.mxu0 %v132
    %316 = vmatpush1.msra.mxu0 %v131
    %317 = vmatprep.subr.mxu0 %v136
    %318 = vmatpush1.msra.mxu0 %v135
    %319 = vmatprep.subr.mxu0 %v140
    %320 = vmatpush1.msra.mxu0 %v139
    %321 = vmatprep.subr.mxu0 %v144
    %322 = vmatpush1.msra.mxu0 %v143
    %323 = vmatprep.subr.mxu0 %v148
    %324 = vmatpush1.msra.mxu0 %v147
    %325 = vmatprep.subr.mxu0 %v152
    %326 = vmatpush1.msra.mxu0 %v151
    %327 = vmatprep.subr.mxu0 %v156
    %328 = vmatpush1.msra.mxu0 %v155
    %329 = vmatprep.subr.mxu0 %v160
    %330 = vmatpush1.msra.mxu0 %v159
    %331 = vmatprep.subr.mxu0 %v164
    %332 = vmatpush1.msra.mxu0 %v163
    %333 = vmatprep.subr.mxu0 %v168
    %334 = vmatpush1.msra.mxu0 %v167
    %335 = vmatprep.subr.mxu0 0.0
    %336 = vmatpush1.msra.mxu0 0.0
    %337 = vmatprep.subr.mxu0 0.0
    %338 = vmatpush1.msra.mxu0 0.0
    %339 = vmatprep.subr.mxu0 0.0
    %340 = vmatpush1.msra.mxu0 0.0
    %341 = vmatprep.subr.mxu0 0.0
    %342 = vmatpush1.msra.mxu0 0.0
    %343 = vmatprep.subr.mxu0 0.0
    %344 = vmatpush1.msra.mxu0 0.0
    %345 = vmatprep.subr.mxu0 0.0
    %346 = vmatpush1.msra.mxu0 0.0
    %347 = vmatprep.subr.mxu0 0.0
    %348 = vmatpush1.msra.mxu0 0.0
    %349 = vmatprep.subr.mxu0 0.0
    %350 = vmatpush1.msra.mxu0 0.0
    %351 = vmatprep.subr.mxu0 0.0
    %352 = vmatpush1.msra.mxu0 0.0
    %353 = vmatprep.subr.mxu0 0.0
    %354 = vmatpush1.msra.mxu0 0.0
    %355 = vmatprep.subr.mxu0 0.0
    %356 = vmatpush1.msra.mxu0 0.0
    %357 = vmatprep.subr.mxu0 0.0
    %358 = vmatpush1.msra.mxu0 0.0
    %359 = vmatprep.subr.mxu0 0.0
    %360 = vmatpush1.msra.mxu0 0.0
    %361 = vmatprep.subr.mxu0 0.0
    %362 = vmatpush1.msra.mxu0 0.0
    %363 = vmatprep.subr.mxu0 0.0
    %364 = vmatpush1.msra.mxu0 0.0
    %365 = vmatprep.subr.mxu0 0.0
    %366 = vmatpush1.msra.mxu0 0.0
    %367 = vmatprep.mubr.f32.mxu0 0.0
    %368 = vmatmul.mubr.f32.gmra.mrb[0].mxu0 0.0
    %v369 = vpop.f32.mrb[0].mxu0
    %v370 = vadd.f32 0.0, %v369
    %v371 = vpop.f32.mrb[0].mxu0
    %v372 = vadd.f32 0.0, %v371
    %373 = vdwg.mxu0
    %374 = vmatprep.subr.mxu0 %v110
    %375 = vmatpush1.msra.mxu0 %v109
    %376 = vmatprep.subr.mxu0 %v114
    %377 = vmatpush1.msra.mxu0 %v113
    %378 = vmatprep.subr.mxu0 %v118
    %379 = vmatpush1.msra.mxu0 %v117
    %380 = vmatprep.subr.mxu0 %v122
    %381 = vmatpush1.msra.mxu0 %v121
    %382 = vmatprep.subr.mxu0 %v126
    %383 = vmatpush1.msra.mxu0 %v125
    %384 = vmatprep.subr.mxu0 %v130
    %385 = vmatpush1.msra.mxu0 %v129
    %386 = vmatprep.subr.mxu0 %v134
    %387 = vmatpush1.msra.mxu0 %v133
    %388 = vmatprep.subr.mxu0 %v138
    %389 = vmatpush1.msra.mxu0 %v137
    %390 = vmatprep.subr.mxu0 %v142
    %391 = vmatpush1.msra.mxu0 %v141
    %392 = vmatprep.subr.mxu0 %v146
    %393 = vmatpush1.msra.mxu0 %v145
    %394 = vmatprep.subr.mxu0 %v150
    %395 = vmatpush1.msra.mxu0 %v149
    %396 = vmatprep.subr.mxu0 %v154
    %397 = vmatpush1.msra.mxu0 %v153
    %398 = vmatprep.subr.mxu0 %v158
    %399 = vmatpush1.msra.mxu0 %v157
    %400 = vmatprep.subr.mxu0 %v162
    %401 = vmatpush1.msra.mxu0 %v161
    %402 = vmatprep.subr.mxu0 %v166
    %403 = vmatpush1.msra.mxu0 %v165
    %404 = vmatprep.subr.mxu0 %v170
    %405 = vmatpush1.msra.mxu0 %v169
    %406 = vmatprep.subr.mxu0 0.0
    %407 = vmatpush1.msra.mxu0 0.0
    %408 = vmatprep.subr.mxu0 0.0
    %409 = vmatpush1.msra.mxu0 0.0
    %410 = vmatprep.subr.mxu0 0.0
    %411 = vmatpush1.msra.mxu0 0.0
    %412 = vmatprep.subr.mxu0 0.0
    %413 = vmatpush1.msra.mxu0 0.0
    %414 = vmatprep.subr.mxu0 0.0
    %415 = vmatpush1.msra.mxu0 0.0
    %416 = vmatprep.subr.mxu0 0.0
    %417 = vmatpush1.msra.mxu0 0.0
    %418 = vmatprep.subr.mxu0 0.0
    %419 = vmatpush1.msra.mxu0 0.0
    %420 = vmatprep.subr.mxu0 0.0
    %421 = vmatpush1.msra.mxu0 0.0
    %422 = vmatprep.subr.mxu0 0.0
    %423 = vmatpush1.msra.mxu0 0.0
    %424 = vmatprep.subr.mxu0 0.0
    %425 = vmatpush1.msra.mxu0 0.0
    %426 = vmatprep.subr.mxu0 0.0
    %427 = vmatpush1.msra.mxu0 0.0
    %428 = vmatprep.subr.mxu0 0.0
    %429 = vmatpush1.msra.mxu0 0.0
    %430 = vmatprep.subr.mxu0 0.0
    %431 = vmatpush1.msra.mxu0 0.0
    %432 = vmatprep.subr.mxu0 0.0
    %433 = vmatpush1.msra.mxu0 0.0
    %434 = vmatprep.subr.mxu0 0.0
    %435 = vmatpush1.msra.mxu0 0.0
    %436 = vmatprep.subr.mxu0 0.0
    %437 = vmatpush1.msra.mxu0 0.0
    %438 = vmatprep.mubr.f32.mxu0 0.0
    %439 = vmatmul.mubr.f32.gmra.mrb[0].mxu0 0.0
    %v440 = vpop.f32.mrb[0].mxu0
    %v441 = vadd.f32 0.0, %v440
    %v442 = vpop.f32.mrb[0].mxu0
    %v443 = vadd.f32 0.0, %v442
    %444 = vdwg.mxu0
    %v445 = vadd.f32 %v299, %v370
    %v446 = vadd.f32 %v300, %v372
    %v447 = vadd.f32 %v301, %v441
    %v448 = vadd.f32 %v302, %v443
    %v450 = vlaneseq
    %v451 = vshrl.u32 %v450, 7
    %v452 = vsub.s32 0, %v451
    %v453 = vrot.slane %v171, %v452
    %v454 = vlaneseq
    %v455 = vshrl.u32 %v454, 7
    %v456 = vsub.s32 1, %v455
    %v457 = vrot.slane %v171, %v456
    %v458 = vlaneseq
    %v459 = vshrl.u32 %v458, 7
    %v460 = vsub.s32 2, %v459
    %v461 = vrot.slane %v171, %v460
    %v462 = vlaneseq
    %v463 = vshrl.u32 %v462, 7
    %v464 = vsub.s32 3, %v463
    %v465 = vrot.slane %v171, %v464
    %v470 = vadd.f32 %v445, %v453
    %v471 = vadd.f32 %v446, %v457
    %v472 = vadd.f32 %v447, %v461
    %v473 = vadd.f32 %v448, %v465
    %v474 = vxor.u32 %v470, 2147483648
    %v475 = vmul.f32 %v474, 1.442695
    %v476 = vpow.pop %v475
    %v477 = vadd.f32 %v476, 1.0
    %v478 = vrcp.pop %v477
    %v479 = vmul.f32 1.0, %v478
    %v480 = vxor.u32 %v471, 2147483648
    %v481 = vmul.f32 %v480, 1.442695
    %v482 = vpow.pop %v481
    %v483 = vadd.f32 %v482, 1.0
    %v484 = vrcp.pop %v483
    %v485 = vmul.f32 1.0, %v484
    %v486 = vtanh.pop %v472
    %v487 = vxor.u32 %v473, 2147483648
    %v488 = vmul.f32 %v487, 1.442695
    %v489 = vpow.pop %v488
    %v490 = vadd.f32 %v489, 1.0
    %v491 = vrcp.pop %v490
    %v492 = vmul.f32 1.0, %v491
    %v493 = vmul.f32 %v485, 0.0
    %v494 = vmul.f32 %v479, %v486
    %v495 = vadd.f32 %v493, %v494
    %v496 = vtanh.pop %v495
    %v497 = vmul.f32 %v492, %v496
    %498 = vst [vmem:[#allocation2] sm:$0xff] %v497
    %499 = vst [vmem:[#allocation3] sm:$0xff] %v495
    %500 = vset.pattern.permute.xlu0 1
    %501 = vperm.xlu0 %500, %v103
    %v502 = vpop.permute.xlu0 %501
    %v504 = vmul.f32 %v502, %v282
    %v505 = vmul.f32 %v502, %v286
    %v506 = vmul.f32 %v502, %v290
    %v507 = vmul.f32 %v502, %v294
    %508 = vmatprep.subr.mxu0 %v108
    %509 = vmatpush1.msra.mxu0 %v107
    %510 = vmatprep.subr.mxu0 %v112
    %511 = vmatpush1.msra.mxu0 %v111
    %512 = vmatprep.subr.mxu0 %v116
    %513 = vmatpush1.msra.mxu0 %v115
    %514 = vmatprep.subr.mxu0 %v120
    %515 = vmatpush1.msra.mxu0 %v119
    %516 = vmatprep.subr.mxu0 %v124
    %517 = vmatpush1.msra.mxu0 %v123
    %518 = vmatprep.subr.mxu0 %v128
    %519 = vmatpush1.msra.mxu0 %v127
    %520 = vmatprep.subr.mxu0 %v132
    %521 = vmatpush1.msra.mxu0 %v131
    %522 = vmatprep.subr.mxu0 %v136
    %523 = vmatpush1.msra.mxu0 %v135
    %524 = vmatprep.subr.mxu0 %v140
    %525 = vmatpush1.msra.mxu0 %v139
    %526 = vmatprep.subr.mxu0 %v144
    %527 = vmatpush1.msra.mxu0 %v143
    %528 = vmatprep.subr.mxu0 %v148
    %529 = vmatpush1.msra.mxu0 %v147
    %530 = vmatprep.subr.mxu0 %v152
    %531 = vmatpush1.msra.mxu0 %v151
    %532 = vmatprep.subr.mxu0 %v156
    %533 = vmatpush1.msra.mxu0 %v155
    %534 = vmatprep.subr.mxu0 %v160
    %535 = vmatpush1.msra.mxu0 %v159
    %536 = vmatprep.subr.mxu0 %v164
    %537 = vmatpush1.msra.mxu0 %v163
    %538 = vmatprep.subr.mxu0 %v168
    %539 = vmatpush1.msra.mxu0 %v167
    %540 = vmatprep.subr.mxu0 0.0
    %541 = vmatpush1.msra.mxu0 0.0
    %542 = vmatprep.subr.mxu0 0.0
    %543 = vmatpush1.msra.mxu0 0.0
    %544 = vmatprep.subr.mxu0 0.0
    %545 = vmatpush1.msra.mxu0 0.0
    %546 = vmatprep.subr.mxu0 0.0
    %547 = vmatpush1.msra.mxu0 0.0
    %548 = vmatprep.subr.mxu0 0.0
    %549 = vmatpush1.msra.mxu0 0.0
    %550 = vmatprep.subr.mxu0 0.0
    %551 = vmatpush1.msra.mxu0 0.0
    %552 = vmatprep.subr.mxu0 0.0
    %553 = vmatpush1.msra.mxu0 0.0
    %554 = vmatprep.subr.mxu0 0.0
    %555 = vmatpush1.msra.mxu0 0.0
    %556 = vmatprep.subr.mxu0 0.0
    %557 = vmatpush1.msra.mxu0 0.0
    %558 = vmatprep.subr.mxu0 0.0
    %559 = vmatpush1.msra.mxu0 0.0
    %560 = vmatprep.subr.mxu0 0.0
    %561 = vmatpush1.msra.mxu0 0.0
    %562 = vmatprep.subr.mxu0 0.0
    %563 = vmatpush1.msra.mxu0 0.0
    %564 = vmatprep.subr.mxu0 0.0
    %565 = vmatpush1.msra.mxu0 0.0
    %566 = vmatprep.subr.mxu0 0.0
    %567 = vmatpush1.msra.mxu0 0.0
    %568 = vmatprep.subr.mxu0 0.0
    %569 = vmatpush1.msra.mxu0 0.0
    %570 = vmatprep.subr.mxu0 0.0
    %571 = vmatpush1.msra.mxu0 0.0
    %572 = vmatprep.mubr.f32.mxu0 0.0
    %573 = vmatmul.mubr.f32.gmra.mrb[0].mxu0 %v497
    %v574 = vpop.f32.mrb[0].mxu0
    %v575 = vadd.f32 0.0, %v574
    %v576 = vpop.f32.mrb[0].mxu0
    %v577 = vadd.f32 0.0, %v576
    %578 = vdwg.mxu0
    %579 = vmatprep.subr.mxu0 %v110
    %580 = vmatpush1.msra.mxu0 %v109
    %581 = vmatprep.subr.mxu0 %v114
    %582 = vmatpush1.msra.mxu0 %v113
    %583 = vmatprep.subr.mxu0 %v118
    %584 = vmatpush1.msra.mxu0 %v117
    %585 = vmatprep.subr.mxu0 %v122
    %586 = vmatpush1.msra.mxu0 %v121
    %587 = vmatprep.subr.mxu0 %v126
    %588 = vmatpush1.msra.mxu0 %v125
    %589 = vmatprep.subr.mxu0 %v130
    %590 = vmatpush1.msra.mxu0 %v129
    %591 = vmatprep.subr.mxu0 %v134
    %592 = vmatpush1.msra.mxu0 %v133
    %593 = vmatprep.subr.mxu0 %v138
    %594 = vmatpush1.msra.mxu0 %v137
    %595 = vmatprep.subr.mxu0 %v142
    %596 = vmatpush1.msra.mxu0 %v141
    %597 = vmatprep.subr.mxu0 %v146
    %598 = vmatpush1.msra.mxu0 %v145
    %599 = vmatprep.subr.mxu0 %v150
    %600 = vmatpush1.msra.mxu0 %v149
    %601 = vmatprep.subr.mxu0 %v154
    %602 = vmatpush1.msra.mxu0 %v153
    %603 = vmatprep.subr.mxu0 %v158
    %604 = vmatpush1.msra.mxu0 %v157
    %605 = vmatprep.subr.mxu0 %v162
    %606 = vmatpush1.msra.mxu0 %v161
    %607 = vmatprep.subr.mxu0 %v166
    %608 = vmatpush1.msra.mxu0 %v165
    %609 = vmatprep.subr.mxu0 %v170
    %610 = vmatpush1.msra.mxu0 %v169
    %611 = vmatprep.subr.mxu0 0.0
    %612 = vmatpush1.msra.mxu0 0.0
    %613 = vmatprep.subr.mxu0 0.0
    %614 = vmatpush1.msra.mxu0 0.0
    %615 = vmatprep.subr.mxu0 0.0
    %616 = vmatpush1.msra.mxu0 0.0
    %617 = vmatprep.subr.mxu0 0.0
    %618 = vmatpush1.msra.mxu0 0.0
    %619 = vmatprep.subr.mxu0 0.0
    %620 = vmatpush1.msra.mxu0 0.0
    %621 = vmatprep.subr.mxu0 0.0
    %622 = vmatpush1.msra.mxu0 0.0
    %623 = vmatprep.subr.mxu0 0.0
    %624 = vmatpush1.msra.mxu0 0.0
    %625 = vmatprep.subr.mxu0 0.0
    %626 = vmatpush1.msra.mxu0 0.0
    %627 = vmatprep.subr.mxu0 0.0
    %628 = vmatpush1.msra.mxu0 0.0
    %629 = vmatprep.subr.mxu0 0.0
    %630 = vmatpush1.msra.mxu0 0.0
    %631 = vmatprep.subr.mxu0 0.0
    %632 = vmatpush1.msra.mxu0 0.0
    %633 = vmatprep.subr.mxu0 0.0
    %634 = vmatpush1.msra.mxu0 0.0
    %635 = vmatprep.subr.mxu0 0.0
    %636 = vmatpush1.msra.mxu0 0.0
    %637 = vmatprep.subr.mxu0 0.0
    %638 = vmatpush1.msra.mxu0 0.0
    %639 = vmatprep.subr.mxu0 0.0
    %640 = vmatpush1.msra.mxu0 0.0
    %641 = vmatprep.subr.mxu0 0.0
    %642 = vmatpush1.msra.mxu0 0.0
    %643 = vmatprep.mubr.f32.mxu0 0.0
    %644 = vmatmul.mubr.f32.gmra.mrb[0].mxu0 %v497
    %v645 = vpop.f32.mrb[0].mxu0
    %v646 = vadd.f32 0.0, %v645
    %v647 = vpop.f32.mrb[0].mxu0
    %v648 = vadd.f32 0.0, %v647
    %649 = vdwg.mxu0
    %v650 = vadd.f32 %v504, %v575
    %v651 = vadd.f32 %v505, %v577
    %v652 = vadd.f32 %v506, %v646
    %v653 = vadd.f32 %v507, %v648
    %v654 = vadd.f32 %v650, %v453
    %v655 = vadd.f32 %v651, %v457
    %v656 = vadd.f32 %v652, %v461
    %v657 = vadd.f32 %v653, %v465
    %v658 = vxor.u32 %v654, 2147483648
    %v659 = vmul.f32 %v658, 1.442695
    %v660 = vpow.pop %v659
    %v661 = vadd.f32 %v660, 1.0
    %v662 = vrcp.pop %v661
    %v663 = vmul.f32 1.0, %v662
    %v664 = vxor.u32 %v655, 2147483648
    %v665 = vmul.f32 %v664, 1.442695
    %v666 = vpow.pop %v665
    %v667 = vadd.f32 %v666, 1.0
    %v668 = vrcp.pop %v667
    %v669 = vmul.f32 1.0, %v668
    %v670 = vtanh.pop %v656
    %v671 = vxor.u32 %v657, 2147483648
    %v672 = vmul.f32 %v671, 1.442695
    %v673 = vpow.pop %v672
    %v674 = vadd.f32 %v673, 1.0
    %v675 = vrcp.pop %v674
    %v676 = vmul.f32 1.0, %v675
    %v677 = vmul.f32 %v669, %v495
    %v678 = vmul.f32 %v663, %v670
    %v679 = vadd.f32 %v677, %v678
    %v680 = vtanh.pop %v679
    %v681 = vmul.f32 %v676, %v680
    %s682 = scalar_lea.vmem [#allocation2], 8
    %683 = vst [vmem:[%s682] sm:$0xff] %v681
    %s684 = scalar_lea.vmem [#allocation3], 8
    %685 = vst [vmem:[%s684] sm:$0xff] %v679
    %686 = vset.pattern.permute.xlu0 2
    %687 = vperm.xlu0 %686, %v103
    %v688 = vpop.permute.xlu0 %687
    %v690 = vmul.f32 %v688, %v282
    %v691 = vmul.f32 %v688, %v286
    %v692 = vmul.f32 %v688, %v290
    %v693 = vmul.f32 %v688, %v294
    %694 = vmatprep.subr.mxu0 %v108
    %695 = vmatpush1.msra.mxu0 %v107
    %696 = vmatprep.subr.mxu0 %v112
    %697 = vmatpush1.msra.mxu0 %v111
    %698 = vmatprep.subr.mxu0 %v116
    %699 = vmatpush1.msra.mxu0 %v115
    %700 = vmatprep.subr.mxu0 %v120
    %701 = vmatpush1.msra.mxu0 %v119
    %702 = vmatprep.subr.mxu0 %v124
    %703 = vmatpush1.msra.mxu0 %v123
    %704 = vmatprep.subr.mxu0 %v128
    %705 = vmatpush1.msra.mxu0 %v127
    %706 = vmatprep.subr.mxu0 %v132
    %707 = vmatpush1.msra.mxu0 %v131
    %708 = vmatprep.subr.mxu0 %v136
    %709 = vmatpush1.msra.mxu0 %v135
    %710 = vmatprep.subr.mxu0 %v140
    %711 = vmatpush1.msra.mxu0 %v139
    %712 = vmatprep.subr.mxu0 %v144
    %713 = vmatpush1.msra.mxu0 %v143
    %714 = vmatprep.subr.mxu0 %v148
    %715 = vmatpush1.msra.mxu0 %v147
    %716 = vmatprep.subr.mxu0 %v152
    %717 = vmatpush1.msra.mxu0 %v151
    %718 = vmatprep.subr.mxu0 %v156
    %719 = vmatpush1.msra.mxu0 %v155
    %720 = vmatprep.subr.mxu0 %v160
    %721 = vmatpush1.msra.mxu0 %v159
    %722 = vmatprep.subr.mxu0 %v164
    %723 = vmatpush1.msra.mxu0 %v163
    %724 = vmatprep.subr.mxu0 %v168
    %725 = vmatpush1.msra.mxu0 %v167
    %726 = vmatprep.subr.mxu0 0.0
    %727 = vmatpush1.msra.mxu0 0.0
    %728 = vmatprep.subr.mxu0 0.0
    %729 = vmatpush1.msra.mxu0 0.0
    %730 = vmatprep.subr.mxu0 0.0
    %731 = vmatpush1.msra.mxu0 0.0
    %732 = vmatprep.subr.mxu0 0.0
    %733 = vmatpush1.msra.mxu0 0.0
    %734 = vmatprep.subr.mxu0 0.0
    %735 = vmatpush1.msra.mxu0 0.0
    %736 = vmatprep.subr.mxu0 0.0
    %737 = vmatpush1.msra.mxu0 0.0
    %738 = vmatprep.subr.mxu0 0.0
    %739 = vmatpush1.msra.mxu0 0.0
    %740 = vmatprep.subr.mxu0 0.0
    %741 = vmatpush1.msra.mxu0 0.0
    %742 = vmatprep.subr.mxu0 0.0
    %743 = vmatpush1.msra.mxu0 0.0
    %744 = vmatprep.subr.mxu0 0.0
    %745 = vmatpush1.msra.mxu0 0.0
    %746 = vmatprep.subr.mxu0 0.0
    %747 = vmatpush1.msra.mxu0 0.0
    %748 = vmatprep.subr.mxu0 0.0
    %749 = vmatpush1.msra.mxu0 0.0
    %750 = vmatprep.subr.mxu0 0.0
    %751 = vmatpush1.msra.mxu0 0.0
    %752 = vmatprep.subr.mxu0 0.0
    %753 = vmatpush1.msra.mxu0 0.0
    %754 = vmatprep.subr.mxu0 0.0
    %755 = vmatpush1.msra.mxu0 0.0
    %756 = vmatprep.subr.mxu0 0.0
    %757 = vmatpush1.msra.mxu0 0.0
    %758 = vmatprep.mubr.f32.mxu0 0.0
    %759 = vmatmul.mubr.f32.gmra.mrb[0].mxu0 %v681
    %v760 = vpop.f32.mrb[0].mxu0
    %v761 = vadd.f32 0.0, %v760
    %v762 = vpop.f32.mrb[0].mxu0
    %v763 = vadd.f32 0.0, %v762
    %764 = vdwg.mxu0
    %765 = vmatprep.subr.mxu0 %v110
    %766 = vmatpush1.msra.mxu0 %v109
    %767 = vmatprep.subr.mxu0 %v114
    %768 = vmatpush1.msra.mxu0 %v113
    %769 = vmatprep.subr.mxu0 %v118
    %770 = vmatpush1.msra.mxu0 %v117
    %771 = vmatprep.subr.mxu0 %v122
    %772 = vmatpush1.msra.mxu0 %v121
    %773 = vmatprep.subr.mxu0 %v126
    %774 = vmatpush1.msra.mxu0 %v125
    %775 = vmatprep.subr.mxu0 %v130
    %776 = vmatpush1.msra.mxu0 %v129
    %777 = vmatprep.subr.mxu0 %v134
    %778 = vmatpush1.msra.mxu0 %v133
    %779 = vmatprep.subr.mxu0 %v138
    %780 = vmatpush1.msra.mxu0 %v137
    %781 = vmatprep.subr.mxu0 %v142
    %782 = vmatpush1.msra.mxu0 %v141
    %783 = vmatprep.subr.mxu0 %v146
    %784 = vmatpush1.msra.mxu0 %v145
    %785 = vmatprep.subr.mxu0 %v150
    %786 = vmatpush1.msra.mxu0 %v149
    %787 = vmatprep.subr.mxu0 %v154
    %788 = vmatpush1.msra.mxu0 %v153
    %789 = vmatprep.subr.mxu0 %v158
    %790 = vmatpush1.msra.mxu0 %v157
    %791 = vmatprep.subr.mxu0 %v162
    %792 = vmatpush1.msra.mxu0 %v161
    %793 = vmatprep.subr.mxu0 %v166
    %794 = vmatpush1.msra.mxu0 %v165
    %795 = vmatprep.subr.mxu0 %v170
    %796 = vmatpush1.msra.mxu0 %v169
    %797 = vmatprep.subr.mxu0 0.0
    %798 = vmatpush1.msra.mxu0 0.0
    %799 = vmatprep.subr.mxu0 0.0
    %800 = vmatpush1.msra.mxu0 0.0
    %801 = vmatprep.subr.mxu0 0.0
    %802 = vmatpush1.msra.mxu0 0.0
    %803 = vmatprep.subr.mxu0 0.0
    %804 = vmatpush1.msra.mxu0 0.0
    %805 = vmatprep.subr.mxu0 0.0
    %806 = vmatpush1.msra.mxu0 0.0
    %807 = vmatprep.subr.mxu0 0.0
    %808 = vmatpush1.msra.mxu0 0.0
    %809 = vmatprep.subr.mxu0 0.0
    %810 = vmatpush1.msra.mxu0 0.0
    %811 = vmatprep.subr.mxu0 0.0
    %812 = vmatpush1.msra.mxu0 0.0
    %813 = vmatprep.subr.mxu0 0.0
    %814 = vmatpush1.msra.mxu0 0.0
    %815 = vmatprep.subr.mxu0 0.0
    %816 = vmatpush1.msra.mxu0 0.0
    %817 = vmatprep.subr.mxu0 0.0
    %818 = vmatpush1.msra.mxu0 0.0
    %819 = vmatprep.subr.mxu0 0.0
    %820 = vmatpush1.msra.mxu0 0.0
    %821 = vmatprep.subr.mxu0 0.0
    %822 = vmatpush1.msra.mxu0 0.0
    %823 = vmatprep.subr.mxu0 0.0
    %824 = vmatpush1.msra.mxu0 0.0
    %825 = vmatprep.subr.mxu0 0.0
    %826 = vmatpush1.msra.mxu0 0.0
    %827 = vmatprep.subr.mxu0 0.0
    %828 = vmatpush1.msra.mxu0 0.0
    %829 = vmatprep.mubr.f32.mxu0 0.0
    %830 = vmatmul.mubr.f32.gmra.mrb[0].mxu0 %v681
    %v831 = vpop.f32.mrb[0].mxu0
    %v832 = vadd.f32 0.0, %v831
    %v833 = vpop.f32.mrb[0].mxu0
    %v834 = vadd.f32 0.0, %v833
    %835 = vdwg.mxu0
    %v836 = vadd.f32 %v690, %v761
    %v837 = vadd.f32 %v691, %v763
    %v838 = vadd.f32 %v692, %v832
    %v839 = vadd.f32 %v693, %v834
    %v840 = vadd.f32 %v836, %v453
    %v841 = vadd.f32 %v837, %v457
    %v842 = vadd.f32 %v838, %v461
    %v843 = vadd.f32 %v839, %v465
    %v844 = vxor.u32 %v840, 2147483648
    %v845 = vmul.f32 %v844, 1.442695
    %v846 = vpow.pop %v845
    %v847 = vadd.f32 %v846, 1.0
    %v848 = vrcp.pop %v847
    %v849 = vmul.f32 1.0, %v848
    %v850 = vxor.u32 %v841, 2147483648
    %v851 = vmul.f32 %v850, 1.442695
    %v852 = vpow.pop %v851
    %v853 = vadd.f32 %v852, 1.0
    %v854 = vrcp.pop %v853
    %v855 = vmul.f32 1.0, %v854
    %v856 = vtanh.pop %v842
    %v857 = vxor.u32 %v843, 2147483648
    %v858 = vmul.f32 %v857, 1.442695
    %v859 = vpow.pop %v858
    %v860 = vadd.f32 %v859, 1.0
    %v861 = vrcp.pop %v860
    %v862 = vmul.f32 1.0, %v861
    %v863 = vmul.f32 %v855, %v679
    %v864 = vmul.f32 %v849, %v856
    %v865 = vadd.f32 %v863, %v864
    %v866 = vtanh.pop %v865
    %v867 = vmul.f32 %v862, %v866
    %s868 = scalar_lea.vmem [#allocation2], 16
    %869 = vst [vmem:[%s868] sm:$0xff] %v867
    %s870 = scalar_lea.vmem [#allocation3], 16
    %871 = vst [vmem:[%s870] sm:$0xff] %v865
    %872 = vset.pattern.permute.xlu0 3
    %873 = vperm.xlu0 %872, %v103
    %v874 = vpop.permute.xlu0 %873
    %v876 = vmul.f32 %v874, %v282
    %v877 = vmul.f32 %v874, %v286
    %v878 = vmul.f32 %v874, %v290
    %v879 = vmul.f32 %v874, %v294
    %880 = vmatprep.subr.mxu0 %v108
    %881 = vmatpush1.msra.mxu0 %v107
    %882 = vmatprep.subr.mxu0 %v112
    %883 = vmatpush1.msra.mxu0 %v111
    %884 = vmatprep.subr.mxu0 %v116
    %885 = vmatpush1.msra.mxu0 %v115
    %886 = vmatprep.subr.mxu0 %v120
    %887 = vmatpush1.msra.mxu0 %v119
    %888 = vmatprep.subr.mxu0 %v124
    %889 = vmatpush1.msra.mxu0 %v123
    %890 = vmatprep.subr.mxu0 %v128
    %891 = vmatpush1.msra.mxu0 %v127
    %892 = vmatprep.subr.mxu0 %v132
    %893 = vmatpush1.msra.mxu0 %v131
    %894 = vmatprep.subr.mxu0 %v136
    %895 = vmatpush1.msra.mxu0 %v135
    %896 = vmatprep.subr.mxu0 %v140
    %897 = vmatpush1.msra.mxu0 %v139
    %898 = vmatprep.subr.mxu0 %v144
    %899 = vmatpush1.msra.mxu0 %v143
    %900 = vmatprep.subr.mxu0 %v148
    %901 = vmatpush1.msra.mxu0 %v147
    %902 = vmatprep.subr.mxu0 %v152
    %903 = vmatpush1.msra.mxu0 %v151
    %904 = vmatprep.subr.mxu0 %v156
    %905 = vmatpush1.msra.mxu0 %v155
    %906 = vmatprep.subr.mxu0 %v160
    %907 = vmatpush1.msra.mxu0 %v159
    %908 = vmatprep.subr.mxu0 %v164
    %909 = vmatpush1.msra.mxu0 %v163
    %910 = vmatprep.subr.mxu0 %v168
    %911 = vmatpush1.msra.mxu0 %v167
    %912 = vmatprep.subr.mxu0 0.0
    %913 = vmatpush1.msra.mxu0 0.0
    %914 = vmatprep.subr.mxu0 0.0
    %915 = vmatpush1.msra.mxu0 0.0
    %916 = vmatprep.subr.mxu0 0.0
    %917 = vmatpush1.msra.mxu0 0.0
    %918 = vmatprep.subr.mxu0 0.0
    %919 = vmatpush1.msra.mxu0 0.0
    %920 = vmatprep.subr.mxu0 0.0
    %921 = vmatpush1.msra.mxu0 0.0
    %922 = vmatprep.subr.mxu0 0.0
    %923 = vmatpush1.msra.mxu0 0.0
    %924 = vmatprep.subr.mxu0 0.0
    %925 = vmatpush1.msra.mxu0 0.0
    %926 = vmatprep.subr.mxu0 0.0
    %927 = vmatpush1.msra.mxu0 0.0
    %928 = vmatprep.subr.mxu0 0.0
    %929 = vmatpush1.msra.mxu0 0.0
    %930 = vmatprep.subr.mxu0 0.0
    %931 = vmatpush1.msra.mxu0 0.0
    %932 = vmatprep.subr.mxu0 0.0
    %933 = vmatpush1.msra.mxu0 0.0
    %934 = vmatprep.subr.mxu0 0.0
    %935 = vmatpush1.msra.mxu0 0.0
    %936 = vmatprep.subr.mxu0 0.0
    %937 = vmatpush1.msra.mxu0 0.0
    %938 = vmatprep.subr.mxu0 0.0
    %939 = vmatpush1.msra.mxu0 0.0
    %940 = vmatprep.subr.mxu0 0.0
    %941 = vmatpush1.msra.mxu0 0.0
    %942 = vmatprep.subr.mxu0 0.0
    %943 = vmatpush1.msra.mxu0 0.0
    %944 = vmatprep.mubr.f32.mxu0 0.0
    %945 = vmatmul.mubr.f32.gmra.mrb[0].mxu0 %v867
    %v946 = vpop.f32.mrb[0].mxu0
    %v947 = vadd.f32 0.0, %v946
    %v948 = vpop.f32.mrb[0].mxu0
    %v949 = vadd.f32 0.0, %v948
    %950 = vdwg.mxu0
    %951 = vmatprep.subr.mxu0 %v110
    %952 = vmatpush1.msra.mxu0 %v109
    %953 = vmatprep.subr.mxu0 %v114
    %954 = vmatpush1.msra.mxu0 %v113
    %955 = vmatprep.subr.mxu0 %v118
    %956 = vmatpush1.msra.mxu0 %v117
    %957 = vmatprep.subr.mxu0 %v122
    %958 = vmatpush1.msra.mxu0 %v121
    %959 = vmatprep.subr.mxu0 %v126
    %960 = vmatpush1.msra.mxu0 %v125
    %961 = vmatprep.subr.mxu0 %v130
    %962 = vmatpush1.msra.mxu0 %v129
    %963 = vmatprep.subr.mxu0 %v134
    %964 = vmatpush1.msra.mxu0 %v133
    %965 = vmatprep.subr.mxu0 %v138
    %966 = vmatpush1.msra.mxu0 %v137
    %967 = vmatprep.subr.mxu0 %v142
    %968 = vmatpush1.msra.mxu0 %v141
    %969 = vmatprep.subr.mxu0 %v146
    %970 = vmatpush1.msra.mxu0 %v145
    %971 = vmatprep.subr.mxu0 %v150
    %972 = vmatpush1.msra.mxu0 %v149
    %973 = vmatprep.subr.mxu0 %v154
    %974 = vmatpush1.msra.mxu0 %v153
    %975 = vmatprep.subr.mxu0 %v158
    %976 = vmatpush1.msra.mxu0 %v157
    %977 = vmatprep.subr.mxu0 %v162
    %978 = vmatpush1.msra.mxu0 %v161
    %979 = vmatprep.subr.mxu0 %v166
    %980 = vmatpush1.msra.mxu0 %v165
    %981 = vmatprep.subr.mxu0 %v170
    %982 = vmatpush1.msra.mxu0 %v169
    %983 = vmatprep.subr.mxu0 0.0
    %984 = vmatpush1.msra.mxu0 0.0
    %985 = vmatprep.subr.mxu0 0.0
    %986 = vmatpush1.msra.mxu0 0.0
    %987 = vmatprep.subr.mxu0 0.0
    %988 = vmatpush1.msra.mxu0 0.0
    %989 = vmatprep.subr.mxu0 0.0
    %990 = vmatpush1.msra.mxu0 0.0
    %991 = vmatprep.subr.mxu0 0.0
    %992 = vmatpush1.msra.mxu0 0.0
    %993 = vmatprep.subr.mxu0 0.0
    %994 = vmatpush1.msra.mxu0 0.0
    %995 = vmatprep.subr.mxu0 0.0
    %996 = vmatpush1.msra.mxu0 0.0
    %997 = vmatprep.subr.mxu0 0.0
    %998 = vmatpush1.msra.mxu0 0.0
    %999 = vmatprep.subr.mxu0 0.0
    %1000 = vmatpush1.msra.mxu0 0.0
    %1001 = vmatprep.subr.mxu0 0.0
    %1002 = vmatpush1.msra.mxu0 0.0
    %1003 = vmatprep.subr.mxu0 0.0
    %1004 = vmatpush1.msra.mxu0 0.0
    %1005 = vmatprep.subr.mxu0 0.0
    %1006 = vmatpush1.msra.mxu0 0.0
    %1007 = vmatprep.subr.mxu0 0.0
    %1008 = vmatpush1.msra.mxu0 0.0
    %1009 = vmatprep.subr.mxu0 0.0
    %1010 = vmatpush1.msra.mxu0 0.0
    %1011 = vmatprep.subr.mxu0 0.0
    %1012 = vmatpush1.msra.mxu0 0.0
    %1013 = vmatprep.subr.mxu0 0.0
    %1014 = vmatpush1.msra.mxu0 0.0
    %1015 = vmatprep.mubr.f32.mxu0 0.0
    %1016 = vmatmul.mubr.f32.gmra.mrb[0].mxu0 %v867
    %v1017 = vpop.f32.mrb[0].mxu0
    %v1018 = vadd.f32 0.0, %v1017
    %v1019 = vpop.f32.mrb[0].mxu0
    %v1020 = vadd.f32 0.0, %v1019
    %1021 = vdwg.mxu0
    %v1022 = vadd.f32 %v876, %v947
    %v1023 = vadd.f32 %v877, %v949
    %v1024 = vadd.f32 %v878, %v1018
    %v1025 = vadd.f32 %v879, %v1020
    %v1026 = vadd.f32 %v1022, %v453
    %v1027 = vadd.f32 %v1023, %v457
    %v1028 = vadd.f32 %v1024, %v461
    %v1029 = vadd.f32 %v1025, %v465
    %v1030 = vxor.u32 %v1026, 2147483648
    %v1031 = vmul.f32 %v1030, 1.442695
    %v1032 = vpow.pop %v1031
    %v1033 = vadd.f32 %v1032, 1.0
    %v1034 = vrcp.pop %v1033
    %v1035 = vmul.f32 1.0, %v1034
    %v1036 = vxor.u32 %v1027, 2147483648
    %v1037 = vmul.f32 %v1036, 1.442695
    %v1038 = vpow.pop %v1037
    %v1039 = vadd.f32 %v1038, 1.0
    %v1040 = vrcp.pop %v1039
    %v1041 = vmul.f32 1.0, %v1040
    %v1042 = vtanh.pop %v1028
    %v1043 = vxor.u32 %v1029, 2147483648
    %v1044 = vmul.f32 %v1043, 1.442695
    %v1045 = vpow.pop %v1044
    %v1046 = vadd.f32 %v1045, 1.0
    %v1047 = vrcp.pop %v1046
    %v1048 = vmul.f32 1.0, %v1047
    %v1049 = vmul.f32 %v1041, %v865
    %v1050 = vmul.f32 %v1035, %v1042
    %v1051 = vadd.f32 %v1049, %v1050
    %v1052 = vtanh.pop %v1051
    %v1053 = vmul.f32 %v1048, %v1052
    %s1054 = scalar_lea.vmem [#allocation2], 24
    %1055 = vst [vmem:[%s1054] sm:$0xff] %v1053
    %s1056 = scalar_lea.vmem [#allocation3], 24
    %1057 = vst [vmem:[%s1056] sm:$0xff] %v1051
    %1058 = vset.pattern.permute.xlu0 4
    %1059 = vperm.xlu0 %1058, %v103
    %v1060 = vpop.permute.xlu0 %1059
    %v1062 = vmul.f32 %v1060, %v282
    %v1063 = vmul.f32 %v1060, %v286
    %v1064 = vmul.f32 %v1060, %v290
    %v1065 = vmul.f32 %v1060, %v294
    %1066 = vmatprep.subr.mxu0 %v108
    %1067 = vmatpush1.msra.mxu0 %v107
    %1068 = vmatprep.subr.mxu0 %v112
    %1069 = vmatpush1.msra.mxu0 %v111
    %1070 = vmatprep.subr.mxu0 %v116
    %1071 = vmatpush1.msra.mxu0 %v115
    %1072 = vmatprep.subr.mxu0 %v120
    %1073 = vmatpush1.msra.mxu0 %v119
    %1074 = vmatprep.subr.mxu0 %v124
    %1075 = vmatpush1.msra.mxu0 %v123
    %1076 = vmatprep.subr.mxu0 %v128
    %1077 = vmatpush1.msra.mxu0 %v127
    %1078 = vmatprep.subr.mxu0 %v132
    %1079 = vmatpush1.msra.mxu0 %v131
    %1080 = vmatprep.subr.mxu0 %v136
    %1081 = vmatpush1.msra.mxu0 %v135
    %1082 = vmatprep.subr.mxu0 %v140
    %1083 = vmatpush1.msra.mxu0 %v139
    %1084 = vmatprep.subr.mxu0 %v144
    %1085 = vmatpush1.msra.mxu0 %v143
    %1086 = vmatprep.subr.mxu0 %v148
    %1087 = vmatpush1.msra.mxu0 %v147
    %1088 = vmatprep.subr.mxu0 %v152
    %1089 = vmatpush1.msra.mxu0 %v151
    %1090 = vmatprep.subr.mxu0 %v156
    %1091 = vmatpush1.msra.mxu0 %v155
    %1092 = vmatprep.subr.mxu0 %v160
    %1093 = vmatpush1.msra.mxu0 %v159
    %1094 = vmatprep.subr.mxu0 %v164
    %1095 = vmatpush1.msra.mxu0 %v163
    %1096 = vmatprep.subr.mxu0 %v168
    %1097 = vmatpush1.msra.mxu0 %v167
    %1098 = vmatprep.subr.mxu0 0.0
    %1099 = vmatpush1.msra.mxu0 0.0
    %1100 = vmatprep.subr.mxu0 0.0
    %1101 = vmatpush1.msra.mxu0 0.0
    %1102 = vmatprep.subr.mxu0 0.0
    %1103 = vmatpush1.msra.mxu0 0.0
    %1104 = vmatprep.subr.mxu0 0.0
    %1105 = vmatpush1.msra.mxu0 0.0
    %1106 = vmatprep.subr.mxu0 0.0
    %1107 = vmatpush1.msra.mxu0 0.0
    %1108 = vmatprep.subr.mxu0 0.0
    %1109 = vmatpush1.msra.mxu0 0.0
    %1110 = vmatprep.subr.mxu0 0.0
    %1111 = vmatpush1.msra.mxu0 0.0
    %1112 = vmatprep.subr.mxu0 0.0
    %1113 = vmatpush1.msra.mxu0 0.0
    %1114 = vmatprep.subr.mxu0 0.0
    %1115 = vmatpush1.msra.mxu0 0.0
    %1116 = vmatprep.subr.mxu0 0.0
    %1117 = vmatpush1.msra.mxu0 0.0
    %1118 = vmatprep.subr.mxu0 0.0
    %1119 = vmatpush1.msra.mxu0 0.0
    %1120 = vmatprep.subr.mxu0 0.0
    %1121 = vmatpush1.msra.mxu0 0.0
    %1122 = vmatprep.subr.mxu0 0.0
    %1123 = vmatpush1.msra.mxu0 0.0
    %1124 = vmatprep.subr.mxu0 0.0
    %1125 = vmatpush1.msra.mxu0 0.0
    %1126 = vmatprep.subr.mxu0 0.0
    %1127 = vmatpush1.msra.mxu0 0.0
    %1128 = vmatprep.subr.mxu0 0.0
    %1129 = vmatpush1.msra.mxu0 0.0
    %1130 = vmatprep.mubr.f32.mxu0 0.0
    %1131 = vmatmul.mubr.f32.gmra.mrb[0].mxu0 %v1053
    %v1132 = vpop.f32.mrb[0].mxu0
    %v1133 = vadd.f32 0.0, %v1132
    %v1134 = vpop.f32.mrb[0].mxu0
    %v1135 = vadd.f32 0.0, %v1134
    %1136 = vdwg.mxu0
    %1137 = vmatprep.subr.mxu0 %v110
    %1138 = vmatpush1.msra.mxu0 %v109
    %1139 = vmatprep.subr.mxu0 %v114
    %1140 = vmatpush1.msra.mxu0 %v113
    %1141 = vmatprep.subr.mxu0 %v118
    %1142 = vmatpush1.msra.mxu0 %v117
    %1143 = vmatprep.subr.mxu0 %v122
    %1144 = vmatpush1.msra.mxu0 %v121
    %1145 = vmatprep.subr.mxu0 %v126
    %1146 = vmatpush1.msra.mxu0 %v125
    %1147 = vmatprep.subr.mxu0 %v130
    %1148 = vmatpush1.msra.mxu0 %v129
    %1149 = vmatprep.subr.mxu0 %v134
    %1150 = vmatpush1.msra.mxu0 %v133
    %1151 = vmatprep.subr.mxu0 %v138
    %1152 = vmatpush1.msra.mxu0 %v137
    %1153 = vmatprep.subr.mxu0 %v142
    %1154 = vmatpush1.msra.mxu0 %v141
    %1155 = vmatprep.subr.mxu0 %v146
    %1156 = vmatpush1.msra.mxu0 %v145
    %1157 = vmatprep.subr.mxu0 %v150
    %1158 = vmatpush1.msra.mxu0 %v149
    %1159 = vmatprep.subr.mxu0 %v154
    %1160 = vmatpush1.msra.mxu0 %v153
    %1161 = vmatprep.subr.mxu0 %v158
    %1162 = vmatpush1.msra.mxu0 %v157
    %1163 = vmatprep.subr.mxu0 %v162
    %1164 = vmatpush1.msra.mxu0 %v161
    %1165 = vmatprep.subr.mxu0 %v166
    %1166 = vmatpush1.msra.mxu0 %v165
    %1167 = vmatprep.subr.mxu0 %v170
    %1168 = vmatpush1.msra.mxu0 %v169
    %1169 = vmatprep.subr.mxu0 0.0
    %1170 = vmatpush1.msra.mxu0 0.0
    %1171 = vmatprep.subr.mxu0 0.0
    %1172 = vmatpush1.msra.mxu0 0.0
    %1173 = vmatprep.subr.mxu0 0.0
    %1174 = vmatpush1.msra.mxu0 0.0
    %1175 = vmatprep.subr.mxu0 0.0
    %1176 = vmatpush1.msra.mxu0 0.0
    %1177 = vmatprep.subr.mxu0 0.0
    %1178 = vmatpush1.msra.mxu0 0.0
    %1179 = vmatprep.subr.mxu0 0.0
    %1180 = vmatpush1.msra.mxu0 0.0
    %1181 = vmatprep.subr.mxu0 0.0
    %1182 = vmatpush1.msra.mxu0 0.0
    %1183 = vmatprep.subr.mxu0 0.0
    %1184 = vmatpush1.msra.mxu0 0.0
    %1185 = vmatprep.subr.mxu0 0.0
    %1186 = vmatpush1.msra.mxu0 0.0
    %1187 = vmatprep.subr.mxu0 0.0
    %1188 = vmatpush1.msra.mxu0 0.0
    %1189 = vmatprep.subr.mxu0 0.0
    %1190 = vmatpush1.msra.mxu0 0.0
    %1191 = vmatprep.subr.mxu0 0.0
    %1192 = vmatpush1.msra.mxu0 0.0
    %1193 = vmatprep.subr.mxu0 0.0
    %1194 = vmatpush1.msra.mxu0 0.0
    %1195 = vmatprep.subr.mxu0 0.0
    %1196 = vmatpush1.msra.mxu0 0.0
    %1197 = vmatprep.subr.mxu0 0.0
    %1198 = vmatpush1.msra.mxu0 0.0
    %1199 = vmatprep.subr.mxu0 0.0
    %1200 = vmatpush1.msra.mxu0 0.0
    %1201 = vmatprep.mubr.f32.mxu0 0.0
    %1202 = vmatmul.mubr.f32.gmra.mrb[0].mxu0 %v1053
    %v1203 = vpop.f32.mrb[0].mxu0
    %v1204 = vadd.f32 0.0, %v1203
    %v1205 = vpop.f32.mrb[0].mxu0
    %v1206 = vadd.f32 0.0, %v1205
    %1207 = vdwg.mxu0
    %v1208 = vadd.f32 %v1062, %v1133
    %v1209 = vadd.f32 %v1063, %v1135
    %v1210 = vadd.f32 %v1064, %v1204
    %v1211 = vadd.f32 %v1065, %v1206
    %v1212 = vadd.f32 %v1208, %v453
    %v1213 = vadd.f32 %v1209, %v457
    %v1214 = vadd.f32 %v1210, %v461
    %v1215 = vadd.f32 %v1211, %v465
    %v1216 = vxor.u32 %v1212, 2147483648
    %v1217 = vmul.f32 %v1216, 1.442695
    %v1218 = vpow.pop %v1217
    %v1219 = vadd.f32 %v1218, 1.0
    %v1220 = vrcp.pop %v1219
    %v1221 = vmul.f32 1.0, %v1220
    %v1222 = vxor.u32 %v1213, 2147483648
    %v1223 = vmul.f32 %v1222, 1.442695
    %v1224 = vpow.pop %v1223
    %v1225 = vadd.f32 %v1224, 1.0
    %v1226 = vrcp.pop %v1225
    %v1227 = vmul.f32 1.0, %v1226
    %v1228 = vtanh.pop %v1214
    %v1229 = vxor.u32 %v1215, 2147483648
    %v1230 = vmul.f32 %v1229, 1.442695
    %v1231 = vpow.pop %v1230
    %v1232 = vadd.f32 %v1231, 1.0
    %v1233 = vrcp.pop %v1232
    %v1234 = vmul.f32 1.0, %v1233
    %v1235 = vmul.f32 %v1227, %v1051
    %v1236 = vmul.f32 %v1221, %v1228
    %v1237 = vadd.f32 %v1235, %v1236
    %v1238 = vtanh.pop %v1237
    %v1239 = vmul.f32 %v1234, %v1238
    %s1240 = scalar_lea.vmem [#allocation2], 32
    %1241 = vst [vmem:[%s1240] sm:$0xff] %v1239
    %s1242 = scalar_lea.vmem [#allocation3], 32
    %1243 = vst [vmem:[%s1242] sm:$0xff] %v1237
    %1244 = vset.pattern.permute.xlu0 5
    %1245 = vperm.xlu0 %1244, %v103
    %v1246 = vpop.permute.xlu0 %1245
    %v1248 = vmul.f32 %v1246, %v282
    %v1249 = vmul.f32 %v1246, %v286
    %v1250 = vmul.f32 %v1246, %v290
    %v1251 = vmul.f32 %v1246, %v294
    %1252 = vmatprep.subr.mxu0 %v108
    %1253 = vmatpush1.msra.mxu0 %v107
    %1254 = vmatprep.subr.mxu0 %v112
    %1255 = vmatpush1.msra.mxu0 %v111
    %1256 = vmatprep.subr.mxu0 %v116
    %1257 = vmatpush1.msra.mxu0 %v115
    %1258 = vmatprep.subr.mxu0 %v120
    %1259 = vmatpush1.msra.mxu0 %v119
    %1260 = vmatprep.subr.mxu0 %v124
    %1261 = vmatpush1.msra.mxu0 %v123
    %1262 = vmatprep.subr.mxu0 %v128
    %1263 = vmatpush1.msra.mxu0 %v127
    %1264 = vmatprep.subr.mxu0 %v132
    %1265 = vmatpush1.msra.mxu0 %v131
    %1266 = vmatprep.subr.mxu0 %v136
    %1267 = vmatpush1.msra.mxu0 %v135
    %1268 = vmatprep.subr.mxu0 %v140
    %1269 = vmatpush1.msra.mxu0 %v139
    %1270 = vmatprep.subr.mxu0 %v144
    %1271 = vmatpush1.msra.mxu0 %v143
    %1272 = vmatprep.subr.mxu0 %v148
    %1273 = vmatpush1.msra.mxu0 %v147
    %1274 = vmatprep.subr.mxu0 %v152
    %1275 = vmatpush1.msra.mxu0 %v151
    %1276 = vmatprep.subr.mxu0 %v156
    %1277 = vmatpush1.msra.mxu0 %v155
    %1278 = vmatprep.subr.mxu0 %v160
    %1279 = vmatpush1.msra.mxu0 %v159
    %1280 = vmatprep.subr.mxu0 %v164
    %1281 = vmatpush1.msra.mxu0 %v163
    %1282 = vmatprep.subr.mxu0 %v168
    %1283 = vmatpush1.msra.mxu0 %v167
    %1284 = vmatprep.subr.mxu0 0.0
    %1285 = vmatpush1.msra.mxu0 0.0
    %1286 = vmatprep.subr.mxu0 0.0
    %1287 = vmatpush1.msra.mxu0 0.0
    %1288 = vmatprep.subr.mxu0 0.0
    %1289 = vmatpush1.msra.mxu0 0.0
    %1290 = vmatprep.subr.mxu0 0.0
    %1291 = vmatpush1.msra.mxu0 0.0
    %1292 = vmatprep.subr.mxu0 0.0
    %1293 = vmatpush1.msra.mxu0 0.0
    %1294 = vmatprep.subr.mxu0 0.0
    %1295 = vmatpush1.msra.mxu0 0.0
    %1296 = vmatprep.subr.mxu0 0.0
    %1297 = vmatpush1.msra.mxu0 0.0
    %1298 = vmatprep.subr.mxu0 0.0
    %1299 = vmatpush1.msra.mxu0 0.0
    %1300 = vmatprep.subr.mxu0 0.0
    %1301 = vmatpush1.msra.mxu0 0.0
    %1302 = vmatprep.subr.mxu0 0.0
    %1303 = vmatpush1.msra.mxu0 0.0
    %1304 = vmatprep.subr.mxu0 0.0
    %1305 = vmatpush1.msra.mxu0 0.0
    %1306 = vmatprep.subr.mxu0 0.0
    %1307 = vmatpush1.msra.mxu0 0.0
    %1308 = vmatprep.subr.mxu0 0.0
    %1309 = vmatpush1.msra.mxu0 0.0
    %1310 = vmatprep.subr.mxu0 0.0
    %1311 = vmatpush1.msra.mxu0 0.0
    %1312 = vmatprep.subr.mxu0 0.0
    %1313 = vmatpush1.msra.mxu0 0.0
    %1314 = vmatprep.subr.mxu0 0.0
    %1315 = vmatpush1.msra.mxu0 0.0
    %1316 = vmatprep.mubr.f32.mxu0 0.0
    %1317 = vmatmul.mubr.f32.gmra.mrb[0].mxu0 %v1239
    %v1318 = vpop.f32.mrb[0].mxu0
    %v1319 = vadd.f32 0.0, %v1318
    %v1320 = vpop.f32.mrb[0].mxu0
    %v1321 = vadd.f32 0.0, %v1320
    %1322 = vdwg.mxu0
    %1323 = vmatprep.subr.mxu0 %v110
    %1324 = vmatpush1.msra.mxu0 %v109
    %1325 = vmatprep.subr.mxu0 %v114
    %1326 = vmatpush1.msra.mxu0 %v113
    %1327 = vmatprep.subr.mxu0 %v118
    %1328 = vmatpush1.msra.mxu0 %v117
    %1329 = vmatprep.subr.mxu0 %v122
    %1330 = vmatpush1.msra.mxu0 %v121
    %1331 = vmatprep.subr.mxu0 %v126
    %1332 = vmatpush1.msra.mxu0 %v125
    %1333 = vmatprep.subr.mxu0 %v130
    %1334 = vmatpush1.msra.mxu0 %v129
    %1335 = vmatprep.subr.mxu0 %v134
    %1336 = vmatpush1.msra.mxu0 %v133
    %1337 = vmatprep.subr.mxu0 %v138
    %1338 = vmatpush1.msra.mxu0 %v137
    %1339 = vmatprep.subr.mxu0 %v142
    %1340 = vmatpush1.msra.mxu0 %v141
    %1341 = vmatprep.subr.mxu0 %v146
    %1342 = vmatpush1.msra.mxu0 %v145
    %1343 = vmatprep.subr.mxu0 %v150
    %1344 = vmatpush1.msra.mxu0 %v149
    %1345 = vmatprep.subr.mxu0 %v154
    %1346 = vmatpush1.msra.mxu0 %v153
    %1347 = vmatprep.subr.mxu0 %v158
    %1348 = vmatpush1.msra.mxu0 %v157
    %1349 = vmatprep.subr.mxu0 %v162
    %1350 = vmatpush1.msra.mxu0 %v161
    %1351 = vmatprep.subr.mxu0 %v166
    %1352 = vmatpush1.msra.mxu0 %v165
    %1353 = vmatprep.subr.mxu0 %v170
    %1354 = vmatpush1.msra.mxu0 %v169
    %1355 = vmatprep.subr.mxu0 0.0
    %1356 = vmatpush1.msra.mxu0 0.0
    %1357 = vmatprep.subr.mxu0 0.0
    %1358 = vmatpush1.msra.mxu0 0.0
    %1359 = vmatprep.subr.mxu0 0.0
    %1360 = vmatpush1.msra.mxu0 0.0
    %1361 = vmatprep.subr.mxu0 0.0
    %1362 = vmatpush1.msra.mxu0 0.0
    %1363 = vmatprep.subr.mxu0 0.0
    %1364 = vmatpush1.msra.mxu0 0.0
    %1365 = vmatprep.subr.mxu0 0.0
    %1366 = vmatpush1.msra.mxu0 0.0
    %1367 = vmatprep.subr.mxu0 0.0
    %1368 = vmatpush1.msra.mxu0 0.0
    %1369 = vmatprep.subr.mxu0 0.0
    %1370 = vmatpush1.msra.mxu0 0.0
    %1371 = vmatprep.subr.mxu0 0.0
    %1372 = vmatpush1.msra.mxu0 0.0
    %1373 = vmatprep.subr.mxu0 0.0
    %1374 = vmatpush1.msra.mxu0 0.0
    %1375 = vmatprep.subr.mxu0 0.0
    %1376 = vmatpush1.msra.mxu0 0.0
    %1377 = vmatprep.subr.mxu0 0.0
    %1378 = vmatpush1.msra.mxu0 0.0
    %1379 = vmatprep.subr.mxu0 0.0
    %1380 = vmatpush1.msra.mxu0 0.0
    %1381 = vmatprep.subr.mxu0 0.0
    %1382 = vmatpush1.msra.mxu0 0.0
    %1383 = vmatprep.subr.mxu0 0.0
    %1384 = vmatpush1.msra.mxu0 0.0
    %1385 = vmatprep.subr.mxu0 0.0
    %1386 = vmatpush1.msra.mxu0 0.0
    %1387 = vmatprep.mubr.f32.mxu0 0.0
    %1388 = vmatmul.mubr.f32.gmra.mrb[0].mxu0 %v1239
    %v1389 = vpop.f32.mrb[0].mxu0
    %v1390 = vadd.f32 0.0, %v1389
    %v1391 = vpop.f32.mrb[0].mxu0
    %v1392 = vadd.f32 0.0, %v1391
    %1393 = vdwg.mxu0
    %v1394 = vadd.f32 %v1248, %v1319
    %v1395 = vadd.f32 %v1249, %v1321
    %v1396 = vadd.f32 %v1250, %v1390
    %v1397 = vadd.f32 %v1251, %v1392
    %v1398 = vadd.f32 %v1394, %v453
    %v1399 = vadd.f32 %v1395, %v457
    %v1400 = vadd.f32 %v1396, %v461
    %v1401 = vadd.f32 %v1397, %v465
    %v1402 = vxor.u32 %v1398, 2147483648
    %v1403 = vmul.f32 %v1402, 1.442695
    %v1404 = vpow.pop %v1403
    %v1405 = vadd.f32 %v1404, 1.0
    %v1406 = vrcp.pop %v1405
    %v1407 = vmul.f32 1.0, %v1406
    %v1408 = vxor.u32 %v1399, 2147483648
    %v1409 = vmul.f32 %v1408, 1.442695
    %v1410 = vpow.pop %v1409
    %v1411 = vadd.f32 %v1410, 1.0
    %v1412 = vrcp.pop %v1411
    %v1413 = vmul.f32 1.0, %v1412
    %v1414 = vtanh.pop %v1400
    %v1415 = vxor.u32 %v1401, 2147483648
    %v1416 = vmul.f32 %v1415, 1.442695
    %v1417 = vpow.pop %v1416
    %v1418 = vadd.f32 %v1417, 1.0
    %v1419 = vrcp.pop %v1418
    %v1420 = vmul.f32 1.0, %v1419
    %v1421 = vmul.f32 %v1413, %v1237
    %v1422 = vmul.f32 %v1407, %v1414
    %v1423 = vadd.f32 %v1421, %v1422
    %v1424 = vtanh.pop %v1423
    %v1425 = vmul.f32 %v1420, %v1424
    %s1426 = scalar_lea.vmem [#allocation2], 40
    %1427 = vst [vmem:[%s1426] sm:$0xff] %v1425
    %s1428 = scalar_lea.vmem [#allocation3], 40
    %1429 = vst [vmem:[%s1428] sm:$0xff] %v1423
    %1430 = vset.pattern.permute.xlu0 6
    %1431 = vperm.xlu0 %1430, %v103
    %v1432 = vpop.permute.xlu0 %1431
    %v1434 = vmul.f32 %v1432, %v282
    %v1435 = vmul.f32 %v1432, %v286
    %v1436 = vmul.f32 %v1432, %v290
    %v1437 = vmul.f32 %v1432, %v294
    %1438 = vmatprep.subr.mxu0 %v108
    %1439 = vmatpush1.msra.mxu0 %v107
    %1440 = vmatprep.subr.mxu0 %v112
    %1441 = vmatpush1.msra.mxu0 %v111
    %1442 = vmatprep.subr.mxu0 %v116
    %1443 = vmatpush1.msra.mxu0 %v115
    %1444 = vmatprep.subr.mxu0 %v120
    %1445 = vmatpush1.msra.mxu0 %v119
    %1446 = vmatprep.subr.mxu0 %v124
    %1447 = vmatpush1.msra.mxu0 %v123
    %1448 = vmatprep.subr.mxu0 %v128
    %1449 = vmatpush1.msra.mxu0 %v127
    %1450 = vmatprep.subr.mxu0 %v132
    %1451 = vmatpush1.msra.mxu0 %v131
    %1452 = vmatprep.subr.mxu0 %v136
    %1453 = vmatpush1.msra.mxu0 %v135
    %1454 = vmatprep.subr.mxu0 %v140
    %1455 = vmatpush1.msra.mxu0 %v139
    %1456 = vmatprep.subr.mxu0 %v144
    %1457 = vmatpush1.msra.mxu0 %v143
    %1458 = vmatprep.subr.mxu0 %v148
    %1459 = vmatpush1.msra.mxu0 %v147
    %1460 = vmatprep.subr.mxu0 %v152
    %1461 = vmatpush1.msra.mxu0 %v151
    %1462 = vmatprep.subr.mxu0 %v156
    %1463 = vmatpush1.msra.mxu0 %v155
    %1464 = vmatprep.subr.mxu0 %v160
    %1465 = vmatpush1.msra.mxu0 %v159
    %1466 = vmatprep.subr.mxu0 %v164
    %1467 = vmatpush1.msra.mxu0 %v163
    %1468 = vmatprep.subr.mxu0 %v168
    %1469 = vmatpush1.msra.mxu0 %v167
    %1470 = vmatprep.subr.mxu0 0.0
    %1471 = vmatpush1.msra.mxu0 0.0
    %1472 = vmatprep.subr.mxu0 0.0
    %1473 = vmatpush1.msra.mxu0 0.0
    %1474 = vmatprep.subr.mxu0 0.0
    %1475 = vmatpush1.msra.mxu0 0.0
    %1476 = vmatprep.subr.mxu0 0.0
    %1477 = vmatpush1.msra.mxu0 0.0
    %1478 = vmatprep.subr.mxu0 0.0
    %1479 = vmatpush1.msra.mxu0 0.0
    %1480 = vmatprep.subr.mxu0 0.0
    %1481 = vmatpush1.msra.mxu0 0.0
    %1482 = vmatprep.subr.mxu0 0.0
    %1483 = vmatpush1.msra.mxu0 0.0
    %1484 = vmatprep.subr.mxu0 0.0
    %1485 = vmatpush1.msra.mxu0 0.0
    %1486 = vmatprep.subr.mxu0 0.0
    %1487 = vmatpush1.msra.mxu0 0.0
    %1488 = vmatprep.subr.mxu0 0.0
    %1489 = vmatpush1.msra.mxu0 0.0
    %1490 = vmatprep.subr.mxu0 0.0
    %1491 = vmatpush1.msra.mxu0 0.0
    %1492 = vmatprep.subr.mxu0 0.0
    %1493 = vmatpush1.msra.mxu0 0.0
    %1494 = vmatprep.subr.mxu0 0.0
    %1495 = vmatpush1.msra.mxu0 0.0
    %1496 = vmatprep.subr.mxu0 0.0
    %1497 = vmatpush1.msra.mxu0 0.0
    %1498 = vmatprep.subr.mxu0 0.0
    %1499 = vmatpush1.msra.mxu0 0.0
    %1500 = vmatprep.subr.mxu0 0.0
    %1501 = vmatpush1.msra.mxu0 0.0
    %1502 = vmatprep.mubr.f32.mxu0 0.0
    %1503 = vmatmul.mubr.f32.gmra.mrb[0].mxu0 %v1425
    %v1504 = vpop.f32.mrb[0].mxu0
    %v1505 = vadd.f32 0.0, %v1504
    %v1506 = vpop.f32.mrb[0].mxu0
    %v1507 = vadd.f32 0.0, %v1506
    %1508 = vdwg.mxu0
    %1509 = vmatprep.subr.mxu0 %v110
    %1510 = vmatpush1.msra.mxu0 %v109
    %1511 = vmatprep.subr.mxu0 %v114
    %1512 = vmatpush1.msra.mxu0 %v113
    %1513 = vmatprep.subr.mxu0 %v118
    %1514 = vmatpush1.msra.mxu0 %v117
    %1515 = vmatprep.subr.mxu0 %v122
    %1516 = vmatpush1.msra.mxu0 %v121
    %1517 = vmatprep.subr.mxu0 %v126
    %1518 = vmatpush1.msra.mxu0 %v125
    %1519 = vmatprep.subr.mxu0 %v130
    %1520 = vmatpush1.msra.mxu0 %v129
    %1521 = vmatprep.subr.mxu0 %v134
    %1522 = vmatpush1.msra.mxu0 %v133
    %1523 = vmatprep.subr.mxu0 %v138
    %1524 = vmatpush1.msra.mxu0 %v137
    %1525 = vmatprep.subr.mxu0 %v142
    %1526 = vmatpush1.msra.mxu0 %v141
    %1527 = vmatprep.subr.mxu0 %v146
    %1528 = vmatpush1.msra.mxu0 %v145
    %1529 = vmatprep.subr.mxu0 %v150
    %1530 = vmatpush1.msra.mxu0 %v149
    %1531 = vmatprep.subr.mxu0 %v154
    %1532 = vmatpush1.msra.mxu0 %v153
    %1533 = vmatprep.subr.mxu0 %v158
    %1534 = vmatpush1.msra.mxu0 %v157
    %1535 = vmatprep.subr.mxu0 %v162
    %1536 = vmatpush1.msra.mxu0 %v161
    %1537 = vmatprep.subr.mxu0 %v166
    %1538 = vmatpush1.msra.mxu0 %v165
    %1539 = vmatprep.subr.mxu0 %v170
    %1540 = vmatpush1.msra.mxu0 %v169
    %1541 = vmatprep.subr.mxu0 0.0
    %1542 = vmatpush1.msra.mxu0 0.0
    %1543 = vmatprep.subr.mxu0 0.0
    %1544 = vmatpush1.msra.mxu0 0.0
    %1545 = vmatprep.subr.mxu0 0.0
    %1546 = vmatpush1.msra.mxu0 0.0
    %1547 = vmatprep.subr.mxu0 0.0
    %1548 = vmatpush1.msra.mxu0 0.0
    %1549 = vmatprep.subr.mxu0 0.0
    %1550 = vmatpush1.msra.mxu0 0.0
    %1551 = vmatprep.subr.mxu0 0.0
    %1552 = vmatpush1.msra.mxu0 0.0
    %1553 = vmatprep.subr.mxu0 0.0
    %1554 = vmatpush1.msra.mxu0 0.0
    %1555 = vmatprep.subr.mxu0 0.0
    %1556 = vmatpush1.msra.mxu0 0.0
    %1557 = vmatprep.subr.mxu0 0.0
    %1558 = vmatpush1.msra.mxu0 0.0
    %1559 = vmatprep.subr.mxu0 0.0
    %1560 = vmatpush1.msra.mxu0 0.0
    %1561 = vmatprep.subr.mxu0 0.0
    %1562 = vmatpush1.msra.mxu0 0.0
    %1563 = vmatprep.subr.mxu0 0.0
    %1564 = vmatpush1.msra.mxu0 0.0
    %1565 = vmatprep.subr.mxu0 0.0
    %1566 = vmatpush1.msra.mxu0 0.0
    %1567 = vmatprep.subr.mxu0 0.0
    %1568 = vmatpush1.msra.mxu0 0.0
    %1569 = vmatprep.subr.mxu0 0.0
    %1570 = vmatpush1.msra.mxu0 0.0
    %1571 = vmatprep.subr.mxu0 0.0
    %1572 = vmatpush1.msra.mxu0 0.0
    %1573 = vmatprep.mubr.f32.mxu0 0.0
    %1574 = vmatmul.mubr.f32.gmra.mrb[0].mxu0 %v1425
    %v1575 = vpop.f32.mrb[0].mxu0
    %v1576 = vadd.f32 0.0, %v1575
    %v1577 = vpop.f32.mrb[0].mxu0
    %v1578 = vadd.f32 0.0, %v1577
    %1579 = vdwg.mxu0
    %v1580 = vadd.f32 %v1434, %v1505
    %v1581 = vadd.f32 %v1435, %v1507
    %v1582 = vadd.f32 %v1436, %v1576
    %v1583 = vadd.f32 %v1437, %v1578
    %v1584 = vadd.f32 %v1580, %v453
    %v1585 = vadd.f32 %v1581, %v457
    %v1586 = vadd.f32 %v1582, %v461
    %v1587 = vadd.f32 %v1583, %v465
    %v1588 = vxor.u32 %v1584, 2147483648
    %v1589 = vmul.f32 %v1588, 1.442695
    %v1590 = vpow.pop %v1589
    %v1591 = vadd.f32 %v1590, 1.0
    %v1592 = vrcp.pop %v1591
    %v1593 = vmul.f32 1.0, %v1592
    %v1594 = vxor.u32 %v1585, 2147483648
    %v1595 = vmul.f32 %v1594, 1.442695
    %v1596 = vpow.pop %v1595
    %v1597 = vadd.f32 %v1596, 1.0
    %v1598 = vrcp.pop %v1597
    %v1599 = vmul.f32 1.0, %v1598
    %v1600 = vtanh.pop %v1586
    %v1601 = vxor.u32 %v1587, 2147483648
    %v1602 = vmul.f32 %v1601, 1.442695
    %v1603 = vpow.pop %v1602
    %v1604 = vadd.f32 %v1603, 1.0
    %v1605 = vrcp.pop %v1604
    %v1606 = vmul.f32 1.0, %v1605
    %v1607 = vmul.f32 %v1599, %v1423
    %v1608 = vmul.f32 %v1593, %v1600
    %v1609 = vadd.f32 %v1607, %v1608
    %v1610 = vtanh.pop %v1609
    %v1611 = vmul.f32 %v1606, %v1610
    %s1612 = scalar_lea.vmem [#allocation2], 48
    %1613 = vst [vmem:[%s1612] sm:$0xff] %v1611
    %s1614 = scalar_lea.vmem [#allocation3], 48
    %1615 = vst [vmem:[%s1614] sm:$0xff] %v1609
    %1616 = vset.pattern.permute.xlu0 7
    %1617 = vperm.xlu0 %1616, %v103
    %v1618 = vpop.permute.xlu0 %1617
    %v1620 = vmul.f32 %v1618, %v282
    %v1621 = vmul.f32 %v1618, %v286
    %v1622 = vmul.f32 %v1618, %v290
    %v1623 = vmul.f32 %v1618, %v294
    %1624 = vmatprep.subr.mxu0 %v108
    %1625 = vmatpush1.msra.mxu0 %v107
    %1626 = vmatprep.subr.mxu0 %v112
    %1627 = vmatpush1.msra.mxu0 %v111
    %1628 = vmatprep.subr.mxu0 %v116
    %1629 = vmatpush1.msra.mxu0 %v115
    %1630 = vmatprep.subr.mxu0 %v120
    %1631 = vmatpush1.msra.mxu0 %v119
    %1632 = vmatprep.subr.mxu0 %v124
    %1633 = vmatpush1.msra.mxu0 %v123
    %1634 = vmatprep.subr.mxu0 %v128
    %1635 = vmatpush1.msra.mxu0 %v127
    %1636 = vmatprep.subr.mxu0 %v132
    %1637 = vmatpush1.msra.mxu0 %v131
    %1638 = vmatprep.subr.mxu0 %v136
    %1639 = vmatpush1.msra.mxu0 %v135
    %1640 = vmatprep.subr.mxu0 %v140
    %1641 = vmatpush1.msra.mxu0 %v139
    %1642 = vmatprep.subr.mxu0 %v144
    %1643 = vmatpush1.msra.mxu0 %v143
    %1644 = vmatprep.subr.mxu0 %v148
    %1645 = vmatpush1.msra.mxu0 %v147
    %1646 = vmatprep.subr.mxu0 %v152
    %1647 = vmatpush1.msra.mxu0 %v151
    %1648 = vmatprep.subr.mxu0 %v156
    %1649 = vmatpush1.msra.mxu0 %v155
    %1650 = vmatprep.subr.mxu0 %v160
    %1651 = vmatpush1.msra.mxu0 %v159
    %1652 = vmatprep.subr.mxu0 %v164
    %1653 = vmatpush1.msra.mxu0 %v163
    %1654 = vmatprep.subr.mxu0 %v168
    %1655 = vmatpush1.msra.mxu0 %v167
    %1656 = vmatprep.subr.mxu0 0.0
    %1657 = vmatpush1.msra.mxu0 0.0
    %1658 = vmatprep.subr.mxu0 0.0
    %1659 = vmatpush1.msra.mxu0 0.0
    %1660 = vmatprep.subr.mxu0 0.0
    %1661 = vmatpush1.msra.mxu0 0.0
    %1662 = vmatprep.subr.mxu0 0.0
    %1663 = vmatpush1.msra.mxu0 0.0
    %1664 = vmatprep.subr.mxu0 0.0
    %1665 = vmatpush1.msra.mxu0 0.0
    %1666 = vmatprep.subr.mxu0 0.0
    %1667 = vmatpush1.msra.mxu0 0.0
    %1668 = vmatprep.subr.mxu0 0.0
    %1669 = vmatpush1.msra.mxu0 0.0
    %1670 = vmatprep.subr.mxu0 0.0
    %1671 = vmatpush1.msra.mxu0 0.0
    %1672 = vmatprep.subr.mxu0 0.0
    %1673 = vmatpush1.msra.mxu0 0.0
    %1674 = vmatprep.subr.mxu0 0.0
    %1675 = vmatpush1.msra.mxu0 0.0
    %1676 = vmatprep.subr.mxu0 0.0
    %1677 = vmatpush1.msra.mxu0 0.0
    %1678 = vmatprep.subr.mxu0 0.0
    %1679 = vmatpush1.msra.mxu0 0.0
    %1680 = vmatprep.subr.mxu0 0.0
    %1681 = vmatpush1.msra.mxu0 0.0
    %1682 = vmatprep.subr.mxu0 0.0
    %1683 = vmatpush1.msra.mxu0 0.0
    %1684 = vmatprep.subr.mxu0 0.0
    %1685 = vmatpush1.msra.mxu0 0.0
    %1686 = vmatprep.subr.mxu0 0.0
    %1687 = vmatpush1.msra.mxu0 0.0
    %1688 = vmatprep.mubr.f32.mxu0 0.0
    %1689 = vmatmul.mubr.f32.gmra.mrb[0].mxu0 %v1611
    %v1690 = vpop.f32.mrb[0].mxu0
    %v1691 = vadd.f32 0.0, %v1690
    %v1692 = vpop.f32.mrb[0].mxu0
    %v1693 = vadd.f32 0.0, %v1692
    %1694 = vdwg.mxu0
    %1695 = vmatprep.subr.mxu0 %v110
    %1696 = vmatpush1.msra.mxu0 %v109
    %1697 = vmatprep.subr.mxu0 %v114
    %1698 = vmatpush1.msra.mxu0 %v113
    %1699 = vmatprep.subr.mxu0 %v118
    %1700 = vmatpush1.msra.mxu0 %v117
    %1701 = vmatprep.subr.mxu0 %v122
    %1702 = vmatpush1.msra.mxu0 %v121
    %1703 = vmatprep.subr.mxu0 %v126
    %1704 = vmatpush1.msra.mxu0 %v125
    %1705 = vmatprep.subr.mxu0 %v130
    %1706 = vmatpush1.msra.mxu0 %v129
    %1707 = vmatprep.subr.mxu0 %v134
    %1708 = vmatpush1.msra.mxu0 %v133
    %1709 = vmatprep.subr.mxu0 %v138
    %1710 = vmatpush1.msra.mxu0 %v137
    %1711 = vmatprep.subr.mxu0 %v142
    %1712 = vmatpush1.msra.mxu0 %v141
    %1713 = vmatprep.subr.mxu0 %v146
    %1714 = vmatpush1.msra.mxu0 %v145
    %1715 = vmatprep.subr.mxu0 %v150
    %1716 = vmatpush1.msra.mxu0 %v149
    %1717 = vmatprep.subr.mxu0 %v154
    %1718 = vmatpush1.msra.mxu0 %v153
    %1719 = vmatprep.subr.mxu0 %v158
    %1720 = vmatpush1.msra.mxu0 %v157
    %1721 = vmatprep.subr.mxu0 %v162
    %1722 = vmatpush1.msra.mxu0 %v161
    %1723 = vmatprep.subr.mxu0 %v166
    %1724 = vmatpush1.msra.mxu0 %v165
    %1725 = vmatprep.subr.mxu0 %v170
    %1726 = vmatpush1.msra.mxu0 %v169
    %1727 = vmatprep.subr.mxu0 0.0
    %1728 = vmatpush1.msra.mxu0 0.0
    %1729 = vmatprep.subr.mxu0 0.0
    %1730 = vmatpush1.msra.mxu0 0.0
    %1731 = vmatprep.subr.mxu0 0.0
    %1732 = vmatpush1.msra.mxu0 0.0
    %1733 = vmatprep.subr.mxu0 0.0
    %1734 = vmatpush1.msra.mxu0 0.0
    %1735 = vmatprep.subr.mxu0 0.0
    %1736 = vmatpush1.msra.mxu0 0.0
    %1737 = vmatprep.subr.mxu0 0.0
    %1738 = vmatpush1.msra.mxu0 0.0
    %1739 = vmatprep.subr.mxu0 0.0
    %1740 = vmatpush1.msra.mxu0 0.0
    %1741 = vmatprep.subr.mxu0 0.0
    %1742 = vmatpush1.msra.mxu0 0.0
    %1743 = vmatprep.subr.mxu0 0.0
    %1744 = vmatpush1.msra.mxu0 0.0
    %1745 = vmatprep.subr.mxu0 0.0
    %1746 = vmatpush1.msra.mxu0 0.0
    %1747 = vmatprep.subr.mxu0 0.0
    %1748 = vmatpush1.msra.mxu0 0.0
    %1749 = vmatprep.subr.mxu0 0.0
    %1750 = vmatpush1.msra.mxu0 0.0
    %1751 = vmatprep.subr.mxu0 0.0
    %1752 = vmatpush1.msra.mxu0 0.0
    %1753 = vmatprep.subr.mxu0 0.0
    %1754 = vmatpush1.msra.mxu0 0.0
    %1755 = vmatprep.subr.mxu0 0.0
    %1756 = vmatpush1.msra.mxu0 0.0
    %1757 = vmatprep.subr.mxu0 0.0
    %1758 = vmatpush1.msra.mxu0 0.0
    %1759 = vmatprep.mubr.f32.mxu0 0.0
    %1760 = vmatmul.mubr.f32.gmra.mrb[0].mxu0 %v1611
    %v1761 = vpop.f32.mrb[0].mxu0
    %v1762 = vadd.f32 0.0, %v1761
    %v1763 = vpop.f32.mrb[0].mxu0
    %v1764 = vadd.f32 0.0, %v1763
    %1765 = vdwg.mxu0
    %v1766 = vadd.f32 %v1620, %v1691
    %v1767 = vadd.f32 %v1621, %v1693
    %v1768 = vadd.f32 %v1622, %v1762
    %v1769 = vadd.f32 %v1623, %v1764
    %v1770 = vadd.f32 %v1766, %v453
    %v1771 = vadd.f32 %v1767, %v457
    %v1772 = vadd.f32 %v1768, %v461
    %v1773 = vadd.f32 %v1769, %v465
    %v1774 = vxor.u32 %v1770, 2147483648
    %v1775 = vmul.f32 %v1774, 1.442695
    %v1776 = vpow.pop %v1775
    %v1777 = vadd.f32 %v1776, 1.0
    %v1778 = vrcp.pop %v1777
    %v1779 = vmul.f32 1.0, %v1778
    %v1780 = vxor.u32 %v1771, 2147483648
    %v1781 = vmul.f32 %v1780, 1.442695
    %v1782 = vpow.pop %v1781
    %v1783 = vadd.f32 %v1782, 1.0
    %v1784 = vrcp.pop %v1783
    %v1785 = vmul.f32 1.0, %v1784
    %v1786 = vtanh.pop %v1772
    %v1787 = vxor.u32 %v1773, 2147483648
    %v1788 = vmul.f32 %v1787, 1.442695
    %v1789 = vpow.pop %v1788
    %v1790 = vadd.f32 %v1789, 1.0
    %v1791 = vrcp.pop %v1790
    %v1792 = vmul.f32 1.0, %v1791
    %v1793 = vmul.f32 %v1785, %v1609
    %v1794 = vmul.f32 %v1779, %v1786
    %v1795 = vadd.f32 %v1793, %v1794
    %v1796 = vtanh.pop %v1795
    %v1797 = vmul.f32 %v1792, %v1796
    %s1798 = scalar_lea.vmem [#allocation2], 56
    %1799 = vst [vmem:[%s1798] sm:$0xff] %v1797
    %s1800 = scalar_lea.vmem [#allocation3], 56
    %1801 = vst [vmem:[%s1800] sm:$0xff] %v1795
    %v1802 = vld [vmem:[#allocation2] sm:$0xff]
    %v1803 = vld [vmem:[#allocation2 + $0x8] sm:$0xff]
    %v1804 = vld [vmem:[#allocation2 + $0x10] sm:$0xff]
    %v1805 = vld [vmem:[#allocation2 + $0x18] sm:$0xff]
    %v1806 = vld [vmem:[#allocation2 + $0x20] sm:$0xff]
    %v1807 = vld [vmem:[#allocation2 + $0x28] sm:$0xff]
    %v1808 = vld [vmem:[#allocation2 + $0x30] sm:$0xff]
    %v1809 = vld [vmem:[#allocation2 + $0x38] sm:$0xff]
    %v1810 = vld [vmem:[#allocation3] sm:$0xff]
    %v1811 = vld [vmem:[#allocation3 + $0x8] sm:$0xff]
    %v1812 = vld [vmem:[#allocation3 + $0x10] sm:$0xff]
    %v1813 = vld [vmem:[#allocation3 + $0x18] sm:$0xff]
    %v1814 = vld [vmem:[#allocation3 + $0x20] sm:$0xff]
    %v1815 = vld [vmem:[#allocation3 + $0x28] sm:$0xff]
    %v1816 = vld [vmem:[#allocation3 + $0x30] sm:$0xff]
    %v1817 = vld [vmem:[#allocation3 + $0x38] sm:$0xff]
    %v1818 = vsub.s32 %v105, 1
    %vm1819 = vcmp.eq.s32.totalorder %v1818, 0
    %vm1820 = vcmp.eq.s32.totalorder %v1818, 1
    %vm1821 = vcmp.eq.s32.totalorder %v1818, 2
    %vm1822 = vcmp.eq.s32.totalorder %v1818, 3
    %vm1823 = vcmp.eq.s32.totalorder %v1818, 4
    %vm1824 = vcmp.eq.s32.totalorder %v1818, 5
    %vm1825 = vcmp.eq.s32.totalorder %v1818, 6
    %vm1826 = vcmp.eq.s32.totalorder %v1818, 7
    %v1827 = vsel %vm1819, 1, 0
    %v1828 = vsel %vm1820, 1, 0
    %v1829 = vsel %vm1821, 1, 0
    %v1830 = vsel %vm1822, 1, 0
    %v1831 = vsel %vm1823, 1, 0
    %v1832 = vsel %vm1824, 1, 0
    %v1833 = vsel %vm1825, 1, 0
    %v1834 = vsel %vm1826, 1, 0
    %v1835 = vcvt.s32.f32 %v1827
    %v1836 = vcvt.s32.f32 %v1828
    %v1837 = vcvt.s32.f32 %v1829
    %v1838 = vcvt.s32.f32 %v1830
    %v1839 = vcvt.s32.f32 %v1831
    %v1840 = vcvt.s32.f32 %v1832
    %v1841 = vcvt.s32.f32 %v1833
    %v1842 = vcvt.s32.f32 %v1834
    %1844 = vset.pattern.permute.xlu0 0
    %1845 = vperm.xlu0 %1844, %v1835
    %v1846 = vpop.permute.xlu0 %1845
    %1849 = vset.pattern.permute.xlu0 0
    %1850 = vperm.xlu0 %1849, %v1836
    %v1851 = vpop.permute.xlu0 %1850
    %1854 = vset.pattern.permute.xlu0 0
    %1855 = vperm.xlu0 %1854, %v1837
    %v1856 = vpop.permute.xlu0 %1855
    %1859 = vset.pattern.permute.xlu0 0
    %1860 = vperm.xlu0 %1859, %v1838
    %v1861 = vpop.permute.xlu0 %1860
    %1864 = vset.pattern.permute.xlu0 0
    %1865 = vperm.xlu0 %1864, %v1839
    %v1866 = vpop.permute.xlu0 %1865
    %1869 = vset.pattern.permute.xlu0 0
    %1870 = vperm.xlu0 %1869, %v1840
    %v1871 = vpop.permute.xlu0 %1870
    %1874 = vset.pattern.permute.xlu0 0
    %1875 = vperm.xlu0 %1874, %v1841
    %v1876 = vpop.permute.xlu0 %1875
    %1879 = vset.pattern.permute.xlu0 0
    %1880 = vperm.xlu0 %1879, %v1842
    %v1881 = vpop.permute.xlu0 %1880
    %v1883 = vmul.f32 %v1802, %v1846
    %v1884 = vmul.f32 %v1803, %v1851
    %v1885 = vmul.f32 %v1804, %v1856
    %v1886 = vmul.f32 %v1805, %v1861
    %v1887 = vmul.f32 %v1806, %v1866
    %v1888 = vmul.f32 %v1807, %v1871
    %v1889 = vmul.f32 %v1808, %v1876
    %v1890 = vmul.f32 %v1809, %v1881
    %v1891 = vadd.f32 %v1883, %v1884
    %v1892 = vadd.f32 %v1891, %v1885
    %v1893 = vadd.f32 %v1892, %v1886
    %v1894 = vadd.f32 %v1893, %v1887
    %v1895 = vadd.f32 %v1894, %v1888
    %v1896 = vadd.f32 %v1895, %v1889
    %v1897 = vadd.f32 %v1896, %v1890
    %v1898 = vmul.f32 %v1810, %v1846
    %v1899 = vmul.f32 %v1811, %v1851
    %v1900 = vmul.f32 %v1812, %v1856
    %v1901 = vmul.f32 %v1813, %v1861
    %v1902 = vmul.f32 %v1814, %v1866
    %v1903 = vmul.f32 %v1815, %v1871
    %v1904 = vmul.f32 %v1816, %v1876
    %v1905 = vmul.f32 %v1817, %v1881
    %v1906 = vadd.f32 %v1898, %v1899
    %v1907 = vadd.f32 %v1906, %v1900
    %v1908 = vadd.f32 %v1907, %v1901
    %v1909 = vadd.f32 %v1908, %v1902
    %v1910 = vadd.f32 %v1909, %v1903
    %v1911 = vadd.f32 %v1910, %v1904
    %v1912 = vadd.f32 %v1911, %v1905
    %v1914 = vlaneseq
    %v1915 = vshrl.u32 %v1914, 7
    %v1916 = vsub.s32 0, %v1915
    %v1917 = vrot.slane %v254, %v1916
    %1919 = vmatprep.subr.mxu0 0.0
    %1920 = vmatpush1.msra.mxu0 %v238
    %1921 = vmatprep.subr.mxu0 0.0
    %1922 = vmatpush1.msra.mxu0 %v239
    %1923 = vmatprep.subr.mxu0 0.0
    %1924 = vmatpush1.msra.mxu0 %v240
    %1925 = vmatprep.subr.mxu0 0.0
    %1926 = vmatpush1.msra.mxu0 %v241
    %1927 = vmatprep.subr.mxu0 0.0
    %1928 = vmatpush1.msra.mxu0 %v242
    %1929 = vmatprep.subr.mxu0 0.0
    %1930 = vmatpush1.msra.mxu0 %v243
    %1931 = vmatprep.subr.mxu0 0.0
    %1932 = vmatpush1.msra.mxu0 %v244
    %1933 = vmatprep.subr.mxu0 0.0
    %1934 = vmatpush1.msra.mxu0 %v245
    %1935 = vmatprep.subr.mxu0 0.0
    %1936 = vmatpush1.msra.mxu0 %v246
    %1937 = vmatprep.subr.mxu0 0.0
    %1938 = vmatpush1.msra.mxu0 %v247
    %1939 = vmatprep.subr.mxu0 0.0
    %1940 = vmatpush1.msra.mxu0 %v248
    %1941 = vmatprep.subr.mxu0 0.0
    %1942 = vmatpush1.msra.mxu0 %v249
    %1943 = vmatprep.subr.mxu0 0.0
    %1944 = vmatpush1.msra.mxu0 %v250
    %1945 = vmatprep.subr.mxu0 0.0
    %1946 = vmatpush1.msra.mxu0 %v251
    %1947 = vmatprep.subr.mxu0 0.0
    %1948 = vmatpush1.msra.mxu0 %v252
    %1949 = vmatprep.subr.mxu0 0.0
    %1950 = vmatpush1.msra.mxu0 %v253
    %1951 = vmatprep.subr.mxu0 0.0
    %1952 = vmatpush1.msra.mxu0 0.0
    %1953 = vmatprep.subr.mxu0 0.0
    %1954 = vmatpush1.msra.mxu0 0.0
    %1955 = vmatprep.subr.mxu0 0.0
    %1956 = vmatpush1.msra.mxu0 0.0
    %1957 = vmatprep.subr.mxu0 0.0
    %1958 = vmatpush1.msra.mxu0 0.0
    %1959 = vmatprep.subr.mxu0 0.0
    %1960 = vmatpush1.msra.mxu0 0.0
    %1961 = vmatprep.subr.mxu0 0.0
    %1962 = vmatpush1.msra.mxu0 0.0
    %1963 = vmatprep.subr.mxu0 0.0
    %1964 = vmatpush1.msra.mxu0 0.0
    %1965 = vmatprep.subr.mxu0 0.0
    %1966 = vmatpush1.msra.mxu0 0.0
    %1967 = vmatprep.subr.mxu0 0.0
    %1968 = vmatpush1.msra.mxu0 0.0
    %1969 = vmatprep.subr.mxu0 0.0
    %1970 = vmatpush1.msra.mxu0 0.0
    %1971 = vmatprep.subr.mxu0 0.0
    %1972 = vmatpush1.msra.mxu0 0.0
    %1973 = vmatprep.subr.mxu0 0.0
    %1974 = vmatpush1.msra.mxu0 0.0
    %1975 = vmatprep.subr.mxu0 0.0
    %1976 = vmatpush1.msra.mxu0 0.0
    %1977 = vmatprep.subr.mxu0 0.0
    %1978 = vmatpush1.msra.mxu0 0.0
    %1979 = vmatprep.subr.mxu0 0.0
    %1980 = vmatpush1.msra.mxu0 0.0
    %1981 = vmatprep.subr.mxu0 0.0
    %1982 = vmatpush1.msra.mxu0 0.0
    %1983 = vmatprep.mubr.f32.mxu0 0.0
    %1984 = vmatmul.mubr.f32.gmra.mrb[0].mxu0 %v1802
    %v1985 = vpop.f32.mrb[0].mxu0
    %v1986 = vadd.f32 %v1917, %v1985
    %v1987 = vpop.f32.mrb[0].mxu0
    %1988 = vmatprep.mubr.f32.mxu0 0.0
    %1989 = vmatmul.mubr.f32.gmra.mrb[0].mxu0 %v1803
    %v1990 = vpop.f32.mrb[0].mxu0
    %v1991 = vadd.f32 %v1917, %v1990
    %v1992 = vpop.f32.mrb[0].mxu0
    %1993 = vmatprep.mubr.f32.mxu0 0.0
    %1994 = vmatmul.mubr.f32.gmra.mrb[0].mxu0 %v1804
    %v1995 = vpop.f32.mrb[0].mxu0
    %v1996 = vadd.f32 %v1917, %v1995
    %v1997 = vpop.f32.mrb[0].mxu0
    %1998 = vmatprep.mubr.f32.mxu0 0.0
    %1999 = vmatmul.mubr.f32.gmra.mrb[0].mxu0 %v1805
    %v2000 = vpop.f32.mrb[0].mxu0
    %v2001 = vadd.f32 %v1917, %v2000
    %v2002 = vpop.f32.mrb[0].mxu0
    %2003 = vmatprep.mubr.f32.mxu0 0.0
    %2004 = vmatmul.mubr.f32.gmra.mrb[0].mxu0 %v1806
    %v2005 = vpop.f32.mrb[0].mxu0
    %v2006 = vadd.f32 %v1917, %v2005
    %v2007 = vpop.f32.mrb[0].mxu0
    %2008 = vmatprep.mubr.f32.mxu0 0.0
    %2009 = vmatmul.mubr.f32.gmra.mrb[0].mxu0 %v1807
    %v2010 = vpop.f32.mrb[0].mxu0
    %v2011 = vadd.f32 %v1917, %v2010
    %v2012 = vpop.f32.mrb[0].mxu0
    %2013 = vmatprep.mubr.f32.mxu0 0.0
    %2014 = vmatmul.mubr.f32.gmra.mrb[0].mxu0 %v1808
    %v2015 = vpop.f32.mrb[0].mxu0
    %v2016 = vadd.f32 %v1917, %v2015
    %v2017 = vpop.f32.mrb[0].mxu0
    %2018 = vmatprep.mubr.f32.mxu0 0.0
    %2019 = vmatmul.mubr.f32.gmra.mrb[0].mxu0 %v1809
    %v2020 = vpop.f32.mrb[0].mxu0
    %v2021 = vadd.f32 %v1917, %v2020
    %v2022 = vpop.f32.mrb[0].mxu0
    %2023 = vdwg.mxu0
    %2024 = vst [vmem:[#allocation4] sm:$0xff] %v1986
    %2025 = vst [vmem:[#allocation4 + $0x8] sm:$0xff] %v1991
    %2026 = vst [vmem:[#allocation4 + $0x10] sm:$0xff] %v1996
    %2027 = vst [vmem:[#allocation4 + $0x18] sm:$0xff] %v2001
    %2028 = vst [vmem:[#allocation4 + $0x20] sm:$0xff] %v2006
    %2029 = vst [vmem:[#allocation4 + $0x28] sm:$0xff] %v2011
    %2030 = vst [vmem:[#allocation4 + $0x30] sm:$0xff] %v2016
    %2031 = vst [vmem:[#allocation4 + $0x38] sm:$0xff] %v2021
    %2032 = vmatprep.subr.mxu0 0.0
    %2033 = vmatpush1.msra.mxu0 %v238
    %2034 = vmatprep.subr.mxu0 0.0
    %2035 = vmatpush1.msra.mxu0 %v239
    %2036 = vmatprep.subr.mxu0 0.0
    %2037 = vmatpush1.msra.mxu0 %v240
    %2038 = vmatprep.subr.mxu0 0.0
    %2039 = vmatpush1.msra.mxu0 %v241
    %2040 = vmatprep.subr.mxu0 0.0
    %2041 = vmatpush1.msra.mxu0 %v242
    %2042 = vmatprep.subr.mxu0 0.0
    %2043 = vmatpush1.msra.mxu0 %v243
    %2044 = vmatprep.subr.mxu0 0.0
    %2045 = vmatpush1.msra.mxu0 %v244
    %2046 = vmatprep.subr.mxu0 0.0
    %2047 = vmatpush1.msra.mxu0 %v245
    %2048 = vmatprep.subr.mxu0 0.0
    %2049 = vmatpush1.msra.mxu0 %v246
    %2050 = vmatprep.subr.mxu0 0.0
    %2051 = vmatpush1.msra.mxu0 %v247
    %2052 = vmatprep.subr.mxu0 0.0
    %2053 = vmatpush1.msra.mxu0 %v248
    %2054 = vmatprep.subr.mxu0 0.0
    %2055 = vmatpush1.msra.mxu0 %v249
    %2056 = vmatprep.subr.mxu0 0.0
    %2057 = vmatpush1.msra.mxu0 %v250
    %2058 = vmatprep.subr.mxu0 0.0
    %2059 = vmatpush1.msra.mxu0 %v251
    %2060 = vmatprep.subr.mxu0 0.0
    %2061 = vmatpush1.msra.mxu0 %v252
    %2062 = vmatprep.subr.mxu0 0.0
    %2063 = vmatpush1.msra.mxu0 %v253
    %2064 = vmatprep.subr.mxu0 0.0
    %2065 = vmatpush1.msra.mxu0 0.0
    %2066 = vmatprep.subr.mxu0 0.0
    %2067 = vmatpush1.msra.mxu0 0.0
    %2068 = vmatprep.subr.mxu0 0.0
    %2069 = vmatpush1.msra.mxu0 0.0
    %2070 = vmatprep.subr.mxu0 0.0
    %2071 = vmatpush1.msra.mxu0 0.0
    %2072 = vmatprep.subr.mxu0 0.0
    %2073 = vmatpush1.msra.mxu0 0.0
    %2074 = vmatprep.subr.mxu0 0.0
    %2075 = vmatpush1.msra.mxu0 0.0
    %2076 = vmatprep.subr.mxu0 0.0
    %2077 = vmatpush1.msra.mxu0 0.0
    %2078 = vmatprep.subr.mxu0 0.0
    %2079 = vmatpush1.msra.mxu0 0.0
    %2080 = vmatprep.subr.mxu0 0.0
    %2081 = vmatpush1.msra.mxu0 0.0
    %2082 = vmatprep.subr.mxu0 0.0
    %2083 = vmatpush1.msra.mxu0 0.0
    %2084 = vmatprep.subr.mxu0 0.0
    %2085 = vmatpush1.msra.mxu0 0.0
    %2086 = vmatprep.subr.mxu0 0.0
    %2087 = vmatpush1.msra.mxu0 0.0
    %2088 = vmatprep.subr.mxu0 0.0
    %2089 = vmatpush1.msra.mxu0 0.0
    %2090 = vmatprep.subr.mxu0 0.0
    %2091 = vmatpush1.msra.mxu0 0.0
    %2092 = vmatprep.subr.mxu0 0.0
    %2093 = vmatpush1.msra.mxu0 0.0
    %2094 = vmatprep.subr.mxu0 0.0
    %2095 = vmatpush1.msra.mxu0 0.0
    %2096 = vmatprep.mubr.f32.mxu0 0.0
    %2097 = vmatmul.mubr.f32.gmra.mrb[0].mxu0 %v1986
    %v2098 = vpop.f32.mrb[0].mxu0
    %v2099 = vadd.f32 %v1917, %v2098
    %v2100 = vpop.f32.mrb[0].mxu0
    %2101 = vmatprep.mubr.f32.mxu0 0.0
    %2102 = vmatmul.mubr.f32.gmra.mrb[0].mxu0 %v1991
    %v2103 = vpop.f32.mrb[0].mxu0
    %v2104 = vadd.f32 %v1917, %v2103
    %v2105 = vpop.f32.mrb[0].mxu0
    %2106 = vmatprep.mubr.f32.mxu0 0.0
    %2107 = vmatmul.mubr.f32.gmra.mrb[0].mxu0 %v1996
    %v2108 = vpop.f32.mrb[0].mxu0
    %v2109 = vadd.f32 %v1917, %v2108
    %v2110 = vpop.f32.mrb[0].mxu0
    %2111 = vmatprep.mubr.f32.mxu0 0.0
    %2112 = vmatmul.mubr.f32.gmra.mrb[0].mxu0 %v2001
    %v2113 = vpop.f32.mrb[0].mxu0
    %v2114 = vadd.f32 %v1917, %v2113
    %v2115 = vpop.f32.mrb[0].mxu0
    %2116 = vmatprep.mubr.f32.mxu0 0.0
    %2117 = vmatmul.mubr.f32.gmra.mrb[0].mxu0 %v2006
    %v2118 = vpop.f32.mrb[0].mxu0
    %v2119 = vadd.f32 %v1917, %v2118
    %v2120 = vpop.f32.mrb[0].mxu0
    %2121 = vmatprep.mubr.f32.mxu0 0.0
    %2122 = vmatmul.mubr.f32.gmra.mrb[0].mxu0 %v2011
    %v2123 = vpop.f32.mrb[0].mxu0
    %v2124 = vadd.f32 %v1917, %v2123
    %v2125 = vpop.f32.mrb[0].mxu0
    %2126 = vmatprep.mubr.f32.mxu0 0.0
    %2127 = vmatmul.mubr.f32.gmra.mrb[0].mxu0 %v2016
    %v2128 = vpop.f32.mrb[0].mxu0
    %v2129 = vadd.f32 %v1917, %v2128
    %v2130 = vpop.f32.mrb[0].mxu0
    %2131 = vmatprep.mubr.f32.mxu0 0.0
    %2132 = vmatmul.mubr.f32.gmra.mrb[0].mxu0 %v2021
    %v2133 = vpop.f32.mrb[0].mxu0
    %v2134 = vadd.f32 %v1917, %v2133
    %v2135 = vpop.f32.mrb[0].mxu0
    %2136 = vdwg.mxu0
    %s2137 = scalar_lea.vmem [#allocation4], 64
    %2138 = vst [vmem:[%s2137] sm:$0xff] %v2099
    %2139 = vst [vmem:[%s2137 + $0x8] sm:$0xff] %v2104
    %2140 = vst [vmem:[%s2137 + $0x10] sm:$0xff] %v2109
    %2141 = vst [vmem:[%s2137 + $0x18] sm:$0xff] %v2114
    %2142 = vst [vmem:[%s2137 + $0x20] sm:$0xff] %v2119
    %2143 = vst [vmem:[%s2137 + $0x28] sm:$0xff] %v2124
    %2144 = vst [vmem:[%s2137 + $0x30] sm:$0xff] %v2129
    %2145 = vst [vmem:[%s2137 + $0x38] sm:$0xff] %v2134
    %2146 = vmatprep.subr.mxu0 0.0
    %2147 = vmatpush1.msra.mxu0 %v238
    %2148 = vmatprep.subr.mxu0 0.0
    %2149 = vmatpush1.msra.mxu0 %v239
    %2150 = vmatprep.subr.mxu0 0.0
    %2151 = vmatpush1.msra.mxu0 %v240
    %2152 = vmatprep.subr.mxu0 0.0
    %2153 = vmatpush1.msra.mxu0 %v241
    %2154 = vmatprep.subr.mxu0 0.0
    %2155 = vmatpush1.msra.mxu0 %v242
    %2156 = vmatprep.subr.mxu0 0.0
    %2157 = vmatpush1.msra.mxu0 %v243
    %2158 = vmatprep.subr.mxu0 0.0
    %2159 = vmatpush1.msra.mxu0 %v244
    %2160 = vmatprep.subr.mxu0 0.0
    %2161 = vmatpush1.msra.mxu0 %v245
    %2162 = vmatprep.subr.mxu0 0.0
    %2163 = vmatpush1.msra.mxu0 %v246
    %2164 = vmatprep.subr.mxu0 0.0
    %2165 = vmatpush1.msra.mxu0 %v247
    %2166 = vmatprep.subr.mxu0 0.0
    %2167 = vmatpush1.msra.mxu0 %v248
    %2168 = vmatprep.subr.mxu0 0.0
    %2169 = vmatpush1.msra.mxu0 %v249
    %2170 = vmatprep.subr.mxu0 0.0
    %2171 = vmatpush1.msra.mxu0 %v250
    %2172 = vmatprep.subr.mxu0 0.0
    %2173 = vmatpush1.msra.mxu0 %v251
    %2174 = vmatprep.subr.mxu0 0.0
    %2175 = vmatpush1.msra.mxu0 %v252
    %2176 = vmatprep.subr.mxu0 0.0
    %2177 = vmatpush1.msra.mxu0 %v253
    %2178 = vmatprep.subr.mxu0 0.0
    %2179 = vmatpush1.msra.mxu0 0.0
    %2180 = vmatprep.subr.mxu0 0.0
    %2181 = vmatpush1.msra.mxu0 0.0
    %2182 = vmatprep.subr.mxu0 0.0
    %2183 = vmatpush1.msra.mxu0 0.0
    %2184 = vmatprep.subr.mxu0 0.0
    %2185 = vmatpush1.msra.mxu0 0.0
    %2186 = vmatprep.subr.mxu0 0.0
    %2187 = vmatpush1.msra.mxu0 0.0
    %2188 = vmatprep.subr.mxu0 0.0
    %2189 = vmatpush1.msra.mxu0 0.0
    %2190 = vmatprep.subr.mxu0 0.0
    %2191 = vmatpush1.msra.mxu0 0.0
    %2192 = vmatprep.subr.mxu0 0.0
    %2193 = vmatpush1.msra.mxu0 0.0
    %2194 = vmatprep.subr.mxu0 0.0
    %2195 = vmatpush1.msra.mxu0 0.0
    %2196 = vmatprep.subr.mxu0 0.0
    %2197 = vmatpush1.msra.mxu0 0.0
    %2198 = vmatprep.subr.mxu0 0.0
    %2199 = vmatpush1.msra.mxu0 0.0
    %2200 = vmatprep.subr.mxu0 0.0
    %2201 = vmatpush1.msra.mxu0 0.0
    %2202 = vmatprep.subr.mxu0 0.0
    %2203 = vmatpush1.msra.mxu0 0.0
    %2204 = vmatprep.subr.mxu0 0.0
    %2205 = vmatpush1.msra.mxu0 0.0
    %2206 = vmatprep.subr.mxu0 0.0
    %2207 = vmatpush1.msra.mxu0 0.0
    %2208 = vmatprep.subr.mxu0 0.0
    %2209 = vmatpush1.msra.mxu0 0.0
    %2210 = vmatprep.mubr.f32.mxu0 0.0
    %2211 = vmatmul.mubr.f32.gmra.mrb[0].mxu0 %v2099
    %v2212 = vpop.f32.mrb[0].mxu0
    %v2213 = vadd.f32 %v1917, %v2212
    %v2214 = vpop.f32.mrb[0].mxu0
    %2215 = vmatprep.mubr.f32.mxu0 0.0
    %2216 = vmatmul.mubr.f32.gmra.mrb[0].mxu0 %v2104
    %v2217 = vpop.f32.mrb[0].mxu0
    %v2218 = vadd.f32 %v1917, %v2217
    %v2219 = vpop.f32.mrb[0].mxu0
    %2220 = vmatprep.mubr.f32.mxu0 0.0
    %2221 = vmatmul.mubr.f32.gmra.mrb[0].mxu0 %v2109
    %v2222 = vpop.f32.mrb[0].mxu0
    %v2223 = vadd.f32 %v1917, %v2222
    %v2224 = vpop.f32.mrb[0].mxu0
    %2225 = vmatprep.mubr.f32.mxu0 0.0
    %2226 = vmatmul.mubr.f32.gmra.mrb[0].mxu0 %v2114
    %v2227 = vpop.f32.mrb[0].mxu0
    %v2228 = vadd.f32 %v1917, %v2227
    %v2229 = vpop.f32.mrb[0].mxu0
    %2230 = vmatprep.mubr.f32.mxu0 0.0
    %2231 = vmatmul.mubr.f32.gmra.mrb[0].mxu0 %v2119
    %v2232 = vpop.f32.mrb[0].mxu0
    %v2233 = vadd.f32 %v1917, %v2232
    %v2234 = vpop.f32.mrb[0].mxu0
    %2235 = vmatprep.mubr.f32.mxu0 0.0
    %2236 = vmatmul.mubr.f32.gmra.mrb[0].mxu0 %v2124
    %v2237 = vpop.f32.mrb[0].mxu0
    %v2238 = vadd.f32 %v1917, %v2237
    %v2239 = vpop.f32.mrb[0].mxu0
    %2240 = vmatprep.mubr.f32.mxu0 0.0
    %2241 = vmatmul.mubr.f32.gmra.mrb[0].mxu0 %v2129
    %v2242 = vpop.f32.mrb[0].mxu0
    %v2243 = vadd.f32 %v1917, %v2242
    %v2244 = vpop.f32.mrb[0].mxu0
    %2245 = vmatprep.mubr.f32.mxu0 0.0
    %2246 = vmatmul.mubr.f32.gmra.mrb[0].mxu0 %v2134
    %v2247 = vpop.f32.mrb[0].mxu0
    %v2248 = vadd.f32 %v1917, %v2247
    %v2249 = vpop.f32.mrb[0].mxu0
    %2250 = vdwg.mxu0
    %s2251 = scalar_lea.vmem [#allocation4], 128
    %2252 = vst [vmem:[%s2251] sm:$0xff] %v2213
    %2253 = vst [vmem:[%s2251 + $0x8] sm:$0xff] %v2218
    %2254 = vst [vmem:[%s2251 + $0x10] sm:$0xff] %v2223
    %2255 = vst [vmem:[%s2251 + $0x18] sm:$0xff] %v2228
    %2256 = vst [vmem:[%s2251 + $0x20] sm:$0xff] %v2233
    %2257 = vst [vmem:[%s2251 + $0x28] sm:$0xff] %v2238
    %2258 = vst [vmem:[%s2251 + $0x30] sm:$0xff] %v2243
    %2259 = vst [vmem:[%s2251 + $0x38] sm:$0xff] %v2248
    %2260 = vmatprep.subr.mxu0 0.0
    %2261 = vmatpush1.msra.mxu0 %v238
    %2262 = vmatprep.subr.mxu0 0.0
    %2263 = vmatpush1.msra.mxu0 %v239
    %2264 = vmatprep.subr.mxu0 0.0
    %2265 = vmatpush1.msra.mxu0 %v240
    %2266 = vmatprep.subr.mxu0 0.0
    %2267 = vmatpush1.msra.mxu0 %v241
    %2268 = vmatprep.subr.mxu0 0.0
    %2269 = vmatpush1.msra.mxu0 %v242
    %2270 = vmatprep.subr.mxu0 0.0
    %2271 = vmatpush1.msra.mxu0 %v243
    %2272 = vmatprep.subr.mxu0 0.0
    %2273 = vmatpush1.msra.mxu0 %v244
    %2274 = vmatprep.subr.mxu0 0.0
    %2275 = vmatpush1.msra.mxu0 %v245
    %2276 = vmatprep.subr.mxu0 0.0
    %2277 = vmatpush1.msra.mxu0 %v246
    %2278 = vmatprep.subr.mxu0 0.0
    %2279 = vmatpush1.msra.mxu0 %v247
    %2280 = vmatprep.subr.mxu0 0.0
    %2281 = vmatpush1.msra.mxu0 %v248
    %2282 = vmatprep.subr.mxu0 0.0
    %2283 = vmatpush1.msra.mxu0 %v249
    %2284 = vmatprep.subr.mxu0 0.0
    %2285 = vmatpush1.msra.mxu0 %v250
    %2286 = vmatprep.subr.mxu0 0.0
    %2287 = vmatpush1.msra.mxu0 %v251
    %2288 = vmatprep.subr.mxu0 0.0
    %2289 = vmatpush1.msra.mxu0 %v252
    %2290 = vmatprep.subr.mxu0 0.0
    %2291 = vmatpush1.msra.mxu0 %v253
    %2292 = vmatprep.subr.mxu0 0.0
    %2293 = vmatpush1.msra.mxu0 0.0
    %2294 = vmatprep.subr.mxu0 0.0
    %2295 = vmatpush1.msra.mxu0 0.0
    %2296 = vmatprep.subr.mxu0 0.0
    %2297 = vmatpush1.msra.mxu0 0.0
    %2298 = vmatprep.subr.mxu0 0.0
    %2299 = vmatpush1.msra.mxu0 0.0
    %2300 = vmatprep.subr.mxu0 0.0
    %2301 = vmatpush1.msra.mxu0 0.0
    %2302 = vmatprep.subr.mxu0 0.0
    %2303 = vmatpush1.msra.mxu0 0.0
    %2304 = vmatprep.subr.mxu0 0.0
    %2305 = vmatpush1.msra.mxu0 0.0
    %2306 = vmatprep.subr.mxu0 0.0
    %2307 = vmatpush1.msra.mxu0 0.0
    %2308 = vmatprep.subr.mxu0 0.0
    %2309 = vmatpush1.msra.mxu0 0.0
    %2310 = vmatprep.subr.mxu0 0.0
    %2311 = vmatpush1.msra.mxu0 0.0
    %2312 = vmatprep.subr.mxu0 0.0
    %2313 = vmatpush1.msra.mxu0 0.0
    %2314 = vmatprep.subr.mxu0 0.0
    %2315 = vmatpush1.msra.mxu0 0.0
    %2316 = vmatprep.subr.mxu0 0.0
    %2317 = vmatpush1.msra.mxu0 0.0
    %2318 = vmatprep.subr.mxu0 0.0
    %2319 = vmatpush1.msra.mxu0 0.0
    %2320 = vmatprep.subr.mxu0 0.0
    %2321 = vmatpush1.msra.mxu0 0.0
    %2322 = vmatprep.subr.mxu0 0.0
    %2323 = vmatpush1.msra.mxu0 0.0
    %2324 = vmatprep.mubr.f32.mxu0 0.0
    %2325 = vmatmul.mubr.f32.gmra.mrb[0].mxu0 %v2213
    %v2326 = vpop.f32.mrb[0].mxu0
    %v2327 = vadd.f32 %v1917, %v2326
    %v2328 = vpop.f32.mrb[0].mxu0
    %2329 = vmatprep.mubr.f32.mxu0 0.0
    %2330 = vmatmul.mubr.f32.gmra.mrb[0].mxu0 %v2218
    %v2331 = vpop.f32.mrb[0].mxu0
    %v2332 = vadd.f32 %v1917, %v2331
    %v2333 = vpop.f32.mrb[0].mxu0
    %2334 = vmatprep.mubr.f32.mxu0 0.0
    %2335 = vmatmul.mubr.f32.gmra.mrb[0].mxu0 %v2223
    %v2336 = vpop.f32.mrb[0].mxu0
    %v2337 = vadd.f32 %v1917, %v2336
    %v2338 = vpop.f32.mrb[0].mxu0
    %2339 = vmatprep.mubr.f32.mxu0 0.0
    %2340 = vmatmul.mubr.f32.gmra.mrb[0].mxu0 %v2228
    %v2341 = vpop.f32.mrb[0].mxu0
    %v2342 = vadd.f32 %v1917, %v2341
    %v2343 = vpop.f32.mrb[0].mxu0
    %2344 = vmatprep.mubr.f32.mxu0 0.0
    %2345 = vmatmul.mubr.f32.gmra.mrb[0].mxu0 %v2233
    %v2346 = vpop.f32.mrb[0].mxu0
    %v2347 = vadd.f32 %v1917, %v2346
    %v2348 = vpop.f32.mrb[0].mxu0
    %2349 = vmatprep.mubr.f32.mxu0 0.0
    %2350 = vmatmul.mubr.f32.gmra.mrb[0].mxu0 %v2238
    %v2351 = vpop.f32.mrb[0].mxu0
    %v2352 = vadd.f32 %v1917, %v2351
    %v2353 = vpop.f32.mrb[0].mxu0
    %2354 = vmatprep.mubr.f32.mxu0 0.0
    %2355 = vmatmul.mubr.f32.gmra.mrb[0].mxu0 %v2243
    %v2356 = vpop.f32.mrb[0].mxu0
    %v2357 = vadd.f32 %v1917, %v2356
    %v2358 = vpop.f32.mrb[0].mxu0
    %2359 = vmatprep.mubr.f32.mxu0 0.0
    %2360 = vmatmul.mubr.f32.gmra.mrb[0].mxu0 %v2248
    %v2361 = vpop.f32.mrb[0].mxu0
    %v2362 = vadd.f32 %v1917, %v2361
    %v2363 = vpop.f32.mrb[0].mxu0
    %2364 = vdwg.mxu0
    %s2365 = scalar_lea.vmem [#allocation4], 192
    %2366 = vst [vmem:[%s2365] sm:$0xff] %v2327
    %2367 = vst [vmem:[%s2365 + $0x8] sm:$0xff] %v2332
    %2368 = vst [vmem:[%s2365 + $0x10] sm:$0xff] %v2337
    %2369 = vst [vmem:[%s2365 + $0x18] sm:$0xff] %v2342
    %2370 = vst [vmem:[%s2365 + $0x20] sm:$0xff] %v2347
    %2371 = vst [vmem:[%s2365 + $0x28] sm:$0xff] %v2352
    %2372 = vst [vmem:[%s2365 + $0x30] sm:$0xff] %v2357
    %2373 = vst [vmem:[%s2365 + $0x38] sm:$0xff] %v2362
    %2374 = vmatprep.subr.mxu0 0.0
    %2375 = vmatpush1.msra.mxu0 %v238
    %2376 = vmatprep.subr.mxu0 0.0
    %2377 = vmatpush1.msra.mxu0 %v239
    %2378 = vmatprep.subr.mxu0 0.0
    %2379 = vmatpush1.msra.mxu0 %v240
    %2380 = vmatprep.subr.mxu0 0.0
    %2381 = vmatpush1.msra.mxu0 %v241
    %2382 = vmatprep.subr.mxu0 0.0
    %2383 = vmatpush1.msra.mxu0 %v242
    %2384 = vmatprep.subr.mxu0 0.0
    %2385 = vmatpush1.msra.mxu0 %v243
    %2386 = vmatprep.subr.mxu0 0.0
    %2387 = vmatpush1.msra.mxu0 %v244
    %2388 = vmatprep.subr.mxu0 0.0
    %2389 = vmatpush1.msra.mxu0 %v245
    %2390 = vmatprep.subr.mxu0 0.0
    %2391 = vmatpush1.msra.mxu0 %v246
    %2392 = vmatprep.subr.mxu0 0.0
    %2393 = vmatpush1.msra.mxu0 %v247
    %2394 = vmatprep.subr.mxu0 0.0
    %2395 = vmatpush1.msra.mxu0 %v248
    %2396 = vmatprep.subr.mxu0 0.0
    %2397 = vmatpush1.msra.mxu0 %v249
    %2398 = vmatprep.subr.mxu0 0.0
    %2399 = vmatpush1.msra.mxu0 %v250
    %2400 = vmatprep.subr.mxu0 0.0
    %2401 = vmatpush1.msra.mxu0 %v251
    %2402 = vmatprep.subr.mxu0 0.0
    %2403 = vmatpush1.msra.mxu0 %v252
    %2404 = vmatprep.subr.mxu0 0.0
    %2405 = vmatpush1.msra.mxu0 %v253
    %2406 = vmatprep.subr.mxu0 0.0
    %2407 = vmatpush1.msra.mxu0 0.0
    %2408 = vmatprep.subr.mxu0 0.0
    %2409 = vmatpush1.msra.mxu0 0.0
    %2410 = vmatprep.subr.mxu0 0.0
    %2411 = vmatpush1.msra.mxu0 0.0
    %2412 = vmatprep.subr.mxu0 0.0
    %2413 = vmatpush1.msra.mxu0 0.0
    %2414 = vmatprep.subr.mxu0 0.0
    %2415 = vmatpush1.msra.mxu0 0.0
    %2416 = vmatprep.subr.mxu0 0.0
    %2417 = vmatpush1.msra.mxu0 0.0
    %2418 = vmatprep.subr.mxu0 0.0
    %2419 = vmatpush1.msra.mxu0 0.0
    %2420 = vmatprep.subr.mxu0 0.0
    %2421 = vmatpush1.msra.mxu0 0.0
    %2422 = vmatprep.subr.mxu0 0.0
    %2423 = vmatpush1.msra.mxu0 0.0
    %2424 = vmatprep.subr.mxu0 0.0
    %2425 = vmatpush1.msra.mxu0 0.0
    %2426 = vmatprep.subr.mxu0 0.0
    %2427 = vmatpush1.msra.mxu0 0.0
    %2428 = vmatprep.subr.mxu0 0.0
    %2429 = vmatpush1.msra.mxu0 0.0
    %2430 = vmatprep.subr.mxu0 0.0
    %2431 = vmatpush1.msra.mxu0 0.0
    %2432 = vmatprep.subr.mxu0 0.0
    %2433 = vmatpush1.msra.mxu0 0.0
    %2434 = vmatprep.subr.mxu0 0.0
    %2435 = vmatpush1.msra.mxu0 0.0
    %2436 = vmatprep.subr.mxu0 0.0
    %2437 = vmatpush1.msra.mxu0 0.0
    %2438 = vmatprep.mubr.f32.mxu0 0.0
    %2439 = vmatmul.mubr.f32.gmra.mrb[0].mxu0 %v2327
    %v2440 = vpop.f32.mrb[0].mxu0
    %v2441 = vadd.f32 %v1917, %v2440
    %v2442 = vpop.f32.mrb[0].mxu0
    %2443 = vmatprep.mubr.f32.mxu0 0.0
    %2444 = vmatmul.mubr.f32.gmra.mrb[0].mxu0 %v2332
    %v2445 = vpop.f32.mrb[0].mxu0
    %v2446 = vadd.f32 %v1917, %v2445
    %v2447 = vpop.f32.mrb[0].mxu0
    %2448 = vmatprep.mubr.f32.mxu0 0.0
    %2449 = vmatmul.mubr.f32.gmra.mrb[0].mxu0 %v2337
    %v2450 = vpop.f32.mrb[0].mxu0
    %v2451 = vadd.f32 %v1917, %v2450
    %v2452 = vpop.f32.mrb[0].mxu0
    %2453 = vmatprep.mubr.f32.mxu0 0.0
    %2454 = vmatmul.mubr.f32.gmra.mrb[0].mxu0 %v2342
    %v2455 = vpop.f32.mrb[0].mxu0
    %v2456 = vadd.f32 %v1917, %v2455
    %v2457 = vpop.f32.mrb[0].mxu0
    %2458 = vmatprep.mubr.f32.mxu0 0.0
    %2459 = vmatmul.mubr.f32.gmra.mrb[0].mxu0 %v2347
    %v2460 = vpop.f32.mrb[0].mxu0
    %v2461 = vadd.f32 %v1917, %v2460
    %v2462 = vpop.f32.mrb[0].mxu0
    %2463 = vmatprep.mubr.f32.mxu0 0.0
    %2464 = vmatmul.mubr.f32.gmra.mrb[0].mxu0 %v2352
    %v2465 = vpop.f32.mrb[0].mxu0
    %v2466 = vadd.f32 %v1917, %v2465
    %v2467 = vpop.f32.mrb[0].mxu0
    %2468 = vmatprep.mubr.f32.mxu0 0.0
    %2469 = vmatmul.mubr.f32.gmra.mrb[0].mxu0 %v2357
    %v2470 = vpop.f32.mrb[0].mxu0
    %v2471 = vadd.f32 %v1917, %v2470
    %v2472 = vpop.f32.mrb[0].mxu0
    %2473 = vmatprep.mubr.f32.mxu0 0.0
    %2474 = vmatmul.mubr.f32.gmra.mrb[0].mxu0 %v2362
    %v2475 = vpop.f32.mrb[0].mxu0
    %v2476 = vadd.f32 %v1917, %v2475
    %v2477 = vpop.f32.mrb[0].mxu0
    %2478 = vdwg.mxu0
    %s2479 = scalar_lea.vmem [#allocation4], 256
    %2480 = vst [vmem:[%s2479] sm:$0xff] %v2441
    %2481 = vst [vmem:[%s2479 + $0x8] sm:$0xff] %v2446
    %2482 = vst [vmem:[%s2479 + $0x10] sm:$0xff] %v2451
    %2483 = vst [vmem:[%s2479 + $0x18] sm:$0xff] %v2456
    %2484 = vst [vmem:[%s2479 + $0x20] sm:$0xff] %v2461
    %2485 = vst [vmem:[%s2479 + $0x28] sm:$0xff] %v2466
    %2486 = vst [vmem:[%s2479 + $0x30] sm:$0xff] %v2471
    %2487 = vst [vmem:[%s2479 + $0x38] sm:$0xff] %v2476
    %2488 = vmatprep.subr.mxu0 0.0
    %2489 = vmatpush1.msra.mxu0 %v238
    %2490 = vmatprep.subr.mxu0 0.0
    %2491 = vmatpush1.msra.mxu0 %v239
    %2492 = vmatprep.subr.mxu0 0.0
    %2493 = vmatpush1.msra.mxu0 %v240
    %2494 = vmatprep.subr.mxu0 0.0
    %2495 = vmatpush1.msra.mxu0 %v241
    %2496 = vmatprep.subr.mxu0 0.0
    %2497 = vmatpush1.msra.mxu0 %v242
    %2498 = vmatprep.subr.mxu0 0.0
    %2499 = vmatpush1.msra.mxu0 %v243
    %2500 = vmatprep.subr.mxu0 0.0
    %2501 = vmatpush1.msra.mxu0 %v244
    %2502 = vmatprep.subr.mxu0 0.0
    %2503 = vmatpush1.msra.mxu0 %v245
    %2504 = vmatprep.subr.mxu0 0.0
    %2505 = vmatpush1.msra.mxu0 %v246
    %2506 = vmatprep.subr.mxu0 0.0
    %2507 = vmatpush1.msra.mxu0 %v247
    %2508 = vmatprep.subr.mxu0 0.0
    %2509 = vmatpush1.msra.mxu0 %v248
    %2510 = vmatprep.subr.mxu0 0.0
    %2511 = vmatpush1.msra.mxu0 %v249
    %2512 = vmatprep.subr.mxu0 0.0
    %2513 = vmatpush1.msra.mxu0 %v250
    %2514 = vmatprep.subr.mxu0 0.0
    %2515 = vmatpush1.msra.mxu0 %v251
    %2516 = vmatprep.subr.mxu0 0.0
    %2517 = vmatpush1.msra.mxu0 %v252
    %2518 = vmatprep.subr.mxu0 0.0
    %2519 = vmatpush1.msra.mxu0 %v253
    %2520 = vmatprep.subr.mxu0 0.0
    %2521 = vmatpush1.msra.mxu0 0.0
    %2522 = vmatprep.subr.mxu0 0.0
    %2523 = vmatpush1.msra.mxu0 0.0
    %2524 = vmatprep.subr.mxu0 0.0
    %2525 = vmatpush1.msra.mxu0 0.0
    %2526 = vmatprep.subr.mxu0 0.0
    %2527 = vmatpush1.msra.mxu0 0.0
    %2528 = vmatprep.subr.mxu0 0.0
    %2529 = vmatpush1.msra.mxu0 0.0
    %2530 = vmatprep.subr.mxu0 0.0
    %2531 = vmatpush1.msra.mxu0 0.0
    %2532 = vmatprep.subr.mxu0 0.0
    %2533 = vmatpush1.msra.mxu0 0.0
    %2534 = vmatprep.subr.mxu0 0.0
    %2535 = vmatpush1.msra.mxu0 0.0
    %2536 = vmatprep.subr.mxu0 0.0
    %2537 = vmatpush1.msra.mxu0 0.0
    %2538 = vmatprep.subr.mxu0 0.0
    %2539 = vmatpush1.msra.mxu0 0.0
    %2540 = vmatprep.subr.mxu0 0.0
    %2541 = vmatpush1.msra.mxu0 0.0
    %2542 = vmatprep.subr.mxu0 0.0
    %2543 = vmatpush1.msra.mxu0 0.0
    %2544 = vmatprep.subr.mxu0 0.0
    %2545 = vmatpush1.msra.mxu0 0.0
    %2546 = vmatprep.subr.mxu0 0.0
    %2547 = vmatpush1.msra.mxu0 0.0
    %2548 = vmatprep.subr.mxu0 0.0
    %2549 = vmatpush1.msra.mxu0 0.0
    %2550 = vmatprep.subr.mxu0 0.0
    %2551 = vmatpush1.msra.mxu0 0.0
    %2552 = vmatprep.mubr.f32.mxu0 0.0
    %2553 = vmatmul.mubr.f32.gmra.mrb[0].mxu0 %v2441
    %v2554 = vpop.f32.mrb[0].mxu0
    %v2555 = vadd.f32 %v1917, %v2554
    %v2556 = vpop.f32.mrb[0].mxu0
    %2557 = vmatprep.mubr.f32.mxu0 0.0
    %2558 = vmatmul.mubr.f32.gmra.mrb[0].mxu0 %v2446
    %v2559 = vpop.f32.mrb[0].mxu0
    %v2560 = vadd.f32 %v1917, %v2559
    %v2561 = vpop.f32.mrb[0].mxu0
    %2562 = vmatprep.mubr.f32.mxu0 0.0
    %2563 = vmatmul.mubr.f32.gmra.mrb[0].mxu0 %v2451
    %v2564 = vpop.f32.mrb[0].mxu0
    %v2565 = vadd.f32 %v1917, %v2564
    %v2566 = vpop.f32.mrb[0].mxu0
    %2567 = vmatprep.mubr.f32.mxu0 0.0
    %2568 = vmatmul.mubr.f32.gmra.mrb[0].mxu0 %v2456
    %v2569 = vpop.f32.mrb[0].mxu0
    %v2570 = vadd.f32 %v1917, %v2569
    %v2571 = vpop.f32.mrb[0].mxu0
    %2572 = vmatprep.mubr.f32.mxu0 0.0
    %2573 = vmatmul.mubr.f32.gmra.mrb[0].mxu0 %v2461
    %v2574 = vpop.f32.mrb[0].mxu0
    %v2575 = vadd.f32 %v1917, %v2574
    %v2576 = vpop.f32.mrb[0].mxu0
    %2577 = vmatprep.mubr.f32.mxu0 0.0
    %2578 = vmatmul.mubr.f32.gmra.mrb[0].mxu0 %v2466
    %v2579 = vpop.f32.mrb[0].mxu0
    %v2580 = vadd.f32 %v1917, %v2579
    %v2581 = vpop.f32.mrb[0].mxu0
    %2582 = vmatprep.mubr.f32.mxu0 0.0
    %2583 = vmatmul.mubr.f32.gmra.mrb[0].mxu0 %v2471
    %v2584 = vpop.f32.mrb[0].mxu0
    %v2585 = vadd.f32 %v1917, %v2584
    %v2586 = vpop.f32.mrb[0].mxu0
    %2587 = vmatprep.mubr.f32.mxu0 0.0
    %2588 = vmatmul.mubr.f32.gmra.mrb[0].mxu0 %v2476
    %v2589 = vpop.f32.mrb[0].mxu0
    %v2590 = vadd.f32 %v1917, %v2589
    %v2591 = vpop.f32.mrb[0].mxu0
    %2592 = vdwg.mxu0
    %s2593 = scalar_lea.vmem [#allocation4], 320
    %2594 = vst [vmem:[%s2593] sm:$0xff] %v2555
    %2595 = vst [vmem:[%s2593 + $0x8] sm:$0xff] %v2560
    %2596 = vst [vmem:[%s2593 + $0x10] sm:$0xff] %v2565
    %2597 = vst [vmem:[%s2593 + $0x18] sm:$0xff] %v2570
    %2598 = vst [vmem:[%s2593 + $0x20] sm:$0xff] %v2575
    %2599 = vst [vmem:[%s2593 + $0x28] sm:$0xff] %v2580
    %2600 = vst [vmem:[%s2593 + $0x30] sm:$0xff] %v2585
    %2601 = vst [vmem:[%s2593 + $0x38] sm:$0xff] %v2590
    %2602 = vmatprep.subr.mxu0 0.0
    %2603 = vmatpush1.msra.mxu0 %v238
    %2604 = vmatprep.subr.mxu0 0.0
    %2605 = vmatpush1.msra.mxu0 %v239
    %2606 = vmatprep.subr.mxu0 0.0
    %2607 = vmatpush1.msra.mxu0 %v240
    %2608 = vmatprep.subr.mxu0 0.0
    %2609 = vmatpush1.msra.mxu0 %v241
    %2610 = vmatprep.subr.mxu0 0.0
    %2611 = vmatpush1.msra.mxu0 %v242
    %2612 = vmatprep.subr.mxu0 0.0
    %2613 = vmatpush1.msra.mxu0 %v243
    %2614 = vmatprep.subr.mxu0 0.0
    %2615 = vmatpush1.msra.mxu0 %v244
    %2616 = vmatprep.subr.mxu0 0.0
    %2617 = vmatpush1.msra.mxu0 %v245
    %2618 = vmatprep.subr.mxu0 0.0
    %2619 = vmatpush1.msra.mxu0 %v246
    %2620 = vmatprep.subr.mxu0 0.0
    %2621 = vmatpush1.msra.mxu0 %v247
    %2622 = vmatprep.subr.mxu0 0.0
    %2623 = vmatpush1.msra.mxu0 %v248
    %2624 = vmatprep.subr.mxu0 0.0
    %2625 = vmatpush1.msra.mxu0 %v249
    %2626 = vmatprep.subr.mxu0 0.0
    %2627 = vmatpush1.msra.mxu0 %v250
    %2628 = vmatprep.subr.mxu0 0.0
    %2629 = vmatpush1.msra.mxu0 %v251
    %2630 = vmatprep.subr.mxu0 0.0
    %2631 = vmatpush1.msra.mxu0 %v252
    %2632 = vmatprep.subr.mxu0 0.0
    %2633 = vmatpush1.msra.mxu0 %v253
    %2634 = vmatprep.subr.mxu0 0.0
    %2635 = vmatpush1.msra.mxu0 0.0
    %2636 = vmatprep.subr.mxu0 0.0
    %2637 = vmatpush1.msra.mxu0 0.0
    %2638 = vmatprep.subr.mxu0 0.0
    %2639 = vmatpush1.msra.mxu0 0.0
    %2640 = vmatprep.subr.mxu0 0.0
    %2641 = vmatpush1.msra.mxu0 0.0
    %2642 = vmatprep.subr.mxu0 0.0
    %2643 = vmatpush1.msra.mxu0 0.0
    %2644 = vmatprep.subr.mxu0 0.0
    %2645 = vmatpush1.msra.mxu0 0.0
    %2646 = vmatprep.subr.mxu0 0.0
    %2647 = vmatpush1.msra.mxu0 0.0
    %2648 = vmatprep.subr.mxu0 0.0
    %2649 = vmatpush1.msra.mxu0 0.0
    %2650 = vmatprep.subr.mxu0 0.0
    %2651 = vmatpush1.msra.mxu0 0.0
    %2652 = vmatprep.subr.mxu0 0.0
    %2653 = vmatpush1.msra.mxu0 0.0
    %2654 = vmatprep.subr.mxu0 0.0
    %2655 = vmatpush1.msra.mxu0 0.0
    %2656 = vmatprep.subr.mxu0 0.0
    %2657 = vmatpush1.msra.mxu0 0.0
    %2658 = vmatprep.subr.mxu0 0.0
    %2659 = vmatpush1.msra.mxu0 0.0
    %2660 = vmatprep.subr.mxu0 0.0
    %2661 = vmatpush1.msra.mxu0 0.0
    %2662 = vmatprep.subr.mxu0 0.0
    %2663 = vmatpush1.msra.mxu0 0.0
    %2664 = vmatprep.subr.mxu0 0.0
    %2665 = vmatpush1.msra.mxu0 0.0
    %2666 = vmatprep.mubr.f32.mxu0 0.0
    %2667 = vmatmul.mubr.f32.gmra.mrb[0].mxu0 %v2555
    %v2668 = vpop.f32.mrb[0].mxu0
    %v2669 = vadd.f32 %v1917, %v2668
    %v2670 = vpop.f32.mrb[0].mxu0
    %2671 = vmatprep.mubr.f32.mxu0 0.0
    %2672 = vmatmul.mubr.f32.gmra.mrb[0].mxu0 %v2560
    %v2673 = vpop.f32.mrb[0].mxu0
    %v2674 = vadd.f32 %v1917, %v2673
    %v2675 = vpop.f32.mrb[0].mxu0
    %2676 = vmatprep.mubr.f32.mxu0 0.0
    %2677 = vmatmul.mubr.f32.gmra.mrb[0].mxu0 %v2565
    %v2678 = vpop.f32.mrb[0].mxu0
    %v2679 = vadd.f32 %v1917, %v2678
    %v2680 = vpop.f32.mrb[0].mxu0
    %2681 = vmatprep.mubr.f32.mxu0 0.0
    %2682 = vmatmul.mubr.f32.gmra.mrb[0].mxu0 %v2570
    %v2683 = vpop.f32.mrb[0].mxu0
    %v2684 = vadd.f32 %v1917, %v2683
    %v2685 = vpop.f32.mrb[0].mxu0
    %2686 = vmatprep.mubr.f32.mxu0 0.0
    %2687 = vmatmul.mubr.f32.gmra.mrb[0].mxu0 %v2575
    %v2688 = vpop.f32.mrb[0].mxu0
    %v2689 = vadd.f32 %v1917, %v2688
    %v2690 = vpop.f32.mrb[0].mxu0
    %2691 = vmatprep.mubr.f32.mxu0 0.0
    %2692 = vmatmul.mubr.f32.gmra.mrb[0].mxu0 %v2580
    %v2693 = vpop.f32.mrb[0].mxu0
    %v2694 = vadd.f32 %v1917, %v2693
    %v2695 = vpop.f32.mrb[0].mxu0
    %2696 = vmatprep.mubr.f32.mxu0 0.0
    %2697 = vmatmul.mubr.f32.gmra.mrb[0].mxu0 %v2585
    %v2698 = vpop.f32.mrb[0].mxu0
    %v2699 = vadd.f32 %v1917, %v2698
    %v2700 = vpop.f32.mrb[0].mxu0
    %2701 = vmatprep.mubr.f32.mxu0 0.0
    %2702 = vmatmul.mubr.f32.gmra.mrb[0].mxu0 %v2590
    %v2703 = vpop.f32.mrb[0].mxu0
    %v2704 = vadd.f32 %v1917, %v2703
    %v2705 = vpop.f32.mrb[0].mxu0
    %2706 = vdwg.mxu0
    %s2707 = scalar_lea.vmem [#allocation4], 384
    %2708 = vst [vmem:[%s2707] sm:$0xff] %v2669
    %2709 = vst [vmem:[%s2707 + $0x8] sm:$0xff] %v2674
    %2710 = vst [vmem:[%s2707 + $0x10] sm:$0xff] %v2679
    %2711 = vst [vmem:[%s2707 + $0x18] sm:$0xff] %v2684
    %2712 = vst [vmem:[%s2707 + $0x20] sm:$0xff] %v2689
    %2713 = vst [vmem:[%s2707 + $0x28] sm:$0xff] %v2694
    %2714 = vst [vmem:[%s2707 + $0x30] sm:$0xff] %v2699
    %2715 = vst [vmem:[%s2707 + $0x38] sm:$0xff] %v2704
    %2716 = vmatprep.subr.mxu0 0.0
    %2717 = vmatpush1.msra.mxu0 %v238
    %2718 = vmatprep.subr.mxu0 0.0
    %2719 = vmatpush1.msra.mxu0 %v239
    %2720 = vmatprep.subr.mxu0 0.0
    %2721 = vmatpush1.msra.mxu0 %v240
    %2722 = vmatprep.subr.mxu0 0.0
    %2723 = vmatpush1.msra.mxu0 %v241
    %2724 = vmatprep.subr.mxu0 0.0
    %2725 = vmatpush1.msra.mxu0 %v242
    %2726 = vmatprep.subr.mxu0 0.0
    %2727 = vmatpush1.msra.mxu0 %v243
    %2728 = vmatprep.subr.mxu0 0.0
    %2729 = vmatpush1.msra.mxu0 %v244
    %2730 = vmatprep.subr.mxu0 0.0
    %2731 = vmatpush1.msra.mxu0 %v245
    %2732 = vmatprep.subr.mxu0 0.0
    %2733 = vmatpush1.msra.mxu0 %v246
    %2734 = vmatprep.subr.mxu0 0.0
    %2735 = vmatpush1.msra.mxu0 %v247
    %2736 = vmatprep.subr.mxu0 0.0
    %2737 = vmatpush1.msra.mxu0 %v248
    %2738 = vmatprep.subr.mxu0 0.0
    %2739 = vmatpush1.msra.mxu0 %v249
    %2740 = vmatprep.subr.mxu0 0.0
    %2741 = vmatpush1.msra.mxu0 %v250
    %2742 = vmatprep.subr.mxu0 0.0
    %2743 = vmatpush1.msra.mxu0 %v251
    %2744 = vmatprep.subr.mxu0 0.0
    %2745 = vmatpush1.msra.mxu0 %v252
    %2746 = vmatprep.subr.mxu0 0.0
    %2747 = vmatpush1.msra.mxu0 %v253
    %2748 = vmatprep.subr.mxu0 0.0
    %2749 = vmatpush1.msra.mxu0 0.0
    %2750 = vmatprep.subr.mxu0 0.0
    %2751 = vmatpush1.msra.mxu0 0.0
    %2752 = vmatprep.subr.mxu0 0.0
    %2753 = vmatpush1.msra.mxu0 0.0
    %2754 = vmatprep.subr.mxu0 0.0
    %2755 = vmatpush1.msra.mxu0 0.0
    %2756 = vmatprep.subr.mxu0 0.0
    %2757 = vmatpush1.msra.mxu0 0.0
    %2758 = vmatprep.subr.mxu0 0.0
    %2759 = vmatpush1.msra.mxu0 0.0
    %2760 = vmatprep.subr.mxu0 0.0
    %2761 = vmatpush1.msra.mxu0 0.0
    %2762 = vmatprep.subr.mxu0 0.0
    %2763 = vmatpush1.msra.mxu0 0.0
    %2764 = vmatprep.subr.mxu0 0.0
    %2765 = vmatpush1.msra.mxu0 0.0
    %2766 = vmatprep.subr.mxu0 0.0
    %2767 = vmatpush1.msra.mxu0 0.0
    %2768 = vmatprep.subr.mxu0 0.0
    %2769 = vmatpush1.msra.mxu0 0.0
    %2770 = vmatprep.subr.mxu0 0.0
    %2771 = vmatpush1.msra.mxu0 0.0
    %2772 = vmatprep.subr.mxu0 0.0
    %2773 = vmatpush1.msra.mxu0 0.0
    %2774 = vmatprep.subr.mxu0 0.0
    %2775 = vmatpush1.msra.mxu0 0.0
    %2776 = vmatprep.subr.mxu0 0.0
    %2777 = vmatpush1.msra.mxu0 0.0
    %2778 = vmatprep.subr.mxu0 0.0
    %2779 = vmatpush1.msra.mxu0 0.0
    %2780 = vmatprep.mubr.f32.mxu0 0.0
    %2781 = vmatmul.mubr.f32.gmra.mrb[0].mxu0 %v2669
    %v2782 = vpop.f32.mrb[0].mxu0
    %v2783 = vadd.f32 %v1917, %v2782
    %v2784 = vpop.f32.mrb[0].mxu0
    %2785 = vmatprep.mubr.f32.mxu0 0.0
    %2786 = vmatmul.mubr.f32.gmra.mrb[0].mxu0 %v2674
    %v2787 = vpop.f32.mrb[0].mxu0
    %v2788 = vadd.f32 %v1917, %v2787
    %v2789 = vpop.f32.mrb[0].mxu0
    %2790 = vmatprep.mubr.f32.mxu0 0.0
    %2791 = vmatmul.mubr.f32.gmra.mrb[0].mxu0 %v2679
    %v2792 = vpop.f32.mrb[0].mxu0
    %v2793 = vadd.f32 %v1917, %v2792
    %v2794 = vpop.f32.mrb[0].mxu0
    %2795 = vmatprep.mubr.f32.mxu0 0.0
    %2796 = vmatmul.mubr.f32.gmra.mrb[0].mxu0 %v2684
    %v2797 = vpop.f32.mrb[0].mxu0
    %v2798 = vadd.f32 %v1917, %v2797
    %v2799 = vpop.f32.mrb[0].mxu0
    %2800 = vmatprep.mubr.f32.mxu0 0.0
    %2801 = vmatmul.mubr.f32.gmra.mrb[0].mxu0 %v2689
    %v2802 = vpop.f32.mrb[0].mxu0
    %v2803 = vadd.f32 %v1917, %v2802
    %v2804 = vpop.f32.mrb[0].mxu0
    %2805 = vmatprep.mubr.f32.mxu0 0.0
    %2806 = vmatmul.mubr.f32.gmra.mrb[0].mxu0 %v2694
    %v2807 = vpop.f32.mrb[0].mxu0
    %v2808 = vadd.f32 %v1917, %v2807
    %v2809 = vpop.f32.mrb[0].mxu0
    %2810 = vmatprep.mubr.f32.mxu0 0.0
    %2811 = vmatmul.mubr.f32.gmra.mrb[0].mxu0 %v2699
    %v2812 = vpop.f32.mrb[0].mxu0
    %v2813 = vadd.f32 %v1917, %v2812
    %v2814 = vpop.f32.mrb[0].mxu0
    %2815 = vmatprep.mubr.f32.mxu0 0.0
    %2816 = vmatmul.mubr.f32.gmra.mrb[0].mxu0 %v2704
    %v2817 = vpop.f32.mrb[0].mxu0
    %v2818 = vadd.f32 %v1917, %v2817
    %v2819 = vpop.f32.mrb[0].mxu0
    %2820 = vdwg.mxu0
    %s2821 = scalar_lea.vmem [#allocation4], 448
    %2822 = vst [vmem:[%s2821] sm:$0xff] %v2783
    %2823 = vst [vmem:[%s2821 + $0x8] sm:$0xff] %v2788
    %2824 = vst [vmem:[%s2821 + $0x10] sm:$0xff] %v2793
    %2825 = vst [vmem:[%s2821 + $0x18] sm:$0xff] %v2798
    %2826 = vst [vmem:[%s2821 + $0x20] sm:$0xff] %v2803
    %2827 = vst [vmem:[%s2821 + $0x28] sm:$0xff] %v2808
    %2828 = vst [vmem:[%s2821 + $0x30] sm:$0xff] %v2813
    %2829 = vst [vmem:[%s2821 + $0x38] sm:$0xff] %v2818
    %v2830 = vlaneseq
    %v2831 = vand.u32 %v2830, 127
    %v2832 = vcvt.s32.f32 %v2831
    %vm2833 = vcmp.eq.s32.totalorder %v2831, 0
    %v2834 = vsel %vm2833, 0.1, %v103
    %vm2835 = vcmp.ne.f32.partialorder %v2834, 0.0
    %v2836 = vlaneseq
    %v2837 = vshrl.u32 %v2836, 7
    %v2838 = vand.u32 %v2831, 7
    %vm2839 = vcmp.eq.s32.totalorder %v2838, %v2837
    %v2840 = vsel %vm2839, 1, 0
    %v2841 = vcvt.s32.f32 %v2840
    %v2842 = vadd.s32 %v2837, 8
    %v2843 = vadd.s32 %v2837, 16
    %v2844 = vadd.s32 %v2837, 24
    %v2845 = vadd.s32 %v2837, 32
    %v2846 = vadd.s32 %v2837, 40
    %v2847 = vadd.s32 %v2837, 48
    %v2848 = vadd.s32 %v2837, 56
    %v2849 = vshra.s32 %v2837, 3
    %v2850 = vshra.s32 %v2842, 3
    %v2851 = vshra.s32 %v2843, 3
    %v2852 = vshra.s32 %v2844, 3
    %v2853 = vshra.s32 %v2845, 3
    %v2854 = vshra.s32 %v2846, 3
    %v2855 = vshra.s32 %v2847, 3
    %v2856 = vshra.s32 %v2848, 3
    %vm2857 = vcmp.eq.s32.totalorder %v2849, %v2831
    %vm2858 = vcmp.eq.s32.totalorder %v2850, %v2831
    %vm2859 = vcmp.eq.s32.totalorder %v2851, %v2831
    %vm2860 = vcmp.eq.s32.totalorder %v2852, %v2831
    %vm2861 = vcmp.eq.s32.totalorder %v2853, %v2831
    %vm2862 = vcmp.eq.s32.totalorder %v2854, %v2831
    %vm2863 = vcmp.eq.s32.totalorder %v2855, %v2831
    %vm2864 = vcmp.eq.s32.totalorder %v2856, %v2831
    %v2865 = vsel %vm2857, 1, 0
    %v2866 = vsel %vm2858, 1, 0
    %v2867 = vsel %vm2859, 1, 0
    %v2868 = vsel %vm2860, 1, 0
    %v2869 = vsel %vm2861, 1, 0
    %v2870 = vsel %vm2862, 1, 0
    %v2871 = vsel %vm2863, 1, 0
    %v2872 = vsel %vm2864, 1, 0
    %v2873 = vcvt.s32.f32 %v2865
    %v2874 = vcvt.s32.f32 %v2866
    %v2875 = vcvt.s32.f32 %v2867
    %v2876 = vcvt.s32.f32 %v2868
    %v2877 = vcvt.s32.f32 %v2869
    %v2878 = vcvt.s32.f32 %v2870
    %v2879 = vcvt.s32.f32 %v2871
    %v2880 = vcvt.s32.f32 %v2872
    %2881 = vst [vmem:[#allocation13] sm:$0xff] 0.0
    %2882 = vst [vmem:[#allocation13 + $0x8] sm:$0xff] 0.0
    %2883 = vst [vmem:[#allocation13 + $0x10] sm:$0xff] 0.0
    %2884 = vst [vmem:[#allocation13 + $0x18] sm:$0xff] 0.0
    %2885 = vst [vmem:[#allocation13 + $0x20] sm:$0xff] 0.0
    %2886 = vst [vmem:[#allocation13 + $0x28] sm:$0xff] 0.0
    %2887 = vst [vmem:[#allocation13 + $0x30] sm:$0xff] 0.0
    %2888 = vst [vmem:[#allocation13 + $0x38] sm:$0xff] 0.0
    %2890 = vset.pattern.permute.xlu0 0
    %2891 = vperm.xlu0 %2890, %v104
    %v2892 = vpop.permute.xlu0 %2891
    %v2895 = vlaneseq
    %v2896 = vshrl.u32 %v2895, 7
    %v2897 = vsub.s32 0, %v2896
    %v2898 = vrot.slane %v172, %v2897
    %v2899 = vlaneseq
    %v2900 = vshrl.u32 %v2899, 7
    %v2901 = vsub.s32 1, %v2900
    %v2902 = vrot.slane %v172, %v2901
    %v2903 = vlaneseq
    %v2904 = vshrl.u32 %v2903, 7
    %v2905 = vsub.s32 2, %v2904
    %v2906 = vrot.slane %v172, %v2905
    %v2907 = vlaneseq
    %v2908 = vshrl.u32 %v2907, 7
    %v2909 = vsub.s32 3, %v2908
    %v2910 = vrot.slane %v172, %v2909
    %v2915 = vmul.f32 %v2892, %v2898
    %v2916 = vmul.f32 %v2892, %v2902
    %v2917 = vmul.f32 %v2892, %v2906
    %v2918 = vmul.f32 %v2892, %v2910
    %2919 = vmatprep.subr.mxu0 %v174
    %2920 = vmatpush1.msra.mxu0 %v173
    %2921 = vmatprep.subr.mxu0 %v178
    %2922 = vmatpush1.msra.mxu0 %v177
    %2923 = vmatprep.subr.mxu0 %v182
    %2924 = vmatpush1.msra.mxu0 %v181
    %2925 = vmatprep.subr.mxu0 %v186
    %2926 = vmatpush1.msra.mxu0 %v185
    %2927 = vmatprep.subr.mxu0 %v190
    %2928 = vmatpush1.msra.mxu0 %v189
    %2929 = vmatprep.subr.mxu0 %v194
    %2930 = vmatpush1.msra.mxu0 %v193
    %2931 = vmatprep.subr.mxu0 %v198
    %2932 = vmatpush1.msra.mxu0 %v197
    %2933 = vmatprep.subr.mxu0 %v202
    %2934 = vmatpush1.msra.mxu0 %v201
    %2935 = vmatprep.subr.mxu0 %v206
    %2936 = vmatpush1.msra.mxu0 %v205
    %2937 = vmatprep.subr.mxu0 %v210
    %2938 = vmatpush1.msra.mxu0 %v209
    %2939 = vmatprep.subr.mxu0 %v214
    %2940 = vmatpush1.msra.mxu0 %v213
    %2941 = vmatprep.subr.mxu0 %v218
    %2942 = vmatpush1.msra.mxu0 %v217
    %2943 = vmatprep.subr.mxu0 %v222
    %2944 = vmatpush1.msra.mxu0 %v221
    %2945 = vmatprep.subr.mxu0 %v226
    %2946 = vmatpush1.msra.mxu0 %v225
    %2947 = vmatprep.subr.mxu0 %v230
    %2948 = vmatpush1.msra.mxu0 %v229
    %2949 = vmatprep.subr.mxu0 %v234
    %2950 = vmatpush1.msra.mxu0 %v233
    %2951 = vmatprep.subr.mxu0 0.0
    %2952 = vmatpush1.msra.mxu0 0.0
    %2953 = vmatprep.subr.mxu0 0.0
    %2954 = vmatpush1.msra.mxu0 0.0
    %2955 = vmatprep.subr.mxu0 0.0
    %2956 = vmatpush1.msra.mxu0 0.0
    %2957 = vmatprep.subr.mxu0 0.0
    %2958 = vmatpush1.msra.mxu0 0.0
    %2959 = vmatprep.subr.mxu0 0.0
    %2960 = vmatpush1.msra.mxu0 0.0
    %2961 = vmatprep.subr.mxu0 0.0
    %2962 = vmatpush1.msra.mxu0 0.0
    %2963 = vmatprep.subr.mxu0 0.0
    %2964 = vmatpush1.msra.mxu0 0.0
    %2965 = vmatprep.subr.mxu0 0.0
    %2966 = vmatpush1.msra.mxu0 0.0
    %2967 = vmatprep.subr.mxu0 0.0
    %2968 = vmatpush1.msra.mxu0 0.0
    %2969 = vmatprep.subr.mxu0 0.0
    %2970 = vmatpush1.msra.mxu0 0.0
    %2971 = vmatprep.subr.mxu0 0.0
    %2972 = vmatpush1.msra.mxu0 0.0
    %2973 = vmatprep.subr.mxu0 0.0
    %2974 = vmatpush1.msra.mxu0 0.0
    %2975 = vmatprep.subr.mxu0 0.0
    %2976 = vmatpush1.msra.mxu0 0.0
    %2977 = vmatprep.subr.mxu0 0.0
    %2978 = vmatpush1.msra.mxu0 0.0
    %2979 = vmatprep.subr.mxu0 0.0
    %2980 = vmatpush1.msra.mxu0 0.0
    %2981 = vmatprep.subr.mxu0 0.0
    %2982 = vmatpush1.msra.mxu0 0.0
    %2983 = vmatprep.mubr.f32.mxu0 0.0
    %2984 = vmatmul.mubr.f32.gmra.mrb[0].mxu0 %v1897
    %v2985 = vpop.f32.mrb[0].mxu0
    %v2986 = vadd.f32 0.0, %v2985
    %v2987 = vpop.f32.mrb[0].mxu0
    %v2988 = vadd.f32 0.0, %v2987
    %2989 = vdwg.mxu0
    %2990 = vmatprep.subr.mxu0 %v176
    %2991 = vmatpush1.msra.mxu0 %v175
    %2992 = vmatprep.subr.mxu0 %v180
    %2993 = vmatpush1.msra.mxu0 %v179
    %2994 = vmatprep.subr.mxu0 %v184
    %2995 = vmatpush1.msra.mxu0 %v183
    %2996 = vmatprep.subr.mxu0 %v188
    %2997 = vmatpush1.msra.mxu0 %v187
    %2998 = vmatprep.subr.mxu0 %v192
    %2999 = vmatpush1.msra.mxu0 %v191
    %3000 = vmatprep.subr.mxu0 %v196
    %3001 = vmatpush1.msra.mxu0 %v195
    %3002 = vmatprep.subr.mxu0 %v200
    %3003 = vmatpush1.msra.mxu0 %v199
    %3004 = vmatprep.subr.mxu0 %v204
    %3005 = vmatpush1.msra.mxu0 %v203
    %3006 = vmatprep.subr.mxu0 %v208
    %3007 = vmatpush1.msra.mxu0 %v207
    %3008 = vmatprep.subr.mxu0 %v212
    %3009 = vmatpush1.msra.mxu0 %v211
    %3010 = vmatprep.subr.mxu0 %v216
    %3011 = vmatpush1.msra.mxu0 %v215
    %3012 = vmatprep.subr.mxu0 %v220
    %3013 = vmatpush1.msra.mxu0 %v219
    %3014 = vmatprep.subr.mxu0 %v224
    %3015 = vmatpush1.msra.mxu0 %v223
    %3016 = vmatprep.subr.mxu0 %v228
    %3017 = vmatpush1.msra.mxu0 %v227
    %3018 = vmatprep.subr.mxu0 %v232
    %3019 = vmatpush1.msra.mxu0 %v231
    %3020 = vmatprep.subr.mxu0 %v236
    %3021 = vmatpush1.msra.mxu0 %v235
    %3022 = vmatprep.subr.mxu0 0.0
    %3023 = vmatpush1.msra.mxu0 0.0
    %3024 = vmatprep.subr.mxu0 0.0
    %3025 = vmatpush1.msra.mxu0 0.0
    %3026 = vmatprep.subr.mxu0 0.0
    %3027 = vmatpush1.msra.mxu0 0.0
    %3028 = vmatprep.subr.mxu0 0.0
    %3029 = vmatpush1.msra.mxu0 0.0
    %3030 = vmatprep.subr.mxu0 0.0
    %3031 = vmatpush1.msra.mxu0 0.0
    %3032 = vmatprep.subr.mxu0 0.0
    %3033 = vmatpush1.msra.mxu0 0.0
    %3034 = vmatprep.subr.mxu0 0.0
    %3035 = vmatpush1.msra.mxu0 0.0
    %3036 = vmatprep.subr.mxu0 0.0
    %3037 = vmatpush1.msra.mxu0 0.0
    %3038 = vmatprep.subr.mxu0 0.0
    %3039 = vmatpush1.msra.mxu0 0.0
    %3040 = vmatprep.subr.mxu0 0.0
    %3041 = vmatpush1.msra.mxu0 0.0
    %3042 = vmatprep.subr.mxu0 0.0
    %3043 = vmatpush1.msra.mxu0 0.0
    %3044 = vmatprep.subr.mxu0 0.0
    %3045 = vmatpush1.msra.mxu0 0.0
    %3046 = vmatprep.subr.mxu0 0.0
    %3047 = vmatpush1.msra.mxu0 0.0
    %3048 = vmatprep.subr.mxu0 0.0
    %3049 = vmatpush1.msra.mxu0 0.0
    %3050 = vmatprep.subr.mxu0 0.0
    %3051 = vmatpush1.msra.mxu0 0.0
    %3052 = vmatprep.subr.mxu0 0.0
    %3053 = vmatpush1.msra.mxu0 0.0
    %3054 = vmatprep.mubr.f32.mxu0 0.0
    %3055 = vmatmul.mubr.f32.gmra.mrb[0].mxu0 %v1897
    %v3056 = vpop.f32.mrb[0].mxu0
    %v3057 = vadd.f32 0.0, %v3056
    %v3058 = vpop.f32.mrb[0].mxu0
    %v3059 = vadd.f32 0.0, %v3058
    %3060 = vdwg.mxu0
    %v3061 = vadd.f32 %v2915, %v2986
    %v3062 = vadd.f32 %v2916, %v2988
    %v3063 = vadd.f32 %v2917, %v3057
    %v3064 = vadd.f32 %v2918, %v3059
    %v3066 = vlaneseq
    %v3067 = vshrl.u32 %v3066, 7
    %v3068 = vsub.s32 0, %v3067
    %v3069 = vrot.slane %v237, %v3068
    %v3070 = vlaneseq
    %v3071 = vshrl.u32 %v3070, 7
    %v3072 = vsub.s32 1, %v3071
    %v3073 = vrot.slane %v237, %v3072
    %v3074 = vlaneseq
    %v3075 = vshrl.u32 %v3074, 7
    %v3076 = vsub.s32 2, %v3075
    %v3077 = vrot.slane %v237, %v3076
    %v3078 = vlaneseq
    %v3079 = vshrl.u32 %v3078, 7
    %v3080 = vsub.s32 3, %v3079
    %v3081 = vrot.slane %v237, %v3080
    %v3086 = vadd.f32 %v3061, %v3069
    %v3087 = vadd.f32 %v3062, %v3073
    %v3088 = vadd.f32 %v3063, %v3077
    %v3089 = vadd.f32 %v3064, %v3081
    %v3090 = vxor.u32 %v3086, 2147483648
    %v3091 = vmul.f32 %v3090, 1.442695
    %v3092 = vpow.pop %v3091
    %v3093 = vadd.f32 %v3092, 1.0
    %v3094 = vrcp.pop %v3093
    %v3095 = vmul.f32 1.0, %v3094
    %v3096 = vxor.u32 %v3087, 2147483648
    %v3097 = vmul.f32 %v3096, 1.442695
    %v3098 = vpow.pop %v3097
    %v3099 = vadd.f32 %v3098, 1.0
    %v3100 = vrcp.pop %v3099
    %v3101 = vmul.f32 1.0, %v3100
    %v3102 = vtanh.pop %v3088
    %v3103 = vxor.u32 %v3089, 2147483648
    %v3104 = vmul.f32 %v3103, 1.442695
    %v3105 = vpow.pop %v3104
    %v3106 = vadd.f32 %v3105, 1.0
    %v3107 = vrcp.pop %v3106
    %v3108 = vmul.f32 1.0, %v3107
    %v3109 = vmul.f32 %v3101, %v1912
    %v3110 = vmul.f32 %v3095, %v3102
    %v3111 = vadd.f32 %v3109, %v3110
    %v3112 = vtanh.pop %v3111
    %v3113 = vmul.f32 %v3108, %v3112
    %v3115 = vlaneseq
    %v3116 = vshrl.u32 %v3115, 7
    %v3117 = vsub.s32 0, %v3116
    %v3118 = vrot.slane %v271, %v3117
    %3120 = vmatprep.subr.mxu0 0.0
    %3121 = vmatpush1.msra.mxu0 %v255
    %3122 = vmatprep.subr.mxu0 0.0
    %3123 = vmatpush1.msra.mxu0 %v256
    %3124 = vmatprep.subr.mxu0 0.0
    %3125 = vmatpush1.msra.mxu0 %v257
    %3126 = vmatprep.subr.mxu0 0.0
    %3127 = vmatpush1.msra.mxu0 %v258
    %3128 = vmatprep.subr.mxu0 0.0
    %3129 = vmatpush1.msra.mxu0 %v259
    %3130 = vmatprep.subr.mxu0 0.0
    %3131 = vmatpush1.msra.mxu0 %v260
    %3132 = vmatprep.subr.mxu0 0.0
    %3133 = vmatpush1.msra.mxu0 %v261
    %3134 = vmatprep.subr.mxu0 0.0
    %3135 = vmatpush1.msra.mxu0 %v262
    %3136 = vmatprep.subr.mxu0 0.0
    %3137 = vmatpush1.msra.mxu0 %v263
    %3138 = vmatprep.subr.mxu0 0.0
    %3139 = vmatpush1.msra.mxu0 %v264
    %3140 = vmatprep.subr.mxu0 0.0
    %3141 = vmatpush1.msra.mxu0 %v265
    %3142 = vmatprep.subr.mxu0 0.0
    %3143 = vmatpush1.msra.mxu0 %v266
    %3144 = vmatprep.subr.mxu0 0.0
    %3145 = vmatpush1.msra.mxu0 %v267
    %3146 = vmatprep.subr.mxu0 0.0
    %3147 = vmatpush1.msra.mxu0 %v268
    %3148 = vmatprep.subr.mxu0 0.0
    %3149 = vmatpush1.msra.mxu0 %v269
    %3150 = vmatprep.subr.mxu0 0.0
    %3151 = vmatpush1.msra.mxu0 %v270
    %3152 = vmatprep.subr.mxu0 0.0
    %3153 = vmatpush1.msra.mxu0 0.0
    %3154 = vmatprep.subr.mxu0 0.0
    %3155 = vmatpush1.msra.mxu0 0.0
    %3156 = vmatprep.subr.mxu0 0.0
    %3157 = vmatpush1.msra.mxu0 0.0
    %3158 = vmatprep.subr.mxu0 0.0
    %3159 = vmatpush1.msra.mxu0 0.0
    %3160 = vmatprep.subr.mxu0 0.0
    %3161 = vmatpush1.msra.mxu0 0.0
    %3162 = vmatprep.subr.mxu0 0.0
    %3163 = vmatpush1.msra.mxu0 0.0
    %3164 = vmatprep.subr.mxu0 0.0
    %3165 = vmatpush1.msra.mxu0 0.0
    %3166 = vmatprep.subr.mxu0 0.0
    %3167 = vmatpush1.msra.mxu0 0.0
    %3168 = vmatprep.subr.mxu0 0.0
    %3169 = vmatpush1.msra.mxu0 0.0
    %3170 = vmatprep.subr.mxu0 0.0
    %3171 = vmatpush1.msra.mxu0 0.0
    %3172 = vmatprep.subr.mxu0 0.0
    %3173 = vmatpush1.msra.mxu0 0.0
    %3174 = vmatprep.subr.mxu0 0.0
    %3175 = vmatpush1.msra.mxu0 0.0
    %3176 = vmatprep.subr.mxu0 0.0
    %3177 = vmatpush1.msra.mxu0 0.0
    %3178 = vmatprep.subr.mxu0 0.0
    %3179 = vmatpush1.msra.mxu0 0.0
    %3180 = vmatprep.subr.mxu0 0.0
    %3181 = vmatpush1.msra.mxu0 0.0
    %3182 = vmatprep.subr.mxu0 0.0
    %3183 = vmatpush1.msra.mxu0 0.0
    %3184 = vmatprep.mubr.f32.mxu0 0.0
    %3185 = vmatmul.mubr.f32.gmra.mrb[0].mxu0 %v3113
    %v3186 = vpop.f32.mrb[0].mxu0
    %v3187 = vadd.f32 %v3118, %v3186
    %v3188 = vpop.f32.mrb[0].mxu0
    %3189 = vdwg.mxu0
    %v3190 = vld [vmem:[#allocation4] sm:$0xff]
    %v3191 = vld [vmem:[#allocation4 + $0x8] sm:$0xff]
    %v3192 = vld [vmem:[#allocation4 + $0x10] sm:$0xff]
    %v3193 = vld [vmem:[#allocation4 + $0x18] sm:$0xff]
    %v3194 = vld [vmem:[#allocation4 + $0x20] sm:$0xff]
    %v3195 = vld [vmem:[#allocation4 + $0x28] sm:$0xff]
    %v3196 = vld [vmem:[#allocation4 + $0x30] sm:$0xff]
    %v3197 = vld [vmem:[#allocation4 + $0x38] sm:$0xff]
    %v3198 = vadd.f32 %v3190, %v3187
    %v3199 = vadd.f32 %v3191, %v3187
    %v3200 = vadd.f32 %v3192, %v3187
    %v3201 = vadd.f32 %v3193, %v3187
    %v3202 = vadd.f32 %v3194, %v3187
    %v3203 = vadd.f32 %v3195, %v3187
    %v3204 = vadd.f32 %v3196, %v3187
    %v3205 = vadd.f32 %v3197, %v3187
    %v3206 = vtanh.pop %v3198
    %v3207 = vtanh.pop %v3199
    %v3208 = vtanh.pop %v3200
    %v3209 = vtanh.pop %v3201
    %v3210 = vtanh.pop %v3202
    %v3211 = vtanh.pop %v3203
    %v3212 = vtanh.pop %v3204
    %v3213 = vtanh.pop %v3205
    %v3215 = vlaneseq
    %v3216 = vshrl.u32 %v3215, 7
    %v3217 = vsub.s32 0, %v3216
    %v3218 = vrot.slane %v272, %v3217
    %v3220 = vmul.f32 %v3206, %v3218
    %v3221 = vmul.f32 %v3207, %v3218
    %v3222 = vmul.f32 %v3208, %v3218
    %v3223 = vmul.f32 %v3209, %v3218
    %v3224 = vmul.f32 %v3210, %v3218
    %v3225 = vmul.f32 %v3211, %v3218
    %v3226 = vmul.f32 %v3212, %v3218
    %v3227 = vmul.f32 %v3213, %v3218
    %3228 = vadd.xlane.f32.xlu0 %v3220
    %v3229 = vpop.xlane.xlu0 %3228
    %3230 = vadd.xlane.f32.xlu0 %v3221
    %v3231 = vpop.xlane.xlu0 %3230
    %3232 = vadd.xlane.f32.xlu0 %v3222
    %v3233 = vpop.xlane.xlu0 %3232
    %3234 = vadd.xlane.f32.xlu0 %v3223
    %v3235 = vpop.xlane.xlu0 %3234
    %3236 = vadd.xlane.f32.xlu0 %v3224
    %v3237 = vpop.xlane.xlu0 %3236
    %3238 = vadd.xlane.f32.xlu0 %v3225
    %v3239 = vpop.xlane.xlu0 %3238
    %3240 = vadd.xlane.f32.xlu0 %v3226
    %v3241 = vpop.xlane.xlu0 %3240
    %3242 = vadd.xlane.f32.xlu0 %v3227
    %v3243 = vpop.xlane.xlu0 %3242
    %v3244 = vmul.f32 %v3229, %v2873
    %v3245 = vmul.f32 %v3231, %v2874
    %v3246 = vmul.f32 %v3233, %v2875
    %v3247 = vmul.f32 %v3235, %v2876
    %v3248 = vmul.f32 %v3237, %v2877
    %v3249 = vmul.f32 %v3239, %v2878
    %v3250 = vmul.f32 %v3241, %v2879
    %v3251 = vmul.f32 %v3243, %v2880
    %vm3252 = vcmask 523264
    %v3254 = vsel %vm3252, %v2841, 0
    %3256 = vmatprep.subr.mxu0 0.0
    %3257 = vmatpush1.msra.mxu0 %v3244
    %3258 = vmatprep.subr.mxu0 0.0
    %3259 = vmatpush1.msra.mxu0 %v3245
    %3260 = vmatprep.subr.mxu0 0.0
    %3261 = vmatpush1.msra.mxu0 %v3246
    %3262 = vmatprep.subr.mxu0 0.0
    %3263 = vmatpush1.msra.mxu0 %v3247
    %3264 = vmatprep.subr.mxu0 0.0
    %3265 = vmatpush1.msra.mxu0 %v3248
    %3266 = vmatprep.subr.mxu0 0.0
    %3267 = vmatpush1.msra.mxu0 %v3249
    %3268 = vmatprep.subr.mxu0 0.0
    %3269 = vmatpush1.msra.mxu0 %v3250
    %3270 = vmatprep.subr.mxu0 0.0
    %3271 = vmatpush1.msra.mxu0 %v3251
    %3272 = vmatprep.subr.mxu0 0.0
    %3273 = vmatpush1.msra.mxu0 0.0
    %3274 = vmatprep.subr.mxu0 0.0
    %3275 = vmatpush1.msra.mxu0 0.0
    %3276 = vmatprep.subr.mxu0 0.0
    %3277 = vmatpush1.msra.mxu0 0.0
    %3278 = vmatprep.subr.mxu0 0.0
    %3279 = vmatpush1.msra.mxu0 0.0
    %3280 = vmatprep.subr.mxu0 0.0
    %3281 = vmatpush1.msra.mxu0 0.0
    %3282 = vmatprep.subr.mxu0 0.0
    %3283 = vmatpush1.msra.mxu0 0.0
    %3284 = vmatprep.subr.mxu0 0.0
    %3285 = vmatpush1.msra.mxu0 0.0
    %3286 = vmatprep.subr.mxu0 0.0
    %3287 = vmatpush1.msra.mxu0 0.0
    %3288 = vmatprep.subr.mxu0 0.0
    %3289 = vmatpush1.msra.mxu0 0.0
    %3290 = vmatprep.subr.mxu0 0.0
    %3291 = vmatpush1.msra.mxu0 0.0
    %3292 = vmatprep.subr.mxu0 0.0
    %3293 = vmatpush1.msra.mxu0 0.0
    %3294 = vmatprep.subr.mxu0 0.0
    %3295 = vmatpush1.msra.mxu0 0.0
    %3296 = vmatprep.subr.mxu0 0.0
    %3297 = vmatpush1.msra.mxu0 0.0
    %3298 = vmatprep.subr.mxu0 0.0
    %3299 = vmatpush1.msra.mxu0 0.0
    %3300 = vmatprep.subr.mxu0 0.0
    %3301 = vmatpush1.msra.mxu0 0.0
    %3302 = vmatprep.subr.mxu0 0.0
    %3303 = vmatpush1.msra.mxu0 0.0
    %3304 = vmatprep.subr.mxu0 0.0
    %3305 = vmatpush1.msra.mxu0 0.0
    %3306 = vmatprep.subr.mxu0 0.0
    %3307 = vmatpush1.msra.mxu0 0.0
    %3308 = vmatprep.subr.mxu0 0.0
    %3309 = vmatpush1.msra.mxu0 0.0
    %3310 = vmatprep.subr.mxu0 0.0
    %3311 = vmatpush1.msra.mxu0 0.0
    %3312 = vmatprep.subr.mxu0 0.0
    %3313 = vmatpush1.msra.mxu0 0.0
    %3314 = vmatprep.subr.mxu0 0.0
    %3315 = vmatpush1.msra.mxu0 0.0
    %3316 = vmatprep.subr.mxu0 0.0
    %3317 = vmatpush1.msra.mxu0 0.0
    %3318 = vmatprep.subr.mxu0 0.0
    %3319 = vmatpush1.msra.mxu0 0.0
    %3320 = vmatprep.mubr.f32.mxu0 0.0
    %3321 = vmatmul.mubr.f32.gmra.mrb[0].mxu0 %v3254
    %v3322 = vpop.f32.mrb[0].mxu0
    %v3323 = vadd.f32 0.0, %v3322
    %v3324 = vpop.f32.mrb[0].mxu0
    %3325 = vdwg.mxu0
    %v3326 = vsub.f32 %v3323, 1000.0
    %v3327 = vsel %vm2835, %v3323, %v3326
    %vm3328 = vcmask 64512
    %v3329 = vsel %vm3328, %v3327, -inf
    %3330 = vmax.xlane.f32.xlu0 %v3329
    %v3331 = vpop.xlane.xlu0 %3330
    %v3332 = vsub.f32 %v3327, %v3331
    %v3333 = vmul.f32 %v3332, 1.442695
    %v3334 = vpow.pop %v3333
    %v3335 = vsel %vm3328, %v3334, 0.0
    %3336 = vadd.xlane.f32.xlu0 %v3335
    %v3337 = vpop.xlane.xlu0 %3336
    %v3338 = vrcp.pop %v3337
    %v3339 = vmul.f32 %v3334, %v3338
    %3340 = vst.msk [vmem:[#allocation13] sm:$0xff] %vm3328, %v3339
    %3341 = vset.pattern.permute.xlu0 1
    %3342 = vperm.xlu0 %3341, %v104
    %v3343 = vpop.permute.xlu0 %3342
    %v3345 = vmul.f32 %v3343, %v2898
    %v3346 = vmul.f32 %v3343, %v2902
    %v3347 = vmul.f32 %v3343, %v2906
    %v3348 = vmul.f32 %v3343, %v2910
    %3349 = vmatprep.subr.mxu0 %v174
    %3350 = vmatpush1.msra.mxu0 %v173
    %3351 = vmatprep.subr.mxu0 %v178
    %3352 = vmatpush1.msra.mxu0 %v177
    %3353 = vmatprep.subr.mxu0 %v182
    %3354 = vmatpush1.msra.mxu0 %v181
    %3355 = vmatprep.subr.mxu0 %v186
    %3356 = vmatpush1.msra.mxu0 %v185
    %3357 = vmatprep.subr.mxu0 %v190
    %3358 = vmatpush1.msra.mxu0 %v189
    %3359 = vmatprep.subr.mxu0 %v194
    %3360 = vmatpush1.msra.mxu0 %v193
    %3361 = vmatprep.subr.mxu0 %v198
    %3362 = vmatpush1.msra.mxu0 %v197
    %3363 = vmatprep.subr.mxu0 %v202
    %3364 = vmatpush1.msra.mxu0 %v201
    %3365 = vmatprep.subr.mxu0 %v206
    %3366 = vmatpush1.msra.mxu0 %v205
    %3367 = vmatprep.subr.mxu0 %v210
    %3368 = vmatpush1.msra.mxu0 %v209
    %3369 = vmatprep.subr.mxu0 %v214
    %3370 = vmatpush1.msra.mxu0 %v213
    %3371 = vmatprep.subr.mxu0 %v218
    %3372 = vmatpush1.msra.mxu0 %v217
    %3373 = vmatprep.subr.mxu0 %v222
    %3374 = vmatpush1.msra.mxu0 %v221
    %3375 = vmatprep.subr.mxu0 %v226
    %3376 = vmatpush1.msra.mxu0 %v225
    %3377 = vmatprep.subr.mxu0 %v230
    %3378 = vmatpush1.msra.mxu0 %v229
    %3379 = vmatprep.subr.mxu0 %v234
    %3380 = vmatpush1.msra.mxu0 %v233
    %3381 = vmatprep.subr.mxu0 0.0
    %3382 = vmatpush1.msra.mxu0 0.0
    %3383 = vmatprep.subr.mxu0 0.0
    %3384 = vmatpush1.msra.mxu0 0.0
    %3385 = vmatprep.subr.mxu0 0.0
    %3386 = vmatpush1.msra.mxu0 0.0
    %3387 = vmatprep.subr.mxu0 0.0
    %3388 = vmatpush1.msra.mxu0 0.0
    %3389 = vmatprep.subr.mxu0 0.0
    %3390 = vmatpush1.msra.mxu0 0.0
    %3391 = vmatprep.subr.mxu0 0.0
    %3392 = vmatpush1.msra.mxu0 0.0
    %3393 = vmatprep.subr.mxu0 0.0
    %3394 = vmatpush1.msra.mxu0 0.0
    %3395 = vmatprep.subr.mxu0 0.0
    %3396 = vmatpush1.msra.mxu0 0.0
    %3397 = vmatprep.subr.mxu0 0.0
    %3398 = vmatpush1.msra.mxu0 0.0
    %3399 = vmatprep.subr.mxu0 0.0
    %3400 = vmatpush1.msra.mxu0 0.0
    %3401 = vmatprep.subr.mxu0 0.0
    %3402 = vmatpush1.msra.mxu0 0.0
    %3403 = vmatprep.subr.mxu0 0.0
    %3404 = vmatpush1.msra.mxu0 0.0
    %3405 = vmatprep.subr.mxu0 0.0
    %3406 = vmatpush1.msra.mxu0 0.0
    %3407 = vmatprep.subr.mxu0 0.0
    %3408 = vmatpush1.msra.mxu0 0.0
    %3409 = vmatprep.subr.mxu0 0.0
    %3410 = vmatpush1.msra.mxu0 0.0
    %3411 = vmatprep.subr.mxu0 0.0
    %3412 = vmatpush1.msra.mxu0 0.0
    %3413 = vmatprep.mubr.f32.mxu0 0.0
    %3414 = vmatmul.mubr.f32.gmra.mrb[0].mxu0 %v3113
    %v3415 = vpop.f32.mrb[0].mxu0
    %v3416 = vadd.f32 0.0, %v3415
    %v3417 = vpop.f32.mrb[0].mxu0
    %v3418 = vadd.f32 0.0, %v3417
    %3419 = vdwg.mxu0
    %3420 = vmatprep.subr.mxu0 %v176
    %3421 = vmatpush1.msra.mxu0 %v175
    %3422 = vmatprep.subr.mxu0 %v180
    %3423 = vmatpush1.msra.mxu0 %v179
    %3424 = vmatprep.subr.mxu0 %v184
    %3425 = vmatpush1.msra.mxu0 %v183
    %3426 = vmatprep.subr.mxu0 %v188
    %3427 = vmatpush1.msra.mxu0 %v187
    %3428 = vmatprep.subr.mxu0 %v192
    %3429 = vmatpush1.msra.mxu0 %v191
    %3430 = vmatprep.subr.mxu0 %v196
    %3431 = vmatpush1.msra.mxu0 %v195
    %3432 = vmatprep.subr.mxu0 %v200
    %3433 = vmatpush1.msra.mxu0 %v199
    %3434 = vmatprep.subr.mxu0 %v204
    %3435 = vmatpush1.msra.mxu0 %v203
    %3436 = vmatprep.subr.mxu0 %v208
    %3437 = vmatpush1.msra.mxu0 %v207
    %3438 = vmatprep.subr.mxu0 %v212
    %3439 = vmatpush1.msra.mxu0 %v211
    %3440 = vmatprep.subr.mxu0 %v216
    %3441 = vmatpush1.msra.mxu0 %v215
    %3442 = vmatprep.subr.mxu0 %v220
    %3443 = vmatpush1.msra.mxu0 %v219
    %3444 = vmatprep.subr.mxu0 %v224
    %3445 = vmatpush1.msra.mxu0 %v223
    %3446 = vmatprep.subr.mxu0 %v228
    %3447 = vmatpush1.msra.mxu0 %v227
    %3448 = vmatprep.subr.mxu0 %v232
    %3449 = vmatpush1.msra.mxu0 %v231
    %3450 = vmatprep.subr.mxu0 %v236
    %3451 = vmatpush1.msra.mxu0 %v235
    %3452 = vmatprep.subr.mxu0 0.0
    %3453 = vmatpush1.msra.mxu0 0.0
    %3454 = vmatprep.subr.mxu0 0.0
    %3455 = vmatpush1.msra.mxu0 0.0
    %3456 = vmatprep.subr.mxu0 0.0
    %3457 = vmatpush1.msra.mxu0 0.0
    %3458 = vmatprep.subr.mxu0 0.0
    %3459 = vmatpush1.msra.mxu0 0.0
    %3460 = vmatprep.subr.mxu0 0.0
    %3461 = vmatpush1.msra.mxu0 0.0
    %3462 = vmatprep.subr.mxu0 0.0
    %3463 = vmatpush1.msra.mxu0 0.0
    %3464 = vmatprep.subr.mxu0 0.0
    %3465 = vmatpush1.msra.mxu0 0.0
    %3466 = vmatprep.subr.mxu0 0.0
    %3467 = vmatpush1.msra.mxu0 0.0
    %3468 = vmatprep.subr.mxu0 0.0
    %3469 = vmatpush1.msra.mxu0 0.0
    %3470 = vmatprep.subr.mxu0 0.0
    %3471 = vmatpush1.msra.mxu0 0.0
    %3472 = vmatprep.subr.mxu0 0.0
    %3473 = vmatpush1.msra.mxu0 0.0
    %3474 = vmatprep.subr.mxu0 0.0
    %3475 = vmatpush1.msra.mxu0 0.0
    %3476 = vmatprep.subr.mxu0 0.0
    %3477 = vmatpush1.msra.mxu0 0.0
    %3478 = vmatprep.subr.mxu0 0.0
    %3479 = vmatpush1.msra.mxu0 0.0
    %3480 = vmatprep.subr.mxu0 0.0
    %3481 = vmatpush1.msra.mxu0 0.0
    %3482 = vmatprep.subr.mxu0 0.0
    %3483 = vmatpush1.msra.mxu0 0.0
    %3484 = vmatprep.mubr.f32.mxu0 0.0
    %3485 = vmatmul.mubr.f32.gmra.mrb[0].mxu0 %v3113
    %v3486 = vpop.f32.mrb[0].mxu0
    %v3487 = vadd.f32 0.0, %v3486
    %v3488 = vpop.f32.mrb[0].mxu0
    %v3489 = vadd.f32 0.0, %v3488
    %3490 = vdwg.mxu0
    %v3491 = vadd.f32 %v3345, %v3416
    %v3492 = vadd.f32 %v3346, %v3418
    %v3493 = vadd.f32 %v3347, %v3487
    %v3494 = vadd.f32 %v3348, %v3489
    %v3495 = vadd.f32 %v3491, %v3069
    %v3496 = vadd.f32 %v3492, %v3073
    %v3497 = vadd.f32 %v3493, %v3077
    %v3498 = vadd.f32 %v3494, %v3081
    %v3499 = vxor.u32 %v3495, 2147483648
    %v3500 = vmul.f32 %v3499, 1.442695
    %v3501 = vpow.pop %v3500
    %v3502 = vadd.f32 %v3501, 1.0
    %v3503 = vrcp.pop %v3502
    %v3504 = vmul.f32 1.0, %v3503
    %v3505 = vxor.u32 %v3496, 2147483648
    %v3506 = vmul.f32 %v3505, 1.442695
    %v3507 = vpow.pop %v3506
    %v3508 = vadd.f32 %v3507, 1.0
    %v3509 = vrcp.pop %v3508
    %v3510 = vmul.f32 1.0, %v3509
    %v3511 = vtanh.pop %v3497
    %v3512 = vxor.u32 %v3498, 2147483648
    %v3513 = vmul.f32 %v3512, 1.442695
    %v3514 = vpow.pop %v3513
    %v3515 = vadd.f32 %v3514, 1.0
    %v3516 = vrcp.pop %v3515
    %v3517 = vmul.f32 1.0, %v3516
    %v3518 = vmul.f32 %v3510, %v3111
    %v3519 = vmul.f32 %v3504, %v3511
    %v3520 = vadd.f32 %v3518, %v3519
    %v3521 = vtanh.pop %v3520
    %v3522 = vmul.f32 %v3517, %v3521
    %3523 = vmatprep.subr.mxu0 0.0
    %3524 = vmatpush1.msra.mxu0 %v255
    %3525 = vmatprep.subr.mxu0 0.0
    %3526 = vmatpush1.msra.mxu0 %v256
    %3527 = vmatprep.subr.mxu0 0.0
    %3528 = vmatpush1.msra.mxu0 %v257
    %3529 = vmatprep.subr.mxu0 0.0
    %3530 = vmatpush1.msra.mxu0 %v258
    %3531 = vmatprep.subr.mxu0 0.0
    %3532 = vmatpush1.msra.mxu0 %v259
    %3533 = vmatprep.subr.mxu0 0.0
    %3534 = vmatpush1.msra.mxu0 %v260
    %3535 = vmatprep.subr.mxu0 0.0
    %3536 = vmatpush1.msra.mxu0 %v261
    %3537 = vmatprep.subr.mxu0 0.0
    %3538 = vmatpush1.msra.mxu0 %v262
    %3539 = vmatprep.subr.mxu0 0.0
    %3540 = vmatpush1.msra.mxu0 %v263
    %3541 = vmatprep.subr.mxu0 0.0
    %3542 = vmatpush1.msra.mxu0 %v264
    %3543 = vmatprep.subr.mxu0 0.0
    %3544 = vmatpush1.msra.mxu0 %v265
    %3545 = vmatprep.subr.mxu0 0.0
    %3546 = vmatpush1.msra.mxu0 %v266
    %3547 = vmatprep.subr.mxu0 0.0
    %3548 = vmatpush1.msra.mxu0 %v267
    %3549 = vmatprep.subr.mxu0 0.0
    %3550 = vmatpush1.msra.mxu0 %v268
    %3551 = vmatprep.subr.mxu0 0.0
    %3552 = vmatpush1.msra.mxu0 %v269
    %3553 = vmatprep.subr.mxu0 0.0
    %3554 = vmatpush1.msra.mxu0 %v270
    %3555 = vmatprep.subr.mxu0 0.0
    %3556 = vmatpush1.msra.mxu0 0.0
    %3557 = vmatprep.subr.mxu0 0.0
    %3558 = vmatpush1.msra.mxu0 0.0
    %3559 = vmatprep.subr.mxu0 0.0
    %3560 = vmatpush1.msra.mxu0 0.0
    %3561 = vmatprep.subr.mxu0 0.0
    %3562 = vmatpush1.msra.mxu0 0.0
    %3563 = vmatprep.subr.mxu0 0.0
    %3564 = vmatpush1.msra.mxu0 0.0
    %3565 = vmatprep.subr.mxu0 0.0
    %3566 = vmatpush1.msra.mxu0 0.0
    %3567 = vmatprep.subr.mxu0 0.0
    %3568 = vmatpush1.msra.mxu0 0.0
    %3569 = vmatprep.subr.mxu0 0.0
    %3570 = vmatpush1.msra.mxu0 0.0
    %3571 = vmatprep.subr.mxu0 0.0
    %3572 = vmatpush1.msra.mxu0 0.0
    %3573 = vmatprep.subr.mxu0 0.0
    %3574 = vmatpush1.msra.mxu0 0.0
    %3575 = vmatprep.subr.mxu0 0.0
    %3576 = vmatpush1.msra.mxu0 0.0
    %3577 = vmatprep.subr.mxu0 0.0
    %3578 = vmatpush1.msra.mxu0 0.0
    %3579 = vmatprep.subr.mxu0 0.0
    %3580 = vmatpush1.msra.mxu0 0.0
    %3581 = vmatprep.subr.mxu0 0.0
    %3582 = vmatpush1.msra.mxu0 0.0
    %3583 = vmatprep.subr.mxu0 0.0
    %3584 = vmatpush1.msra.mxu0 0.0
    %3585 = vmatprep.subr.mxu0 0.0
    %3586 = vmatpush1.msra.mxu0 0.0
    %3587 = vmatprep.mubr.f32.mxu0 0.0
    %3588 = vmatmul.mubr.f32.gmra.mrb[0].mxu0 %v3522
    %v3589 = vpop.f32.mrb[0].mxu0
    %v3590 = vadd.f32 %v3118, %v3589
    %v3591 = vpop.f32.mrb[0].mxu0
    %3592 = vdwg.mxu0
    %v3593 = vld [vmem:[%s2137] sm:$0xff]
    %v3594 = vld [vmem:[%s2137 + $0x8] sm:$0xff]
    %v3595 = vld [vmem:[%s2137 + $0x10] sm:$0xff]
    %v3596 = vld [vmem:[%s2137 + $0x18] sm:$0xff]
    %v3597 = vld [vmem:[%s2137 + $0x20] sm:$0xff]
    %v3598 = vld [vmem:[%s2137 + $0x28] sm:$0xff]
    %v3599 = vld [vmem:[%s2137 + $0x30] sm:$0xff]
    %v3600 = vld [vmem:[%s2137 + $0x38] sm:$0xff]
    %v3601 = vadd.f32 %v3593, %v3590
    %v3602 = vadd.f32 %v3594, %v3590
    %v3603 = vadd.f32 %v3595, %v3590
    %v3604 = vadd.f32 %v3596, %v3590
    %v3605 = vadd.f32 %v3597, %v3590
    %v3606 = vadd.f32 %v3598, %v3590
    %v3607 = vadd.f32 %v3599, %v3590
    %v3608 = vadd.f32 %v3600, %v3590
    %v3609 = vtanh.pop %v3601
    %v3610 = vtanh.pop %v3602
    %v3611 = vtanh.pop %v3603
    %v3612 = vtanh.pop %v3604
    %v3613 = vtanh.pop %v3605
    %v3614 = vtanh.pop %v3606
    %v3615 = vtanh.pop %v3607
    %v3616 = vtanh.pop %v3608
    %v3617 = vmul.f32 %v3609, %v3218
    %v3618 = vmul.f32 %v3610, %v3218
    %v3619 = vmul.f32 %v3611, %v3218
    %v3620 = vmul.f32 %v3612, %v3218
    %v3621 = vmul.f32 %v3613, %v3218
    %v3622 = vmul.f32 %v3614, %v3218
    %v3623 = vmul.f32 %v3615, %v3218
    %v3624 = vmul.f32 %v3616, %v3218
    %3625 = vadd.xlane.f32.xlu0 %v3617
    %v3626 = vpop.xlane.xlu0 %3625
    %3627 = vadd.xlane.f32.xlu0 %v3618
    %v3628 = vpop.xlane.xlu0 %3627
    %3629 = vadd.xlane.f32.xlu0 %v3619
    %v3630 = vpop.xlane.xlu0 %3629
    %3631 = vadd.xlane.f32.xlu0 %v3620
    %v3632 = vpop.xlane.xlu0 %3631
    %3633 = vadd.xlane.f32.xlu0 %v3621
    %v3634 = vpop.xlane.xlu0 %3633
    %3635 = vadd.xlane.f32.xlu0 %v3622
    %v3636 = vpop.xlane.xlu0 %3635
    %3637 = vadd.xlane.f32.xlu0 %v3623
    %v3638 = vpop.xlane.xlu0 %3637
    %3639 = vadd.xlane.f32.xlu0 %v3624
    %v3640 = vpop.xlane.xlu0 %3639
    %v3641 = vmul.f32 %v3626, %v2873
    %v3642 = vmul.f32 %v3628, %v2874
    %v3643 = vmul.f32 %v3630, %v2875
    %v3644 = vmul.f32 %v3632, %v2876
    %v3645 = vmul.f32 %v3634, %v2877
    %v3646 = vmul.f32 %v3636, %v2878
    %v3647 = vmul.f32 %v3638, %v2879
    %v3648 = vmul.f32 %v3640, %v2880
    %3649 = vmatprep.subr.mxu0 0.0
    %3650 = vmatpush1.msra.mxu0 %v3641
    %3651 = vmatprep.subr.mxu0 0.0
    %3652 = vmatpush1.msra.mxu0 %v3642
    %3653 = vmatprep.subr.mxu0 0.0
    %3654 = vmatpush1.msra.mxu0 %v3643
    %3655 = vmatprep.subr.mxu0 0.0
    %3656 = vmatpush1.msra.mxu0 %v3644
    %3657 = vmatprep.subr.mxu0 0.0
    %3658 = vmatpush1.msra.mxu0 %v3645
    %3659 = vmatprep.subr.mxu0 0.0
    %3660 = vmatpush1.msra.mxu0 %v3646
    %3661 = vmatprep.subr.mxu0 0.0
    %3662 = vmatpush1.msra.mxu0 %v3647
    %3663 = vmatprep.subr.mxu0 0.0
    %3664 = vmatpush1.msra.mxu0 %v3648
    %3665 = vmatprep.subr.mxu0 0.0
    %3666 = vmatpush1.msra.mxu0 0.0
    %3667 = vmatprep.subr.mxu0 0.0
    %3668 = vmatpush1.msra.mxu0 0.0
    %3669 = vmatprep.subr.mxu0 0.0
    %3670 = vmatpush1.msra.mxu0 0.0
    %3671 = vmatprep.subr.mxu0 0.0
    %3672 = vmatpush1.msra.mxu0 0.0
    %3673 = vmatprep.subr.mxu0 0.0
    %3674 = vmatpush1.msra.mxu0 0.0
    %3675 = vmatprep.subr.mxu0 0.0
    %3676 = vmatpush1.msra.mxu0 0.0
    %3677 = vmatprep.subr.mxu0 0.0
    %3678 = vmatpush1.msra.mxu0 0.0
    %3679 = vmatprep.subr.mxu0 0.0
    %3680 = vmatpush1.msra.mxu0 0.0
    %3681 = vmatprep.subr.mxu0 0.0
    %3682 = vmatpush1.msra.mxu0 0.0
    %3683 = vmatprep.subr.mxu0 0.0
    %3684 = vmatpush1.msra.mxu0 0.0
    %3685 = vmatprep.subr.mxu0 0.0
    %3686 = vmatpush1.msra.mxu0 0.0
    %3687 = vmatprep.subr.mxu0 0.0
    %3688 = vmatpush1.msra.mxu0 0.0
    %3689 = vmatprep.subr.mxu0 0.0
    %3690 = vmatpush1.msra.mxu0 0.0
    %3691 = vmatprep.subr.mxu0 0.0
    %3692 = vmatpush1.msra.mxu0 0.0
    %3693 = vmatprep.subr.mxu0 0.0
    %3694 = vmatpush1.msra.mxu0 0.0
    %3695 = vmatprep.subr.mxu0 0.0
    %3696 = vmatpush1.msra.mxu0 0.0
    %3697 = vmatprep.subr.mxu0 0.0
    %3698 = vmatpush1.msra.mxu0 0.0
    %3699 = vmatprep.subr.mxu0 0.0
    %3700 = vmatpush1.msra.mxu0 0.0
    %3701 = vmatprep.subr.mxu0 0.0
    %3702 = vmatpush1.msra.mxu0 0.0
    %3703 = vmatprep.subr.mxu0 0.0
    %3704 = vmatpush1.msra.mxu0 0.0
    %3705 = vmatprep.subr.mxu0 0.0
    %3706 = vmatpush1.msra.mxu0 0.0
    %3707 = vmatprep.subr.mxu0 0.0
    %3708 = vmatpush1.msra.mxu0 0.0
    %3709 = vmatprep.subr.mxu0 0.0
    %3710 = vmatpush1.msra.mxu0 0.0
    %3711 = vmatprep.subr.mxu0 0.0
    %3712 = vmatpush1.msra.mxu0 0.0
    %3713 = vmatprep.mubr.f32.mxu0 0.0
    %3714 = vmatmul.mubr.f32.gmra.mrb[0].mxu0 %v3254
    %v3715 = vpop.f32.mrb[0].mxu0
    %v3716 = vadd.f32 0.0, %v3715
    %v3717 = vpop.f32.mrb[0].mxu0
    %3718 = vdwg.mxu0
    %v3719 = vsub.f32 %v3716, 1000.0
    %v3720 = vsel %vm2835, %v3716, %v3719
    %v3721 = vsel %vm3328, %v3720, -inf
    %3722 = vmax.xlane.f32.xlu0 %v3721
    %v3723 = vpop.xlane.xlu0 %3722
    %v3724 = vsub.f32 %v3720, %v3723
    %v3725 = vmul.f32 %v3724, 1.442695
    %v3726 = vpow.pop %v3725
    %v3727 = vsel %vm3328, %v3726, 0.0
    %3728 = vadd.xlane.f32.xlu0 %v3727
    %v3729 = vpop.xlane.xlu0 %3728
    %v3730 = vrcp.pop %v3729
    %v3731 = vmul.f32 %v3726, %v3730
    %s3732 = scalar_lea.vmem [#allocation13], 8
    %3733 = vst.msk [vmem:[%s3732] sm:$0xff] %vm3328, %v3731
    %vm3734 = vcmp.eq.f32.partialorder %v3720, %v3723
    %v3735 = vsel %vm3734, %v2832, 8.0
    %v3736 = vsel %vm3328, %v3735, inf
    %3737 = vmin.xlane.f32.xlu0 %v3736
    %v3738 = vpop.xlane.xlu0 %3737
    %vm3739 = vcmp.eq.f32.partialorder %v2832, %v3738
    %v3740 = vsel %vm3739, 1, 0
    %v3741 = vcvt.s32.f32 %v3740
    %v3742 = vmul.f32 %v3741, %v2834
    %v3743 = vsel %vm3328, %v3742, 0.0
    %3744 = vadd.xlane.f32.xlu0 %v3743
    %v3745 = vpop.xlane.xlu0 %3744
    %v3746 = vmul.f32 %v3745, %v2898
    %v3747 = vmul.f32 %v3745, %v2902
    %v3748 = vmul.f32 %v3745, %v2906
    %v3749 = vmul.f32 %v3745, %v2910
    %3750 = vmatprep.subr.mxu0 %v174
    %3751 = vmatpush1.msra.mxu0 %v173
    %3752 = vmatprep.subr.mxu0 %v178
    %3753 = vmatpush1.msra.mxu0 %v177
    %3754 = vmatprep.subr.mxu0 %v182
    %3755 = vmatpush1.msra.mxu0 %v181
    %3756 = vmatprep.subr.mxu0 %v186
    %3757 = vmatpush1.msra.mxu0 %v185
    %3758 = vmatprep.subr.mxu0 %v190
    %3759 = vmatpush1.msra.mxu0 %v189
    %3760 = vmatprep.subr.mxu0 %v194
    %3761 = vmatpush1.msra.mxu0 %v193
    %3762 = vmatprep.subr.mxu0 %v198
    %3763 = vmatpush1.msra.mxu0 %v197
    %3764 = vmatprep.subr.mxu0 %v202
    %3765 = vmatpush1.msra.mxu0 %v201
    %3766 = vmatprep.subr.mxu0 %v206
    %3767 = vmatpush1.msra.mxu0 %v205
    %3768 = vmatprep.subr.mxu0 %v210
    %3769 = vmatpush1.msra.mxu0 %v209
    %3770 = vmatprep.subr.mxu0 %v214
    %3771 = vmatpush1.msra.mxu0 %v213
    %3772 = vmatprep.subr.mxu0 %v218
    %3773 = vmatpush1.msra.mxu0 %v217
    %3774 = vmatprep.subr.mxu0 %v222
    %3775 = vmatpush1.msra.mxu0 %v221
    %3776 = vmatprep.subr.mxu0 %v226
    %3777 = vmatpush1.msra.mxu0 %v225
    %3778 = vmatprep.subr.mxu0 %v230
    %3779 = vmatpush1.msra.mxu0 %v229
    %3780 = vmatprep.subr.mxu0 %v234
    %3781 = vmatpush1.msra.mxu0 %v233
    %3782 = vmatprep.subr.mxu0 0.0
    %3783 = vmatpush1.msra.mxu0 0.0
    %3784 = vmatprep.subr.mxu0 0.0
    %3785 = vmatpush1.msra.mxu0 0.0
    %3786 = vmatprep.subr.mxu0 0.0
    %3787 = vmatpush1.msra.mxu0 0.0
    %3788 = vmatprep.subr.mxu0 0.0
    %3789 = vmatpush1.msra.mxu0 0.0
    %3790 = vmatprep.subr.mxu0 0.0
    %3791 = vmatpush1.msra.mxu0 0.0
    %3792 = vmatprep.subr.mxu0 0.0
    %3793 = vmatpush1.msra.mxu0 0.0
    %3794 = vmatprep.subr.mxu0 0.0
    %3795 = vmatpush1.msra.mxu0 0.0
    %3796 = vmatprep.subr.mxu0 0.0
    %3797 = vmatpush1.msra.mxu0 0.0
    %3798 = vmatprep.subr.mxu0 0.0
    %3799 = vmatpush1.msra.mxu0 0.0
    %3800 = vmatprep.subr.mxu0 0.0
    %3801 = vmatpush1.msra.mxu0 0.0
    %3802 = vmatprep.subr.mxu0 0.0
    %3803 = vmatpush1.msra.mxu0 0.0
    %3804 = vmatprep.subr.mxu0 0.0
    %3805 = vmatpush1.msra.mxu0 0.0
    %3806 = vmatprep.subr.mxu0 0.0
    %3807 = vmatpush1.msra.mxu0 0.0
    %3808 = vmatprep.subr.mxu0 0.0
    %3809 = vmatpush1.msra.mxu0 0.0
    %3810 = vmatprep.subr.mxu0 0.0
    %3811 = vmatpush1.msra.mxu0 0.0
    %3812 = vmatprep.subr.mxu0 0.0
    %3813 = vmatpush1.msra.mxu0 0.0
    %3814 = vmatprep.mubr.f32.mxu0 0.0
    %3815 = vmatmul.mubr.f32.gmra.mrb[0].mxu0 %v3522
    %v3816 = vpop.f32.mrb[0].mxu0
    %v3817 = vadd.f32 0.0, %v3816
    %v3818 = vpop.f32.mrb[0].mxu0
    %v3819 = vadd.f32 0.0, %v3818
    %3820 = vdwg.mxu0
    %3821 = vmatprep.subr.mxu0 %v176
    %3822 = vmatpush1.msra.mxu0 %v175
    %3823 = vmatprep.subr.mxu0 %v180
    %3824 = vmatpush1.msra.mxu0 %v179
    %3825 = vmatprep.subr.mxu0 %v184
    %3826 = vmatpush1.msra.mxu0 %v183
    %3827 = vmatprep.subr.mxu0 %v188
    %3828 = vmatpush1.msra.mxu0 %v187
    %3829 = vmatprep.subr.mxu0 %v192
    %3830 = vmatpush1.msra.mxu0 %v191
    %3831 = vmatprep.subr.mxu0 %v196
    %3832 = vmatpush1.msra.mxu0 %v195
    %3833 = vmatprep.subr.mxu0 %v200
    %3834 = vmatpush1.msra.mxu0 %v199
    %3835 = vmatprep.subr.mxu0 %v204
    %3836 = vmatpush1.msra.mxu0 %v203
    %3837 = vmatprep.subr.mxu0 %v208
    %3838 = vmatpush1.msra.mxu0 %v207
    %3839 = vmatprep.subr.mxu0 %v212
    %3840 = vmatpush1.msra.mxu0 %v211
    %3841 = vmatprep.subr.mxu0 %v216
    %3842 = vmatpush1.msra.mxu0 %v215
    %3843 = vmatprep.subr.mxu0 %v220
    %3844 = vmatpush1.msra.mxu0 %v219
    %3845 = vmatprep.subr.mxu0 %v224
    %3846 = vmatpush1.msra.mxu0 %v223
    %3847 = vmatprep.subr.mxu0 %v228
    %3848 = vmatpush1.msra.mxu0 %v227
    %3849 = vmatprep.subr.mxu0 %v232
    %3850 = vmatpush1.msra.mxu0 %v231
    %3851 = vmatprep.subr.mxu0 %v236
    %3852 = vmatpush1.msra.mxu0 %v235
    %3853 = vmatprep.subr.mxu0 0.0
    %3854 = vmatpush1.msra.mxu0 0.0
    %3855 = vmatprep.subr.mxu0 0.0
    %3856 = vmatpush1.msra.mxu0 0.0
    %3857 = vmatprep.subr.mxu0 0.0
    %3858 = vmatpush1.msra.mxu0 0.0
    %3859 = vmatprep.subr.mxu0 0.0
    %3860 = vmatpush1.msra.mxu0 0.0
    %3861 = vmatprep.subr.mxu0 0.0
    %3862 = vmatpush1.msra.mxu0 0.0
    %3863 = vmatprep.subr.mxu0 0.0
    %3864 = vmatpush1.msra.mxu0 0.0
    %3865 = vmatprep.subr.mxu0 0.0
    %3866 = vmatpush1.msra.mxu0 0.0
    %3867 = vmatprep.subr.mxu0 0.0
    %3868 = vmatpush1.msra.mxu0 0.0
    %3869 = vmatprep.subr.mxu0 0.0
    %3870 = vmatpush1.msra.mxu0 0.0
    %3871 = vmatprep.subr.mxu0 0.0
    %3872 = vmatpush1.msra.mxu0 0.0
    %3873 = vmatprep.subr.mxu0 0.0
    %3874 = vmatpush1.msra.mxu0 0.0
    %3875 = vmatprep.subr.mxu0 0.0
    %3876 = vmatpush1.msra.mxu0 0.0
    %3877 = vmatprep.subr.mxu0 0.0
    %3878 = vmatpush1.msra.mxu0 0.0
    %3879 = vmatprep.subr.mxu0 0.0
    %3880 = vmatpush1.msra.mxu0 0.0
    %3881 = vmatprep.subr.mxu0 0.0
    %3882 = vmatpush1.msra.mxu0 0.0
    %3883 = vmatprep.subr.mxu0 0.0
    %3884 = vmatpush1.msra.mxu0 0.0
    %3885 = vmatprep.mubr.f32.mxu0 0.0
    %3886 = vmatmul.mubr.f32.gmra.mrb[0].mxu0 %v3522
    %v3887 = vpop.f32.mrb[0].mxu0
    %v3888 = vadd.f32 0.0, %v3887
    %v3889 = vpop.f32.mrb[0].mxu0
    %v3890 = vadd.f32 0.0, %v3889
    %3891 = vdwg.mxu0
    %v3892 = vadd.f32 %v3746, %v3817
    %v3893 = vadd.f32 %v3747, %v3819
    %v3894 = vadd.f32 %v3748, %v3888
    %v3895 = vadd.f32 %v3749, %v3890
    %v3896 = vadd.f32 %v3892, %v3069
    %v3897 = vadd.f32 %v3893, %v3073
    %v3898 = vadd.f32 %v3894, %v3077
    %v3899 = vadd.f32 %v3895, %v3081
    %v3900 = vxor.u32 %v3896, 2147483648
    %v3901 = vmul.f32 %v3900, 1.442695
    %v3902 = vpow.pop %v3901
    %v3903 = vadd.f32 %v3902, 1.0
    %v3904 = vrcp.pop %v3903
    %v3905 = vmul.f32 1.0, %v3904
    %v3906 = vxor.u32 %v3897, 2147483648
    %v3907 = vmul.f32 %v3906, 1.442695
    %v3908 = vpow.pop %v3907
    %v3909 = vadd.f32 %v3908, 1.0
    %v3910 = vrcp.pop %v3909
    %v3911 = vmul.f32 1.0, %v3910
    %v3912 = vtanh.pop %v3898
    %v3913 = vxor.u32 %v3899, 2147483648
    %v3914 = vmul.f32 %v3913, 1.442695
    %v3915 = vpow.pop %v3914
    %v3916 = vadd.f32 %v3915, 1.0
    %v3917 = vrcp.pop %v3916
    %v3918 = vmul.f32 1.0, %v3917
    %v3919 = vmul.f32 %v3911, %v3520
    %v3920 = vmul.f32 %v3905, %v3912
    %v3921 = vadd.f32 %v3919, %v3920
    %v3922 = vtanh.pop %v3921
    %v3923 = vmul.f32 %v3918, %v3922
    %3924 = vmatprep.subr.mxu0 0.0
    %3925 = vmatpush1.msra.mxu0 %v255
    %3926 = vmatprep.subr.mxu0 0.0
    %3927 = vmatpush1.msra.mxu0 %v256
    %3928 = vmatprep.subr.mxu0 0.0
    %3929 = vmatpush1.msra.mxu0 %v257
    %3930 = vmatprep.subr.mxu0 0.0
    %3931 = vmatpush1.msra.mxu0 %v258
    %3932 = vmatprep.subr.mxu0 0.0
    %3933 = vmatpush1.msra.mxu0 %v259
    %3934 = vmatprep.subr.mxu0 0.0
    %3935 = vmatpush1.msra.mxu0 %v260
    %3936 = vmatprep.subr.mxu0 0.0
    %3937 = vmatpush1.msra.mxu0 %v261
    %3938 = vmatprep.subr.mxu0 0.0
    %3939 = vmatpush1.msra.mxu0 %v262
    %3940 = vmatprep.subr.mxu0 0.0
    %3941 = vmatpush1.msra.mxu0 %v263
    %3942 = vmatprep.subr.mxu0 0.0
    %3943 = vmatpush1.msra.mxu0 %v264
    %3944 = vmatprep.subr.mxu0 0.0
    %3945 = vmatpush1.msra.mxu0 %v265
    %3946 = vmatprep.subr.mxu0 0.0
    %3947 = vmatpush1.msra.mxu0 %v266
    %3948 = vmatprep.subr.mxu0 0.0
    %3949 = vmatpush1.msra.mxu0 %v267
    %3950 = vmatprep.subr.mxu0 0.0
    %3951 = vmatpush1.msra.mxu0 %v268
    %3952 = vmatprep.subr.mxu0 0.0
    %3953 = vmatpush1.msra.mxu0 %v269
    %3954 = vmatprep.subr.mxu0 0.0
    %3955 = vmatpush1.msra.mxu0 %v270
    %3956 = vmatprep.subr.mxu0 0.0
    %3957 = vmatpush1.msra.mxu0 0.0
    %3958 = vmatprep.subr.mxu0 0.0
    %3959 = vmatpush1.msra.mxu0 0.0
    %3960 = vmatprep.subr.mxu0 0.0
    %3961 = vmatpush1.msra.mxu0 0.0
    %3962 = vmatprep.subr.mxu0 0.0
    %3963 = vmatpush1.msra.mxu0 0.0
    %3964 = vmatprep.subr.mxu0 0.0
    %3965 = vmatpush1.msra.mxu0 0.0
    %3966 = vmatprep.subr.mxu0 0.0
    %3967 = vmatpush1.msra.mxu0 0.0
    %3968 = vmatprep.subr.mxu0 0.0
    %3969 = vmatpush1.msra.mxu0 0.0
    %3970 = vmatprep.subr.mxu0 0.0
    %3971 = vmatpush1.msra.mxu0 0.0
    %3972 = vmatprep.subr.mxu0 0.0
    %3973 = vmatpush1.msra.mxu0 0.0
    %3974 = vmatprep.subr.mxu0 0.0
    %3975 = vmatpush1.msra.mxu0 0.0
    %3976 = vmatprep.subr.mxu0 0.0
    %3977 = vmatpush1.msra.mxu0 0.0
    %3978 = vmatprep.subr.mxu0 0.0
    %3979 = vmatpush1.msra.mxu0 0.0
    %3980 = vmatprep.subr.mxu0 0.0
    %3981 = vmatpush1.msra.mxu0 0.0
    %3982 = vmatprep.subr.mxu0 0.0
    %3983 = vmatpush1.msra.mxu0 0.0
    %3984 = vmatprep.subr.mxu0 0.0
    %3985 = vmatpush1.msra.mxu0 0.0
    %3986 = vmatprep.subr.mxu0 0.0
    %3987 = vmatpush1.msra.mxu0 0.0
    %3988 = vmatprep.mubr.f32.mxu0 0.0
    %3989 = vmatmul.mubr.f32.gmra.mrb[0].mxu0 %v3923
    %v3990 = vpop.f32.mrb[0].mxu0
    %v3991 = vadd.f32 %v3118, %v3990
    %v3992 = vpop.f32.mrb[0].mxu0
    %3993 = vdwg.mxu0
    %v3994 = vld [vmem:[%s2251] sm:$0xff]
    %v3995 = vld [vmem:[%s2251 + $0x8] sm:$0xff]
    %v3996 = vld [vmem:[%s2251 + $0x10] sm:$0xff]
    %v3997 = vld [vmem:[%s2251 + $0x18] sm:$0xff]
    %v3998 = vld [vmem:[%s2251 + $0x20] sm:$0xff]
    %v3999 = vld [vmem:[%s2251 + $0x28] sm:$0xff]
    %v4000 = vld [vmem:[%s2251 + $0x30] sm:$0xff]
    %v4001 = vld [vmem:[%s2251 + $0x38] sm:$0xff]
    %v4002 = vadd.f32 %v3994, %v3991
    %v4003 = vadd.f32 %v3995, %v3991
    %v4004 = vadd.f32 %v3996, %v3991
    %v4005 = vadd.f32 %v3997, %v3991
    %v4006 = vadd.f32 %v3998, %v3991
    %v4007 = vadd.f32 %v3999, %v3991
    %v4008 = vadd.f32 %v4000, %v3991
    %v4009 = vadd.f32 %v4001, %v3991
    %v4010 = vtanh.pop %v4002
    %v4011 = vtanh.pop %v4003
    %v4012 = vtanh.pop %v4004
    %v4013 = vtanh.pop %v4005
    %v4014 = vtanh.pop %v4006
    %v4015 = vtanh.pop %v4007
    %v4016 = vtanh.pop %v4008
    %v4017 = vtanh.pop %v4009
    %v4018 = vmul.f32 %v4010, %v3218
    %v4019 = vmul.f32 %v4011, %v3218
    %v4020 = vmul.f32 %v4012, %v3218
    %v4021 = vmul.f32 %v4013, %v3218
    %v4022 = vmul.f32 %v4014, %v3218
    %v4023 = vmul.f32 %v4015, %v3218
    %v4024 = vmul.f32 %v4016, %v3218
    %v4025 = vmul.f32 %v4017, %v3218
    %4026 = vadd.xlane.f32.xlu0 %v4018
    %v4027 = vpop.xlane.xlu0 %4026
    %4028 = vadd.xlane.f32.xlu0 %v4019
    %v4029 = vpop.xlane.xlu0 %4028
    %4030 = vadd.xlane.f32.xlu0 %v4020
    %v4031 = vpop.xlane.xlu0 %4030
    %4032 = vadd.xlane.f32.xlu0 %v4021
    %v4033 = vpop.xlane.xlu0 %4032
    %4034 = vadd.xlane.f32.xlu0 %v4022
    %v4035 = vpop.xlane.xlu0 %4034
    %4036 = vadd.xlane.f32.xlu0 %v4023
    %v4037 = vpop.xlane.xlu0 %4036
    %4038 = vadd.xlane.f32.xlu0 %v4024
    %v4039 = vpop.xlane.xlu0 %4038
    %4040 = vadd.xlane.f32.xlu0 %v4025
    %v4041 = vpop.xlane.xlu0 %4040
    %v4042 = vmul.f32 %v4027, %v2873
    %v4043 = vmul.f32 %v4029, %v2874
    %v4044 = vmul.f32 %v4031, %v2875
    %v4045 = vmul.f32 %v4033, %v2876
    %v4046 = vmul.f32 %v4035, %v2877
    %v4047 = vmul.f32 %v4037, %v2878
    %v4048 = vmul.f32 %v4039, %v2879
    %v4049 = vmul.f32 %v4041, %v2880
    %4050 = vmatprep.subr.mxu0 0.0
    %4051 = vmatpush1.msra.mxu0 %v4042
    %4052 = vmatprep.subr.mxu0 0.0
    %4053 = vmatpush1.msra.mxu0 %v4043
    %4054 = vmatprep.subr.mxu0 0.0
    %4055 = vmatpush1.msra.mxu0 %v4044
    %4056 = vmatprep.subr.mxu0 0.0
    %4057 = vmatpush1.msra.mxu0 %v4045
    %4058 = vmatprep.subr.mxu0 0.0
    %4059 = vmatpush1.msra.mxu0 %v4046
    %4060 = vmatprep.subr.mxu0 0.0
    %4061 = vmatpush1.msra.mxu0 %v4047
    %4062 = vmatprep.subr.mxu0 0.0
    %4063 = vmatpush1.msra.mxu0 %v4048
    %4064 = vmatprep.subr.mxu0 0.0
    %4065 = vmatpush1.msra.mxu0 %v4049
    %4066 = vmatprep.subr.mxu0 0.0
    %4067 = vmatpush1.msra.mxu0 0.0
    %4068 = vmatprep.subr.mxu0 0.0
    %4069 = vmatpush1.msra.mxu0 0.0
    %4070 = vmatprep.subr.mxu0 0.0
    %4071 = vmatpush1.msra.mxu0 0.0
    %4072 = vmatprep.subr.mxu0 0.0
    %4073 = vmatpush1.msra.mxu0 0.0
    %4074 = vmatprep.subr.mxu0 0.0
    %4075 = vmatpush1.msra.mxu0 0.0
    %4076 = vmatprep.subr.mxu0 0.0
    %4077 = vmatpush1.msra.mxu0 0.0
    %4078 = vmatprep.subr.mxu0 0.0
    %4079 = vmatpush1.msra.mxu0 0.0
    %4080 = vmatprep.subr.mxu0 0.0
    %4081 = vmatpush1.msra.mxu0 0.0
    %4082 = vmatprep.subr.mxu0 0.0
    %4083 = vmatpush1.msra.mxu0 0.0
    %4084 = vmatprep.subr.mxu0 0.0
    %4085 = vmatpush1.msra.mxu0 0.0
    %4086 = vmatprep.subr.mxu0 0.0
    %4087 = vmatpush1.msra.mxu0 0.0
    %4088 = vmatprep.subr.mxu0 0.0
    %4089 = vmatpush1.msra.mxu0 0.0
    %4090 = vmatprep.subr.mxu0 0.0
    %4091 = vmatpush1.msra.mxu0 0.0
    %4092 = vmatprep.subr.mxu0 0.0
    %4093 = vmatpush1.msra.mxu0 0.0
    %4094 = vmatprep.subr.mxu0 0.0
    %4095 = vmatpush1.msra.mxu0 0.0
    %4096 = vmatprep.subr.mxu0 0.0
    %4097 = vmatpush1.msra.mxu0 0.0
    %4098 = vmatprep.subr.mxu0 0.0
    %4099 = vmatpush1.msra.mxu0 0.0
    %4100 = vmatprep.subr.mxu0 0.0
    %4101 = vmatpush1.msra.mxu0 0.0
    %4102 = vmatprep.subr.mxu0 0.0
    %4103 = vmatpush1.msra.mxu0 0.0
    %4104 = vmatprep.subr.mxu0 0.0
    %4105 = vmatpush1.msra.mxu0 0.0
    %4106 = vmatprep.subr.mxu0 0.0
    %4107 = vmatpush1.msra.mxu0 0.0
    %4108 = vmatprep.subr.mxu0 0.0
    %4109 = vmatpush1.msra.mxu0 0.0
    %4110 = vmatprep.subr.mxu0 0.0
    %4111 = vmatpush1.msra.mxu0 0.0
    %4112 = vmatprep.subr.mxu0 0.0
    %4113 = vmatpush1.msra.mxu0 0.0
    %4114 = vmatprep.mubr.f32.mxu0 0.0
    %4115 = vmatmul.mubr.f32.gmra.mrb[0].mxu0 %v3254
    %v4116 = vpop.f32.mrb[0].mxu0
    %v4117 = vadd.f32 0.0, %v4116
    %v4118 = vpop.f32.mrb[0].mxu0
    %4119 = vdwg.mxu0
    %v4120 = vsub.f32 %v4117, 1000.0
    %v4121 = vsel %vm2835, %v4117, %v4120
    %v4122 = vsel %vm3328, %v4121, -inf
    %4123 = vmax.xlane.f32.xlu0 %v4122
    %v4124 = vpop.xlane.xlu0 %4123
    %v4125 = vsub.f32 %v4121, %v4124
    %v4126 = vmul.f32 %v4125, 1.442695
    %v4127 = vpow.pop %v4126
    %v4128 = vsel %vm3328, %v4127, 0.0
    %4129 = vadd.xlane.f32.xlu0 %v4128
    %v4130 = vpop.xlane.xlu0 %4129
    %v4131 = vrcp.pop %v4130
    %v4132 = vmul.f32 %v4127, %v4131
    %s4133 = scalar_lea.vmem [#allocation13], 16
    %4134 = vst.msk [vmem:[%s4133] sm:$0xff] %vm3328, %v4132
    %vm4135 = vcmp.eq.f32.partialorder %v4121, %v4124
    %v4136 = vsel %vm4135, %v2832, 8.0
    %v4137 = vsel %vm3328, %v4136, inf
    %4138 = vmin.xlane.f32.xlu0 %v4137
    %v4139 = vpop.xlane.xlu0 %4138
    %vm4140 = vcmp.eq.f32.partialorder %v2832, %v4139
    %v4141 = vsel %vm4140, 1, 0
    %v4142 = vcvt.s32.f32 %v4141
    %v4143 = vmul.f32 %v4142, %v2834
    %v4144 = vsel %vm3328, %v4143, 0.0
    %4145 = vadd.xlane.f32.xlu0 %v4144
    %v4146 = vpop.xlane.xlu0 %4145
    %v4147 = vmul.f32 %v4146, %v2898
    %v4148 = vmul.f32 %v4146, %v2902
    %v4149 = vmul.f32 %v4146, %v2906
    %v4150 = vmul.f32 %v4146, %v2910
    %4151 = vmatprep.subr.mxu0 %v174
    %4152 = vmatpush1.msra.mxu0 %v173
    %4153 = vmatprep.subr.mxu0 %v178
    %4154 = vmatpush1.msra.mxu0 %v177
    %4155 = vmatprep.subr.mxu0 %v182
    %4156 = vmatpush1.msra.mxu0 %v181
    %4157 = vmatprep.subr.mxu0 %v186
    %4158 = vmatpush1.msra.mxu0 %v185
    %4159 = vmatprep.subr.mxu0 %v190
    %4160 = vmatpush1.msra.mxu0 %v189
    %4161 = vmatprep.subr.mxu0 %v194
    %4162 = vmatpush1.msra.mxu0 %v193
    %4163 = vmatprep.subr.mxu0 %v198
    %4164 = vmatpush1.msra.mxu0 %v197
    %4165 = vmatprep.subr.mxu0 %v202
    %4166 = vmatpush1.msra.mxu0 %v201
    %4167 = vmatprep.subr.mxu0 %v206
    %4168 = vmatpush1.msra.mxu0 %v205
    %4169 = vmatprep.subr.mxu0 %v210
    %4170 = vmatpush1.msra.mxu0 %v209
    %4171 = vmatprep.subr.mxu0 %v214
    %4172 = vmatpush1.msra.mxu0 %v213
    %4173 = vmatprep.subr.mxu0 %v218
    %4174 = vmatpush1.msra.mxu0 %v217
    %4175 = vmatprep.subr.mxu0 %v222
    %4176 = vmatpush1.msra.mxu0 %v221
    %4177 = vmatprep.subr.mxu0 %v226
    %4178 = vmatpush1.msra.mxu0 %v225
    %4179 = vmatprep.subr.mxu0 %v230
    %4180 = vmatpush1.msra.mxu0 %v229
    %4181 = vmatprep.subr.mxu0 %v234
    %4182 = vmatpush1.msra.mxu0 %v233
    %4183 = vmatprep.subr.mxu0 0.0
    %4184 = vmatpush1.msra.mxu0 0.0
    %4185 = vmatprep.subr.mxu0 0.0
    %4186 = vmatpush1.msra.mxu0 0.0
    %4187 = vmatprep.subr.mxu0 0.0
    %4188 = vmatpush1.msra.mxu0 0.0
    %4189 = vmatprep.subr.mxu0 0.0
    %4190 = vmatpush1.msra.mxu0 0.0
    %4191 = vmatprep.subr.mxu0 0.0
    %4192 = vmatpush1.msra.mxu0 0.0
    %4193 = vmatprep.subr.mxu0 0.0
    %4194 = vmatpush1.msra.mxu0 0.0
    %4195 = vmatprep.subr.mxu0 0.0
    %4196 = vmatpush1.msra.mxu0 0.0
    %4197 = vmatprep.subr.mxu0 0.0
    %4198 = vmatpush1.msra.mxu0 0.0
    %4199 = vmatprep.subr.mxu0 0.0
    %4200 = vmatpush1.msra.mxu0 0.0
    %4201 = vmatprep.subr.mxu0 0.0
    %4202 = vmatpush1.msra.mxu0 0.0
    %4203 = vmatprep.subr.mxu0 0.0
    %4204 = vmatpush1.msra.mxu0 0.0
    %4205 = vmatprep.subr.mxu0 0.0
    %4206 = vmatpush1.msra.mxu0 0.0
    %4207 = vmatprep.subr.mxu0 0.0
    %4208 = vmatpush1.msra.mxu0 0.0
    %4209 = vmatprep.subr.mxu0 0.0
    %4210 = vmatpush1.msra.mxu0 0.0
    %4211 = vmatprep.subr.mxu0 0.0
    %4212 = vmatpush1.msra.mxu0 0.0
    %4213 = vmatprep.subr.mxu0 0.0
    %4214 = vmatpush1.msra.mxu0 0.0
    %4215 = vmatprep.mubr.f32.mxu0 0.0
    %4216 = vmatmul.mubr.f32.gmra.mrb[0].mxu0 %v3923
    %v4217 = vpop.f32.mrb[0].mxu0
    %v4218 = vadd.f32 0.0, %v4217
    %v4219 = vpop.f32.mrb[0].mxu0
    %v4220 = vadd.f32 0.0, %v4219
    %4221 = vdwg.mxu0
    %4222 = vmatprep.subr.mxu0 %v176
    %4223 = vmatpush1.msra.mxu0 %v175
    %4224 = vmatprep.subr.mxu0 %v180
    %4225 = vmatpush1.msra.mxu0 %v179
    %4226 = vmatprep.subr.mxu0 %v184
    %4227 = vmatpush1.msra.mxu0 %v183
    %4228 = vmatprep.subr.mxu0 %v188
    %4229 = vmatpush1.msra.mxu0 %v187
    %4230 = vmatprep.subr.mxu0 %v192
    %4231 = vmatpush1.msra.mxu0 %v191
    %4232 = vmatprep.subr.mxu0 %v196
    %4233 = vmatpush1.msra.mxu0 %v195
    %4234 = vmatprep.subr.mxu0 %v200
    %4235 = vmatpush1.msra.mxu0 %v199
    %4236 = vmatprep.subr.mxu0 %v204
    %4237 = vmatpush1.msra.mxu0 %v203
    %4238 = vmatprep.subr.mxu0 %v208
    %4239 = vmatpush1.msra.mxu0 %v207
    %4240 = vmatprep.subr.mxu0 %v212
    %4241 = vmatpush1.msra.mxu0 %v211
    %4242 = vmatprep.subr.mxu0 %v216
    %4243 = vmatpush1.msra.mxu0 %v215
    %4244 = vmatprep.subr.mxu0 %v220
    %4245 = vmatpush1.msra.mxu0 %v219
    %4246 = vmatprep.subr.mxu0 %v224
    %4247 = vmatpush1.msra.mxu0 %v223
    %4248 = vmatprep.subr.mxu0 %v228
    %4249 = vmatpush1.msra.mxu0 %v227
    %4250 = vmatprep.subr.mxu0 %v232
    %4251 = vmatpush1.msra.mxu0 %v231
    %4252 = vmatprep.subr.mxu0 %v236
    %4253 = vmatpush1.msra.mxu0 %v235
    %4254 = vmatprep.subr.mxu0 0.0
    %4255 = vmatpush1.msra.mxu0 0.0
    %4256 = vmatprep.subr.mxu0 0.0
    %4257 = vmatpush1.msra.mxu0 0.0
    %4258 = vmatprep.subr.mxu0 0.0
    %4259 = vmatpush1.msra.mxu0 0.0
    %4260 = vmatprep.subr.mxu0 0.0
    %4261 = vmatpush1.msra.mxu0 0.0
    %4262 = vmatprep.subr.mxu0 0.0
    %4263 = vmatpush1.msra.mxu0 0.0
    %4264 = vmatprep.subr.mxu0 0.0
    %4265 = vmatpush1.msra.mxu0 0.0
    %4266 = vmatprep.subr.mxu0 0.0
    %4267 = vmatpush1.msra.mxu0 0.0
    %4268 = vmatprep.subr.mxu0 0.0
    %4269 = vmatpush1.msra.mxu0 0.0
    %4270 = vmatprep.subr.mxu0 0.0
    %4271 = vmatpush1.msra.mxu0 0.0
    %4272 = vmatprep.subr.mxu0 0.0
    %4273 = vmatpush1.msra.mxu0 0.0
    %4274 = vmatprep.subr.mxu0 0.0
    %4275 = vmatpush1.msra.mxu0 0.0
    %4276 = vmatprep.subr.mxu0 0.0
    %4277 = vmatpush1.msra.mxu0 0.0
    %4278 = vmatprep.subr.mxu0 0.0
    %4279 = vmatpush1.msra.mxu0 0.0
    %4280 = vmatprep.subr.mxu0 0.0
    %4281 = vmatpush1.msra.mxu0 0.0
    %4282 = vmatprep.subr.mxu0 0.0
    %4283 = vmatpush1.msra.mxu0 0.0
    %4284 = vmatprep.subr.mxu0 0.0
    %4285 = vmatpush1.msra.mxu0 0.0
    %4286 = vmatprep.mubr.f32.mxu0 0.0
    %4287 = vmatmul.mubr.f32.gmra.mrb[0].mxu0 %v3923
    %v4288 = vpop.f32.mrb[0].mxu0
    %v4289 = vadd.f32 0.0, %v4288
    %v4290 = vpop.f32.mrb[0].mxu0
    %v4291 = vadd.f32 0.0, %v4290
    %4292 = vdwg.mxu0
    %v4293 = vadd.f32 %v4147, %v4218
    %v4294 = vadd.f32 %v4148, %v4220
    %v4295 = vadd.f32 %v4149, %v4289
    %v4296 = vadd.f32 %v4150, %v4291
    %v4297 = vadd.f32 %v4293, %v3069
    %v4298 = vadd.f32 %v4294, %v3073
    %v4299 = vadd.f32 %v4295, %v3077
    %v4300 = vadd.f32 %v4296, %v3081
    %v4301 = vxor.u32 %v4297, 2147483648
    %v4302 = vmul.f32 %v4301, 1.442695
    %v4303 = vpow.pop %v4302
    %v4304 = vadd.f32 %v4303, 1.0
    %v4305 = vrcp.pop %v4304
    %v4306 = vmul.f32 1.0, %v4305
    %v4307 = vxor.u32 %v4298, 2147483648
    %v4308 = vmul.f32 %v4307, 1.442695
    %v4309 = vpow.pop %v4308
    %v4310 = vadd.f32 %v4309, 1.0
    %v4311 = vrcp.pop %v4310
    %v4312 = vmul.f32 1.0, %v4311
    %v4313 = vtanh.pop %v4299
    %v4314 = vxor.u32 %v4300, 2147483648
    %v4315 = vmul.f32 %v4314, 1.442695
    %v4316 = vpow.pop %v4315
    %v4317 = vadd.f32 %v4316, 1.0
    %v4318 = vrcp.pop %v4317
    %v4319 = vmul.f32 1.0, %v4318
    %v4320 = vmul.f32 %v4312, %v3921
    %v4321 = vmul.f32 %v4306, %v4313
    %v4322 = vadd.f32 %v4320, %v4321
    %v4323 = vtanh.pop %v4322
    %v4324 = vmul.f32 %v4319, %v4323
    %4325 = vmatprep.subr.mxu0 0.0
    %4326 = vmatpush1.msra.mxu0 %v255
    %4327 = vmatprep.subr.mxu0 0.0
    %4328 = vmatpush1.msra.mxu0 %v256
    %4329 = vmatprep.subr.mxu0 0.0
    %4330 = vmatpush1.msra.mxu0 %v257
    %4331 = vmatprep.subr.mxu0 0.0
    %4332 = vmatpush1.msra.mxu0 %v258
    %4333 = vmatprep.subr.mxu0 0.0
    %4334 = vmatpush1.msra.mxu0 %v259
    %4335 = vmatprep.subr.mxu0 0.0
    %4336 = vmatpush1.msra.mxu0 %v260
    %4337 = vmatprep.subr.mxu0 0.0
    %4338 = vmatpush1.msra.mxu0 %v261
    %4339 = vmatprep.subr.mxu0 0.0
    %4340 = vmatpush1.msra.mxu0 %v262
    %4341 = vmatprep.subr.mxu0 0.0
    %4342 = vmatpush1.msra.mxu0 %v263
    %4343 = vmatprep.subr.mxu0 0.0
    %4344 = vmatpush1.msra.mxu0 %v264
    %4345 = vmatprep.subr.mxu0 0.0
    %4346 = vmatpush1.msra.mxu0 %v265
    %4347 = vmatprep.subr.mxu0 0.0
    %4348 = vmatpush1.msra.mxu0 %v266
    %4349 = vmatprep.subr.mxu0 0.0
    %4350 = vmatpush1.msra.mxu0 %v267
    %4351 = vmatprep.subr.mxu0 0.0
    %4352 = vmatpush1.msra.mxu0 %v268
    %4353 = vmatprep.subr.mxu0 0.0
    %4354 = vmatpush1.msra.mxu0 %v269
    %4355 = vmatprep.subr.mxu0 0.0
    %4356 = vmatpush1.msra.mxu0 %v270
    %4357 = vmatprep.subr.mxu0 0.0
    %4358 = vmatpush1.msra.mxu0 0.0
    %4359 = vmatprep.subr.mxu0 0.0
    %4360 = vmatpush1.msra.mxu0 0.0
    %4361 = vmatprep.subr.mxu0 0.0
    %4362 = vmatpush1.msra.mxu0 0.0
    %4363 = vmatprep.subr.mxu0 0.0
    %4364 = vmatpush1.msra.mxu0 0.0
    %4365 = vmatprep.subr.mxu0 0.0
    %4366 = vmatpush1.msra.mxu0 0.0
    %4367 = vmatprep.subr.mxu0 0.0
    %4368 = vmatpush1.msra.mxu0 0.0
    %4369 = vmatprep.subr.mxu0 0.0
    %4370 = vmatpush1.msra.mxu0 0.0
    %4371 = vmatprep.subr.mxu0 0.0
    %4372 = vmatpush1.msra.mxu0 0.0
    %4373 = vmatprep.subr.mxu0 0.0
    %4374 = vmatpush1.msra.mxu0 0.0
    %4375 = vmatprep.subr.mxu0 0.0
    %4376 = vmatpush1.msra.mxu0 0.0
    %4377 = vmatprep.subr.mxu0 0.0
    %4378 = vmatpush1.msra.mxu0 0.0
    %4379 = vmatprep.subr.mxu0 0.0
    %4380 = vmatpush1.msra.mxu0 0.0
    %4381 = vmatprep.subr.mxu0 0.0
    %4382 = vmatpush1.msra.mxu0 0.0
    %4383 = vmatprep.subr.mxu0 0.0
    %4384 = vmatpush1.msra.mxu0 0.0
    %4385 = vmatprep.subr.mxu0 0.0
    %4386 = vmatpush1.msra.mxu0 0.0
    %4387 = vmatprep.subr.mxu0 0.0
    %4388 = vmatpush1.msra.mxu0 0.0
    %4389 = vmatprep.mubr.f32.mxu0 0.0
    %4390 = vmatmul.mubr.f32.gmra.mrb[0].mxu0 %v4324
    %v4391 = vpop.f32.mrb[0].mxu0
    %v4392 = vadd.f32 %v3118, %v4391
    %v4393 = vpop.f32.mrb[0].mxu0
    %4394 = vdwg.mxu0
    %v4395 = vld [vmem:[%s2365] sm:$0xff]
    %v4396 = vld [vmem:[%s2365 + $0x8] sm:$0xff]
    %v4397 = vld [vmem:[%s2365 + $0x10] sm:$0xff]
    %v4398 = vld [vmem:[%s2365 + $0x18] sm:$0xff]
    %v4399 = vld [vmem:[%s2365 + $0x20] sm:$0xff]
    %v4400 = vld [vmem:[%s2365 + $0x28] sm:$0xff]
    %v4401 = vld [vmem:[%s2365 + $0x30] sm:$0xff]
    %v4402 = vld [vmem:[%s2365 + $0x38] sm:$0xff]
    %v4403 = vadd.f32 %v4395, %v4392
    %v4404 = vadd.f32 %v4396, %v4392
    %v4405 = vadd.f32 %v4397, %v4392
    %v4406 = vadd.f32 %v4398, %v4392
    %v4407 = vadd.f32 %v4399, %v4392
    %v4408 = vadd.f32 %v4400, %v4392
    %v4409 = vadd.f32 %v4401, %v4392
    %v4410 = vadd.f32 %v4402, %v4392
    %v4411 = vtanh.pop %v4403
    %v4412 = vtanh.pop %v4404
    %v4413 = vtanh.pop %v4405
    %v4414 = vtanh.pop %v4406
    %v4415 = vtanh.pop %v4407
    %v4416 = vtanh.pop %v4408
    %v4417 = vtanh.pop %v4409
    %v4418 = vtanh.pop %v4410
    %v4419 = vmul.f32 %v4411, %v3218
    %v4420 = vmul.f32 %v4412, %v3218
    %v4421 = vmul.f32 %v4413, %v3218
    %v4422 = vmul.f32 %v4414, %v3218
    %v4423 = vmul.f32 %v4415, %v3218
    %v4424 = vmul.f32 %v4416, %v3218
    %v4425 = vmul.f32 %v4417, %v3218
    %v4426 = vmul.f32 %v4418, %v3218
    %4427 = vadd.xlane.f32.xlu0 %v4419
    %v4428 = vpop.xlane.xlu0 %4427
    %4429 = vadd.xlane.f32.xlu0 %v4420
    %v4430 = vpop.xlane.xlu0 %4429
    %4431 = vadd.xlane.f32.xlu0 %v4421
    %v4432 = vpop.xlane.xlu0 %4431
    %4433 = vadd.xlane.f32.xlu0 %v4422
    %v4434 = vpop.xlane.xlu0 %4433
    %4435 = vadd.xlane.f32.xlu0 %v4423
    %v4436 = vpop.xlane.xlu0 %4435
    %4437 = vadd.xlane.f32.xlu0 %v4424
    %v4438 = vpop.xlane.xlu0 %4437
    %4439 = vadd.xlane.f32.xlu0 %v4425
    %v4440 = vpop.xlane.xlu0 %4439
    %4441 = vadd.xlane.f32.xlu0 %v4426
    %v4442 = vpop.xlane.xlu0 %4441
    %v4443 = vmul.f32 %v4428, %v2873
    %v4444 = vmul.f32 %v4430, %v2874
    %v4445 = vmul.f32 %v4432, %v2875
    %v4446 = vmul.f32 %v4434, %v2876
    %v4447 = vmul.f32 %v4436, %v2877
    %v4448 = vmul.f32 %v4438, %v2878
    %v4449 = vmul.f32 %v4440, %v2879
    %v4450 = vmul.f32 %v4442, %v2880
    %4451 = vmatprep.subr.mxu0 0.0
    %4452 = vmatpush1.msra.mxu0 %v4443
    %4453 = vmatprep.subr.mxu0 0.0
    %4454 = vmatpush1.msra.mxu0 %v4444
    %4455 = vmatprep.subr.mxu0 0.0
    %4456 = vmatpush1.msra.mxu0 %v4445
    %4457 = vmatprep.subr.mxu0 0.0
    %4458 = vmatpush1.msra.mxu0 %v4446
    %4459 = vmatprep.subr.mxu0 0.0
    %4460 = vmatpush1.msra.mxu0 %v4447
    %4461 = vmatprep.subr.mxu0 0.0
    %4462 = vmatpush1.msra.mxu0 %v4448
    %4463 = vmatprep.subr.mxu0 0.0
    %4464 = vmatpush1.msra.mxu0 %v4449
    %4465 = vmatprep.subr.mxu0 0.0
    %4466 = vmatpush1.msra.mxu0 %v4450
    %4467 = vmatprep.subr.mxu0 0.0
    %4468 = vmatpush1.msra.mxu0 0.0
    %4469 = vmatprep.subr.mxu0 0.0
    %4470 = vmatpush1.msra.mxu0 0.0
    %4471 = vmatprep.subr.mxu0 0.0
    %4472 = vmatpush1.msra.mxu0 0.0
    %4473 = vmatprep.subr.mxu0 0.0
    %4474 = vmatpush1.msra.mxu0 0.0
    %4475 = vmatprep.subr.mxu0 0.0
    %4476 = vmatpush1.msra.mxu0 0.0
    %4477 = vmatprep.subr.mxu0 0.0
    %4478 = vmatpush1.msra.mxu0 0.0
    %4479 = vmatprep.subr.mxu0 0.0
    %4480 = vmatpush1.msra.mxu0 0.0
    %4481 = vmatprep.subr.mxu0 0.0
    %4482 = vmatpush1.msra.mxu0 0.0
    %4483 = vmatprep.subr.mxu0 0.0
    %4484 = vmatpush1.msra.mxu0 0.0
    %4485 = vmatprep.subr.mxu0 0.0
    %4486 = vmatpush1.msra.mxu0 0.0
    %4487 = vmatprep.subr.mxu0 0.0
    %4488 = vmatpush1.msra.mxu0 0.0
    %4489 = vmatprep.subr.mxu0 0.0
    %4490 = vmatpush1.msra.mxu0 0.0
    %4491 = vmatprep.subr.mxu0 0.0
    %4492 = vmatpush1.msra.mxu0 0.0
    %4493 = vmatprep.subr.mxu0 0.0
    %4494 = vmatpush1.msra.mxu0 0.0
    %4495 = vmatprep.subr.mxu0 0.0
    %4496 = vmatpush1.msra.mxu0 0.0
    %4497 = vmatprep.subr.mxu0 0.0
    %4498 = vmatpush1.msra.mxu0 0.0
    %4499 = vmatprep.subr.mxu0 0.0
    %4500 = vmatpush1.msra.mxu0 0.0
    %4501 = vmatprep.subr.mxu0 0.0
    %4502 = vmatpush1.msra.mxu0 0.0
    %4503 = vmatprep.subr.mxu0 0.0
    %4504 = vmatpush1.msra.mxu0 0.0
    %4505 = vmatprep.subr.mxu0 0.0
    %4506 = vmatpush1.msra.mxu0 0.0
    %4507 = vmatprep.subr.mxu0 0.0
    %4508 = vmatpush1.msra.mxu0 0.0
    %4509 = vmatprep.subr.mxu0 0.0
    %4510 = vmatpush1.msra.mxu0 0.0
    %4511 = vmatprep.subr.mxu0 0.0
    %4512 = vmatpush1.msra.mxu0 0.0
    %4513 = vmatprep.subr.mxu0 0.0
    %4514 = vmatpush1.msra.mxu0 0.0
    %4515 = vmatprep.mubr.f32.mxu0 0.0
    %4516 = vmatmul.mubr.f32.gmra.mrb[0].mxu0 %v3254
    %v4517 = vpop.f32.mrb[0].mxu0
    %v4518 = vadd.f32 0.0, %v4517
    %v4519 = vpop.f32.mrb[0].mxu0
    %4520 = vdwg.mxu0
    %v4521 = vsub.f32 %v4518, 1000.0
    %v4522 = vsel %vm2835, %v4518, %v4521
    %v4523 = vsel %vm3328, %v4522, -inf
    %4524 = vmax.xlane.f32.xlu0 %v4523
    %v4525 = vpop.xlane.xlu0 %4524
    %v4526 = vsub.f32 %v4522, %v4525
    %v4527 = vmul.f32 %v4526, 1.442695
    %v4528 = vpow.pop %v4527
    %v4529 = vsel %vm3328, %v4528, 0.0
    %4530 = vadd.xlane.f32.xlu0 %v4529
    %v4531 = vpop.xlane.xlu0 %4530
    %v4532 = vrcp.pop %v4531
    %v4533 = vmul.f32 %v4528, %v4532
    %s4534 = scalar_lea.vmem [#allocation13], 24
    %4535 = vst.msk [vmem:[%s4534] sm:$0xff] %vm3328, %v4533
    %vm4536 = vcmp.eq.f32.partialorder %v4522, %v4525
    %v4537 = vsel %vm4536, %v2832, 8.0
    %v4538 = vsel %vm3328, %v4537, inf
    %4539 = vmin.xlane.f32.xlu0 %v4538
    %v4540 = vpop.xlane.xlu0 %4539
    %vm4541 = vcmp.eq.f32.partialorder %v2832, %v4540
    %v4542 = vsel %vm4541, 1, 0
    %v4543 = vcvt.s32.f32 %v4542
    %v4544 = vmul.f32 %v4543, %v2834
    %v4545 = vsel %vm3328, %v4544, 0.0
    %4546 = vadd.xlane.f32.xlu0 %v4545
    %v4547 = vpop.xlane.xlu0 %4546
    %v4548 = vmul.f32 %v4547, %v2898
    %v4549 = vmul.f32 %v4547, %v2902
    %v4550 = vmul.f32 %v4547, %v2906
    %v4551 = vmul.f32 %v4547, %v2910
    %4552 = vmatprep.subr.mxu0 %v174
    %4553 = vmatpush1.msra.mxu0 %v173
    %4554 = vmatprep.subr.mxu0 %v178
    %4555 = vmatpush1.msra.mxu0 %v177
    %4556 = vmatprep.subr.mxu0 %v182
    %4557 = vmatpush1.msra.mxu0 %v181
    %4558 = vmatprep.subr.mxu0 %v186
    %4559 = vmatpush1.msra.mxu0 %v185
    %4560 = vmatprep.subr.mxu0 %v190
    %4561 = vmatpush1.msra.mxu0 %v189
    %4562 = vmatprep.subr.mxu0 %v194
    %4563 = vmatpush1.msra.mxu0 %v193
    %4564 = vmatprep.subr.mxu0 %v198
    %4565 = vmatpush1.msra.mxu0 %v197
    %4566 = vmatprep.subr.mxu0 %v202
    %4567 = vmatpush1.msra.mxu0 %v201
    %4568 = vmatprep.subr.mxu0 %v206
    %4569 = vmatpush1.msra.mxu0 %v205
    %4570 = vmatprep.subr.mxu0 %v210
    %4571 = vmatpush1.msra.mxu0 %v209
    %4572 = vmatprep.subr.mxu0 %v214
    %4573 = vmatpush1.msra.mxu0 %v213
    %4574 = vmatprep.subr.mxu0 %v218
    %4575 = vmatpush1.msra.mxu0 %v217
    %4576 = vmatprep.subr.mxu0 %v222
    %4577 = vmatpush1.msra.mxu0 %v221
    %4578 = vmatprep.subr.mxu0 %v226
    %4579 = vmatpush1.msra.mxu0 %v225
    %4580 = vmatprep.subr.mxu0 %v230
    %4581 = vmatpush1.msra.mxu0 %v229
    %4582 = vmatprep.subr.mxu0 %v234
    %4583 = vmatpush1.msra.mxu0 %v233
    %4584 = vmatprep.subr.mxu0 0.0
    %4585 = vmatpush1.msra.mxu0 0.0
    %4586 = vmatprep.subr.mxu0 0.0
    %4587 = vmatpush1.msra.mxu0 0.0
    %4588 = vmatprep.subr.mxu0 0.0
    %4589 = vmatpush1.msra.mxu0 0.0
    %4590 = vmatprep.subr.mxu0 0.0
    %4591 = vmatpush1.msra.mxu0 0.0
    %4592 = vmatprep.subr.mxu0 0.0
    %4593 = vmatpush1.msra.mxu0 0.0
    %4594 = vmatprep.subr.mxu0 0.0
    %4595 = vmatpush1.msra.mxu0 0.0
    %4596 = vmatprep.subr.mxu0 0.0
    %4597 = vmatpush1.msra.mxu0 0.0
    %4598 = vmatprep.subr.mxu0 0.0
    %4599 = vmatpush1.msra.mxu0 0.0
    %4600 = vmatprep.subr.mxu0 0.0
    %4601 = vmatpush1.msra.mxu0 0.0
    %4602 = vmatprep.subr.mxu0 0.0
    %4603 = vmatpush1.msra.mxu0 0.0
    %4604 = vmatprep.subr.mxu0 0.0
    %4605 = vmatpush1.msra.mxu0 0.0
    %4606 = vmatprep.subr.mxu0 0.0
    %4607 = vmatpush1.msra.mxu0 0.0
    %4608 = vmatprep.subr.mxu0 0.0
    %4609 = vmatpush1.msra.mxu0 0.0
    %4610 = vmatprep.subr.mxu0 0.0
    %4611 = vmatpush1.msra.mxu0 0.0
    %4612 = vmatprep.subr.mxu0 0.0
    %4613 = vmatpush1.msra.mxu0 0.0
    %4614 = vmatprep.subr.mxu0 0.0
    %4615 = vmatpush1.msra.mxu0 0.0
    %4616 = vmatprep.mubr.f32.mxu0 0.0
    %4617 = vmatmul.mubr.f32.gmra.mrb[0].mxu0 %v4324
    %v4618 = vpop.f32.mrb[0].mxu0
    %v4619 = vadd.f32 0.0, %v4618
    %v4620 = vpop.f32.mrb[0].mxu0
    %v4621 = vadd.f32 0.0, %v4620
    %4622 = vdwg.mxu0
    %4623 = vmatprep.subr.mxu0 %v176
    %4624 = vmatpush1.msra.mxu0 %v175
    %4625 = vmatprep.subr.mxu0 %v180
    %4626 = vmatpush1.msra.mxu0 %v179
    %4627 = vmatprep.subr.mxu0 %v184
    %4628 = vmatpush1.msra.mxu0 %v183
    %4629 = vmatprep.subr.mxu0 %v188
    %4630 = vmatpush1.msra.mxu0 %v187
    %4631 = vmatprep.subr.mxu0 %v192
    %4632 = vmatpush1.msra.mxu0 %v191
    %4633 = vmatprep.subr.mxu0 %v196
    %4634 = vmatpush1.msra.mxu0 %v195
    %4635 = vmatprep.subr.mxu0 %v200
    %4636 = vmatpush1.msra.mxu0 %v199
    %4637 = vmatprep.subr.mxu0 %v204
    %4638 = vmatpush1.msra.mxu0 %v203
    %4639 = vmatprep.subr.mxu0 %v208
    %4640 = vmatpush1.msra.mxu0 %v207
    %4641 = vmatprep.subr.mxu0 %v212
    %4642 = vmatpush1.msra.mxu0 %v211
    %4643 = vmatprep.subr.mxu0 %v216
    %4644 = vmatpush1.msra.mxu0 %v215
    %4645 = vmatprep.subr.mxu0 %v220
    %4646 = vmatpush1.msra.mxu0 %v219
    %4647 = vmatprep.subr.mxu0 %v224
    %4648 = vmatpush1.msra.mxu0 %v223
    %4649 = vmatprep.subr.mxu0 %v228
    %4650 = vmatpush1.msra.mxu0 %v227
    %4651 = vmatprep.subr.mxu0 %v232
    %4652 = vmatpush1.msra.mxu0 %v231
    %4653 = vmatprep.subr.mxu0 %v236
    %4654 = vmatpush1.msra.mxu0 %v235
    %4655 = vmatprep.subr.mxu0 0.0
    %4656 = vmatpush1.msra.mxu0 0.0
    %4657 = vmatprep.subr.mxu0 0.0
    %4658 = vmatpush1.msra.mxu0 0.0
    %4659 = vmatprep.subr.mxu0 0.0
    %4660 = vmatpush1.msra.mxu0 0.0
    %4661 = vmatprep.subr.mxu0 0.0
    %4662 = vmatpush1.msra.mxu0 0.0
    %4663 = vmatprep.subr.mxu0 0.0
    %4664 = vmatpush1.msra.mxu0 0.0
    %4665 = vmatprep.subr.mxu0 0.0
    %4666 = vmatpush1.msra.mxu0 0.0
    %4667 = vmatprep.subr.mxu0 0.0
    %4668 = vmatpush1.msra.mxu0 0.0
    %4669 = vmatprep.subr.mxu0 0.0
    %4670 = vmatpush1.msra.mxu0 0.0
    %4671 = vmatprep.subr.mxu0 0.0
    %4672 = vmatpush1.msra.mxu0 0.0
    %4673 = vmatprep.subr.mxu0 0.0
    %4674 = vmatpush1.msra.mxu0 0.0
    %4675 = vmatprep.subr.mxu0 0.0
    %4676 = vmatpush1.msra.mxu0 0.0
    %4677 = vmatprep.subr.mxu0 0.0
    %4678 = vmatpush1.msra.mxu0 0.0
    %4679 = vmatprep.subr.mxu0 0.0
    %4680 = vmatpush1.msra.mxu0 0.0
    %4681 = vmatprep.subr.mxu0 0.0
    %4682 = vmatpush1.msra.mxu0 0.0
    %4683 = vmatprep.subr.mxu0 0.0
    %4684 = vmatpush1.msra.mxu0 0.0
    %4685 = vmatprep.subr.mxu0 0.0
    %4686 = vmatpush1.msra.mxu0 0.0
    %4687 = vmatprep.mubr.f32.mxu0 0.0
    %4688 = vmatmul.mubr.f32.gmra.mrb[0].mxu0 %v4324
    %v4689 = vpop.f32.mrb[0].mxu0
    %v4690 = vadd.f32 0.0, %v4689
    %v4691 = vpop.f32.mrb[0].mxu0
    %v4692 = vadd.f32 0.0, %v4691
    %4693 = vdwg.mxu0
    %v4694 = vadd.f32 %v4548, %v4619
    %v4695 = vadd.f32 %v4549, %v4621
    %v4696 = vadd.f32 %v4550, %v4690
    %v4697 = vadd.f32 %v4551, %v4692
    %v4698 = vadd.f32 %v4694, %v3069
    %v4699 = vadd.f32 %v4695, %v3073
    %v4700 = vadd.f32 %v4696, %v3077
    %v4701 = vadd.f32 %v4697, %v3081
    %v4702 = vxor.u32 %v4698, 2147483648
    %v4703 = vmul.f32 %v4702, 1.442695
    %v4704 = vpow.pop %v4703
    %v4705 = vadd.f32 %v4704, 1.0
    %v4706 = vrcp.pop %v4705
    %v4707 = vmul.f32 1.0, %v4706
    %v4708 = vxor.u32 %v4699, 2147483648
    %v4709 = vmul.f32 %v4708, 1.442695
    %v4710 = vpow.pop %v4709
    %v4711 = vadd.f32 %v4710, 1.0
    %v4712 = vrcp.pop %v4711
    %v4713 = vmul.f32 1.0, %v4712
    %v4714 = vtanh.pop %v4700
    %v4715 = vxor.u32 %v4701, 2147483648
    %v4716 = vmul.f32 %v4715, 1.442695
    %v4717 = vpow.pop %v4716
    %v4718 = vadd.f32 %v4717, 1.0
    %v4719 = vrcp.pop %v4718
    %v4720 = vmul.f32 1.0, %v4719
    %v4721 = vmul.f32 %v4713, %v4322
    %v4722 = vmul.f32 %v4707, %v4714
    %v4723 = vadd.f32 %v4721, %v4722
    %v4724 = vtanh.pop %v4723
    %v4725 = vmul.f32 %v4720, %v4724
    %4726 = vmatprep.subr.mxu0 0.0
    %4727 = vmatpush1.msra.mxu0 %v255
    %4728 = vmatprep.subr.mxu0 0.0
    %4729 = vmatpush1.msra.mxu0 %v256
    %4730 = vmatprep.subr.mxu0 0.0
    %4731 = vmatpush1.msra.mxu0 %v257
    %4732 = vmatprep.subr.mxu0 0.0
    %4733 = vmatpush1.msra.mxu0 %v258
    %4734 = vmatprep.subr.mxu0 0.0
    %4735 = vmatpush1.msra.mxu0 %v259
    %4736 = vmatprep.subr.mxu0 0.0
    %4737 = vmatpush1.msra.mxu0 %v260
    %4738 = vmatprep.subr.mxu0 0.0
    %4739 = vmatpush1.msra.mxu0 %v261
    %4740 = vmatprep.subr.mxu0 0.0
    %4741 = vmatpush1.msra.mxu0 %v262
    %4742 = vmatprep.subr.mxu0 0.0
    %4743 = vmatpush1.msra.mxu0 %v263
    %4744 = vmatprep.subr.mxu0 0.0
    %4745 = vmatpush1.msra.mxu0 %v264
    %4746 = vmatprep.subr.mxu0 0.0
    %4747 = vmatpush1.msra.mxu0 %v265
    %4748 = vmatprep.subr.mxu0 0.0
    %4749 = vmatpush1.msra.mxu0 %v266
    %4750 = vmatprep.subr.mxu0 0.0
    %4751 = vmatpush1.msra.mxu0 %v267
    %4752 = vmatprep.subr.mxu0 0.0
    %4753 = vmatpush1.msra.mxu0 %v268
    %4754 = vmatprep.subr.mxu0 0.0
    %4755 = vmatpush1.msra.mxu0 %v269
    %4756 = vmatprep.subr.mxu0 0.0
    %4757 = vmatpush1.msra.mxu0 %v270
    %4758 = vmatprep.subr.mxu0 0.0
    %4759 = vmatpush1.msra.mxu0 0.0
    %4760 = vmatprep.subr.mxu0 0.0
    %4761 = vmatpush1.msra.mxu0 0.0
    %4762 = vmatprep.subr.mxu0 0.0
    %4763 = vmatpush1.msra.mxu0 0.0
    %4764 = vmatprep.subr.mxu0 0.0
    %4765 = vmatpush1.msra.mxu0 0.0
    %4766 = vmatprep.subr.mxu0 0.0
    %4767 = vmatpush1.msra.mxu0 0.0
    %4768 = vmatprep.subr.mxu0 0.0
    %4769 = vmatpush1.msra.mxu0 0.0
    %4770 = vmatprep.subr.mxu0 0.0
    %4771 = vmatpush1.msra.mxu0 0.0
    %4772 = vmatprep.subr.mxu0 0.0
    %4773 = vmatpush1.msra.mxu0 0.0
    %4774 = vmatprep.subr.mxu0 0.0
    %4775 = vmatpush1.msra.mxu0 0.0
    %4776 = vmatprep.subr.mxu0 0.0
    %4777 = vmatpush1.msra.mxu0 0.0
    %4778 = vmatprep.subr.mxu0 0.0
    %4779 = vmatpush1.msra.mxu0 0.0
    %4780 = vmatprep.subr.mxu0 0.0
    %4781 = vmatpush1.msra.mxu0 0.0
    %4782 = vmatprep.subr.mxu0 0.0
    %4783 = vmatpush1.msra.mxu0 0.0
    %4784 = vmatprep.subr.mxu0 0.0
    %4785 = vmatpush1.msra.mxu0 0.0
    %4786 = vmatprep.subr.mxu0 0.0
    %4787 = vmatpush1.msra.mxu0 0.0
    %4788 = vmatprep.subr.mxu0 0.0
    %4789 = vmatpush1.msra.mxu0 0.0
    %4790 = vmatprep.mubr.f32.mxu0 0.0
    %4791 = vmatmul.mubr.f32.gmra.mrb[0].mxu0 %v4725
    %v4792 = vpop.f32.mrb[0].mxu0
    %v4793 = vadd.f32 %v3118, %v4792
    %v4794 = vpop.f32.mrb[0].mxu0
    %4795 = vdwg.mxu0
    %v4796 = vld [vmem:[%s2479] sm:$0xff]
    %v4797 = vld [vmem:[%s2479 + $0x8] sm:$0xff]
    %v4798 = vld [vmem:[%s2479 + $0x10] sm:$0xff]
    %v4799 = vld [vmem:[%s2479 + $0x18] sm:$0xff]
    %v4800 = vld [vmem:[%s2479 + $0x20] sm:$0xff]
    %v4801 = vld [vmem:[%s2479 + $0x28] sm:$0xff]
    %v4802 = vld [vmem:[%s2479 + $0x30] sm:$0xff]
    %v4803 = vld [vmem:[%s2479 + $0x38] sm:$0xff]
    %v4804 = vadd.f32 %v4796, %v4793
    %v4805 = vadd.f32 %v4797, %v4793
    %v4806 = vadd.f32 %v4798, %v4793
    %v4807 = vadd.f32 %v4799, %v4793
    %v4808 = vadd.f32 %v4800, %v4793
    %v4809 = vadd.f32 %v4801, %v4793
    %v4810 = vadd.f32 %v4802, %v4793
    %v4811 = vadd.f32 %v4803, %v4793
    %v4812 = vtanh.pop %v4804
    %v4813 = vtanh.pop %v4805
    %v4814 = vtanh.pop %v4806
    %v4815 = vtanh.pop %v4807
    %v4816 = vtanh.pop %v4808
    %v4817 = vtanh.pop %v4809
    %v4818 = vtanh.pop %v4810
    %v4819 = vtanh.pop %v4811
    %v4820 = vmul.f32 %v4812, %v3218
    %v4821 = vmul.f32 %v4813, %v3218
    %v4822 = vmul.f32 %v4814, %v3218
    %v4823 = vmul.f32 %v4815, %v3218
    %v4824 = vmul.f32 %v4816, %v3218
    %v4825 = vmul.f32 %v4817, %v3218
    %v4826 = vmul.f32 %v4818, %v3218
    %v4827 = vmul.f32 %v4819, %v3218
    %4828 = vadd.xlane.f32.xlu0 %v4820
    %v4829 = vpop.xlane.xlu0 %4828
    %4830 = vadd.xlane.f32.xlu0 %v4821
    %v4831 = vpop.xlane.xlu0 %4830
    %4832 = vadd.xlane.f32.xlu0 %v4822
    %v4833 = vpop.xlane.xlu0 %4832
    %4834 = vadd.xlane.f32.xlu0 %v4823
    %v4835 = vpop.xlane.xlu0 %4834
    %4836 = vadd.xlane.f32.xlu0 %v4824
    %v4837 = vpop.xlane.xlu0 %4836
    %4838 = vadd.xlane.f32.xlu0 %v4825
    %v4839 = vpop.xlane.xlu0 %4838
    %4840 = vadd.xlane.f32.xlu0 %v4826
    %v4841 = vpop.xlane.xlu0 %4840
    %4842 = vadd.xlane.f32.xlu0 %v4827
    %v4843 = vpop.xlane.xlu0 %4842
    %v4844 = vmul.f32 %v4829, %v2873
    %v4845 = vmul.f32 %v4831, %v2874
    %v4846 = vmul.f32 %v4833, %v2875
    %v4847 = vmul.f32 %v4835, %v2876
    %v4848 = vmul.f32 %v4837, %v2877
    %v4849 = vmul.f32 %v4839, %v2878
    %v4850 = vmul.f32 %v4841, %v2879
    %v4851 = vmul.f32 %v4843, %v2880
    %4852 = vmatprep.subr.mxu0 0.0
    %4853 = vmatpush1.msra.mxu0 %v4844
    %4854 = vmatprep.subr.mxu0 0.0
    %4855 = vmatpush1.msra.mxu0 %v4845
    %4856 = vmatprep.subr.mxu0 0.0
    %4857 = vmatpush1.msra.mxu0 %v4846
    %4858 = vmatprep.subr.mxu0 0.0
    %4859 = vmatpush1.msra.mxu0 %v4847
    %4860 = vmatprep.subr.mxu0 0.0
    %4861 = vmatpush1.msra.mxu0 %v4848
    %4862 = vmatprep.subr.mxu0 0.0
    %4863 = vmatpush1.msra.mxu0 %v4849
    %4864 = vmatprep.subr.mxu0 0.0
    %4865 = vmatpush1.msra.mxu0 %v4850
    %4866 = vmatprep.subr.mxu0 0.0
    %4867 = vmatpush1.msra.mxu0 %v4851
    %4868 = vmatprep.subr.mxu0 0.0
    %4869 = vmatpush1.msra.mxu0 0.0
    %4870 = vmatprep.subr.mxu0 0.0
    %4871 = vmatpush1.msra.mxu0 0.0
    %4872 = vmatprep.subr.mxu0 0.0
    %4873 = vmatpush1.msra.mxu0 0.0
    %4874 = vmatprep.subr.mxu0 0.0
    %4875 = vmatpush1.msra.mxu0 0.0
    %4876 = vmatprep.subr.mxu0 0.0
    %4877 = vmatpush1.msra.mxu0 0.0
    %4878 = vmatprep.subr.mxu0 0.0
    %4879 = vmatpush1.msra.mxu0 0.0
    %4880 = vmatprep.subr.mxu0 0.0
    %4881 = vmatpush1.msra.mxu0 0.0
    %4882 = vmatprep.subr.mxu0 0.0
    %4883 = vmatpush1.msra.mxu0 0.0
    %4884 = vmatprep.subr.mxu0 0.0
    %4885 = vmatpush1.msra.mxu0 0.0
    %4886 = vmatprep.subr.mxu0 0.0
    %4887 = vmatpush1.msra.mxu0 0.0
    %4888 = vmatprep.subr.mxu0 0.0
    %4889 = vmatpush1.msra.mxu0 0.0
    %4890 = vmatprep.subr.mxu0 0.0
    %4891 = vmatpush1.msra.mxu0 0.0
    %4892 = vmatprep.subr.mxu0 0.0
    %4893 = vmatpush1.msra.mxu0 0.0
    %4894 = vmatprep.subr.mxu0 0.0
    %4895 = vmatpush1.msra.mxu0 0.0
    %4896 = vmatprep.subr.mxu0 0.0
    %4897 = vmatpush1.msra.mxu0 0.0
    %4898 = vmatprep.subr.mxu0 0.0
    %4899 = vmatpush1.msra.mxu0 0.0
    %4900 = vmatprep.subr.mxu0 0.0
    %4901 = vmatpush1.msra.mxu0 0.0
    %4902 = vmatprep.subr.mxu0 0.0
    %4903 = vmatpush1.msra.mxu0 0.0
    %4904 = vmatprep.subr.mxu0 0.0
    %4905 = vmatpush1.msra.mxu0 0.0
    %4906 = vmatprep.subr.mxu0 0.0
    %4907 = vmatpush1.msra.mxu0 0.0
    %4908 = vmatprep.subr.mxu0 0.0
    %4909 = vmatpush1.msra.mxu0 0.0
    %4910 = vmatprep.subr.mxu0 0.0
    %4911 = vmatpush1.msra.mxu0 0.0
    %4912 = vmatprep.subr.mxu0 0.0
    %4913 = vmatpush1.msra.mxu0 0.0
    %4914 = vmatprep.subr.mxu0 0.0
    %4915 = vmatpush1.msra.mxu0 0.0
    %4916 = vmatprep.mubr.f32.mxu0 0.0
    %4917 = vmatmul.mubr.f32.gmra.mrb[0].mxu0 %v3254
    %v4918 = vpop.f32.mrb[0].mxu0
    %v4919 = vadd.f32 0.0, %v4918
    %v4920 = vpop.f32.mrb[0].mxu0
    %4921 = vdwg.mxu0
    %v4922 = vsub.f32 %v4919, 1000.0
    %v4923 = vsel %vm2835, %v4919, %v4922
    %v4924 = vsel %vm3328, %v4923, -inf
    %4925 = vmax.xlane.f32.xlu0 %v4924
    %v4926 = vpop.xlane.xlu0 %4925
    %v4927 = vsub.f32 %v4923, %v4926
    %v4928 = vmul.f32 %v4927, 1.442695
    %v4929 = vpow.pop %v4928
    %v4930 = vsel %vm3328, %v4929, 0.0
    %4931 = vadd.xlane.f32.xlu0 %v4930
    %v4932 = vpop.xlane.xlu0 %4931
    %v4933 = vrcp.pop %v4932
    %v4934 = vmul.f32 %v4929, %v4933
    %s4935 = scalar_lea.vmem [#allocation13], 32
    %4936 = vst.msk [vmem:[%s4935] sm:$0xff] %vm3328, %v4934
    %vm4937 = vcmp.eq.f32.partialorder %v4923, %v4926
    %v4938 = vsel %vm4937, %v2832, 8.0
    %v4939 = vsel %vm3328, %v4938, inf
    %4940 = vmin.xlane.f32.xlu0 %v4939
    %v4941 = vpop.xlane.xlu0 %4940
    %vm4942 = vcmp.eq.f32.partialorder %v2832, %v4941
    %v4943 = vsel %vm4942, 1, 0
    %v4944 = vcvt.s32.f32 %v4943
    %v4945 = vmul.f32 %v4944, %v2834
    %v4946 = vsel %vm3328, %v4945, 0.0
    %4947 = vadd.xlane.f32.xlu0 %v4946
    %v4948 = vpop.xlane.xlu0 %4947
    %v4949 = vmul.f32 %v4948, %v2898
    %v4950 = vmul.f32 %v4948, %v2902
    %v4951 = vmul.f32 %v4948, %v2906
    %v4952 = vmul.f32 %v4948, %v2910
    %4953 = vmatprep.subr.mxu0 %v174
    %4954 = vmatpush1.msra.mxu0 %v173
    %4955 = vmatprep.subr.mxu0 %v178
    %4956 = vmatpush1.msra.mxu0 %v177
    %4957 = vmatprep.subr.mxu0 %v182
    %4958 = vmatpush1.msra.mxu0 %v181
    %4959 = vmatprep.subr.mxu0 %v186
    %4960 = vmatpush1.msra.mxu0 %v185
    %4961 = vmatprep.subr.mxu0 %v190
    %4962 = vmatpush1.msra.mxu0 %v189
    %4963 = vmatprep.subr.mxu0 %v194
    %4964 = vmatpush1.msra.mxu0 %v193
    %4965 = vmatprep.subr.mxu0 %v198
    %4966 = vmatpush1.msra.mxu0 %v197
    %4967 = vmatprep.subr.mxu0 %v202
    %4968 = vmatpush1.msra.mxu0 %v201
    %4969 = vmatprep.subr.mxu0 %v206
    %4970 = vmatpush1.msra.mxu0 %v205
    %4971 = vmatprep.subr.mxu0 %v210
    %4972 = vmatpush1.msra.mxu0 %v209
    %4973 = vmatprep.subr.mxu0 %v214
    %4974 = vmatpush1.msra.mxu0 %v213
    %4975 = vmatprep.subr.mxu0 %v218
    %4976 = vmatpush1.msra.mxu0 %v217
    %4977 = vmatprep.subr.mxu0 %v222
    %4978 = vmatpush1.msra.mxu0 %v221
    %4979 = vmatprep.subr.mxu0 %v226
    %4980 = vmatpush1.msra.mxu0 %v225
    %4981 = vmatprep.subr.mxu0 %v230
    %4982 = vmatpush1.msra.mxu0 %v229
    %4983 = vmatprep.subr.mxu0 %v234
    %4984 = vmatpush1.msra.mxu0 %v233
    %4985 = vmatprep.subr.mxu0 0.0
    %4986 = vmatpush1.msra.mxu0 0.0
    %4987 = vmatprep.subr.mxu0 0.0
    %4988 = vmatpush1.msra.mxu0 0.0
    %4989 = vmatprep.subr.mxu0 0.0
    %4990 = vmatpush1.msra.mxu0 0.0
    %4991 = vmatprep.subr.mxu0 0.0
    %4992 = vmatpush1.msra.mxu0 0.0
    %4993 = vmatprep.subr.mxu0 0.0
    %4994 = vmatpush1.msra.mxu0 0.0
    %4995 = vmatprep.subr.mxu0 0.0
    %4996 = vmatpush1.msra.mxu0 0.0
    %4997 = vmatprep.subr.mxu0 0.0
    %4998 = vmatpush1.msra.mxu0 0.0
    %4999 = vmatprep.subr.mxu0 0.0
    %5000 = vmatpush1.msra.mxu0 0.0
    %5001 = vmatprep.subr.mxu0 0.0
    %5002 = vmatpush1.msra.mxu0 0.0
    %5003 = vmatprep.subr.mxu0 0.0
    %5004 = vmatpush1.msra.mxu0 0.0
    %5005 = vmatprep.subr.mxu0 0.0
    %5006 = vmatpush1.msra.mxu0 0.0
    %5007 = vmatprep.subr.mxu0 0.0
    %5008 = vmatpush1.msra.mxu0 0.0
    %5009 = vmatprep.subr.mxu0 0.0
    %5010 = vmatpush1.msra.mxu0 0.0
    %5011 = vmatprep.subr.mxu0 0.0
    %5012 = vmatpush1.msra.mxu0 0.0
    %5013 = vmatprep.subr.mxu0 0.0
    %5014 = vmatpush1.msra.mxu0 0.0
    %5015 = vmatprep.subr.mxu0 0.0
    %5016 = vmatpush1.msra.mxu0 0.0
    %5017 = vmatprep.mubr.f32.mxu0 0.0
    %5018 = vmatmul.mubr.f32.gmra.mrb[0].mxu0 %v4725
    %v5019 = vpop.f32.mrb[0].mxu0
    %v5020 = vadd.f32 0.0, %v5019
    %v5021 = vpop.f32.mrb[0].mxu0
    %v5022 = vadd.f32 0.0, %v5021
    %5023 = vdwg.mxu0
    %5024 = vmatprep.subr.mxu0 %v176
    %5025 = vmatpush1.msra.mxu0 %v175
    %5026 = vmatprep.subr.mxu0 %v180
    %5027 = vmatpush1.msra.mxu0 %v179
    %5028 = vmatprep.subr.mxu0 %v184
    %5029 = vmatpush1.msra.mxu0 %v183
    %5030 = vmatprep.subr.mxu0 %v188
    %5031 = vmatpush1.msra.mxu0 %v187
    %5032 = vmatprep.subr.mxu0 %v192
    %5033 = vmatpush1.msra.mxu0 %v191
    %5034 = vmatprep.subr.mxu0 %v196
    %5035 = vmatpush1.msra.mxu0 %v195
    %5036 = vmatprep.subr.mxu0 %v200
    %5037 = vmatpush1.msra.mxu0 %v199
    %5038 = vmatprep.subr.mxu0 %v204
    %5039 = vmatpush1.msra.mxu0 %v203
    %5040 = vmatprep.subr.mxu0 %v208
    %5041 = vmatpush1.msra.mxu0 %v207
    %5042 = vmatprep.subr.mxu0 %v212
    %5043 = vmatpush1.msra.mxu0 %v211
    %5044 = vmatprep.subr.mxu0 %v216
    %5045 = vmatpush1.msra.mxu0 %v215
    %5046 = vmatprep.subr.mxu0 %v220
    %5047 = vmatpush1.msra.mxu0 %v219
    %5048 = vmatprep.subr.mxu0 %v224
    %5049 = vmatpush1.msra.mxu0 %v223
    %5050 = vmatprep.subr.mxu0 %v228
    %5051 = vmatpush1.msra.mxu0 %v227
    %5052 = vmatprep.subr.mxu0 %v232
    %5053 = vmatpush1.msra.mxu0 %v231
    %5054 = vmatprep.subr.mxu0 %v236
    %5055 = vmatpush1.msra.mxu0 %v235
    %5056 = vmatprep.subr.mxu0 0.0
    %5057 = vmatpush1.msra.mxu0 0.0
    %5058 = vmatprep.subr.mxu0 0.0
    %5059 = vmatpush1.msra.mxu0 0.0
    %5060 = vmatprep.subr.mxu0 0.0
    %5061 = vmatpush1.msra.mxu0 0.0
    %5062 = vmatprep.subr.mxu0 0.0
    %5063 = vmatpush1.msra.mxu0 0.0
    %5064 = vmatprep.subr.mxu0 0.0
    %5065 = vmatpush1.msra.mxu0 0.0
    %5066 = vmatprep.subr.mxu0 0.0
    %5067 = vmatpush1.msra.mxu0 0.0
    %5068 = vmatprep.subr.mxu0 0.0
    %5069 = vmatpush1.msra.mxu0 0.0
    %5070 = vmatprep.subr.mxu0 0.0
    %5071 = vmatpush1.msra.mxu0 0.0
    %5072 = vmatprep.subr.mxu0 0.0
    %5073 = vmatpush1.msra.mxu0 0.0
    %5074 = vmatprep.subr.mxu0 0.0
    %5075 = vmatpush1.msra.mxu0 0.0
    %5076 = vmatprep.subr.mxu0 0.0
    %5077 = vmatpush1.msra.mxu0 0.0
    %5078 = vmatprep.subr.mxu0 0.0
    %5079 = vmatpush1.msra.mxu0 0.0
    %5080 = vmatprep.subr.mxu0 0.0
    %5081 = vmatpush1.msra.mxu0 0.0
    %5082 = vmatprep.subr.mxu0 0.0
    %5083 = vmatpush1.msra.mxu0 0.0
    %5084 = vmatprep.subr.mxu0 0.0
    %5085 = vmatpush1.msra.mxu0 0.0
    %5086 = vmatprep.subr.mxu0 0.0
    %5087 = vmatpush1.msra.mxu0 0.0
    %5088 = vmatprep.mubr.f32.mxu0 0.0
    %5089 = vmatmul.mubr.f32.gmra.mrb[0].mxu0 %v4725
    %v5090 = vpop.f32.mrb[0].mxu0
    %v5091 = vadd.f32 0.0, %v5090
    %v5092 = vpop.f32.mrb[0].mxu0
    %v5093 = vadd.f32 0.0, %v5092
    %5094 = vdwg.mxu0
    %v5095 = vadd.f32 %v4949, %v5020
    %v5096 = vadd.f32 %v4950, %v5022
    %v5097 = vadd.f32 %v4951, %v5091
    %v5098 = vadd.f32 %v4952, %v5093
    %v5099 = vadd.f32 %v5095, %v3069
    %v5100 = vadd.f32 %v5096, %v3073
    %v5101 = vadd.f32 %v5097, %v3077
    %v5102 = vadd.f32 %v5098, %v3081
    %v5103 = vxor.u32 %v5099, 2147483648
    %v5104 = vmul.f32 %v5103, 1.442695
    %v5105 = vpow.pop %v5104
    %v5106 = vadd.f32 %v5105, 1.0
    %v5107 = vrcp.pop %v5106
    %v5108 = vmul.f32 1.0, %v5107
    %v5109 = vxor.u32 %v5100, 2147483648
    %v5110 = vmul.f32 %v5109, 1.442695
    %v5111 = vpow.pop %v5110
    %v5112 = vadd.f32 %v5111, 1.0
    %v5113 = vrcp.pop %v5112
    %v5114 = vmul.f32 1.0, %v5113
    %v5115 = vtanh.pop %v5101
    %v5116 = vxor.u32 %v5102, 2147483648
    %v5117 = vmul.f32 %v5116, 1.442695
    %v5118 = vpow.pop %v5117
    %v5119 = vadd.f32 %v5118, 1.0
    %v5120 = vrcp.pop %v5119
    %v5121 = vmul.f32 1.0, %v5120
    %v5122 = vmul.f32 %v5114, %v4723
    %v5123 = vmul.f32 %v5108, %v5115
    %v5124 = vadd.f32 %v5122, %v5123
    %v5125 = vtanh.pop %v5124
    %v5126 = vmul.f32 %v5121, %v5125
    %5127 = vmatprep.subr.mxu0 0.0
    %5128 = vmatpush1.msra.mxu0 %v255
    %5129 = vmatprep.subr.mxu0 0.0
    %5130 = vmatpush1.msra.mxu0 %v256
    %5131 = vmatprep.subr.mxu0 0.0
    %5132 = vmatpush1.msra.mxu0 %v257
    %5133 = vmatprep.subr.mxu0 0.0
    %5134 = vmatpush1.msra.mxu0 %v258
    %5135 = vmatprep.subr.mxu0 0.0
    %5136 = vmatpush1.msra.mxu0 %v259
    %5137 = vmatprep.subr.mxu0 0.0
    %5138 = vmatpush1.msra.mxu0 %v260
    %5139 = vmatprep.subr.mxu0 0.0
    %5140 = vmatpush1.msra.mxu0 %v261
    %5141 = vmatprep.subr.mxu0 0.0
    %5142 = vmatpush1.msra.mxu0 %v262
    %5143 = vmatprep.subr.mxu0 0.0
    %5144 = vmatpush1.msra.mxu0 %v263
    %5145 = vmatprep.subr.mxu0 0.0
    %5146 = vmatpush1.msra.mxu0 %v264
    %5147 = vmatprep.subr.mxu0 0.0
    %5148 = vmatpush1.msra.mxu0 %v265
    %5149 = vmatprep.subr.mxu0 0.0
    %5150 = vmatpush1.msra.mxu0 %v266
    %5151 = vmatprep.subr.mxu0 0.0
    %5152 = vmatpush1.msra.mxu0 %v267
    %5153 = vmatprep.subr.mxu0 0.0
    %5154 = vmatpush1.msra.mxu0 %v268
    %5155 = vmatprep.subr.mxu0 0.0
    %5156 = vmatpush1.msra.mxu0 %v269
    %5157 = vmatprep.subr.mxu0 0.0
    %5158 = vmatpush1.msra.mxu0 %v270
    %5159 = vmatprep.subr.mxu0 0.0
    %5160 = vmatpush1.msra.mxu0 0.0
    %5161 = vmatprep.subr.mxu0 0.0
    %5162 = vmatpush1.msra.mxu0 0.0
    %5163 = vmatprep.subr.mxu0 0.0
    %5164 = vmatpush1.msra.mxu0 0.0
    %5165 = vmatprep.subr.mxu0 0.0
    %5166 = vmatpush1.msra.mxu0 0.0
    %5167 = vmatprep.subr.mxu0 0.0
    %5168 = vmatpush1.msra.mxu0 0.0
    %5169 = vmatprep.subr.mxu0 0.0
    %5170 = vmatpush1.msra.mxu0 0.0
    %5171 = vmatprep.subr.mxu0 0.0
    %5172 = vmatpush1.msra.mxu0 0.0
    %5173 = vmatprep.subr.mxu0 0.0
    %5174 = vmatpush1.msra.mxu0 0.0
    %5175 = vmatprep.subr.mxu0 0.0
    %5176 = vmatpush1.msra.mxu0 0.0
    %5177 = vmatprep.subr.mxu0 0.0
    %5178 = vmatpush1.msra.mxu0 0.0
    %5179 = vmatprep.subr.mxu0 0.0
    %5180 = vmatpush1.msra.mxu0 0.0
    %5181 = vmatprep.subr.mxu0 0.0
    %5182 = vmatpush1.msra.mxu0 0.0
    %5183 = vmatprep.subr.mxu0 0.0
    %5184 = vmatpush1.msra.mxu0 0.0
    %5185 = vmatprep.subr.mxu0 0.0
    %5186 = vmatpush1.msra.mxu0 0.0
    %5187 = vmatprep.subr.mxu0 0.0
    %5188 = vmatpush1.msra.mxu0 0.0
    %5189 = vmatprep.subr.mxu0 0.0
    %5190 = vmatpush1.msra.mxu0 0.0
    %5191 = vmatprep.mubr.f32.mxu0 0.0
    %5192 = vmatmul.mubr.f32.gmra.mrb[0].mxu0 %v5126
    %v5193 = vpop.f32.mrb[0].mxu0
    %v5194 = vadd.f32 %v3118, %v5193
    %v5195 = vpop.f32.mrb[0].mxu0
    %5196 = vdwg.mxu0
    %v5197 = vld [vmem:[%s2593] sm:$0xff]
    %v5198 = vld [vmem:[%s2593 + $0x8] sm:$0xff]
    %v5199 = vld [vmem:[%s2593 + $0x10] sm:$0xff]
    %v5200 = vld [vmem:[%s2593 + $0x18] sm:$0xff]
    %v5201 = vld [vmem:[%s2593 + $0x20] sm:$0xff]
    %v5202 = vld [vmem:[%s2593 + $0x28] sm:$0xff]
    %v5203 = vld [vmem:[%s2593 + $0x30] sm:$0xff]
    %v5204 = vld [vmem:[%s2593 + $0x38] sm:$0xff]
    %v5205 = vadd.f32 %v5197, %v5194
    %v5206 = vadd.f32 %v5198, %v5194
    %v5207 = vadd.f32 %v5199, %v5194
    %v5208 = vadd.f32 %v5200, %v5194
    %v5209 = vadd.f32 %v5201, %v5194
    %v5210 = vadd.f32 %v5202, %v5194
    %v5211 = vadd.f32 %v5203, %v5194
    %v5212 = vadd.f32 %v5204, %v5194
    %v5213 = vtanh.pop %v5205
    %v5214 = vtanh.pop %v5206
    %v5215 = vtanh.pop %v5207
    %v5216 = vtanh.pop %v5208
    %v5217 = vtanh.pop %v5209
    %v5218 = vtanh.pop %v5210
    %v5219 = vtanh.pop %v5211
    %v5220 = vtanh.pop %v5212
    %v5221 = vmul.f32 %v5213, %v3218
    %v5222 = vmul.f32 %v5214, %v3218
    %v5223 = vmul.f32 %v5215, %v3218
    %v5224 = vmul.f32 %v5216, %v3218
    %v5225 = vmul.f32 %v5217, %v3218
    %v5226 = vmul.f32 %v5218, %v3218
    %v5227 = vmul.f32 %v5219, %v3218
    %v5228 = vmul.f32 %v5220, %v3218
    %5229 = vadd.xlane.f32.xlu0 %v5221
    %v5230 = vpop.xlane.xlu0 %5229
    %5231 = vadd.xlane.f32.xlu0 %v5222
    %v5232 = vpop.xlane.xlu0 %5231
    %5233 = vadd.xlane.f32.xlu0 %v5223
    %v5234 = vpop.xlane.xlu0 %5233
    %5235 = vadd.xlane.f32.xlu0 %v5224
    %v5236 = vpop.xlane.xlu0 %5235
    %5237 = vadd.xlane.f32.xlu0 %v5225
    %v5238 = vpop.xlane.xlu0 %5237
    %5239 = vadd.xlane.f32.xlu0 %v5226
    %v5240 = vpop.xlane.xlu0 %5239
    %5241 = vadd.xlane.f32.xlu0 %v5227
    %v5242 = vpop.xlane.xlu0 %5241
    %5243 = vadd.xlane.f32.xlu0 %v5228
    %v5244 = vpop.xlane.xlu0 %5243
    %v5245 = vmul.f32 %v5230, %v2873
    %v5246 = vmul.f32 %v5232, %v2874
    %v5247 = vmul.f32 %v5234, %v2875
    %v5248 = vmul.f32 %v5236, %v2876
    %v5249 = vmul.f32 %v5238, %v2877
    %v5250 = vmul.f32 %v5240, %v2878
    %v5251 = vmul.f32 %v5242, %v2879
    %v5252 = vmul.f32 %v5244, %v2880
    %5253 = vmatprep.subr.mxu0 0.0
    %5254 = vmatpush1.msra.mxu0 %v5245
    %5255 = vmatprep.subr.mxu0 0.0
    %5256 = vmatpush1.msra.mxu0 %v5246
    %5257 = vmatprep.subr.mxu0 0.0
    %5258 = vmatpush1.msra.mxu0 %v5247
    %5259 = vmatprep.subr.mxu0 0.0
    %5260 = vmatpush1.msra.mxu0 %v5248
    %5261 = vmatprep.subr.mxu0 0.0
    %5262 = vmatpush1.msra.mxu0 %v5249
    %5263 = vmatprep.subr.mxu0 0.0
    %5264 = vmatpush1.msra.mxu0 %v5250
    %5265 = vmatprep.subr.mxu0 0.0
    %5266 = vmatpush1.msra.mxu0 %v5251
    %5267 = vmatprep.subr.mxu0 0.0
    %5268 = vmatpush1.msra.mxu0 %v5252
    %5269 = vmatprep.subr.mxu0 0.0
    %5270 = vmatpush1.msra.mxu0 0.0
    %5271 = vmatprep.subr.mxu0 0.0
    %5272 = vmatpush1.msra.mxu0 0.0
    %5273 = vmatprep.subr.mxu0 0.0
    %5274 = vmatpush1.msra.mxu0 0.0
    %5275 = vmatprep.subr.mxu0 0.0
    %5276 = vmatpush1.msra.mxu0 0.0
    %5277 = vmatprep.subr.mxu0 0.0
    %5278 = vmatpush1.msra.mxu0 0.0
    %5279 = vmatprep.subr.mxu0 0.0
    %5280 = vmatpush1.msra.mxu0 0.0
    %5281 = vmatprep.subr.mxu0 0.0
    %5282 = vmatpush1.msra.mxu0 0.0
    %5283 = vmatprep.subr.mxu0 0.0
    %5284 = vmatpush1.msra.mxu0 0.0
    %5285 = vmatprep.subr.mxu0 0.0
    %5286 = vmatpush1.msra.mxu0 0.0
    %5287 = vmatprep.subr.mxu0 0.0
    %5288 = vmatpush1.msra.mxu0 0.0
    %5289 = vmatprep.subr.mxu0 0.0
    %5290 = vmatpush1.msra.mxu0 0.0
    %5291 = vmatprep.subr.mxu0 0.0
    %5292 = vmatpush1.msra.mxu0 0.0
    %5293 = vmatprep.subr.mxu0 0.0
    %5294 = vmatpush1.msra.mxu0 0.0
    %5295 = vmatprep.subr.mxu0 0.0
    %5296 = vmatpush1.msra.mxu0 0.0
    %5297 = vmatprep.subr.mxu0 0.0
    %5298 = vmatpush1.msra.mxu0 0.0
    %5299 = vmatprep.subr.mxu0 0.0
    %5300 = vmatpush1.msra.mxu0 0.0
    %5301 = vmatprep.subr.mxu0 0.0
    %5302 = vmatpush1.msra.mxu0 0.0
    %5303 = vmatprep.subr.mxu0 0.0
    %5304 = vmatpush1.msra.mxu0 0.0
    %5305 = vmatprep.subr.mxu0 0.0
    %5306 = vmatpush1.msra.mxu0 0.0
    %5307 = vmatprep.subr.mxu0 0.0
    %5308 = vmatpush1.msra.mxu0 0.0
    %5309 = vmatprep.subr.mxu0 0.0
    %5310 = vmatpush1.msra.mxu0 0.0
    %5311 = vmatprep.subr.mxu0 0.0
    %5312 = vmatpush1.msra.mxu0 0.0
    %5313 = vmatprep.subr.mxu0 0.0
    %5314 = vmatpush1.msra.mxu0 0.0
    %5315 = vmatprep.subr.mxu0 0.0
    %5316 = vmatpush1.msra.mxu0 0.0
    %5317 = vmatprep.mubr.f32.mxu0 0.0
    %5318 = vmatmul.mubr.f32.gmra.mrb[0].mxu0 %v3254
    %v5319 = vpop.f32.mrb[0].mxu0
    %v5320 = vadd.f32 0.0, %v5319
    %v5321 = vpop.f32.mrb[0].mxu0
    %5322 = vdwg.mxu0
    %v5323 = vsub.f32 %v5320, 1000.0
    %v5324 = vsel %vm2835, %v5320, %v5323
    %v5325 = vsel %vm3328, %v5324, -inf
    %5326 = vmax.xlane.f32.xlu0 %v5325
    %v5327 = vpop.xlane.xlu0 %5326
    %v5328 = vsub.f32 %v5324, %v5327
    %v5329 = vmul.f32 %v5328, 1.442695
    %v5330 = vpow.pop %v5329
    %v5331 = vsel %vm3328, %v5330, 0.0
    %5332 = vadd.xlane.f32.xlu0 %v5331
    %v5333 = vpop.xlane.xlu0 %5332
    %v5334 = vrcp.pop %v5333
    %v5335 = vmul.f32 %v5330, %v5334
    %s5336 = scalar_lea.vmem [#allocation13], 40
    %5337 = vst.msk [vmem:[%s5336] sm:$0xff] %vm3328, %v5335
    %vm5338 = vcmp.eq.f32.partialorder %v5324, %v5327
    %v5339 = vsel %vm5338, %v2832, 8.0
    %v5340 = vsel %vm3328, %v5339, inf
    %5341 = vmin.xlane.f32.xlu0 %v5340
    %v5342 = vpop.xlane.xlu0 %5341
    %vm5343 = vcmp.eq.f32.partialorder %v2832, %v5342
    %v5344 = vsel %vm5343, 1, 0
    %v5345 = vcvt.s32.f32 %v5344
    %v5346 = vmul.f32 %v5345, %v2834
    %v5347 = vsel %vm3328, %v5346, 0.0
    %5348 = vadd.xlane.f32.xlu0 %v5347
    %v5349 = vpop.xlane.xlu0 %5348
    %v5350 = vmul.f32 %v5349, %v2898
    %v5351 = vmul.f32 %v5349, %v2902
    %v5352 = vmul.f32 %v5349, %v2906
    %v5353 = vmul.f32 %v5349, %v2910
    %5354 = vmatprep.subr.mxu0 %v174
    %5355 = vmatpush1.msra.mxu0 %v173
    %5356 = vmatprep.subr.mxu0 %v178
    %5357 = vmatpush1.msra.mxu0 %v177
    %5358 = vmatprep.subr.mxu0 %v182
    %5359 = vmatpush1.msra.mxu0 %v181
    %5360 = vmatprep.subr.mxu0 %v186
    %5361 = vmatpush1.msra.mxu0 %v185
    %5362 = vmatprep.subr.mxu0 %v190
    %5363 = vmatpush1.msra.mxu0 %v189
    %5364 = vmatprep.subr.mxu0 %v194
    %5365 = vmatpush1.msra.mxu0 %v193
    %5366 = vmatprep.subr.mxu0 %v198
    %5367 = vmatpush1.msra.mxu0 %v197
    %5368 = vmatprep.subr.mxu0 %v202
    %5369 = vmatpush1.msra.mxu0 %v201
    %5370 = vmatprep.subr.mxu0 %v206
    %5371 = vmatpush1.msra.mxu0 %v205
    %5372 = vmatprep.subr.mxu0 %v210
    %5373 = vmatpush1.msra.mxu0 %v209
    %5374 = vmatprep.subr.mxu0 %v214
    %5375 = vmatpush1.msra.mxu0 %v213
    %5376 = vmatprep.subr.mxu0 %v218
    %5377 = vmatpush1.msra.mxu0 %v217
    %5378 = vmatprep.subr.mxu0 %v222
    %5379 = vmatpush1.msra.mxu0 %v221
    %5380 = vmatprep.subr.mxu0 %v226
    %5381 = vmatpush1.msra.mxu0 %v225
    %5382 = vmatprep.subr.mxu0 %v230
    %5383 = vmatpush1.msra.mxu0 %v229
    %5384 = vmatprep.subr.mxu0 %v234
    %5385 = vmatpush1.msra.mxu0 %v233
    %5386 = vmatprep.subr.mxu0 0.0
    %5387 = vmatpush1.msra.mxu0 0.0
    %5388 = vmatprep.subr.mxu0 0.0
    %5389 = vmatpush1.msra.mxu0 0.0
    %5390 = vmatprep.subr.mxu0 0.0
    %5391 = vmatpush1.msra.mxu0 0.0
    %5392 = vmatprep.subr.mxu0 0.0
    %5393 = vmatpush1.msra.mxu0 0.0
    %5394 = vmatprep.subr.mxu0 0.0
    %5395 = vmatpush1.msra.mxu0 0.0
    %5396 = vmatprep.subr.mxu0 0.0
    %5397 = vmatpush1.msra.mxu0 0.0
    %5398 = vmatprep.subr.mxu0 0.0
    %5399 = vmatpush1.msra.mxu0 0.0
    %5400 = vmatprep.subr.mxu0 0.0
    %5401 = vmatpush1.msra.mxu0 0.0
    %5402 = vmatprep.subr.mxu0 0.0
    %5403 = vmatpush1.msra.mxu0 0.0
    %5404 = vmatprep.subr.mxu0 0.0
    %5405 = vmatpush1.msra.mxu0 0.0
    %5406 = vmatprep.subr.mxu0 0.0
    %5407 = vmatpush1.msra.mxu0 0.0
    %5408 = vmatprep.subr.mxu0 0.0
    %5409 = vmatpush1.msra.mxu0 0.0
    %5410 = vmatprep.subr.mxu0 0.0
    %5411 = vmatpush1.msra.mxu0 0.0
    %5412 = vmatprep.subr.mxu0 0.0
    %5413 = vmatpush1.msra.mxu0 0.0
    %5414 = vmatprep.subr.mxu0 0.0
    %5415 = vmatpush1.msra.mxu0 0.0
    %5416 = vmatprep.subr.mxu0 0.0
    %5417 = vmatpush1.msra.mxu0 0.0
    %5418 = vmatprep.mubr.f32.mxu0 0.0
    %5419 = vmatmul.mubr.f32.gmra.mrb[0].mxu0 %v5126
    %v5420 = vpop.f32.mrb[0].mxu0
    %v5421 = vadd.f32 0.0, %v5420
    %v5422 = vpop.f32.mrb[0].mxu0
    %v5423 = vadd.f32 0.0, %v5422
    %5424 = vdwg.mxu0
    %5425 = vmatprep.subr.mxu0 %v176
    %5426 = vmatpush1.msra.mxu0 %v175
    %5427 = vmatprep.subr.mxu0 %v180
    %5428 = vmatpush1.msra.mxu0 %v179
    %5429 = vmatprep.subr.mxu0 %v184
    %5430 = vmatpush1.msra.mxu0 %v183
    %5431 = vmatprep.subr.mxu0 %v188
    %5432 = vmatpush1.msra.mxu0 %v187
    %5433 = vmatprep.subr.mxu0 %v192
    %5434 = vmatpush1.msra.mxu0 %v191
    %5435 = vmatprep.subr.mxu0 %v196
    %5436 = vmatpush1.msra.mxu0 %v195
    %5437 = vmatprep.subr.mxu0 %v200
    %5438 = vmatpush1.msra.mxu0 %v199
    %5439 = vmatprep.subr.mxu0 %v204
    %5440 = vmatpush1.msra.mxu0 %v203
    %5441 = vmatprep.subr.mxu0 %v208
    %5442 = vmatpush1.msra.mxu0 %v207
    %5443 = vmatprep.subr.mxu0 %v212
    %5444 = vmatpush1.msra.mxu0 %v211
    %5445 = vmatprep.subr.mxu0 %v216
    %5446 = vmatpush1.msra.mxu0 %v215
    %5447 = vmatprep.subr.mxu0 %v220
    %5448 = vmatpush1.msra.mxu0 %v219
    %5449 = vmatprep.subr.mxu0 %v224
    %5450 = vmatpush1.msra.mxu0 %v223
    %5451 = vmatprep.subr.mxu0 %v228
    %5452 = vmatpush1.msra.mxu0 %v227
    %5453 = vmatprep.subr.mxu0 %v232
    %5454 = vmatpush1.msra.mxu0 %v231
    %5455 = vmatprep.subr.mxu0 %v236
    %5456 = vmatpush1.msra.mxu0 %v235
    %5457 = vmatprep.subr.mxu0 0.0
    %5458 = vmatpush1.msra.mxu0 0.0
    %5459 = vmatprep.subr.mxu0 0.0
    %5460 = vmatpush1.msra.mxu0 0.0
    %5461 = vmatprep.subr.mxu0 0.0
    %5462 = vmatpush1.msra.mxu0 0.0
    %5463 = vmatprep.subr.mxu0 0.0
    %5464 = vmatpush1.msra.mxu0 0.0
    %5465 = vmatprep.subr.mxu0 0.0
    %5466 = vmatpush1.msra.mxu0 0.0
    %5467 = vmatprep.subr.mxu0 0.0
    %5468 = vmatpush1.msra.mxu0 0.0
    %5469 = vmatprep.subr.mxu0 0.0
    %5470 = vmatpush1.msra.mxu0 0.0
    %5471 = vmatprep.subr.mxu0 0.0
    %5472 = vmatpush1.msra.mxu0 0.0
    %5473 = vmatprep.subr.mxu0 0.0
    %5474 = vmatpush1.msra.mxu0 0.0
    %5475 = vmatprep.subr.mxu0 0.0
    %5476 = vmatpush1.msra.mxu0 0.0
    %5477 = vmatprep.subr.mxu0 0.0
    %5478 = vmatpush1.msra.mxu0 0.0
    %5479 = vmatprep.subr.mxu0 0.0
    %5480 = vmatpush1.msra.mxu0 0.0
    %5481 = vmatprep.subr.mxu0 0.0
    %5482 = vmatpush1.msra.mxu0 0.0
    %5483 = vmatprep.subr.mxu0 0.0
    %5484 = vmatpush1.msra.mxu0 0.0
    %5485 = vmatprep.subr.mxu0 0.0
    %5486 = vmatpush1.msra.mxu0 0.0
    %5487 = vmatprep.subr.mxu0 0.0
    %5488 = vmatpush1.msra.mxu0 0.0
    %5489 = vmatprep.mubr.f32.mxu0 0.0
    %5490 = vmatmul.mubr.f32.gmra.mrb[0].mxu0 %v5126
    %v5491 = vpop.f32.mrb[0].mxu0
    %v5492 = vadd.f32 0.0, %v5491
    %v5493 = vpop.f32.mrb[0].mxu0
    %v5494 = vadd.f32 0.0, %v5493
    %5495 = vdwg.mxu0
    %v5496 = vadd.f32 %v5350, %v5421
    %v5497 = vadd.f32 %v5351, %v5423
    %v5498 = vadd.f32 %v5352, %v5492
    %v5499 = vadd.f32 %v5353, %v5494
    %v5500 = vadd.f32 %v5496, %v3069
    %v5501 = vadd.f32 %v5497, %v3073
    %v5502 = vadd.f32 %v5498, %v3077
    %v5503 = vadd.f32 %v5499, %v3081
    %v5504 = vxor.u32 %v5500, 2147483648
    %v5505 = vmul.f32 %v5504, 1.442695
    %v5506 = vpow.pop %v5505
    %v5507 = vadd.f32 %v5506, 1.0
    %v5508 = vrcp.pop %v5507
    %v5509 = vmul.f32 1.0, %v5508
    %v5510 = vxor.u32 %v5501, 2147483648
    %v5511 = vmul.f32 %v5510, 1.442695
    %v5512 = vpow.pop %v5511
    %v5513 = vadd.f32 %v5512, 1.0
    %v5514 = vrcp.pop %v5513
    %v5515 = vmul.f32 1.0, %v5514
    %v5516 = vtanh.pop %v5502
    %v5517 = vxor.u32 %v5503, 2147483648
    %v5518 = vmul.f32 %v5517, 1.442695
    %v5519 = vpow.pop %v5518
    %v5520 = vadd.f32 %v5519, 1.0
    %v5521 = vrcp.pop %v5520
    %v5522 = vmul.f32 1.0, %v5521
    %v5523 = vmul.f32 %v5515, %v5124
    %v5524 = vmul.f32 %v5509, %v5516
    %v5525 = vadd.f32 %v5523, %v5524
    %v5526 = vtanh.pop %v5525
    %v5527 = vmul.f32 %v5522, %v5526
    %5528 = vmatprep.subr.mxu0 0.0
    %5529 = vmatpush1.msra.mxu0 %v255
    %5530 = vmatprep.subr.mxu0 0.0
    %5531 = vmatpush1.msra.mxu0 %v256
    %5532 = vmatprep.subr.mxu0 0.0
    %5533 = vmatpush1.msra.mxu0 %v257
    %5534 = vmatprep.subr.mxu0 0.0
    %5535 = vmatpush1.msra.mxu0 %v258
    %5536 = vmatprep.subr.mxu0 0.0
    %5537 = vmatpush1.msra.mxu0 %v259
    %5538 = vmatprep.subr.mxu0 0.0
    %5539 = vmatpush1.msra.mxu0 %v260
    %5540 = vmatprep.subr.mxu0 0.0
    %5541 = vmatpush1.msra.mxu0 %v261
    %5542 = vmatprep.subr.mxu0 0.0
    %5543 = vmatpush1.msra.mxu0 %v262
    %5544 = vmatprep.subr.mxu0 0.0
    %5545 = vmatpush1.msra.mxu0 %v263
    %5546 = vmatprep.subr.mxu0 0.0
    %5547 = vmatpush1.msra.mxu0 %v264
    %5548 = vmatprep.subr.mxu0 0.0
    %5549 = vmatpush1.msra.mxu0 %v265
    %5550 = vmatprep.subr.mxu0 0.0
    %5551 = vmatpush1.msra.mxu0 %v266
    %5552 = vmatprep.subr.mxu0 0.0
    %5553 = vmatpush1.msra.mxu0 %v267
    %5554 = vmatprep.subr.mxu0 0.0
    %5555 = vmatpush1.msra.mxu0 %v268
    %5556 = vmatprep.subr.mxu0 0.0
    %5557 = vmatpush1.msra.mxu0 %v269
    %5558 = vmatprep.subr.mxu0 0.0
    %5559 = vmatpush1.msra.mxu0 %v270
    %5560 = vmatprep.subr.mxu0 0.0
    %5561 = vmatpush1.msra.mxu0 0.0
    %5562 = vmatprep.subr.mxu0 0.0
    %5563 = vmatpush1.msra.mxu0 0.0
    %5564 = vmatprep.subr.mxu0 0.0
    %5565 = vmatpush1.msra.mxu0 0.0
    %5566 = vmatprep.subr.mxu0 0.0
    %5567 = vmatpush1.msra.mxu0 0.0
    %5568 = vmatprep.subr.mxu0 0.0
    %5569 = vmatpush1.msra.mxu0 0.0
    %5570 = vmatprep.subr.mxu0 0.0
    %5571 = vmatpush1.msra.mxu0 0.0
    %5572 = vmatprep.subr.mxu0 0.0
    %5573 = vmatpush1.msra.mxu0 0.0
    %5574 = vmatprep.subr.mxu0 0.0
    %5575 = vmatpush1.msra.mxu0 0.0
    %5576 = vmatprep.subr.mxu0 0.0
    %5577 = vmatpush1.msra.mxu0 0.0
    %5578 = vmatprep.subr.mxu0 0.0
    %5579 = vmatpush1.msra.mxu0 0.0
    %5580 = vmatprep.subr.mxu0 0.0
    %5581 = vmatpush1.msra.mxu0 0.0
    %5582 = vmatprep.subr.mxu0 0.0
    %5583 = vmatpush1.msra.mxu0 0.0
    %5584 = vmatprep.subr.mxu0 0.0
    %5585 = vmatpush1.msra.mxu0 0.0
    %5586 = vmatprep.subr.mxu0 0.0
    %5587 = vmatpush1.msra.mxu0 0.0
    %5588 = vmatprep.subr.mxu0 0.0
    %5589 = vmatpush1.msra.mxu0 0.0
    %5590 = vmatprep.subr.mxu0 0.0
    %5591 = vmatpush1.msra.mxu0 0.0
    %5592 = vmatprep.mubr.f32.mxu0 0.0
    %5593 = vmatmul.mubr.f32.gmra.mrb[0].mxu0 %v5527
    %v5594 = vpop.f32.mrb[0].mxu0
    %v5595 = vadd.f32 %v3118, %v5594
    %v5596 = vpop.f32.mrb[0].mxu0
    %5597 = vdwg.mxu0
    %v5598 = vld [vmem:[%s2707] sm:$0xff]
    %v5599 = vld [vmem:[%s2707 + $0x8] sm:$0xff]
    %v5600 = vld [vmem:[%s2707 + $0x10] sm:$0xff]
    %v5601 = vld [vmem:[%s2707 + $0x18] sm:$0xff]
    %v5602 = vld [vmem:[%s2707 + $0x20] sm:$0xff]
    %v5603 = vld [vmem:[%s2707 + $0x28] sm:$0xff]
    %v5604 = vld [vmem:[%s2707 + $0x30] sm:$0xff]
    %v5605 = vld [vmem:[%s2707 + $0x38] sm:$0xff]
    %v5606 = vadd.f32 %v5598, %v5595
    %v5607 = vadd.f32 %v5599, %v5595
    %v5608 = vadd.f32 %v5600, %v5595
    %v5609 = vadd.f32 %v5601, %v5595
    %v5610 = vadd.f32 %v5602, %v5595
    %v5611 = vadd.f32 %v5603, %v5595
    %v5612 = vadd.f32 %v5604, %v5595
    %v5613 = vadd.f32 %v5605, %v5595
    %v5614 = vtanh.pop %v5606
    %v5615 = vtanh.pop %v5607
    %v5616 = vtanh.pop %v5608
    %v5617 = vtanh.pop %v5609
    %v5618 = vtanh.pop %v5610
    %v5619 = vtanh.pop %v5611
    %v5620 = vtanh.pop %v5612
    %v5621 = vtanh.pop %v5613
    %v5622 = vmul.f32 %v5614, %v3218
    %v5623 = vmul.f32 %v5615, %v3218
    %v5624 = vmul.f32 %v5616, %v3218
    %v5625 = vmul.f32 %v5617, %v3218
    %v5626 = vmul.f32 %v5618, %v3218
    %v5627 = vmul.f32 %v5619, %v3218
    %v5628 = vmul.f32 %v5620, %v3218
    %v5629 = vmul.f32 %v5621, %v3218
    %5630 = vadd.xlane.f32.xlu0 %v5622
    %v5631 = vpop.xlane.xlu0 %5630
    %5632 = vadd.xlane.f32.xlu0 %v5623
    %v5633 = vpop.xlane.xlu0 %5632
    %5634 = vadd.xlane.f32.xlu0 %v5624
    %v5635 = vpop.xlane.xlu0 %5634
    %5636 = vadd.xlane.f32.xlu0 %v5625
    %v5637 = vpop.xlane.xlu0 %5636
    %5638 = vadd.xlane.f32.xlu0 %v5626
    %v5639 = vpop.xlane.xlu0 %5638
    %5640 = vadd.xlane.f32.xlu0 %v5627
    %v5641 = vpop.xlane.xlu0 %5640
    %5642 = vadd.xlane.f32.xlu0 %v5628
    %v5643 = vpop.xlane.xlu0 %5642
    %5644 = vadd.xlane.f32.xlu0 %v5629
    %v5645 = vpop.xlane.xlu0 %5644
    %v5646 = vmul.f32 %v5631, %v2873
    %v5647 = vmul.f32 %v5633, %v2874
    %v5648 = vmul.f32 %v5635, %v2875
    %v5649 = vmul.f32 %v5637, %v2876
    %v5650 = vmul.f32 %v5639, %v2877
    %v5651 = vmul.f32 %v5641, %v2878
    %v5652 = vmul.f32 %v5643, %v2879
    %v5653 = vmul.f32 %v5645, %v2880
    %5654 = vmatprep.subr.mxu0 0.0
    %5655 = vmatpush1.msra.mxu0 %v5646
    %5656 = vmatprep.subr.mxu0 0.0
    %5657 = vmatpush1.msra.mxu0 %v5647
    %5658 = vmatprep.subr.mxu0 0.0
    %5659 = vmatpush1.msra.mxu0 %v5648
    %5660 = vmatprep.subr.mxu0 0.0
    %5661 = vmatpush1.msra.mxu0 %v5649
    %5662 = vmatprep.subr.mxu0 0.0
    %5663 = vmatpush1.msra.mxu0 %v5650
    %5664 = vmatprep.subr.mxu0 0.0
    %5665 = vmatpush1.msra.mxu0 %v5651
    %5666 = vmatprep.subr.mxu0 0.0
    %5667 = vmatpush1.msra.mxu0 %v5652
    %5668 = vmatprep.subr.mxu0 0.0
    %5669 = vmatpush1.msra.mxu0 %v5653
    %5670 = vmatprep.subr.mxu0 0.0
    %5671 = vmatpush1.msra.mxu0 0.0
    %5672 = vmatprep.subr.mxu0 0.0
    %5673 = vmatpush1.msra.mxu0 0.0
    %5674 = vmatprep.subr.mxu0 0.0
    %5675 = vmatpush1.msra.mxu0 0.0
    %5676 = vmatprep.subr.mxu0 0.0
    %5677 = vmatpush1.msra.mxu0 0.0
    %5678 = vmatprep.subr.mxu0 0.0
    %5679 = vmatpush1.msra.mxu0 0.0
    %5680 = vmatprep.subr.mxu0 0.0
    %5681 = vmatpush1.msra.mxu0 0.0
    %5682 = vmatprep.subr.mxu0 0.0
    %5683 = vmatpush1.msra.mxu0 0.0
    %5684 = vmatprep.subr.mxu0 0.0
    %5685 = vmatpush1.msra.mxu0 0.0
    %5686 = vmatprep.subr.mxu0 0.0
    %5687 = vmatpush1.msra.mxu0 0.0
    %5688 = vmatprep.subr.mxu0 0.0
    %5689 = vmatpush1.msra.mxu0 0.0
    %5690 = vmatprep.subr.mxu0 0.0
    %5691 = vmatpush1.msra.mxu0 0.0
    %5692 = vmatprep.subr.mxu0 0.0
    %5693 = vmatpush1.msra.mxu0 0.0
    %5694 = vmatprep.subr.mxu0 0.0
    %5695 = vmatpush1.msra.mxu0 0.0
    %5696 = vmatprep.subr.mxu0 0.0
    %5697 = vmatpush1.msra.mxu0 0.0
    %5698 = vmatprep.subr.mxu0 0.0
    %5699 = vmatpush1.msra.mxu0 0.0
    %5700 = vmatprep.subr.mxu0 0.0
    %5701 = vmatpush1.msra.mxu0 0.0
    %5702 = vmatprep.subr.mxu0 0.0
    %5703 = vmatpush1.msra.mxu0 0.0
    %5704 = vmatprep.subr.mxu0 0.0
    %5705 = vmatpush1.msra.mxu0 0.0
    %5706 = vmatprep.subr.mxu0 0.0
    %5707 = vmatpush1.msra.mxu0 0.0
    %5708 = vmatprep.subr.mxu0 0.0
    %5709 = vmatpush1.msra.mxu0 0.0
    %5710 = vmatprep.subr.mxu0 0.0
    %5711 = vmatpush1.msra.mxu0 0.0
    %5712 = vmatprep.subr.mxu0 0.0
    %5713 = vmatpush1.msra.mxu0 0.0
    %5714 = vmatprep.subr.mxu0 0.0
    %5715 = vmatpush1.msra.mxu0 0.0
    %5716 = vmatprep.subr.mxu0 0.0
    %5717 = vmatpush1.msra.mxu0 0.0
    %5718 = vmatprep.mubr.f32.mxu0 0.0
    %5719 = vmatmul.mubr.f32.gmra.mrb[0].mxu0 %v3254
    %v5720 = vpop.f32.mrb[0].mxu0
    %v5721 = vadd.f32 0.0, %v5720
    %v5722 = vpop.f32.mrb[0].mxu0
    %5723 = vdwg.mxu0
    %v5724 = vsub.f32 %v5721, 1000.0
    %v5725 = vsel %vm2835, %v5721, %v5724
    %v5726 = vsel %vm3328, %v5725, -inf
    %5727 = vmax.xlane.f32.xlu0 %v5726
    %v5728 = vpop.xlane.xlu0 %5727
    %v5729 = vsub.f32 %v5725, %v5728
    %v5730 = vmul.f32 %v5729, 1.442695
    %v5731 = vpow.pop %v5730
    %v5732 = vsel %vm3328, %v5731, 0.0
    %5733 = vadd.xlane.f32.xlu0 %v5732
    %v5734 = vpop.xlane.xlu0 %5733
    %v5735 = vrcp.pop %v5734
    %v5736 = vmul.f32 %v5731, %v5735
    %s5737 = scalar_lea.vmem [#allocation13], 48
    %5738 = vst.msk [vmem:[%s5737] sm:$0xff] %vm3328, %v5736
    %vm5739 = vcmp.eq.f32.partialorder %v5725, %v5728
    %v5740 = vsel %vm5739, %v2832, 8.0
    %v5741 = vsel %vm3328, %v5740, inf
    %5742 = vmin.xlane.f32.xlu0 %v5741
    %v5743 = vpop.xlane.xlu0 %5742
    %vm5744 = vcmp.eq.f32.partialorder %v2832, %v5743
    %v5745 = vsel %vm5744, 1, 0
    %v5746 = vcvt.s32.f32 %v5745
    %v5747 = vmul.f32 %v5746, %v2834
    %v5748 = vsel %vm3328, %v5747, 0.0
    %5749 = vadd.xlane.f32.xlu0 %v5748
    %v5750 = vpop.xlane.xlu0 %5749
    %v5751 = vmul.f32 %v5750, %v2898
    %v5752 = vmul.f32 %v5750, %v2902
    %v5753 = vmul.f32 %v5750, %v2906
    %v5754 = vmul.f32 %v5750, %v2910
    %5755 = vmatprep.subr.mxu0 %v174
    %5756 = vmatpush1.msra.mxu0 %v173
    %5757 = vmatprep.subr.mxu0 %v178
    %5758 = vmatpush1.msra.mxu0 %v177
    %5759 = vmatprep.subr.mxu0 %v182
    %5760 = vmatpush1.msra.mxu0 %v181
    %5761 = vmatprep.subr.mxu0 %v186
    %5762 = vmatpush1.msra.mxu0 %v185
    %5763 = vmatprep.subr.mxu0 %v190
    %5764 = vmatpush1.msra.mxu0 %v189
    %5765 = vmatprep.subr.mxu0 %v194
    %5766 = vmatpush1.msra.mxu0 %v193
    %5767 = vmatprep.subr.mxu0 %v198
    %5768 = vmatpush1.msra.mxu0 %v197
    %5769 = vmatprep.subr.mxu0 %v202
    %5770 = vmatpush1.msra.mxu0 %v201
    %5771 = vmatprep.subr.mxu0 %v206
    %5772 = vmatpush1.msra.mxu0 %v205
    %5773 = vmatprep.subr.mxu0 %v210
    %5774 = vmatpush1.msra.mxu0 %v209
    %5775 = vmatprep.subr.mxu0 %v214
    %5776 = vmatpush1.msra.mxu0 %v213
    %5777 = vmatprep.subr.mxu0 %v218
    %5778 = vmatpush1.msra.mxu0 %v217
    %5779 = vmatprep.subr.mxu0 %v222
    %5780 = vmatpush1.msra.mxu0 %v221
    %5781 = vmatprep.subr.mxu0 %v226
    %5782 = vmatpush1.msra.mxu0 %v225
    %5783 = vmatprep.subr.mxu0 %v230
    %5784 = vmatpush1.msra.mxu0 %v229
    %5785 = vmatprep.subr.mxu0 %v234
    %5786 = vmatpush1.msra.mxu0 %v233
    %5787 = vmatprep.subr.mxu0 0.0
    %5788 = vmatpush1.msra.mxu0 0.0
    %5789 = vmatprep.subr.mxu0 0.0
    %5790 = vmatpush1.msra.mxu0 0.0
    %5791 = vmatprep.subr.mxu0 0.0
    %5792 = vmatpush1.msra.mxu0 0.0
    %5793 = vmatprep.subr.mxu0 0.0
    %5794 = vmatpush1.msra.mxu0 0.0
    %5795 = vmatprep.subr.mxu0 0.0
    %5796 = vmatpush1.msra.mxu0 0.0
    %5797 = vmatprep.subr.mxu0 0.0
    %5798 = vmatpush1.msra.mxu0 0.0
    %5799 = vmatprep.subr.mxu0 0.0
    %5800 = vmatpush1.msra.mxu0 0.0
    %5801 = vmatprep.subr.mxu0 0.0
    %5802 = vmatpush1.msra.mxu0 0.0
    %5803 = vmatprep.subr.mxu0 0.0
    %5804 = vmatpush1.msra.mxu0 0.0
    %5805 = vmatprep.subr.mxu0 0.0
    %5806 = vmatpush1.msra.mxu0 0.0
    %5807 = vmatprep.subr.mxu0 0.0
    %5808 = vmatpush1.msra.mxu0 0.0
    %5809 = vmatprep.subr.mxu0 0.0
    %5810 = vmatpush1.msra.mxu0 0.0
    %5811 = vmatprep.subr.mxu0 0.0
    %5812 = vmatpush1.msra.mxu0 0.0
    %5813 = vmatprep.subr.mxu0 0.0
    %5814 = vmatpush1.msra.mxu0 0.0
    %5815 = vmatprep.subr.mxu0 0.0
    %5816 = vmatpush1.msra.mxu0 0.0
    %5817 = vmatprep.subr.mxu0 0.0
    %5818 = vmatpush1.msra.mxu0 0.0
    %5819 = vmatprep.mubr.f32.mxu0 0.0
    %5820 = vmatmul.mubr.f32.gmra.mrb[0].mxu0 %v5527
    %v5821 = vpop.f32.mrb[0].mxu0
    %v5822 = vadd.f32 0.0, %v5821
    %v5823 = vpop.f32.mrb[0].mxu0
    %v5824 = vadd.f32 0.0, %v5823
    %5825 = vdwg.mxu0
    %5826 = vmatprep.subr.mxu0 %v176
    %5827 = vmatpush1.msra.mxu0 %v175
    %5828 = vmatprep.subr.mxu0 %v180
    %5829 = vmatpush1.msra.mxu0 %v179
    %5830 = vmatprep.subr.mxu0 %v184
    %5831 = vmatpush1.msra.mxu0 %v183
    %5832 = vmatprep.subr.mxu0 %v188
    %5833 = vmatpush1.msra.mxu0 %v187
    %5834 = vmatprep.subr.mxu0 %v192
    %5835 = vmatpush1.msra.mxu0 %v191
    %5836 = vmatprep.subr.mxu0 %v196
    %5837 = vmatpush1.msra.mxu0 %v195
    %5838 = vmatprep.subr.mxu0 %v200
    %5839 = vmatpush1.msra.mxu0 %v199
    %5840 = vmatprep.subr.mxu0 %v204
    %5841 = vmatpush1.msra.mxu0 %v203
    %5842 = vmatprep.subr.mxu0 %v208
    %5843 = vmatpush1.msra.mxu0 %v207
    %5844 = vmatprep.subr.mxu0 %v212
    %5845 = vmatpush1.msra.mxu0 %v211
    %5846 = vmatprep.subr.mxu0 %v216
    %5847 = vmatpush1.msra.mxu0 %v215
    %5848 = vmatprep.subr.mxu0 %v220
    %5849 = vmatpush1.msra.mxu0 %v219
    %5850 = vmatprep.subr.mxu0 %v224
    %5851 = vmatpush1.msra.mxu0 %v223
    %5852 = vmatprep.subr.mxu0 %v228
    %5853 = vmatpush1.msra.mxu0 %v227
    %5854 = vmatprep.subr.mxu0 %v232
    %5855 = vmatpush1.msra.mxu0 %v231
    %5856 = vmatprep.subr.mxu0 %v236
    %5857 = vmatpush1.msra.mxu0 %v235
    %5858 = vmatprep.subr.mxu0 0.0
    %5859 = vmatpush1.msra.mxu0 0.0
    %5860 = vmatprep.subr.mxu0 0.0
    %5861 = vmatpush1.msra.mxu0 0.0
    %5862 = vmatprep.subr.mxu0 0.0
    %5863 = vmatpush1.msra.mxu0 0.0
    %5864 = vmatprep.subr.mxu0 0.0
    %5865 = vmatpush1.msra.mxu0 0.0
    %5866 = vmatprep.subr.mxu0 0.0
    %5867 = vmatpush1.msra.mxu0 0.0
    %5868 = vmatprep.subr.mxu0 0.0
    %5869 = vmatpush1.msra.mxu0 0.0
    %5870 = vmatprep.subr.mxu0 0.0
    %5871 = vmatpush1.msra.mxu0 0.0
    %5872 = vmatprep.subr.mxu0 0.0
    %5873 = vmatpush1.msra.mxu0 0.0
    %5874 = vmatprep.subr.mxu0 0.0
    %5875 = vmatpush1.msra.mxu0 0.0
    %5876 = vmatprep.subr.mxu0 0.0
    %5877 = vmatpush1.msra.mxu0 0.0
    %5878 = vmatprep.subr.mxu0 0.0
    %5879 = vmatpush1.msra.mxu0 0.0
    %5880 = vmatprep.subr.mxu0 0.0
    %5881 = vmatpush1.msra.mxu0 0.0
    %5882 = vmatprep.subr.mxu0 0.0
    %5883 = vmatpush1.msra.mxu0 0.0
    %5884 = vmatprep.subr.mxu0 0.0
    %5885 = vmatpush1.msra.mxu0 0.0
    %5886 = vmatprep.subr.mxu0 0.0
    %5887 = vmatpush1.msra.mxu0 0.0
    %5888 = vmatprep.subr.mxu0 0.0
    %5889 = vmatpush1.msra.mxu0 0.0
    %5890 = vmatprep.mubr.f32.mxu0 0.0
    %5891 = vmatmul.mubr.f32.gmra.mrb[0].mxu0 %v5527
    %v5892 = vpop.f32.mrb[0].mxu0
    %v5893 = vadd.f32 0.0, %v5892
    %v5894 = vpop.f32.mrb[0].mxu0
    %v5895 = vadd.f32 0.0, %v5894
    %5896 = vdwg.mxu0
    %v5897 = vadd.f32 %v5751, %v5822
    %v5898 = vadd.f32 %v5752, %v5824
    %v5899 = vadd.f32 %v5753, %v5893
    %v5900 = vadd.f32 %v5754, %v5895
    %v5901 = vadd.f32 %v5897, %v3069
    %v5902 = vadd.f32 %v5898, %v3073
    %v5903 = vadd.f32 %v5899, %v3077
    %v5904 = vadd.f32 %v5900, %v3081
    %v5905 = vxor.u32 %v5901, 2147483648
    %v5906 = vmul.f32 %v5905, 1.442695
    %v5907 = vpow.pop %v5906
    %v5908 = vadd.f32 %v5907, 1.0
    %v5909 = vrcp.pop %v5908
    %v5910 = vmul.f32 1.0, %v5909
    %v5911 = vxor.u32 %v5902, 2147483648
    %v5912 = vmul.f32 %v5911, 1.442695
    %v5913 = vpow.pop %v5912
    %v5914 = vadd.f32 %v5913, 1.0
    %v5915 = vrcp.pop %v5914
    %v5916 = vmul.f32 1.0, %v5915
    %v5917 = vtanh.pop %v5903
    %v5918 = vxor.u32 %v5904, 2147483648
    %v5919 = vmul.f32 %v5918, 1.442695
    %v5920 = vpow.pop %v5919
    %v5921 = vadd.f32 %v5920, 1.0
    %v5922 = vrcp.pop %v5921
    %v5923 = vmul.f32 1.0, %v5922
    %v5924 = vmul.f32 %v5916, %v5525
    %v5925 = vmul.f32 %v5910, %v5917
    %v5926 = vadd.f32 %v5924, %v5925
    %v5927 = vtanh.pop %v5926
    %v5928 = vmul.f32 %v5923, %v5927
    %5929 = vmatprep.subr.mxu0 0.0
    %5930 = vmatpush1.msra.mxu0 %v255
    %5931 = vmatprep.subr.mxu0 0.0
    %5932 = vmatpush1.msra.mxu0 %v256
    %5933 = vmatprep.subr.mxu0 0.0
    %5934 = vmatpush1.msra.mxu0 %v257
    %5935 = vmatprep.subr.mxu0 0.0
    %5936 = vmatpush1.msra.mxu0 %v258
    %5937 = vmatprep.subr.mxu0 0.0
    %5938 = vmatpush1.msra.mxu0 %v259
    %5939 = vmatprep.subr.mxu0 0.0
    %5940 = vmatpush1.msra.mxu0 %v260
    %5941 = vmatprep.subr.mxu0 0.0
    %5942 = vmatpush1.msra.mxu0 %v261
    %5943 = vmatprep.subr.mxu0 0.0
    %5944 = vmatpush1.msra.mxu0 %v262
    %5945 = vmatprep.subr.mxu0 0.0
    %5946 = vmatpush1.msra.mxu0 %v263
    %5947 = vmatprep.subr.mxu0 0.0
    %5948 = vmatpush1.msra.mxu0 %v264
    %5949 = vmatprep.subr.mxu0 0.0
    %5950 = vmatpush1.msra.mxu0 %v265
    %5951 = vmatprep.subr.mxu0 0.0
    %5952 = vmatpush1.msra.mxu0 %v266
    %5953 = vmatprep.subr.mxu0 0.0
    %5954 = vmatpush1.msra.mxu0 %v267
    %5955 = vmatprep.subr.mxu0 0.0
    %5956 = vmatpush1.msra.mxu0 %v268
    %5957 = vmatprep.subr.mxu0 0.0
    %5958 = vmatpush1.msra.mxu0 %v269
    %5959 = vmatprep.subr.mxu0 0.0
    %5960 = vmatpush1.msra.mxu0 %v270
    %5961 = vmatprep.subr.mxu0 0.0
    %5962 = vmatpush1.msra.mxu0 0.0
    %5963 = vmatprep.subr.mxu0 0.0
    %5964 = vmatpush1.msra.mxu0 0.0
    %5965 = vmatprep.subr.mxu0 0.0
    %5966 = vmatpush1.msra.mxu0 0.0
    %5967 = vmatprep.subr.mxu0 0.0
    %5968 = vmatpush1.msra.mxu0 0.0
    %5969 = vmatprep.subr.mxu0 0.0
    %5970 = vmatpush1.msra.mxu0 0.0
    %5971 = vmatprep.subr.mxu0 0.0
    %5972 = vmatpush1.msra.mxu0 0.0
    %5973 = vmatprep.subr.mxu0 0.0
    %5974 = vmatpush1.msra.mxu0 0.0
    %5975 = vmatprep.subr.mxu0 0.0
    %5976 = vmatpush1.msra.mxu0 0.0
    %5977 = vmatprep.subr.mxu0 0.0
    %5978 = vmatpush1.msra.mxu0 0.0
    %5979 = vmatprep.subr.mxu0 0.0
    %5980 = vmatpush1.msra.mxu0 0.0
    %5981 = vmatprep.subr.mxu0 0.0
    %5982 = vmatpush1.msra.mxu0 0.0
    %5983 = vmatprep.subr.mxu0 0.0
    %5984 = vmatpush1.msra.mxu0 0.0
    %5985 = vmatprep.subr.mxu0 0.0
    %5986 = vmatpush1.msra.mxu0 0.0
    %5987 = vmatprep.subr.mxu0 0.0
    %5988 = vmatpush1.msra.mxu0 0.0
    %5989 = vmatprep.subr.mxu0 0.0
    %5990 = vmatpush1.msra.mxu0 0.0
    %5991 = vmatprep.subr.mxu0 0.0
    %5992 = vmatpush1.msra.mxu0 0.0
    %5993 = vmatprep.mubr.f32.mxu0 0.0
    %5994 = vmatmul.mubr.f32.gmra.mrb[0].mxu0 %v5928
    %v5995 = vpop.f32.mrb[0].mxu0
    %v5996 = vadd.f32 %v3118, %v5995
    %v5997 = vpop.f32.mrb[0].mxu0
    %5998 = vdwg.mxu0
    %v5999 = vld [vmem:[%s2821] sm:$0xff]
    %v6000 = vld [vmem:[%s2821 + $0x8] sm:$0xff]
    %v6001 = vld [vmem:[%s2821 + $0x10] sm:$0xff]
    %v6002 = vld [vmem:[%s2821 + $0x18] sm:$0xff]
    %v6003 = vld [vmem:[%s2821 + $0x20] sm:$0xff]
    %v6004 = vld [vmem:[%s2821 + $0x28] sm:$0xff]
    %v6005 = vld [vmem:[%s2821 + $0x30] sm:$0xff]
    %v6006 = vld [vmem:[%s2821 + $0x38] sm:$0xff]
    %v6007 = vadd.f32 %v5999, %v5996
    %v6008 = vadd.f32 %v6000, %v5996
    %v6009 = vadd.f32 %v6001, %v5996
    %v6010 = vadd.f32 %v6002, %v5996
    %v6011 = vadd.f32 %v6003, %v5996
    %v6012 = vadd.f32 %v6004, %v5996
    %v6013 = vadd.f32 %v6005, %v5996
    %v6014 = vadd.f32 %v6006, %v5996
    %v6015 = vtanh.pop %v6007
    %v6016 = vtanh.pop %v6008
    %v6017 = vtanh.pop %v6009
    %v6018 = vtanh.pop %v6010
    %v6019 = vtanh.pop %v6011
    %v6020 = vtanh.pop %v6012
    %v6021 = vtanh.pop %v6013
    %v6022 = vtanh.pop %v6014
    %v6023 = vmul.f32 %v6015, %v3218
    %v6024 = vmul.f32 %v6016, %v3218
    %v6025 = vmul.f32 %v6017, %v3218
    %v6026 = vmul.f32 %v6018, %v3218
    %v6027 = vmul.f32 %v6019, %v3218
    %v6028 = vmul.f32 %v6020, %v3218
    %v6029 = vmul.f32 %v6021, %v3218
    %v6030 = vmul.f32 %v6022, %v3218
    %6031 = vadd.xlane.f32.xlu0 %v6023
    %v6032 = vpop.xlane.xlu0 %6031
    %6033 = vadd.xlane.f32.xlu0 %v6024
    %v6034 = vpop.xlane.xlu0 %6033
    %6035 = vadd.xlane.f32.xlu0 %v6025
    %v6036 = vpop.xlane.xlu0 %6035
    %6037 = vadd.xlane.f32.xlu0 %v6026
    %v6038 = vpop.xlane.xlu0 %6037
    %6039 = vadd.xlane.f32.xlu0 %v6027
    %v6040 = vpop.xlane.xlu0 %6039
    %6041 = vadd.xlane.f32.xlu0 %v6028
    %v6042 = vpop.xlane.xlu0 %6041
    %6043 = vadd.xlane.f32.xlu0 %v6029
    %v6044 = vpop.xlane.xlu0 %6043
    %6045 = vadd.xlane.f32.xlu0 %v6030
    %v6046 = vpop.xlane.xlu0 %6045
    %v6047 = vmul.f32 %v6032, %v2873
    %v6048 = vmul.f32 %v6034, %v2874
    %v6049 = vmul.f32 %v6036, %v2875
    %v6050 = vmul.f32 %v6038, %v2876
    %v6051 = vmul.f32 %v6040, %v2877
    %v6052 = vmul.f32 %v6042, %v2878
    %v6053 = vmul.f32 %v6044, %v2879
    %v6054 = vmul.f32 %v6046, %v2880
    %6055 = vmatprep.subr.mxu0 0.0
    %6056 = vmatpush1.msra.mxu0 %v6047
    %6057 = vmatprep.subr.mxu0 0.0
    %6058 = vmatpush1.msra.mxu0 %v6048
    %6059 = vmatprep.subr.mxu0 0.0
    %6060 = vmatpush1.msra.mxu0 %v6049
    %6061 = vmatprep.subr.mxu0 0.0
    %6062 = vmatpush1.msra.mxu0 %v6050
    %6063 = vmatprep.subr.mxu0 0.0
    %6064 = vmatpush1.msra.mxu0 %v6051
    %6065 = vmatprep.subr.mxu0 0.0
    %6066 = vmatpush1.msra.mxu0 %v6052
    %6067 = vmatprep.subr.mxu0 0.0
    %6068 = vmatpush1.msra.mxu0 %v6053
    %6069 = vmatprep.subr.mxu0 0.0
    %6070 = vmatpush1.msra.mxu0 %v6054
    %6071 = vmatprep.subr.mxu0 0.0
    %6072 = vmatpush1.msra.mxu0 0.0
    %6073 = vmatprep.subr.mxu0 0.0
    %6074 = vmatpush1.msra.mxu0 0.0
    %6075 = vmatprep.subr.mxu0 0.0
    %6076 = vmatpush1.msra.mxu0 0.0
    %6077 = vmatprep.subr.mxu0 0.0
    %6078 = vmatpush1.msra.mxu0 0.0
    %6079 = vmatprep.subr.mxu0 0.0
    %6080 = vmatpush1.msra.mxu0 0.0
    %6081 = vmatprep.subr.mxu0 0.0
    %6082 = vmatpush1.msra.mxu0 0.0
    %6083 = vmatprep.subr.mxu0 0.0
    %6084 = vmatpush1.msra.mxu0 0.0
    %6085 = vmatprep.subr.mxu0 0.0
    %6086 = vmatpush1.msra.mxu0 0.0
    %6087 = vmatprep.subr.mxu0 0.0
    %6088 = vmatpush1.msra.mxu0 0.0
    %6089 = vmatprep.subr.mxu0 0.0
    %6090 = vmatpush1.msra.mxu0 0.0
    %6091 = vmatprep.subr.mxu0 0.0
    %6092 = vmatpush1.msra.mxu0 0.0
    %6093 = vmatprep.subr.mxu0 0.0
    %6094 = vmatpush1.msra.mxu0 0.0
    %6095 = vmatprep.subr.mxu0 0.0
    %6096 = vmatpush1.msra.mxu0 0.0
    %6097 = vmatprep.subr.mxu0 0.0
    %6098 = vmatpush1.msra.mxu0 0.0
    %6099 = vmatprep.subr.mxu0 0.0
    %6100 = vmatpush1.msra.mxu0 0.0
    %6101 = vmatprep.subr.mxu0 0.0
    %6102 = vmatpush1.msra.mxu0 0.0
    %6103 = vmatprep.subr.mxu0 0.0
    %6104 = vmatpush1.msra.mxu0 0.0
    %6105 = vmatprep.subr.mxu0 0.0
    %6106 = vmatpush1.msra.mxu0 0.0
    %6107 = vmatprep.subr.mxu0 0.0
    %6108 = vmatpush1.msra.mxu0 0.0
    %6109 = vmatprep.subr.mxu0 0.0
    %6110 = vmatpush1.msra.mxu0 0.0
    %6111 = vmatprep.subr.mxu0 0.0
    %6112 = vmatpush1.msra.mxu0 0.0
    %6113 = vmatprep.subr.mxu0 0.0
    %6114 = vmatpush1.msra.mxu0 0.0
    %6115 = vmatprep.subr.mxu0 0.0
    %6116 = vmatpush1.msra.mxu0 0.0
    %6117 = vmatprep.subr.mxu0 0.0
    %6118 = vmatpush1.msra.mxu0 0.0
    %6119 = vmatprep.mubr.f32.mxu0 0.0
    %6120 = vmatmul.mubr.f32.gmra.mrb[0].mxu0 %v3254
    %v6121 = vpop.f32.mrb[0].mxu0
    %v6122 = vadd.f32 0.0, %v6121
    %v6123 = vpop.f32.mrb[0].mxu0
    %6124 = vdwg.mxu0
    %v6125 = vsub.f32 %v6122, 1000.0
    %v6126 = vsel %vm2835, %v6122, %v6125
    %v6127 = vsel %vm3328, %v6126, -inf
    %6128 = vmax.xlane.f32.xlu0 %v6127
    %v6129 = vpop.xlane.xlu0 %6128
    %v6130 = vsub.f32 %v6126, %v6129
    %v6131 = vmul.f32 %v6130, 1.442695
    %v6132 = vpow.pop %v6131
    %v6133 = vsel %vm3328, %v6132, 0.0
    %6134 = vadd.xlane.f32.xlu0 %v6133
    %v6135 = vpop.xlane.xlu0 %6134
    %v6136 = vrcp.pop %v6135
    %v6137 = vmul.f32 %v6132, %v6136
    %s6138 = scalar_lea.vmem [#allocation13], 56
    %6139 = vst.msk [vmem:[%s6138] sm:$0xff] %vm3328, %v6137
    // Predicated region
    $region74: #{tpu_custom_call.1} parent=1 // pred_check
      _
    $region75: #{tpu_custom_call.1} parent=1 // pred_check_branch
      %6141 = sbr.rel (0) target = $region77
    $region76: #{tpu_custom_call.1} parent=1 // pred_region
      %s6143 = ssub.s32 1024, 1024
      %6144 = vsyncadd [#allocation7], %s6143
      %s6145 = sshll.u32 [#allocation13], 4
      %s6146 = int_to_ptr.vmem [resolvable:$true] %s6145
      %6151 = dma.vmem_to_hbm [thread:$0]  %s6146, 1024, %s14, [#allocation7], 128, 128, 8
    $region77: #{tpu_custom_call.1} parent=1 // pred_fallthru
      _
    // Predicated region
    $region78: #{tpu_custom_call.1} parent=1 // pred_check
      _
    $region79: #{tpu_custom_call.1} parent=1 // pred_check_branch
      %6153 = sbr.rel (0) target = $region81
    $region80: #{tpu_custom_call.1} parent=1 // pred_region
      %6154 = dma.done [#allocation7], 1024
    $region81: #{tpu_custom_call.1} parent=1 // pred_fallthru
      _
    %6155 = vsyncpa [#allocation6], 1
    %6156 = vsyncpa [#allocation9], 1
    %6157 = vsyncpa [#allocation12], 1
    %6158 = vsyncpa [#allocation7], 1

</llo_original>
